<compile_context>
chip_gen: v5e
topology: v5e:2x2
jax: 0.10.0
libtpu: 0.0.40
codegen_flags: <defaults>
</compile_context>

<pallas_src>
import jax
import jax.numpy as jnp
import numpy as np
from jax import lax
from jax.experimental import pallas as pl
from jax.experimental.pallas import tpu as pltpu

EPS = 1e-5  # PyTorch BatchNorm2d default eps


def _round_up(x, m):
    return (x + m - 1) // m * m


# ----------------------------- fused Pallas kernel ---------------------------
def _make_double_conv_kernel(N, H, W, K1, Cpad):
    Wp, Hp = W + 2, H + 2
    HWp = H * Wp                 # rows computed per image (padded-width rows)
    HpWp = Hp * Wp               # rows in a flattened padded slab
    HW = H * W                   # valid (real-pixel) rows per image
    inv_count = 1.0 / float(N * HW)

    def valid_mask():
        # Row r of an (HWp, Cpad) activation block is output position
        # (h, w') with w' = r mod Wp; only w' < W are real pixels (the last
        # two columns of each Wp-period wrap into the halo).
        r = lax.broadcasted_iota(jnp.int32, (HWp, Cpad), 0)
        return (r % Wp) < W

    def kernel(xkw_ref, w1_ref, w2_ref, prm_ref, o_ref,
               hpre_ref, hpad_ref, stats_ref, ss_ref):
        p = pl.program_id(0)          # phase
        n = pl.program_id(1)          # image
        nt = pl.num_programs(1)

        def update_stats(acc):
            # Masked Chan/Welford merge of this image into running (mean, M2).
            mask = valid_mask()
            s = jnp.sum(jnp.where(mask, acc, 0.0), axis=0, keepdims=True)
            mb = s * (1.0 / float(HW))                      # block mean
            d = jnp.where(mask, acc - mb, 0.0)
            m2b = jnp.sum(d * d, axis=0, keepdims=True)     # block M2
            nf = n.astype(jnp.float32)
            c_mean = 1.0 / (nf + 1.0)                       # nb / ntot
            c_m2 = float(HW) * nf * c_mean                  # na*nb / ntot
            mean = stats_ref[0:1, :]
            m2 = stats_ref[1:2, :]
            delta = mb - mean
            stats_ref[0:1, :] = mean + delta * c_mean
            stats_ref[1:2, :] = m2 + m2b + delta * delta * c_m2

        def finalize(stage):
            mean = stats_ref[0:1, :]
            var = stats_ref[1:2, :] * inv_count             # biased (train-mode BN)
            gamma = prm_ref[2 * stage:2 * stage + 1, :]
            beta = prm_ref[2 * stage + 1:2 * stage + 2, :]
            scale = gamma * lax.rsqrt(var + EPS)
            ss_ref[2 * stage:2 * stage + 1, :] = scale
            ss_ref[2 * stage + 1:2 * stage + 2, :] = beta - mean * scale

        def normalized(stage, rows):
            scale = ss_ref[2 * stage:2 * stage + 1, :]
            shift = ss_ref[2 * stage + 1:2 * stage + 2, :]
            return jnp.maximum(rows.astype(jnp.float32) * scale + shift, 0.0)

        # ---------------- phase 0: conv1 (3 K-fused taps) + BN1 stats ----------
        @pl.when(p == 0)
        def _():
            @pl.when(n == 0)
            def _():
                stats_ref[...] = jnp.zeros_like(stats_ref)

            acc = jnp.zeros((HWp, Cpad), jnp.float32)
            for kh in range(3):
                acc = acc + jnp.dot(xkw_ref[0, pl.ds(kh * Wp, HWp), :],
                                    w1_ref[kh],
                                    preferred_element_type=jnp.float32)
            hpre_ref[n] = acc.astype(jnp.bfloat16)
            update_stats(acc)

            @pl.when(n == nt - 1)
            def _():
                finalize(0)
                stats_ref[...] = jnp.zeros_like(stats_ref)   # reset for stage 2

        # --- phase 1: BN1+ReLU -> single-image padded slab, conv2 + BN2 stats --
        @pl.when(p == 1)
        def _():
            @pl.when(n == 0)
            def _():
                # Zero only the halo rows the masked per-image store never
                # covers (top border + (1,0); bottom border + 8 guard rows).
                hpad_ref[pl.ds(0, Wp + 1), :] = jnp.zeros(
                    (Wp + 1, Cpad), jnp.bfloat16)
                hpad_ref[pl.ds((H + 1) * Wp + 1, Wp + 7), :] = jnp.zeros(
                    (Wp + 7, Cpad), jnp.bfloat16)

            # BN1 (folded FMA) + ReLU; masking the wrap columns to zero also
            # writes the interior halo zeros of the padded slab.
            h1 = jnp.where(valid_mask(), normalized(0, hpre_ref[n]), 0.0)
            hpad_ref[pl.ds(Wp + 1, HWp), :] = h1.astype(jnp.bfloat16)

            acc = jnp.zeros((HWp, Cpad), jnp.float32)
            for kh in range(3):
                # kw taps fused along the contraction dim: K = 3*Cpad = 384.
                lhs = jnp.concatenate(
                    [hpad_ref[pl.ds(kh * Wp + kw, HWp), :] for kw in range(3)],
                    axis=-1)
                acc = acc + jnp.dot(lhs, w2_ref[kh],
                                    preferred_element_type=jnp.float32)
            hpre_ref[n] = acc.astype(jnp.bfloat16)           # reuse scratch
            update_stats(acc)

            @pl.when(n == nt - 1)
            def _():
                finalize(1)

        # -------------- phase 2: BN2 + ReLU -> lane-dense output store ---------
        @pl.when(p == 2)
        def _():
            y = normalized(1, hpre_ref[n])
            o_ref[...] = y.reshape(1, HWp, Cpad)

    return kernel


# --------------------------------- wrapper -----------------------------------
def _fold_weight(w_oihw, cin_pad, cout_pad):
    # OIHW -> (kh, 3*cin_pad, cout_pad) with kw folded into the contraction dim.
    co, ci, _, _ = w_oihw.shape
    w = jnp.transpose(w_oihw, (2, 3, 1, 0))                  # (kh, kw, ci, co)
    w = jnp.pad(w, ((0, 0), (0, 0), (0, cin_pad - ci), (0, cout_pad - co)))
    return w.reshape(3, 3 * cin_pad, cout_pad).astype(jnp.bfloat16)


@jax.jit
def inconv_forward(x_nchw, params):
    # Conv biases b1/b2 are accepted (nn.Conv2d has them) but cancel exactly
    # under train-mode BatchNorm's mean subtraction, so they are dropped.
    w1, b1, g1, bt1, w2, b2, g2, bt2 = params
    del b1, b2
    N, Cin, H, W = x_nchw.shape
    Cout = w1.shape[0]
    Cg = _round_up(Cin, 8)                      # conv1 per-tap channel group
    K1 = 3 * Cg                                 # conv1 contraction (kw folded)
    Cpad = _round_up(max(Cout, 128), 128)       # lane-dense channels
    Hp, Wp = H + 2, W + 2
    HWp, HpWp = H * Wp, Hp * Wp

    # NHWC, zero-padded spatially, kw taps folded into the channel dim so conv1
    # is 3 matmuls with K = 3*Cg (tiny HBM cost: Cin is small for inconv).
    x = jnp.transpose(x_nchw, (0, 2, 3, 1))
    xpad = jnp.pad(x, ((0, 0), (1, 1), (1, 1), (0, Cg - Cin)))
    taps = [xpad,
            jnp.pad(xpad[:, :, 1:, :], ((0, 0), (0, 0), (0, 1), (0, 0))),
            jnp.pad(xpad[:, :, 2:, :], ((0, 0), (0, 0), (0, 2), (0, 0)))]
    xkw = jnp.concatenate(taps, axis=-1).reshape(N, HpWp, K1).astype(jnp.bfloat16)

    w1f = _fold_weight(w1, Cg, Cpad)                         # (3, K1, Cpad)
    w2f = _fold_weight(w2, Cpad, Cpad)                       # (3, 3*Cpad, Cpad)
    prm = jnp.stack([
        jnp.pad(g1, (0, Cpad - Cout)),
        jnp.pad(bt1, (0, Cpad - Cout)),
        jnp.pad(g2, (0, Cpad - Cout)),
        jnp.pad(bt2, (0, Cpad - Cout)),
    ]).astype(jnp.float32)

    kernel = _make_double_conv_kernel(N, H, W, K1, Cpad)

    # VMEM budget (double-buffered input & output blocks + persistent scratch).
    vmem_bytes = (2 * HpWp * K1 * 2                 # xkw block x2
                  + 3 * K1 * Cpad * 2 + 9 * Cpad * Cpad * 2 + 4 * Cpad * 4
                  + N * HWp * Cpad * 2              # hpre (bf16)
                  + (HpWp + 8) * Cpad * 2           # hpad (bf16, 1 image)
                  + 2 * HWp * Cpad * 4              # output block x2
                  + 6 * Cpad * 4)
    vmem_limit = min(max(int(vmem_bytes * 1.5) + (2 << 20), 8 << 20), 48 << 20)

    flops = 2 * N * HWp * (3 * K1 * Cpad + 9 * Cpad * Cpad)
    bytes_accessed = (xkw.size * 2 + w1f.size * 2 + w2f.size * 2
                      + prm.size * 4 + N * HWp * Cpad * 4)

    out = pl.pallas_call(
        kernel,
        out_shape=jax.ShapeDtypeStruct((N, HWp, Cpad), jnp.float32),
        grid_spec=pltpu.PrefetchScalarGridSpec(
            num_scalar_prefetch=0,
            grid=(3, N),                            # (phase, image)
            in_specs=[
                # per-image input tile; pinned after phase 0 (no re-fetch).
                pl.BlockSpec((1, HpWp, K1),
                             lambda p, n: (jnp.where(p == 0, n, N - 1), 0, 0)),
                pl.BlockSpec((3, K1, Cpad), lambda p, n: (0, 0, 0)),
                pl.BlockSpec((3, 3 * Cpad, Cpad), lambda p, n: (0, 0, 0)),
                pl.BlockSpec((4, Cpad), lambda p, n: (0, 0)),
            ],
            # Output written only in phase 2; phases 0-1 keep block 0 resident
            # and untouched (see invariant note at the top of this file).
            out_specs=pl.BlockSpec((1, HWp, Cpad),
                                   lambda p, n: (jnp.where(p == 2, n, 0), 0, 0)),
            scratch_shapes=[
                pltpu.VMEM((N, HWp, Cpad), jnp.bfloat16),     # pre-BN activations
                pltpu.VMEM((HpWp + 8, Cpad), jnp.bfloat16),   # 1-image padded slab
                pltpu.VMEM((2, Cpad), jnp.float32),           # running mean / M2
                pltpu.VMEM((4, Cpad), jnp.float32),           # BN1/BN2 scale,shift
            ],
        ),
        compiler_params=pltpu.CompilerParams(
            dimension_semantics=("arbitrary", "arbitrary"),
            vmem_limit_bytes=vmem_limit,
        ),
        cost_estimate=pl.CostEstimate(
            flops=flops, transcendentals=2 * Cpad, bytes_accessed=bytes_accessed),
    )(xkw, w1f, w2f, prm)

    # Drop the 2 wrap columns per row and the channel padding; back to NCHW.
    out = out.reshape(N, H, Wp, Cpad)[:, :, :W, :Cout]
    return jnp.transpose(out, (0, 3, 1, 2))


# ----------------------------- pure-JAX reference ----------------------------
def _ref_conv_bn_relu(x_nhwc, w_oihw, b, g, beta):
    w = jnp.transpose(w_oihw, (2, 3, 1, 0))                  # HWIO
    y = lax.conv_general_dilated(
        x_nhwc, w, (1, 1), "SAME", dimension_numbers=("NHWC", "HWIO", "NHWC"))
    y = y + b
    mean = jnp.mean(y, axis=(0, 1, 2), keepdims=True)
    var = jnp.mean((y - mean) ** 2, axis=(0, 1, 2), keepdims=True)
    y = (y - mean) * lax.rsqrt(var + EPS) * g + beta
    return jnp.maximum(y, 0.0)


def ref_inconv_forward(x_nchw, params):
    w1, b1, g1, bt1, w2, b2, g2, bt2 = params
    x = jnp.transpose(x_nchw, (0, 2, 3, 1))
    h = _ref_conv_bn_relu(x, w1, b1, g1, bt1)
    h = _ref_conv_bn_relu(h, w2, b2, g2, bt2)
    return jnp.transpose(h, (0, 3, 1, 2))


# ----------------------------------- main -------------------------------------
if __name__ == "__main__":
    key = jax.random.PRNGKey(0)
    ks = jax.random.split(key, 5)

    N, in_ch, out_ch, H, W = 2, 4, 8, 16, 16
    x = jax.random.normal(ks[0], (N, in_ch, H, W), jnp.float32)

    # Conv2d weights in PyTorch OIHW layout; BN gamma/beta at PyTorch defaults.
    w1 = jax.random.normal(ks[1], (out_ch, in_ch, 3, 3), jnp.float32) * 0.1
    b1 = jax.random.normal(ks[2], (out_ch,), jnp.float32) * 0.1
    g1 = jnp.ones((out_ch,), jnp.float32)
    bt1 = jnp.zeros((out_ch,), jnp.float32)
    w2 = jax.random.normal(ks[3], (out_ch, out_ch, 3, 3), jnp.float32) * 0.1
    b2 = jax.random.normal(ks[4], (out_ch,), jnp.float32) * 0.1
    g2 = jnp.ones((out_ch,), jnp.float32)
    bt2 = jnp.zeros((out_ch,), jnp.float32)
    params = (w1, b1, g1, bt1, w2, b2, g2, bt2)

    out = jax.block_until_ready(inconv_forward(x, params))
    ref = ref_inconv_forward(x, params)

    assert out.shape == (N, out_ch, H, W), out.shape
    # bf16 MXU operands + bf16-staged pre-BN activations vs f32 reference.
    np.testing.assert_allclose(np.asarray(out), np.asarray(ref),
                               rtol=4e-2, atol=4e-2)
    print("KERNEL_OK")
</pallas_src>

<mosaic_0001>
module attributes {stable_mosaic.version = 11 : i64} {
  func.func @kernel(%arg0: i32, %arg1: i32, %arg2: memref<1x324x24xbf16, #tpu.memory_space<vmem>>, %arg3: memref<3x24x128xbf16, #tpu.memory_space<vmem>>, %arg4: memref<3x384x128xbf16, #tpu.memory_space<vmem>>, %arg5: memref<4x128xf32, #tpu.memory_space<vmem>>, %arg6: memref<1x288x128xf32, #tpu.memory_space<vmem>>, %arg7: memref<2x288x128xbf16, #tpu.memory_space<vmem>>, %arg8: memref<332x128xbf16, #tpu.memory_space<vmem>>, %arg9: memref<2x128xf32, #tpu.memory_space<vmem>>, %arg10: memref<4x128xf32, #tpu.memory_space<vmem>>) attributes {dimension_semantics = [#tpu.dimension_semantics<arbitrary>, #tpu.dimension_semantics<arbitrary>], iteration_bounds = array<i64: 3, 2>, scalar_prefetch = 0 : i64, scratch_operands = 4 : i64, tpu.core_type = #tpu.core_type<tc>, window_params = [{transform_indices = @transform_0, window_bounds = array<i64: 1, 324, 24>}, {pipeline_mode = #tpu.pipeline_mode<synchronous>, transform_indices = @transform_1, window_bounds = array<i64: 3, 24, 128>}, {pipeline_mode = #tpu.pipeline_mode<synchronous>, transform_indices = @transform_2, window_bounds = array<i64: 3, 384, 128>}, {pipeline_mode = #tpu.pipeline_mode<synchronous>, transform_indices = @transform_3, window_bounds = array<i64: 4, 128>}, {transform_indices = @transform_4, window_bounds = array<i64: 1, 288, 128>}]} {
    %c0_i32 = arith.constant 0 : i32
    %0 = arith.cmpi eq, %arg0, %c0_i32 : i32
    %1 = arith.extui %0 : i1 to i32
    %c0_i32_0 = arith.constant 0 : i32
    %2 = arith.cmpi ne, %1, %c0_i32_0 : i32
    scf.if %2 {
      %c0_i32_3 = arith.constant 0 : i32
      %9 = arith.cmpi eq, %arg1, %c0_i32_3 : i32
      %10 = arith.extui %9 : i1 to i32
      %c0_i32_4 = arith.constant 0 : i32
      %11 = arith.cmpi ne, %10, %c0_i32_4 : i32
      scf.if %11 {
        %cst_46 = arith.constant 0.000000e+00 : f32
        %89 = vector.broadcast %cst_46 : f32 to vector<2x128xf32>
        %c0_47 = arith.constant 0 : index
        %c0_48 = arith.constant 0 : index
        %90 = vector.load %arg9[%c0_47, %c0_48] : memref<2x128xf32, #tpu.memory_space<vmem>>, vector<2x128xf32>
        tpu.vector_store %arg9[%c0_47, %c0_48], %89 {strides = array<i32>} : memref<2x128xf32, #tpu.memory_space<vmem>>, vector<2x128xf32>,
      } else {
      }
      %cst = arith.constant 0.000000e+00 : f32
      %12 = vector.broadcast %cst : f32 to vector<288x128xf32>
      %c0 = arith.constant 0 : index
      %c0_5 = arith.constant 0 : index
      %c0_6 = arith.constant 0 : index
      %13 = vector.load %arg2[%c0, %c0_5, %c0_6] : memref<1x324x24xbf16, #tpu.memory_space<vmem>>, vector<1x288x24xbf16>
      %14 = vector.shape_cast %13 : vector<1x288x24xbf16> to vector<288x24xbf16>
      %c0_7 = arith.constant 0 : index
      %c0_8 = arith.constant 0 : index
      %c0_9 = arith.constant 0 : index
      %15 = vector.load %arg3[%c0_7, %c0_8, %c0_9] : memref<3x24x128xbf16, #tpu.memory_space<vmem>>, vector<1x24x128xbf16>
      %16 = vector.shape_cast %15 : vector<1x24x128xbf16> to vector<24x128xbf16>
      %cst_10 = arith.constant dense<0.000000e+00> : vector<288x128xf32>
      %17 = tpu.matmul %14, %16, %cst_10 {dimension_numbers = #tpu.dot_dimension_numbers<[1], [0], [0], [1], [0, 0, 1, 1], [], []>} : vector<288x24xbf16>, vector<24x128xbf16>, vector<288x128xf32> -> vector<288x128xf32>
      %18 = arith.addf %12, %17 : vector<288x128xf32>
      %c0_11 = arith.constant 0 : index
      %c18 = arith.constant 18 : index
      %c0_12 = arith.constant 0 : index
      %19 = vector.load %arg2[%c0_11, %c18, %c0_12] : memref<1x324x24xbf16, #tpu.memory_space<vmem>>, vector<1x288x24xbf16>
      %20 = vector.shape_cast %19 : vector<1x288x24xbf16> to vector<288x24xbf16>
      %c1 = arith.constant 1 : index
      %c0_13 = arith.constant 0 : index
      %c0_14 = arith.constant 0 : index
      %21 = vector.load %arg3[%c1, %c0_13, %c0_14] : memref<3x24x128xbf16, #tpu.memory_space<vmem>>, vector<1x24x128xbf16>
      %22 = vector.shape_cast %21 : vector<1x24x128xbf16> to vector<24x128xbf16>
      %cst_15 = arith.constant dense<0.000000e+00> : vector<288x128xf32>
      %23 = tpu.matmul %20, %22, %cst_15 {dimension_numbers = #tpu.dot_dimension_numbers<[1], [0], [0], [1], [0, 0, 1, 1], [], []>} : vector<288x24xbf16>, vector<24x128xbf16>, vector<288x128xf32> -> vector<288x128xf32>
      %24 = arith.addf %18, %23 : vector<288x128xf32>
      %c0_16 = arith.constant 0 : index
      %c36 = arith.constant 36 : index
      %c0_17 = arith.constant 0 : index
      %25 = vector.load %arg2[%c0_16, %c36, %c0_17] : memref<1x324x24xbf16, #tpu.memory_space<vmem>>, vector<1x288x24xbf16>
      %26 = vector.shape_cast %25 : vector<1x288x24xbf16> to vector<288x24xbf16>
      %c2 = arith.constant 2 : index
      %c0_18 = arith.constant 0 : index
      %c0_19 = arith.constant 0 : index
      %27 = vector.load %arg3[%c2, %c0_18, %c0_19] : memref<3x24x128xbf16, #tpu.memory_space<vmem>>, vector<1x24x128xbf16>
      %28 = vector.shape_cast %27 : vector<1x24x128xbf16> to vector<24x128xbf16>
      %cst_20 = arith.constant dense<0.000000e+00> : vector<288x128xf32>
      %29 = tpu.matmul %26, %28, %cst_20 {dimension_numbers = #tpu.dot_dimension_numbers<[1], [0], [0], [1], [0, 0, 1, 1], [], []>} : vector<288x24xbf16>, vector<24x128xbf16>, vector<288x128xf32> -> vector<288x128xf32>
      %30 = arith.addf %24, %29 : vector<288x128xf32>
      %31 = arith.truncf %30 : vector<288x128xf32> to vector<288x128xbf16>
      %32 = arith.index_cast %arg1 : i32 to index
      %c0_21 = arith.constant 0 : index
      %c0_22 = arith.constant 0 : index
      %33 = vector.load %arg7[%32, %c0_21, %c0_22] : memref<2x288x128xbf16, #tpu.memory_space<vmem>>, vector<1x288x128xbf16>
      %34 = vector.shape_cast %33 : vector<1x288x128xbf16> to vector<288x128xbf16>
      %35 = vector.shape_cast %31 : vector<288x128xbf16> to vector<1x288x128xbf16>
      tpu.vector_store %arg7[%32, %c0_21, %c0_22], %35 {strides = array<i32>} : memref<2x288x128xbf16, #tpu.memory_space<vmem>>, vector<1x288x128xbf16>,
      %36 = tpu.iota {dimensions = array<i32: 0>} : vector<288x128xi32>
      %c18_i32 = arith.constant 18 : i32
      %c0_i32_23 = arith.constant 0 : i32
      %37 = arith.cmpi eq, %c18_i32, %c0_i32_23 : i32
      %c1_i32_24 = arith.constant 1 : i32
      %38 = arith.select %37, %c1_i32_24, %c18_i32 : i32
      %39 = vector.broadcast %38 : i32 to vector<288x128xi32>
      %40 = arith.remsi %36, %39 : vector<288x128xi32>
      %c0_i32_25 = arith.constant 0 : i32
      %41 = vector.broadcast %c0_i32_25 : i32 to vector<288x128xi32>
      %42 = arith.cmpi ne, %40, %41 : vector<288x128xi32>
      %c0_i32_26 = arith.constant 0 : i32
      %43 = vector.broadcast %c0_i32_26 : i32 to vector<288x128xi32>
      %44 = arith.cmpi slt, %40, %43 : vector<288x128xi32>
      %c0_i32_27 = arith.constant 0 : i32
      %45 = arith.cmpi slt, %38, %c0_i32_27 : i32
      %46 = vector.broadcast %45 : i1 to vector<288x128xi1>
      %47 = vector.broadcast %46 : vector<288x128xi1> to vector<288x128xi1>
      %48 = arith.xori %44, %47 : vector<288x128xi1>
      %49 = arith.andi %48, %42 : vector<288x128xi1>
      %50 = vector.broadcast %38 : i32 to vector<288x128xi32>
      %51 = arith.addi %40, %50 : vector<288x128xi32>
      %52 = arith.select %49, %51, %40 : vector<288x128xi1>, vector<288x128xi32>
      %c16_i32 = arith.constant 16 : i32
      %53 = vector.broadcast %c16_i32 : i32 to vector<288x128xi32>
      %54 = arith.cmpi slt, %52, %53 : vector<288x128xi32>
      %cst_28 = arith.constant 0.000000e+00 : f32
      %55 = vector.broadcast %cst_28 : f32 to vector<288x128xf32>
      %56 = arith.select %54, %30, %55 : vector<288x128xi1>, vector<288x128xf32>
      %cst_29 = arith.constant dense<0.000000e+00> : vector<128xf32>
      %57 = vector.multi_reduction <add>, %56, %cst_29 [0] : vector<288x128xf32> to vector<128xf32>
      %58 = vector.shape_cast %57 : vector<128xf32> to vector<1x128xf32>
      %cst_30 = arith.constant 3.906250e-03 : f32
      %59 = vector.broadcast %cst_30 : f32 to vector<1x128xf32>
      %60 = arith.mulf %58, %59 : vector<1x128xf32>
      %61 = vector.broadcast %60 : vector<1x128xf32> to vector<288x128xf32>
      %62 = arith.subf %30, %61 : vector<288x128xf32>
      %cst_31 = arith.constant 0.000000e+00 : f32
      %63 = vector.broadcast %cst_31 : f32 to vector<288x128xf32>
      %64 = arith.select %54, %62, %63 : vector<288x128xi1>, vector<288x128xf32>
      %65 = arith.mulf %64, %64 : vector<288x128xf32>
      %cst_32 = arith.constant dense<0.000000e+00> : vector<128xf32>
      %66 = vector.multi_reduction <add>, %65, %cst_32 [0] : vector<288x128xf32> to vector<128xf32>
      %67 = vector.shape_cast %66 : vector<128xf32> to vector<1x128xf32>
      %68 = arith.sitofp %arg1 : i32 to f32
      %cst_33 = arith.constant 1.000000e+00 : f32
      %69 = arith.addf %68, %cst_33 : f32
      %cst_34 = arith.constant 1.000000e+00 : f32
      %70 = arith.divf %cst_34, %69 : f32
      %cst_35 = arith.constant 2.560000e+02 : f32
      %71 = arith.mulf %cst_35, %68 : f32
      %72 = arith.mulf %71, %70 : f32
      %c0_36 = arith.constant 0 : index
      %c0_37 = arith.constant 0 : index
      %73 = vector.load %arg9[%c0_36, %c0_37] : memref<2x128xf32, #tpu.memory_space<vmem>>, vector<1x128xf32>
      %c1_38 = arith.constant 1 : index
      %c0_39 = arith.constant 0 : index
      %74 = vector.load %arg9[%c1_38, %c0_39] : memref<2x128xf32, #tpu.memory_space<vmem>>, vector<1x128xf32>
      %75 = arith.subf %60, %73 : vector<1x128xf32>
      %76 = vector.broadcast %70 : f32 to vector<1x128xf32>
      %77 = arith.mulf %75, %76 : vector<1x128xf32>
      %78 = arith.addf %73, %77 : vector<1x128xf32>
      %c0_40 = arith.constant 0 : index
      %c0_41 = arith.constant 0 : index
      %79 = vector.load %arg9[%c0_40, %c0_41] : memref<2x128xf32, #tpu.memory_space<vmem>>, vector<1x128xf32>
      tpu.vector_store %arg9[%c0_40, %c0_41], %78 {strides = array<i32>} : memref<2x128xf32, #tpu.memory_space<vmem>>, vector<1x128xf32>,
      %80 = arith.addf %74, %67 : vector<1x128xf32>
      %81 = arith.mulf %75, %75 : vector<1x128xf32>
      %82 = vector.broadcast %72 : f32 to vector<1x128xf32>
      %83 = arith.mulf %81, %82 : vector<1x128xf32>
      %84 = arith.addf %80, %83 : vector<1x128xf32>
      %c1_42 = arith.constant 1 : index
      %c0_43 = arith.constant 0 : index
      %85 = vector.load %arg9[%c1_42, %c0_43] : memref<2x128xf32, #tpu.memory_space<vmem>>, vector<1x128xf32>
      tpu.vector_store %arg9[%c1_42, %c0_43], %84 {strides = array<i32>} : memref<2x128xf32, #tpu.memory_space<vmem>>, vector<1x128xf32>,
      %c1_i32_44 = arith.constant 1 : i32
      %86 = arith.cmpi eq, %arg1, %c1_i32_44 : i32
      %87 = arith.extui %86 : i1 to i32
      %c0_i32_45 = arith.constant 0 : i32
      %88 = arith.cmpi ne, %87, %c0_i32_45 : i32
      scf.if %88 {
        %c0_46 = arith.constant 0 : index
        %c0_47 = arith.constant 0 : index
        %89 = vector.load %arg9[%c0_46, %c0_47] : memref<2x128xf32, #tpu.memory_space<vmem>>, vector<1x128xf32>
        %c1_48 = arith.constant 1 : index
        %c0_49 = arith.constant 0 : index
        %90 = vector.load %arg9[%c1_48, %c0_49] : memref<2x128xf32, #tpu.memory_space<vmem>>, vector<1x128xf32>
        %cst_50 = arith.constant 0.001953125 : f32
        %91 = vector.broadcast %cst_50 : f32 to vector<1x128xf32>
        %92 = arith.mulf %90, %91 : vector<1x128xf32>
        %c0_51 = arith.constant 0 : index
        %c0_52 = arith.constant 0 : index
        %93 = vector.load %arg5[%c0_51, %c0_52] : memref<4x128xf32, #tpu.memory_space<vmem>>, vector<1x128xf32>
        %c1_53 = arith.constant 1 : index
        %c0_54 = arith.constant 0 : index
        %94 = vector.load %arg5[%c1_53, %c0_54] : memref<4x128xf32, #tpu.memory_space<vmem>>, vector<1x128xf32>
        %cst_55 = arith.constant 9.99999974E-6 : f32
        %95 = vector.broadcast %cst_55 : f32 to vector<1x128xf32>
        %96 = arith.addf %92, %95 : vector<1x128xf32>
        %97 = math.rsqrt %96 : vector<1x128xf32>
        %98 = arith.mulf %93, %97 : vector<1x128xf32>
        %c0_56 = arith.constant 0 : index
        %c0_57 = arith.constant 0 : index
        %99 = vector.load %arg10[%c0_56, %c0_57] : memref<4x128xf32, #tpu.memory_space<vmem>>, vector<1x128xf32>
        tpu.vector_store %arg10[%c0_56, %c0_57], %98 {strides = array<i32>} : memref<4x128xf32, #tpu.memory_space<vmem>>, vector<1x128xf32>,
        %100 = arith.mulf %89, %98 : vector<1x128xf32>
        %101 = arith.subf %94, %100 : vector<1x128xf32>
        %c1_58 = arith.constant 1 : index
        %c0_59 = arith.constant 0 : index
        %102 = vector.load %arg10[%c1_58, %c0_59] : memref<4x128xf32, #tpu.memory_space<vmem>>, vector<1x128xf32>
        tpu.vector_store %arg10[%c1_58, %c0_59], %101 {strides = array<i32>} : memref<4x128xf32, #tpu.memory_space<vmem>>, vector<1x128xf32>,
        %cst_60 = arith.constant 0.000000e+00 : f32
        %103 = vector.broadcast %cst_60 : f32 to vector<2x128xf32>
        %c0_61 = arith.constant 0 : index
        %c0_62 = arith.constant 0 : index
        %104 = vector.load %arg9[%c0_61, %c0_62] : memref<2x128xf32, #tpu.memory_space<vmem>>, vector<2x128xf32>
        tpu.vector_store %arg9[%c0_61, %c0_62], %103 {strides = array<i32>} : memref<2x128xf32, #tpu.memory_space<vmem>>, vector<2x128xf32>,
      } else {
      }
    } else {
    }
    %c1_i32 = arith.constant 1 : i32
    %3 = arith.cmpi eq, %arg0, %c1_i32 : i32
    %4 = arith.extui %3 : i1 to i32
    %c0_i32_1 = arith.constant 0 : i32
    %5 = arith.cmpi ne, %4, %c0_i32_1 : i32
    scf.if %5 {
      %c0_i32_3 = arith.constant 0 : i32
      %9 = arith.cmpi eq, %arg1, %c0_i32_3 : i32
      %10 = arith.extui %9 : i1 to i32
      %c0_i32_4 = arith.constant 0 : i32
      %11 = arith.cmpi ne, %10, %c0_i32_4 : i32
      scf.if %11 {
        %cst_68 = arith.constant 0.000000e+00 : bf16
        %130 = vector.broadcast %cst_68 : bf16 to vector<19x128xbf16>
        %c0_69 = arith.constant 0 : index
        %c0_70 = arith.constant 0 : index
        %131 = vector.load %arg8[%c0_69, %c0_70] : memref<332x128xbf16, #tpu.memory_space<vmem>>, vector<19x128xbf16>
        tpu.vector_store %arg8[%c0_69, %c0_70], %130 {strides = array<i32>} : memref<332x128xbf16, #tpu.memory_space<vmem>>, vector<19x128xbf16>,
        %cst_71 = arith.constant 0.000000e+00 : bf16
        %132 = vector.broadcast %cst_71 : bf16 to vector<25x128xbf16>
        %c307 = arith.constant 307 : index
        %c0_72 = arith.constant 0 : index
        %133 = vector.load %arg8[%c307, %c0_72] : memref<332x128xbf16, #tpu.memory_space<vmem>>, vector<25x128xbf16>
        tpu.vector_store %arg8[%c307, %c0_72], %132 {strides = array<i32>} : memref<332x128xbf16, #tpu.memory_space<vmem>>, vector<25x128xbf16>,
      } else {
      }
      %12 = tpu.iota {dimensions = array<i32: 0>} : vector<288x128xi32>
      %c18_i32 = arith.constant 18 : i32
      %c0_i32_5 = arith.constant 0 : i32
      %13 = arith.cmpi eq, %c18_i32, %c0_i32_5 : i32
      %c1_i32_6 = arith.constant 1 : i32
      %14 = arith.select %13, %c1_i32_6, %c18_i32 : i32
      %15 = vector.broadcast %14 : i32 to vector<288x128xi32>
      %16 = arith.remsi %12, %15 : vector<288x128xi32>
      %c0_i32_7 = arith.constant 0 : i32
      %17 = vector.broadcast %c0_i32_7 : i32 to vector<288x128xi32>
      %18 = arith.cmpi ne, %16, %17 : vector<288x128xi32>
      %c0_i32_8 = arith.constant 0 : i32
      %19 = vector.broadcast %c0_i32_8 : i32 to vector<288x128xi32>
      %20 = arith.cmpi slt, %16, %19 : vector<288x128xi32>
      %c0_i32_9 = arith.constant 0 : i32
      %21 = arith.cmpi slt, %14, %c0_i32_9 : i32
      %22 = vector.broadcast %21 : i1 to vector<288x128xi1>
      %23 = vector.broadcast %22 : vector<288x128xi1> to vector<288x128xi1>
      %24 = arith.xori %20, %23 : vector<288x128xi1>
      %25 = arith.andi %24, %18 : vector<288x128xi1>
      %26 = vector.broadcast %14 : i32 to vector<288x128xi32>
      %27 = arith.addi %16, %26 : vector<288x128xi32>
      %28 = arith.select %25, %27, %16 : vector<288x128xi1>, vector<288x128xi32>
      %c16_i32 = arith.constant 16 : i32
      %29 = vector.broadcast %c16_i32 : i32 to vector<288x128xi32>
      %30 = arith.cmpi slt, %28, %29 : vector<288x128xi32>
      %31 = arith.index_cast %arg1 : i32 to index
      %c0 = arith.constant 0 : index
      %c0_10 = arith.constant 0 : index
      %32 = vector.load %arg7[%31, %c0, %c0_10] : memref<2x288x128xbf16, #tpu.memory_space<vmem>>, vector<1x288x128xbf16>
      %33 = vector.shape_cast %32 : vector<1x288x128xbf16> to vector<288x128xbf16>
      %c0_11 = arith.constant 0 : index
      %c0_12 = arith.constant 0 : index
      %34 = vector.load %arg10[%c0_11, %c0_12] : memref<4x128xf32, #tpu.memory_space<vmem>>, vector<1x128xf32>
      %c1 = arith.constant 1 : index
      %c0_13 = arith.constant 0 : index
      %35 = vector.load %arg10[%c1, %c0_13] : memref<4x128xf32, #tpu.memory_space<vmem>>, vector<1x128xf32>
      %36 = arith.extf %33 : vector<288x128xbf16> to vector<288x128xf32>
      %37 = vector.broadcast %34 : vector<1x128xf32> to vector<288x128xf32>
      %38 = arith.mulf %36, %37 : vector<288x128xf32>
      %39 = vector.broadcast %35 : vector<1x128xf32> to vector<288x128xf32>
      %40 = arith.addf %38, %39 : vector<288x128xf32>
      %cst = arith.constant 0.000000e+00 : f32
      %41 = vector.broadcast %cst : f32 to vector<288x128xf32>
      %42 = arith.maximumf %40, %41 : vector<288x128xf32>
      %cst_14 = arith.constant 0.000000e+00 : f32
      %43 = vector.broadcast %cst_14 : f32 to vector<288x128xf32>
      %44 = arith.select %30, %42, %43 : vector<288x128xi1>, vector<288x128xf32>
      %45 = arith.truncf %44 : vector<288x128xf32> to vector<288x128xbf16>
      %c19 = arith.constant 19 : index
      %c0_15 = arith.constant 0 : index
      %46 = vector.load %arg8[%c19, %c0_15] : memref<332x128xbf16, #tpu.memory_space<vmem>>, vector<288x128xbf16>
      tpu.vector_store %arg8[%c19, %c0_15], %45 {strides = array<i32>} : memref<332x128xbf16, #tpu.memory_space<vmem>>, vector<288x128xbf16>,
      %cst_16 = arith.constant 0.000000e+00 : f32
      %47 = vector.broadcast %cst_16 : f32 to vector<288x128xf32>
      %c0_17 = arith.constant 0 : index
      %c0_18 = arith.constant 0 : index
      %48 = vector.load %arg8[%c0_17, %c0_18] : memref<332x128xbf16, #tpu.memory_space<vmem>>, vector<288x128xbf16>
      %c1_19 = arith.constant 1 : index
      %c0_20 = arith.constant 0 : index
      %49 = vector.load %arg8[%c1_19, %c0_20] : memref<332x128xbf16, #tpu.memory_space<vmem>>, vector<288x128xbf16>
      %c2 = arith.constant 2 : index
      %c0_21 = arith.constant 0 : index
      %50 = vector.load %arg8[%c2, %c0_21] : memref<332x128xbf16, #tpu.memory_space<vmem>>, vector<288x128xbf16>
      %51 = tpu.concatenate %48, %49, %50 in 1 : vector<288x128xbf16>, vector<288x128xbf16>, vector<288x128xbf16> -> vector<288x384xbf16>
      %c0_22 = arith.constant 0 : index
      %c0_23 = arith.constant 0 : index
      %c0_24 = arith.constant 0 : index
      %52 = vector.load %arg4[%c0_22, %c0_23, %c0_24] : memref<3x384x128xbf16, #tpu.memory_space<vmem>>, vector<1x384x128xbf16>
      %53 = vector.shape_cast %52 : vector<1x384x128xbf16> to vector<384x128xbf16>
      %cst_25 = arith.constant dense<0.000000e+00> : vector<288x128xf32>
      %54 = tpu.matmul %51, %53, %cst_25 {dimension_numbers = #tpu.dot_dimension_numbers<[1], [0], [0], [1], [0, 0, 1, 1], [], []>} : vector<288x384xbf16>, vector<384x128xbf16>, vector<288x128xf32> -> vector<288x128xf32>
      %55 = arith.addf %47, %54 : vector<288x128xf32>
      %c18 = arith.constant 18 : index
      %c0_26 = arith.constant 0 : index
      %56 = vector.load %arg8[%c18, %c0_26] : memref<332x128xbf16, #tpu.memory_space<vmem>>, vector<288x128xbf16>
      %c19_27 = arith.constant 19 : index
      %c0_28 = arith.constant 0 : index
      %57 = vector.load %arg8[%c19_27, %c0_28] : memref<332x128xbf16, #tpu.memory_space<vmem>>, vector<288x128xbf16>
      %c20 = arith.constant 20 : index
      %c0_29 = arith.constant 0 : index
      %58 = vector.load %arg8[%c20, %c0_29] : memref<332x128xbf16, #tpu.memory_space<vmem>>, vector<288x128xbf16>
      %59 = tpu.concatenate %56, %57, %58 in 1 : vector<288x128xbf16>, vector<288x128xbf16>, vector<288x128xbf16> -> vector<288x384xbf16>
      %c1_30 = arith.constant 1 : index
      %c0_31 = arith.constant 0 : index
      %c0_32 = arith.constant 0 : index
      %60 = vector.load %arg4[%c1_30, %c0_31, %c0_32] : memref<3x384x128xbf16, #tpu.memory_space<vmem>>, vector<1x384x128xbf16>
      %61 = vector.shape_cast %60 : vector<1x384x128xbf16> to vector<384x128xbf16>
      %cst_33 = arith.constant dense<0.000000e+00> : vector<288x128xf32>
      %62 = tpu.matmul %59, %61, %cst_33 {dimension_numbers = #tpu.dot_dimension_numbers<[1], [0], [0], [1], [0, 0, 1, 1], [], []>} : vector<288x384xbf16>, vector<384x128xbf16>, vector<288x128xf32> -> vector<288x128xf32>
      %63 = arith.addf %55, %62 : vector<288x128xf32>
      %c36 = arith.constant 36 : index
      %c0_34 = arith.constant 0 : index
      %64 = vector.load %arg8[%c36, %c0_34] : memref<332x128xbf16, #tpu.memory_space<vmem>>, vector<288x128xbf16>
      %c37 = arith.constant 37 : index
      %c0_35 = arith.constant 0 : index
      %65 = vector.load %arg8[%c37, %c0_35] : memref<332x128xbf16, #tpu.memory_space<vmem>>, vector<288x128xbf16>
      %c38 = arith.constant 38 : index
      %c0_36 = arith.constant 0 : index
      %66 = vector.load %arg8[%c38, %c0_36] : memref<332x128xbf16, #tpu.memory_space<vmem>>, vector<288x128xbf16>
      %67 = tpu.concatenate %64, %65, %66 in 1 : vector<288x128xbf16>, vector<288x128xbf16>, vector<288x128xbf16> -> vector<288x384xbf16>
      %c2_37 = arith.constant 2 : index
      %c0_38 = arith.constant 0 : index
      %c0_39 = arith.constant 0 : index
      %68 = vector.load %arg4[%c2_37, %c0_38, %c0_39] : memref<3x384x128xbf16, #tpu.memory_space<vmem>>, vector<1x384x128xbf16>
      %69 = vector.shape_cast %68 : vector<1x384x128xbf16> to vector<384x128xbf16>
      %cst_40 = arith.constant dense<0.000000e+00> : vector<288x128xf32>
      %70 = tpu.matmul %67, %69, %cst_40 {dimension_numbers = #tpu.dot_dimension_numbers<[1], [0], [0], [1], [0, 0, 1, 1], [], []>} : vector<288x384xbf16>, vector<384x128xbf16>, vector<288x128xf32> -> vector<288x128xf32>
      %71 = arith.addf %63, %70 : vector<288x128xf32>
      %72 = arith.truncf %71 : vector<288x128xf32> to vector<288x128xbf16>
      %73 = arith.index_cast %arg1 : i32 to index
      %c0_41 = arith.constant 0 : index
      %c0_42 = arith.constant 0 : index
      %74 = vector.load %arg7[%73, %c0_41, %c0_42] : memref<2x288x128xbf16, #tpu.memory_space<vmem>>, vector<1x288x128xbf16>
      %75 = vector.shape_cast %74 : vector<1x288x128xbf16> to vector<288x128xbf16>
      %76 = vector.shape_cast %72 : vector<288x128xbf16> to vector<1x288x128xbf16>
      tpu.vector_store %arg7[%73, %c0_41, %c0_42], %76 {strides = array<i32>} : memref<2x288x128xbf16, #tpu.memory_space<vmem>>, vector<1x288x128xbf16>,
      %77 = tpu.iota {dimensions = array<i32: 0>} : vector<288x128xi32>
      %c18_i32_43 = arith.constant 18 : i32
      %c0_i32_44 = arith.constant 0 : i32
      %78 = arith.cmpi eq, %c18_i32_43, %c0_i32_44 : i32
      %c1_i32_45 = arith.constant 1 : i32
      %79 = arith.select %78, %c1_i32_45, %c18_i32_43 : i32
      %80 = vector.broadcast %79 : i32 to vector<288x128xi32>
      %81 = arith.remsi %77, %80 : vector<288x128xi32>
      %c0_i32_46 = arith.constant 0 : i32
      %82 = vector.broadcast %c0_i32_46 : i32 to vector<288x128xi32>
      %83 = arith.cmpi ne, %81, %82 : vector<288x128xi32>
      %c0_i32_47 = arith.constant 0 : i32
      %84 = vector.broadcast %c0_i32_47 : i32 to vector<288x128xi32>
      %85 = arith.cmpi slt, %81, %84 : vector<288x128xi32>
      %c0_i32_48 = arith.constant 0 : i32
      %86 = arith.cmpi slt, %79, %c0_i32_48 : i32
      %87 = vector.broadcast %86 : i1 to vector<288x128xi1>
      %88 = vector.broadcast %87 : vector<288x128xi1> to vector<288x128xi1>
      %89 = arith.xori %85, %88 : vector<288x128xi1>
      %90 = arith.andi %89, %83 : vector<288x128xi1>
      %91 = vector.broadcast %79 : i32 to vector<288x128xi32>
      %92 = arith.addi %81, %91 : vector<288x128xi32>
      %93 = arith.select %90, %92, %81 : vector<288x128xi1>, vector<288x128xi32>
      %c16_i32_49 = arith.constant 16 : i32
      %94 = vector.broadcast %c16_i32_49 : i32 to vector<288x128xi32>
      %95 = arith.cmpi slt, %93, %94 : vector<288x128xi32>
      %cst_50 = arith.constant 0.000000e+00 : f32
      %96 = vector.broadcast %cst_50 : f32 to vector<288x128xf32>
      %97 = arith.select %95, %71, %96 : vector<288x128xi1>, vector<288x128xf32>
      %cst_51 = arith.constant dense<0.000000e+00> : vector<128xf32>
      %98 = vector.multi_reduction <add>, %97, %cst_51 [0] : vector<288x128xf32> to vector<128xf32>
      %99 = vector.shape_cast %98 : vector<128xf32> to vector<1x128xf32>
      %cst_52 = arith.constant 3.906250e-03 : f32
      %100 = vector.broadcast %cst_52 : f32 to vector<1x128xf32>
      %101 = arith.mulf %99, %100 : vector<1x128xf32>
      %102 = vector.broadcast %101 : vector<1x128xf32> to vector<288x128xf32>
      %103 = arith.subf %71, %102 : vector<288x128xf32>
      %cst_53 = arith.constant 0.000000e+00 : f32
      %104 = vector.broadcast %cst_53 : f32 to vector<288x128xf32>
      %105 = arith.select %95, %103, %104 : vector<288x128xi1>, vector<288x128xf32>
      %106 = arith.mulf %105, %105 : vector<288x128xf32>
      %cst_54 = arith.constant dense<0.000000e+00> : vector<128xf32>
      %107 = vector.multi_reduction <add>, %106, %cst_54 [0] : vector<288x128xf32> to vector<128xf32>
      %108 = vector.shape_cast %107 : vector<128xf32> to vector<1x128xf32>
      %109 = arith.sitofp %arg1 : i32 to f32
      %cst_55 = arith.constant 1.000000e+00 : f32
      %110 = arith.addf %109, %cst_55 : f32
      %cst_56 = arith.constant 1.000000e+00 : f32
      %111 = arith.divf %cst_56, %110 : f32
      %cst_57 = arith.constant 2.560000e+02 : f32
      %112 = arith.mulf %cst_57, %109 : f32
      %113 = arith.mulf %112, %111 : f32
      %c0_58 = arith.constant 0 : index
      %c0_59 = arith.constant 0 : index
      %114 = vector.load %arg9[%c0_58, %c0_59] : memref<2x128xf32, #tpu.memory_space<vmem>>, vector<1x128xf32>
      %c1_60 = arith.constant 1 : index
      %c0_61 = arith.constant 0 : index
      %115 = vector.load %arg9[%c1_60, %c0_61] : memref<2x128xf32, #tpu.memory_space<vmem>>, vector<1x128xf32>
      %116 = arith.subf %101, %114 : vector<1x128xf32>
      %117 = vector.broadcast %111 : f32 to vector<1x128xf32>
      %118 = arith.mulf %116, %117 : vector<1x128xf32>
      %119 = arith.addf %114, %118 : vector<1x128xf32>
      %c0_62 = arith.constant 0 : index
      %c0_63 = arith.constant 0 : index
      %120 = vector.load %arg9[%c0_62, %c0_63] : memref<2x128xf32, #tpu.memory_space<vmem>>, vector<1x128xf32>
      tpu.vector_store %arg9[%c0_62, %c0_63], %119 {strides = array<i32>} : memref<2x128xf32, #tpu.memory_space<vmem>>, vector<1x128xf32>,
      %121 = arith.addf %115, %108 : vector<1x128xf32>
      %122 = arith.mulf %116, %116 : vector<1x128xf32>
      %123 = vector.broadcast %113 : f32 to vector<1x128xf32>
      %124 = arith.mulf %122, %123 : vector<1x128xf32>
      %125 = arith.addf %121, %124 : vector<1x128xf32>
      %c1_64 = arith.constant 1 : index
      %c0_65 = arith.constant 0 : index
      %126 = vector.load %arg9[%c1_64, %c0_65] : memref<2x128xf32, #tpu.memory_space<vmem>>, vector<1x128xf32>
      tpu.vector_store %arg9[%c1_64, %c0_65], %125 {strides = array<i32>} : memref<2x128xf32, #tpu.memory_space<vmem>>, vector<1x128xf32>,
      %c1_i32_66 = arith.constant 1 : i32
      %127 = arith.cmpi eq, %arg1, %c1_i32_66 : i32
      %128 = arith.extui %127 : i1 to i32
      %c0_i32_67 = arith.constant 0 : i32
      %129 = arith.cmpi ne, %128, %c0_i32_67 : i32
      scf.if %129 {
        %c0_68 = arith.constant 0 : index
        %c0_69 = arith.constant 0 : index
        %130 = vector.load %arg9[%c0_68, %c0_69] : memref<2x128xf32, #tpu.memory_space<vmem>>, vector<1x128xf32>
        %c1_70 = arith.constant 1 : index
        %c0_71 = arith.constant 0 : index
        %131 = vector.load %arg9[%c1_70, %c0_71] : memref<2x128xf32, #tpu.memory_space<vmem>>, vector<1x128xf32>
        %cst_72 = arith.constant 0.001953125 : f32
        %132 = vector.broadcast %cst_72 : f32 to vector<1x128xf32>
        %133 = arith.mulf %131, %132 : vector<1x128xf32>
        %c2_73 = arith.constant 2 : index
        %c0_74 = arith.constant 0 : index
        %134 = vector.load %arg5[%c2_73, %c0_74] : memref<4x128xf32, #tpu.memory_space<vmem>>, vector<1x128xf32>
        %c3 = arith.constant 3 : index
        %c0_75 = arith.constant 0 : index
        %135 = vector.load %arg5[%c3, %c0_75] : memref<4x128xf32, #tpu.memory_space<vmem>>, vector<1x128xf32>
        %cst_76 = arith.constant 9.99999974E-6 : f32
        %136 = vector.broadcast %cst_76 : f32 to vector<1x128xf32>
        %137 = arith.addf %133, %136 : vector<1x128xf32>
        %138 = math.rsqrt %137 : vector<1x128xf32>
        %139 = arith.mulf %134, %138 : vector<1x128xf32>
        %c2_77 = arith.constant 2 : index
        %c0_78 = arith.constant 0 : index
        %140 = vector.load %arg10[%c2_77, %c0_78] : memref<4x128xf32, #tpu.memory_space<vmem>>, vector<1x128xf32>
        tpu.vector_store %arg10[%c2_77, %c0_78], %139 {strides = array<i32>} : memref<4x128xf32, #tpu.memory_space<vmem>>, vector<1x128xf32>,
        %141 = arith.mulf %130, %139 : vector<1x128xf32>
        %142 = arith.subf %135, %141 : vector<1x128xf32>
        %c3_79 = arith.constant 3 : index
        %c0_80 = arith.constant 0 : index
        %143 = vector.load %arg10[%c3_79, %c0_80] : memref<4x128xf32, #tpu.memory_space<vmem>>, vector<1x128xf32>
        tpu.vector_store %arg10[%c3_79, %c0_80], %142 {strides = array<i32>} : memref<4x128xf32, #tpu.memory_space<vmem>>, vector<1x128xf32>,
      } else {
      }
    } else {
    }
    %c2_i32 = arith.constant 2 : i32
    %6 = arith.cmpi eq, %arg0, %c2_i32 : i32
    %7 = arith.extui %6 : i1 to i32
    %c0_i32_2 = arith.constant 0 : i32
    %8 = arith.cmpi ne, %7, %c0_i32_2 : i32
    scf.if %8 {
      %9 = arith.index_cast %arg1 : i32 to index
      %c0 = arith.constant 0 : index
      %c0_3 = arith.constant 0 : index
      %10 = vector.load %arg7[%9, %c0, %c0_3] : memref<2x288x128xbf16, #tpu.memory_space<vmem>>, vector<1x288x128xbf16>
      %11 = vector.shape_cast %10 : vector<1x288x128xbf16> to vector<288x128xbf16>
      %c2 = arith.constant 2 : index
      %c0_4 = arith.constant 0 : index
      %12 = vector.load %arg10[%c2, %c0_4] : memref<4x128xf32, #tpu.memory_space<vmem>>, vector<1x128xf32>
      %c3 = arith.constant 3 : index
      %c0_5 = arith.constant 0 : index
      %13 = vector.load %arg10[%c3, %c0_5] : memref<4x128xf32, #tpu.memory_space<vmem>>, vector<1x128xf32>
      %14 = arith.extf %11 : vector<288x128xbf16> to vector<288x128xf32>
      %15 = vector.broadcast %12 : vector<1x128xf32> to vector<288x128xf32>
      %16 = arith.mulf %14, %15 : vector<288x128xf32>
      %17 = vector.broadcast %13 : vector<1x128xf32> to vector<288x128xf32>
      %18 = arith.addf %16, %17 : vector<288x128xf32>
      %cst = arith.constant 0.000000e+00 : f32
      %19 = vector.broadcast %cst : f32 to vector<288x128xf32>
      %20 = arith.maximumf %18, %19 : vector<288x128xf32>
      %21 = vector.shape_cast %20 : vector<288x128xf32> to vector<1x288x128xf32>
      %c0_6 = arith.constant 0 : index
      %c0_7 = arith.constant 0 : index
      %c0_8 = arith.constant 0 : index
      %22 = vector.load %arg6[%c0_6, %c0_7, %c0_8] : memref<1x288x128xf32, #tpu.memory_space<vmem>>, vector<1x288x128xf32>
      tpu.vector_store %arg6[%c0_6, %c0_7, %c0_8], %21 {strides = array<i32>} : memref<1x288x128xf32, #tpu.memory_space<vmem>>, vector<1x288x128xf32>,
    } else {
    }
    return
  }
  func.func @transform_0(%arg0: i32, %arg1: i32) -> (i32, i32, i32) {
    %c0_i32 = arith.constant 0 : i32
    %0 = arith.cmpi eq, %arg0, %c0_i32 : i32
    %c1_i32 = arith.constant 1 : i32
    %1 = arith.select %0, %arg1, %c1_i32 : i32
    %c0_i32_0 = arith.constant 0 : i32
    %c0_i32_1 = arith.constant 0 : i32
    %c0_i32_2 = arith.constant 0 : i32
    return %1, %c0_i32_0, %c0_i32_1 : i32, i32, i32
  }
  func.func @transform_1(%arg0: i32, %arg1: i32) -> (i32, i32, i32) {
    %c0_i32 = arith.constant 0 : i32
    %c0_i32_0 = arith.constant 0 : i32
    %c0_i32_1 = arith.constant 0 : i32
    %c0_i32_2 = arith.constant 0 : i32
    return %c0_i32, %c0_i32_0, %c0_i32_1 : i32, i32, i32
  }
  func.func @transform_2(%arg0: i32, %arg1: i32) -> (i32, i32, i32) {
    %c0_i32 = arith.constant 0 : i32
    %c0_i32_0 = arith.constant 0 : i32
    %c0_i32_1 = arith.constant 0 : i32
    %c0_i32_2 = arith.constant 0 : i32
    return %c0_i32, %c0_i32_0, %c0_i32_1 : i32, i32, i32
  }
  func.func @transform_3(%arg0: i32, %arg1: i32) -> (i32, i32) {
    %c0_i32 = arith.constant 0 : i32
    %c0_i32_0 = arith.constant 0 : i32
    %c0_i32_1 = arith.constant 0 : i32
    return %c0_i32, %c0_i32_0 : i32, i32
  }
  func.func @transform_4(%arg0: i32, %arg1: i32) -> (i32, i32, i32) {
    %c2_i32 = arith.constant 2 : i32
    %0 = arith.cmpi eq, %arg0, %c2_i32 : i32
    %c0_i32 = arith.constant 0 : i32
    %1 = arith.select %0, %arg1, %c0_i32 : i32
    %c0_i32_0 = arith.constant 0 : i32
    %c0_i32_1 = arith.constant 0 : i32
    %c0_i32_2 = arith.constant 0 : i32
    return %1, %c0_i32_0, %c0_i32_1 : i32, i32, i32
  }
}

</mosaic_0001>

<llo_original>
// kernel: inconv_forward.1
$region0: #{inconv_forward.1}
  #allocation0 [shape = 'u32[]', space=smem, size = 0x4, offset = 0x4, fixed_abs, tag = 'smem constant byte address 0x4 - core index']
  #allocation1 [shape = 'u32[72,128]{1,0:T(1,128)}', space=vmem, size = 0x9000, scoped, tag = 'internal scratch']
  #allocation2 [shape = 'bf16[2,288,128]{2,1,0:T(8,128)(2,1)}', space=vmem, size = 0x24000, scoped, tag = 'scratch operand']
  #allocation3 [shape = 'bf16[332,128]{1,0:T(8,128)(2,1)}', space=vmem, size = 0x15000, scoped, tag = 'scratch operand']
  #allocation4 [shape = 'f32[2,128]{1,0:T(2,128)}', space=vmem, size = 0x400, scoped, tag = 'scratch operand']
  #allocation5 [shape = 'f32[4,128]{1,0:T(4,128)}', space=vmem, size = 0x800, scoped, tag = 'scratch operand']
  %s0 = inlined_call_operand.vmem [shape: bf16[2,324,24], index: 0, kind: input, shape index: {}]
  %s1 = inlined_call_operand.vmem [shape: bf16[3,24,128], index: 1, kind: input, shape index: {}]
  %s2 = inlined_call_operand.vmem [shape: bf16[3,384,128], index: 2, kind: input, shape index: {}]
  %s3 = inlined_call_operand.vmem [shape: f32[4,128], index: 3, kind: input, shape index: {}]
  %s4 = inlined_call_operand.vmem [shape: f32[2,288,128], index: 4, kind: output, shape index: {}]
  %s5 = sld [smem:[#allocation0]]
  $region77: #{inconv_forward.1} parent=0
    _
  %s7 = ssub.s32 1, %s5
  %s8 = scalar_select 0, %s7, %s5
  loop: start=0, step=1, limit=8
  $region2: #{inconv_forward.1} parent=0 // loop_pre_header
    _
  $region3: #{inconv_forward.1} parent=0 // loop_header
    %s10 = sphi 0, %s14
    %p11 = scmp.ge.s32.totalorder %s10, 8
    %s17 = sphi 0, %s29
    %s18 = sphi 0, %s25
    %s19 = sphi 0, %s17
    %s20 = sphi 0, %s18
    %s21 = sphi 0, %s19
    %s22 = sphi 0, %s20
    %s36 = sphi 0, %s38
    %s39 = sphi 0, %s36
    %s40 = sphi 0, %s39
    %s56 = sphi 0, %s40
    %s60 = sphi 0, %s60
    %s62 = sphi 0, %s60
    %s63 = sphi 0, %s62
    %s77 = sphi 0, %s63
    %s81 = sphi 0, %s81
    %s83 = sphi 0, %s81
    %s84 = sphi 0, %s83
    %s98 = sphi 0, %s84
    %s102 = sphi 0, %s102
    %s104 = sphi 0, %s102
    %s105 = sphi 0, %s104
    %s119 = sphi 0, %s105
    %s129 = sphi 0, %s131
    %s132 = sphi 0, %s129
    %s133 = sphi 0, %s132
    %s149 = sphi 0, %s133
  $region4: #{inconv_forward.1} parent=0 // loop_header_branch
    %13 = sbr.rel (%p11) target = $region8
  $region5: #{inconv_forward.1} parent=0 // loop_body
    %s15 = ssub.s32 %s10, 1
    %s16 = ssub.s32 %s10, 2
    %s23 = sadd.s32 1, %s18
    %p24 = scmp.ge.s32.totalorder %s23, 2
    %s25 = scalar_select %p24, 0, %s23
    %s26 = sadd.s32 1, %s17
    %s27 = scalar_select %p24, %s26, %s17
    %p28 = scmp.ge.s32.totalorder %s27, 3
    %s29 = scalar_select %p28, 0, %s27
    %p30 = scmp.eq.s32.totalorder %s17, 0
    %s31 = scalar_select %p30, %s18, 1
    %p32 = scmp.eq.s32.totalorder %s29, 0
    %s33 = scalar_select %p32, %s25, 1
    %s34 = ssub.s32 %s31, %s33
    %p35 = scmp.eq.s32.totalorder %s34, 0
    %s37 = sadd.s32 %s36, 1
    %s38 = scalar_select %p35, %s36, %s37
    %p41 = pneg %p35
    %p42 = scmp.eq.s32.totalorder %s10, 5
    %p43 = por %p41, %p42
    %p44 = scmp.ne.s32.totalorder %s36, %s39
    %p45 = scmp.eq.s32.totalorder %s10, 0
    %p46 = por %p44, %p45
    %p47 = scmp.ne.s32.totalorder %s36, %s39
    %p48 = scmp.eq.s32.totalorder %s15, 5
    %p49 = por %p47, %p48
    %p50 = scmp.ne.s32.totalorder %s39, %s40
    %p51 = scmp.eq.s32.totalorder %s15, 0
    %p52 = por %p50, %p51
    %p53 = scmp.ne.s32.totalorder %s39, %s40
    %p54 = scmp.eq.s32.totalorder %s16, 5
    %p55 = por %p53, %p54
    %p57 = scmp.ne.s32.totalorder %s40, %s56
    %p58 = scmp.eq.s32.totalorder %s16, 0
    %p59 = por %p57, %p58
    %s61 = sadd.s32 %s60, 1
    %p64 = scmp.eq.s32.totalorder %s10, 5
    %p65 = scmp.ne.s32.totalorder %s60, %s62
    %p66 = scmp.eq.s32.totalorder %s10, 0
    %p67 = por %p65, %p66
    %p68 = scmp.ne.s32.totalorder %s60, %s62
    %p69 = scmp.eq.s32.totalorder %s15, 5
    %p70 = por %p68, %p69
    %p71 = scmp.ne.s32.totalorder %s62, %s63
    %p72 = scmp.eq.s32.totalorder %s15, 0
    %p73 = por %p71, %p72
    %p74 = scmp.ne.s32.totalorder %s62, %s63
    %p75 = scmp.eq.s32.totalorder %s16, 5
    %p76 = por %p74, %p75
    %p78 = scmp.ne.s32.totalorder %s63, %s77
    %p79 = scmp.eq.s32.totalorder %s16, 0
    %p80 = por %p78, %p79
    %s82 = sadd.s32 %s81, 1
    %p85 = scmp.eq.s32.totalorder %s10, 5
    %p86 = scmp.ne.s32.totalorder %s81, %s83
    %p87 = scmp.eq.s32.totalorder %s10, 0
    %p88 = por %p86, %p87
    %p89 = scmp.ne.s32.totalorder %s81, %s83
    %p90 = scmp.eq.s32.totalorder %s15, 5
    %p91 = por %p89, %p90
    %p92 = scmp.ne.s32.totalorder %s83, %s84
    %p93 = scmp.eq.s32.totalorder %s15, 0
    %p94 = por %p92, %p93
    %p95 = scmp.ne.s32.totalorder %s83, %s84
    %p96 = scmp.eq.s32.totalorder %s16, 5
    %p97 = por %p95, %p96
    %p99 = scmp.ne.s32.totalorder %s84, %s98
    %p100 = scmp.eq.s32.totalorder %s16, 0
    %p101 = por %p99, %p100
    %s103 = sadd.s32 %s102, 1
    %p106 = scmp.eq.s32.totalorder %s10, 5
    %p107 = scmp.ne.s32.totalorder %s102, %s104
    %p108 = scmp.eq.s32.totalorder %s10, 0
    %p109 = por %p107, %p108
    %p110 = scmp.ne.s32.totalorder %s102, %s104
    %p111 = scmp.eq.s32.totalorder %s15, 5
    %p112 = por %p110, %p111
    %p113 = scmp.ne.s32.totalorder %s104, %s105
    %p114 = scmp.eq.s32.totalorder %s15, 0
    %p115 = por %p113, %p114
    %p116 = scmp.ne.s32.totalorder %s104, %s105
    %p117 = scmp.eq.s32.totalorder %s16, 5
    %p118 = por %p116, %p117
    %p120 = scmp.ne.s32.totalorder %s105, %s119
    %p121 = scmp.eq.s32.totalorder %s16, 0
    %p122 = por %p120, %p121
    %p123 = scmp.eq.s32.totalorder %s17, 2
    %s124 = scalar_select %p123, %s18, 0
    %p125 = scmp.eq.s32.totalorder %s29, 2
    %s126 = scalar_select %p125, %s25, 0
    %s127 = ssub.s32 %s124, %s126
    %p128 = scmp.eq.s32.totalorder %s127, 0
    %s130 = sadd.s32 %s129, 1
    %s131 = scalar_select %p128, %s129, %s130
    %p134 = pneg %p128
    %p135 = scmp.eq.s32.totalorder %s10, 5
    %p136 = por %p134, %p135
    %p137 = scmp.ne.s32.totalorder %s129, %s132
    %p138 = scmp.eq.s32.totalorder %s10, 0
    %p139 = por %p137, %p138
    %p140 = scmp.ne.s32.totalorder %s129, %s132
    %p141 = scmp.eq.s32.totalorder %s15, 5
    %p142 = por %p140, %p141
    %p143 = scmp.ne.s32.totalorder %s132, %s133
    %p144 = scmp.eq.s32.totalorder %s15, 0
    %p145 = por %p143, %p144
    %p146 = scmp.ne.s32.totalorder %s132, %s133
    %p147 = scmp.eq.s32.totalorder %s16, 5
    %p148 = por %p146, %p147
    %p150 = scmp.ne.s32.totalorder %s133, %s149
    %p151 = scmp.eq.s32.totalorder %s16, 0
    %p152 = por %p150, %p151
    %p153 = scmp.le.s32.totalorder 1, %s10
    %p154 = scmp.lt.s32.totalorder %s10, 7
    %p155 = pnand %p153, %p154
    %p156 = pneg %p155
    // Predicated region
    $region9: #{inconv_forward.1} parent=5 // pred_check
      _
    $region10: #{inconv_forward.1} parent=5 // pred_check_branch
      %158 = sbr.rel (%p155) target = $region12
    $region11: #{inconv_forward.1} parent=5 // pred_region
      %s159 = ssub.s32 %s10, 1
      // Predicated region
      $region13: #{inconv_forward.1} parent=11 // pred_check
        %p160 = pneg %p73
      $region14: #{inconv_forward.1} parent=11 // pred_check_branch
        %162 = sbr.rel (%p160) target = $region16
      $region15: #{inconv_forward.1} parent=11 // pred_region
        _
      $region16: #{inconv_forward.1} parent=11 // pred_fallthru
        _
      // Predicated region
      $region17: #{inconv_forward.1} parent=11 // pred_check
        %p163 = pneg %p94
      $region18: #{inconv_forward.1} parent=11 // pred_check_branch
        %165 = sbr.rel (%p163) target = $region20
      $region19: #{inconv_forward.1} parent=11 // pred_region
        _
      $region20: #{inconv_forward.1} parent=11 // pred_fallthru
        _
      // Predicated region
      $region21: #{inconv_forward.1} parent=11 // pred_check
        %p166 = pneg %p115
      $region22: #{inconv_forward.1} parent=11 // pred_check_branch
        %168 = sbr.rel (%p166) target = $region24
      $region23: #{inconv_forward.1} parent=11 // pred_region
        _
      $region24: #{inconv_forward.1} parent=11 // pred_fallthru
        _
    $region12: #{inconv_forward.1} parent=5 // pred_fallthru
      _
    %p169 = scmp.lt.s32.totalorder %s10, 6
    // Predicated region
    $region25: #{inconv_forward.1} parent=5 // pred_check
      %p170 = pneg %p169
    $region26: #{inconv_forward.1} parent=5 // pred_check_branch
      %172 = sbr.rel (%p170) target = $region28
    $region27: #{inconv_forward.1} parent=5 // pred_region
      // Predicated region
      $region29: #{inconv_forward.1} parent=27 // pred_check
        %p173 = pneg %p46
      $region30: #{inconv_forward.1} parent=27 // pred_check_branch
        %175 = sbr.rel (%p173) target = $region32
      $region31: #{inconv_forward.1} parent=27 // pred_region
        %p176 = scmp.eq.s32.totalorder %s17, 0
        %s177 = scalar_select %p176, %s18, 1
        %p178 = scmp.lt.s32.totalorder %s177, 1
        %s179 = scalar_select %p178, %s177, 1
        %s180 = smul.addr %s179, 41
        %s181 = smul.addr %s180, 4
        %s182 = scalar_lea.vmem %s0, %s181
        %p183 = scmp.eq.s32.totalorder %s17, 0
        %s184 = scalar_select %p183, %s18, 1
      $region32: #{inconv_forward.1} parent=27 // pred_fallthru
        _
    $region28: #{inconv_forward.1} parent=5 // pred_fallthru
      _
    %p185 = scmp.le.s32.totalorder 1, %s10
    %p186 = scmp.lt.s32.totalorder %s10, 7
    %p187 = pnand %p185, %p186
    %p188 = pneg %p187
    // Predicated region
    $region33: #{inconv_forward.1} parent=5 // pred_check
      _
    $region34: #{inconv_forward.1} parent=5 // pred_check_branch
      %190 = sbr.rel (%p187) target = $region36
    $region35: #{inconv_forward.1} parent=5 // pred_region
      %s191 = ssub.s32 %s10, 1
      %p192 = scmp.eq.s32.totalorder %s19, 0
      %s193 = scalar_select %p192, %s20, 1
      %p194 = scmp.lt.s32.totalorder %s193, 1
      %s195 = scalar_select %p194, %s193, 1
      %s196 = smul.addr %s195, 41
      %s197 = smul.addr %s196, 4
      %s198 = scalar_lea.vmem %s0, %s197
      %p199 = pneg %p52
      %p200 = pneg %p49
      %p201 = pneg %p73
      %p202 = pneg %p70
      %p203 = pneg %p94
      %p204 = pneg %p91
      %p205 = pneg %p115
      %p206 = pneg %p112
      %p207 = pneg %p145
      %p208 = pneg %p142
      %p209 = scmp.eq.s32.totalorder %s19, 2
      %s210 = scalar_select %p209, %s20, 0
      %p211 = scmp.lt.s32.totalorder %s210, 1
      %s212 = scalar_select %p211, %s210, 1
      %s213 = smul.addr %s212, 36
      %s214 = smul.addr %s213, 8
      %s215 = scalar_lea.vmem %s4, %s214
      %p216 = scmp.eq.s32.totalorder %s19, 0
      %s217 = scalar_select %p216, %s20, 1
      %p218 = scmp.lt.s32.totalorder %s217, 1
      %s219 = scalar_select %p218, %s217, 1
      %s220 = smul.addr %s219, 41
      %s221 = smul.addr %s220, 4
      %s222 = scalar_lea.vmem %s0, %s221
      %p223 = scmp.eq.s32.totalorder %s19, 0
      %s224 = scalar_select %p223, %s20, 1
      %p225 = scmp.eq.s32.totalorder %s19, 2
      %s226 = scalar_select %p225, %s20, 0
      %p227 = scmp.lt.s32.totalorder %s226, 1
      %s228 = scalar_select %p227, %s226, 1
      %s229 = smul.addr %s228, 36
      %s230 = smul.addr %s229, 8
      %s231 = scalar_lea.vmem %s4, %s230
      %p232 = scmp.eq.s32.totalorder %s19, 2
      %s233 = scalar_select %p232, %s20, 0
      %p235 = scmp.eq.s32.totalorder %s19, 0
      // Predicated region
      $region37: #{inconv_forward.1} parent=35 // pred_check
        %p236 = pneg %p235
      $region38: #{inconv_forward.1} parent=35 // pred_check_branch
        %238 = sbr.rel (%p236) target = $region40
      $region39: #{inconv_forward.1} parent=35 // pred_region
        %p239 = scmp.eq.s32.totalorder %s20, 0
        // Predicated region
        $region41: #{inconv_forward.1} parent=39 // pred_check
          %p240 = pneg %p239
        $region42: #{inconv_forward.1} parent=39 // pred_check_branch
          %242 = sbr.rel (%p240) target = $region44
        $region43: #{inconv_forward.1} parent=39 // pred_region
          %243 = vst [vmem:[#allocation4] sm:$0x3] 0.0
        $region44: #{inconv_forward.1} parent=39 // pred_fallthru
          _
        %v244 = vld [vmem:[%s222] sm:$0xf]
        %v245 = vld [vmem:[%s222 + $0x4] sm:$0xf]
        %v246 = vld [vmem:[%s222 + $0x8] sm:$0xf]
        %v247 = vld [vmem:[%s222 + $0xc] sm:$0xf]
        %v248 = vld [vmem:[%s222 + $0x10] sm:$0xf]
        %v249 = vld [vmem:[%s222 + $0x14] sm:$0xf]
        %v250 = vld [vmem:[%s222 + $0x18] sm:$0xf]
        %v251 = vld [vmem:[%s222 + $0x1c] sm:$0xf]
        %v252 = vld [vmem:[%s222 + $0x20] sm:$0xf]
        %v253 = vld [vmem:[%s222 + $0x24] sm:$0xf]
        %v254 = vld [vmem:[%s222 + $0x28] sm:$0xf]
        %v255 = vld [vmem:[%s222 + $0x2c] sm:$0xf]
        %v256 = vld [vmem:[%s222 + $0x30] sm:$0xf]
        %v257 = vld [vmem:[%s222 + $0x34] sm:$0xf]
        %v258 = vld [vmem:[%s222 + $0x38] sm:$0xf]
        %v259 = vld [vmem:[%s222 + $0x3c] sm:$0xf]
        %v260 = vld [vmem:[%s222 + $0x40] sm:$0xf]
        %v261 = vld [vmem:[%s222 + $0x44] sm:$0xf]
        %v262 = vld [vmem:[%s222 + $0x48] sm:$0xf]
        %v263 = vld [vmem:[%s222 + $0x4c] sm:$0xf]
        %v264 = vld [vmem:[%s222 + $0x50] sm:$0xf]
        %v265 = vld [vmem:[%s222 + $0x54] sm:$0xf]
        %v266 = vld [vmem:[%s222 + $0x58] sm:$0xf]
        %v267 = vld [vmem:[%s222 + $0x5c] sm:$0xf]
        %v268 = vld [vmem:[%s222 + $0x60] sm:$0xf]
        %v269 = vld [vmem:[%s222 + $0x64] sm:$0xf]
        %v270 = vld [vmem:[%s222 + $0x68] sm:$0xf]
        %v271 = vld [vmem:[%s222 + $0x6c] sm:$0xf]
        %v272 = vld [vmem:[%s222 + $0x70] sm:$0xf]
        %v273 = vld [vmem:[%s222 + $0x74] sm:$0xf]
        %v274 = vld [vmem:[%s222 + $0x78] sm:$0xf]
        %v275 = vld [vmem:[%s222 + $0x7c] sm:$0xf]
        %v276 = vld [vmem:[%s222 + $0x80] sm:$0xf]
        %v277 = vld [vmem:[%s222 + $0x84] sm:$0xf]
        %v278 = vld [vmem:[%s222 + $0x88] sm:$0xf]
        %v279 = vld [vmem:[%s222 + $0x8c] sm:$0xf]
        %v280 = vld [vmem:[%s1] sm:$0xf]
        %v281 = vld [vmem:[%s1 + $0x4] sm:$0xf]
        %v282 = vld [vmem:[%s1 + $0x8] sm:$0xf]
        %v283 = vld [vmem:[%s222 + $0x8] sm:$0xe]
        %v284 = vld [vmem:[%s222 + $0x90] sm:$0xf]
        %v285 = vld [vmem:[%s222 + $0x94] sm:$0xf]
        %v286 = vld [vmem:[%s222 + $0x98] sm:$0x1]
        %s287 = scalar_lea.vmem %s1, 12
        %v288 = vld [vmem:[%s287] sm:$0xf]
        %v289 = vld [vmem:[%s287 + $0x4] sm:$0xf]
        %v290 = vld [vmem:[%s287 + $0x8] sm:$0xf]
        %v328 = vunpack.c.l.b16 %v283
        %v329 = vunpack.c.l.b16 %v247
        %v330 = vunpack.c.l.b16 %v248
        %v331 = vunpack.c.l.b16 %v249
        %v332 = vunpack.c.l.b16 %v250
        %v333 = vunpack.c.l.b16 %v251
        %v334 = vunpack.c.l.b16 %v252
        %v335 = vunpack.c.l.b16 %v253
        %v336 = vunpack.c.l.b16 %v254
        %v337 = vunpack.c.l.b16 %v255
        %v338 = vunpack.c.l.b16 %v256
        %v339 = vunpack.c.l.b16 %v257
        %v340 = vunpack.c.l.b16 %v258
        %v341 = vunpack.c.l.b16 %v259
        %v342 = vunpack.c.l.b16 %v260
        %v343 = vunpack.c.l.b16 %v261
        %v344 = vunpack.c.l.b16 %v262
        %v345 = vunpack.c.l.b16 %v263
        %v346 = vunpack.c.l.b16 %v264
        %v347 = vunpack.c.l.b16 %v265
        %v348 = vunpack.c.l.b16 %v266
        %v349 = vunpack.c.l.b16 %v267
        %v350 = vunpack.c.l.b16 %v268
        %v351 = vunpack.c.l.b16 %v269
        %v352 = vunpack.c.l.b16 %v270
        %v353 = vunpack.c.l.b16 %v271
        %v354 = vunpack.c.l.b16 %v272
        %v355 = vunpack.c.l.b16 %v273
        %v356 = vunpack.c.l.b16 %v274
        %v357 = vunpack.c.l.b16 %v275
        %v358 = vunpack.c.l.b16 %v276
        %v359 = vunpack.c.l.b16 %v277
        %v360 = vunpack.c.l.b16 %v278
        %v361 = vunpack.c.l.b16 %v279
        %v362 = vunpack.c.l.b16 %v284
        %v363 = vunpack.c.l.b16 %v285
        %v364 = vunpack.c.l.b16 %v286
        %v365 = vpack.c.b16 %v329, %v328
        %v366 = vpack.c.b16 %v331, %v330
        %v367 = vpack.c.b16 %v333, %v332
        %v368 = vpack.c.b16 %v335, %v334
        %v369 = vpack.c.b16 %v337, %v336
        %v370 = vpack.c.b16 %v339, %v338
        %v371 = vpack.c.b16 %v341, %v340
        %v372 = vpack.c.b16 %v343, %v342
        %v373 = vpack.c.b16 %v345, %v344
        %v374 = vpack.c.b16 %v347, %v346
        %v375 = vpack.c.b16 %v349, %v348
        %v376 = vpack.c.b16 %v351, %v350
        %v377 = vpack.c.b16 %v353, %v352
        %v378 = vpack.c.b16 %v355, %v354
        %v379 = vpack.c.b16 %v357, %v356
        %v380 = vpack.c.b16 %v359, %v358
        %v381 = vpack.c.b16 %v361, %v360
        %v382 = vpack.c.b16 %v363, %v362
        %v383 = vpack.c.b16 %v364, %v364
        %vm384 = vcmask 1046528
        %v385 = vrot.slane %v365, 1
        %v386 = vrot.slane %v366, 1
        %v387 = vsel %vm384, %v385, %v386
        %v388 = vrot.slane %v367, 1
        %v389 = vsel %vm384, %v386, %v388
        %v390 = vrot.slane %v368, 1
        %v391 = vsel %vm384, %v388, %v390
        %v392 = vrot.slane %v369, 1
        %v393 = vsel %vm384, %v390, %v392
        %v394 = vrot.slane %v370, 1
        %v395 = vsel %vm384, %v392, %v394
        %v396 = vrot.slane %v371, 1
        %v397 = vsel %vm384, %v394, %v396
        %v398 = vrot.slane %v372, 1
        %v399 = vsel %vm384, %v396, %v398
        %v400 = vrot.slane %v373, 1
        %v401 = vsel %vm384, %v398, %v400
        %v402 = vrot.slane %v374, 1
        %v403 = vsel %vm384, %v400, %v402
        %v404 = vrot.slane %v375, 1
        %v405 = vsel %vm384, %v402, %v404
        %v406 = vrot.slane %v376, 1
        %v407 = vsel %vm384, %v404, %v406
        %v408 = vrot.slane %v377, 1
        %v409 = vsel %vm384, %v406, %v408
        %v410 = vrot.slane %v378, 1
        %v411 = vsel %vm384, %v408, %v410
        %v412 = vrot.slane %v379, 1
        %v413 = vsel %vm384, %v410, %v412
        %v414 = vrot.slane %v380, 1
        %v415 = vsel %vm384, %v412, %v414
        %v416 = vrot.slane %v381, 1
        %v417 = vsel %vm384, %v414, %v416
        %v418 = vrot.slane %v382, 1
        %v419 = vsel %vm384, %v416, %v418
        %v420 = vrot.slane %v383, 1
        %v421 = vsel %vm384, %v418, %v420
        %v425 = vunpack.c.l.b16 %v288
        %v426 = vunpack.c.l.b16 %v289
        %v427 = vunpack.c.l.b16 %v290
        %v428 = vpack.c.b16 %v426, %v425
        %v429 = vpack.c.b16 %v427, %v427
        %vm431 = vcmask 195584
        %v433 = vsel %vm431, %v387, 0
        %v436 = vsel %vm431, %v389, 0
        %v439 = vsel %vm431, %v391, 0
        %v442 = vsel %vm431, %v393, 0
        %v445 = vsel %vm431, %v395, 0
        %v448 = vsel %vm431, %v397, 0
        %v451 = vsel %vm431, %v399, 0
        %v454 = vsel %vm431, %v401, 0
        %v457 = vsel %vm431, %v403, 0
        %v460 = vsel %vm431, %v405, 0
        %v463 = vsel %vm431, %v407, 0
        %v466 = vsel %vm431, %v409, 0
        %v469 = vsel %vm431, %v411, 0
        %v472 = vsel %vm431, %v413, 0
        %v475 = vsel %vm431, %v415, 0
        %v478 = vsel %vm431, %v417, 0
        %v481 = vsel %vm431, %v419, 0
        %v484 = vsel %vm431, %v421, 0
        %vm486 = vcmask 1043456
        %v488 = vsel %vm486, %v429, 0
        %490 = vmatpush.bf16.msra.mxu0 0
        %491 = vmatpush.bf16.msra.mxu0 0
        %492 = vmatpush.bf16.msra.mxu0 0
        %493 = vmatpush.bf16.msra.mxu0 0
        %494 = vmatpush.bf16.msra.mxu0 0
        %495 = vmatpush.bf16.msra.mxu0 0
        %496 = vmatpush.bf16.msra.mxu0 %v488
        %497 = vmatpush.bf16.msra.mxu0 %v428
        %498 = vmatmul.bf16.gmra.mxu0 %v433
        %v499 = vpop.f32.mrf.mxu0
        %v500 = vadd.f32 0.0, %v499
        %v501 = vpop.f32.mrf.mxu0
        %v502 = vadd.f32 0.0, %v501
        %503 = vmatmul.bf16.gmra.mxu0 %v436
        %v504 = vpop.f32.mrf.mxu0
        %v505 = vadd.f32 0.0, %v504
        %v506 = vpop.f32.mrf.mxu0
        %v507 = vadd.f32 0.0, %v506
        %508 = vmatmul.bf16.gmra.mxu0 %v439
        %v509 = vpop.f32.mrf.mxu0
        %v510 = vadd.f32 0.0, %v509
        %v511 = vpop.f32.mrf.mxu0
        %v512 = vadd.f32 0.0, %v511
        %513 = vmatmul.bf16.gmra.mxu0 %v442
        %v514 = vpop.f32.mrf.mxu0
        %v515 = vadd.f32 0.0, %v514
        %v516 = vpop.f32.mrf.mxu0
        %v517 = vadd.f32 0.0, %v516
        %518 = vmatmul.bf16.gmra.mxu0 %v445
        %v519 = vpop.f32.mrf.mxu0
        %v520 = vadd.f32 0.0, %v519
        %v521 = vpop.f32.mrf.mxu0
        %v522 = vadd.f32 0.0, %v521
        %523 = vmatmul.bf16.gmra.mxu0 %v448
        %v524 = vpop.f32.mrf.mxu0
        %v525 = vadd.f32 0.0, %v524
        %v526 = vpop.f32.mrf.mxu0
        %v527 = vadd.f32 0.0, %v526
        %528 = vmatmul.bf16.gmra.mxu0 %v451
        %v529 = vpop.f32.mrf.mxu0
        %v530 = vadd.f32 0.0, %v529
        %v531 = vpop.f32.mrf.mxu0
        %v532 = vadd.f32 0.0, %v531
        %533 = vmatmul.bf16.gmra.mxu0 %v454
        %v534 = vpop.f32.mrf.mxu0
        %v535 = vadd.f32 0.0, %v534
        %v536 = vpop.f32.mrf.mxu0
        %v537 = vadd.f32 0.0, %v536
        %538 = vmatmul.bf16.gmra.mxu0 %v457
        %v539 = vpop.f32.mrf.mxu0
        %v540 = vadd.f32 0.0, %v539
        %v541 = vpop.f32.mrf.mxu0
        %v542 = vadd.f32 0.0, %v541
        %543 = vmatmul.bf16.gmra.mxu0 %v460
        %v544 = vpop.f32.mrf.mxu0
        %v545 = vadd.f32 0.0, %v544
        %v546 = vpop.f32.mrf.mxu0
        %v547 = vadd.f32 0.0, %v546
        %548 = vmatmul.bf16.gmra.mxu0 %v463
        %v549 = vpop.f32.mrf.mxu0
        %v550 = vadd.f32 0.0, %v549
        %v551 = vpop.f32.mrf.mxu0
        %v552 = vadd.f32 0.0, %v551
        %553 = vmatmul.bf16.gmra.mxu0 %v466
        %v554 = vpop.f32.mrf.mxu0
        %v555 = vadd.f32 0.0, %v554
        %v556 = vpop.f32.mrf.mxu0
        %v557 = vadd.f32 0.0, %v556
        %558 = vmatmul.bf16.gmra.mxu0 %v469
        %v559 = vpop.f32.mrf.mxu0
        %v560 = vadd.f32 0.0, %v559
        %v561 = vpop.f32.mrf.mxu0
        %v562 = vadd.f32 0.0, %v561
        %563 = vmatmul.bf16.gmra.mxu0 %v472
        %v564 = vpop.f32.mrf.mxu0
        %v565 = vadd.f32 0.0, %v564
        %v566 = vpop.f32.mrf.mxu0
        %v567 = vadd.f32 0.0, %v566
        %568 = vmatmul.bf16.gmra.mxu0 %v475
        %v569 = vpop.f32.mrf.mxu0
        %v570 = vadd.f32 0.0, %v569
        %v571 = vpop.f32.mrf.mxu0
        %v572 = vadd.f32 0.0, %v571
        %573 = vmatmul.bf16.gmra.mxu0 %v478
        %v574 = vpop.f32.mrf.mxu0
        %v575 = vadd.f32 0.0, %v574
        %v576 = vpop.f32.mrf.mxu0
        %v577 = vadd.f32 0.0, %v576
        %578 = vmatmul.bf16.gmra.mxu0 %v481
        %v579 = vpop.f32.mrf.mxu0
        %v580 = vadd.f32 0.0, %v579
        %v581 = vpop.f32.mrf.mxu0
        %v582 = vadd.f32 0.0, %v581
        %583 = vmatmul.bf16.gmra.mxu0 %v484
        %v584 = vpop.f32.mrf.mxu0
        %v585 = vadd.f32 0.0, %v584
        %v586 = vpop.f32.mrf.mxu0
        %v587 = vadd.f32 0.0, %v586
        %588 = vdwg.mxu0
        %v592 = vunpack.c.l.b16 %v244
        %v593 = vunpack.c.l.b16 %v245
        %v594 = vunpack.c.l.b16 %v246
        %v595 = vpack.c.b16 %v593, %v592
        %v596 = vpack.c.b16 %v329, %v594
        %v600 = vunpack.c.l.b16 %v280
        %v601 = vunpack.c.l.b16 %v281
        %v602 = vunpack.c.l.b16 %v282
        %v603 = vpack.c.b16 %v601, %v600
        %v604 = vpack.c.b16 %v602, %v602
        %v607 = vsel %vm431, %v595, 0
        %v610 = vsel %vm431, %v596, 0
        %v613 = vsel %vm431, %v366, 0
        %v616 = vsel %vm431, %v367, 0
        %v619 = vsel %vm431, %v368, 0
        %v622 = vsel %vm431, %v369, 0
        %v625 = vsel %vm431, %v370, 0
        %v628 = vsel %vm431, %v371, 0
        %v631 = vsel %vm431, %v372, 0
        %v634 = vsel %vm431, %v373, 0
        %v637 = vsel %vm431, %v374, 0
        %v640 = vsel %vm431, %v375, 0
        %v643 = vsel %vm431, %v376, 0
        %v646 = vsel %vm431, %v377, 0
        %v649 = vsel %vm431, %v378, 0
        %v652 = vsel %vm431, %v379, 0
        %v655 = vsel %vm431, %v380, 0
        %v658 = vsel %vm431, %v381, 0
        %v661 = vsel %vm486, %v604, 0
        %663 = vmatpush.bf16.msra.mxu0 0
        %664 = vmatpush.bf16.msra.mxu0 0
        %665 = vmatpush.bf16.msra.mxu0 0
        %666 = vmatpush.bf16.msra.mxu0 0
        %667 = vmatpush.bf16.msra.mxu0 0
        %668 = vmatpush.bf16.msra.mxu0 0
        %669 = vmatpush.bf16.msra.mxu0 %v661
        %670 = vmatpush.bf16.msra.mxu0 %v603
        %671 = vmatmul.bf16.gmra.mxu0 %v607
        %v672 = vpop.f32.mrf.mxu0
        %v673 = vadd.f32 %v500, %v672
        %v674 = vpop.f32.mrf.mxu0
        %v675 = vadd.f32 %v502, %v674
        %676 = vmatmul.bf16.gmra.mxu0 %v610
        %v677 = vpop.f32.mrf.mxu0
        %v678 = vadd.f32 %v505, %v677
        %v679 = vpop.f32.mrf.mxu0
        %v680 = vadd.f32 %v507, %v679
        %681 = vmatmul.bf16.gmra.mxu0 %v613
        %v682 = vpop.f32.mrf.mxu0
        %v683 = vadd.f32 %v510, %v682
        %v684 = vpop.f32.mrf.mxu0
        %v685 = vadd.f32 %v512, %v684
        %686 = vmatmul.bf16.gmra.mxu0 %v616
        %v687 = vpop.f32.mrf.mxu0
        %v688 = vadd.f32 %v515, %v687
        %v689 = vpop.f32.mrf.mxu0
        %v690 = vadd.f32 %v517, %v689
        %691 = vmatmul.bf16.gmra.mxu0 %v619
        %v692 = vpop.f32.mrf.mxu0
        %v693 = vadd.f32 %v520, %v692
        %v694 = vpop.f32.mrf.mxu0
        %v695 = vadd.f32 %v522, %v694
        %696 = vmatmul.bf16.gmra.mxu0 %v622
        %v697 = vpop.f32.mrf.mxu0
        %v698 = vadd.f32 %v525, %v697
        %v699 = vpop.f32.mrf.mxu0
        %v700 = vadd.f32 %v527, %v699
        %701 = vmatmul.bf16.gmra.mxu0 %v625
        %v702 = vpop.f32.mrf.mxu0
        %v703 = vadd.f32 %v530, %v702
        %v704 = vpop.f32.mrf.mxu0
        %v705 = vadd.f32 %v532, %v704
        %706 = vmatmul.bf16.gmra.mxu0 %v628
        %v707 = vpop.f32.mrf.mxu0
        %v708 = vadd.f32 %v535, %v707
        %v709 = vpop.f32.mrf.mxu0
        %v710 = vadd.f32 %v537, %v709
        %711 = vmatmul.bf16.gmra.mxu0 %v631
        %v712 = vpop.f32.mrf.mxu0
        %v713 = vadd.f32 %v540, %v712
        %v714 = vpop.f32.mrf.mxu0
        %v715 = vadd.f32 %v542, %v714
        %716 = vmatmul.bf16.gmra.mxu0 %v634
        %v717 = vpop.f32.mrf.mxu0
        %v718 = vadd.f32 %v545, %v717
        %v719 = vpop.f32.mrf.mxu0
        %v720 = vadd.f32 %v547, %v719
        %721 = vmatmul.bf16.gmra.mxu0 %v637
        %v722 = vpop.f32.mrf.mxu0
        %v723 = vadd.f32 %v550, %v722
        %v724 = vpop.f32.mrf.mxu0
        %v725 = vadd.f32 %v552, %v724
        %726 = vmatmul.bf16.gmra.mxu0 %v640
        %v727 = vpop.f32.mrf.mxu0
        %v728 = vadd.f32 %v555, %v727
        %v729 = vpop.f32.mrf.mxu0
        %v730 = vadd.f32 %v557, %v729
        %731 = vmatmul.bf16.gmra.mxu0 %v643
        %v732 = vpop.f32.mrf.mxu0
        %v733 = vadd.f32 %v560, %v732
        %v734 = vpop.f32.mrf.mxu0
        %v735 = vadd.f32 %v562, %v734
        %736 = vmatmul.bf16.gmra.mxu0 %v646
        %v737 = vpop.f32.mrf.mxu0
        %v738 = vadd.f32 %v565, %v737
        %v739 = vpop.f32.mrf.mxu0
        %v740 = vadd.f32 %v567, %v739
        %741 = vmatmul.bf16.gmra.mxu0 %v649
        %v742 = vpop.f32.mrf.mxu0
        %v743 = vadd.f32 %v570, %v742
        %v744 = vpop.f32.mrf.mxu0
        %v745 = vadd.f32 %v572, %v744
        %746 = vmatmul.bf16.gmra.mxu0 %v652
        %v747 = vpop.f32.mrf.mxu0
        %v748 = vadd.f32 %v575, %v747
        %v749 = vpop.f32.mrf.mxu0
        %v750 = vadd.f32 %v577, %v749
        %751 = vmatmul.bf16.gmra.mxu0 %v655
        %v752 = vpop.f32.mrf.mxu0
        %v753 = vadd.f32 %v580, %v752
        %v754 = vpop.f32.mrf.mxu0
        %v755 = vadd.f32 %v582, %v754
        %756 = vmatmul.bf16.gmra.mxu0 %v658
        %v757 = vpop.f32.mrf.mxu0
        %v758 = vadd.f32 %v585, %v757
        %v759 = vpop.f32.mrf.mxu0
        %v760 = vadd.f32 %v587, %v759
        %761 = vdwg.mxu0
        %v762 = vld [vmem:[%s222 + $0x10] sm:$0xc]
        %v763 = vld [vmem:[%s222 + $0x14] sm:$0xf]
        %v764 = vld [vmem:[%s222 + $0x18] sm:$0xf]
        %v765 = vld [vmem:[%s222 + $0x1c] sm:$0xf]
        %v766 = vld [vmem:[%s222 + $0x20] sm:$0xf]
        %v767 = vld [vmem:[%s222 + $0x24] sm:$0xf]
        %v768 = vld [vmem:[%s222 + $0x28] sm:$0xf]
        %v769 = vld [vmem:[%s222 + $0x2c] sm:$0xf]
        %v770 = vld [vmem:[%s222 + $0x30] sm:$0xf]
        %v771 = vld [vmem:[%s222 + $0x34] sm:$0xf]
        %v772 = vld [vmem:[%s222 + $0x38] sm:$0xf]
        %v773 = vld [vmem:[%s222 + $0x3c] sm:$0xf]
        %v774 = vld [vmem:[%s222 + $0x40] sm:$0xf]
        %v775 = vld [vmem:[%s222 + $0x44] sm:$0xf]
        %v776 = vld [vmem:[%s222 + $0x48] sm:$0xf]
        %v777 = vld [vmem:[%s222 + $0x4c] sm:$0xf]
        %v778 = vld [vmem:[%s222 + $0x50] sm:$0xf]
        %v779 = vld [vmem:[%s222 + $0x54] sm:$0xf]
        %v780 = vld [vmem:[%s222 + $0x58] sm:$0xf]
        %v781 = vld [vmem:[%s222 + $0x5c] sm:$0xf]
        %v782 = vld [vmem:[%s222 + $0x60] sm:$0xf]
        %v783 = vld [vmem:[%s222 + $0x64] sm:$0xf]
        %v784 = vld [vmem:[%s222 + $0x68] sm:$0xf]
        %v785 = vld [vmem:[%s222 + $0x6c] sm:$0xf]
        %v786 = vld [vmem:[%s222 + $0x70] sm:$0xf]
        %v787 = vld [vmem:[%s222 + $0x74] sm:$0xf]
        %v788 = vld [vmem:[%s222 + $0x78] sm:$0xf]
        %v789 = vld [vmem:[%s222 + $0x7c] sm:$0xf]
        %v790 = vld [vmem:[%s222 + $0x80] sm:$0xf]
        %v791 = vld [vmem:[%s222 + $0x84] sm:$0xf]
        %v792 = vld [vmem:[%s222 + $0x88] sm:$0xf]
        %v793 = vld [vmem:[%s222 + $0x8c] sm:$0xf]
        %v794 = vld [vmem:[%s222 + $0x90] sm:$0xf]
        %v795 = vld [vmem:[%s222 + $0x94] sm:$0xf]
        %v796 = vld [vmem:[%s222 + $0x98] sm:$0xf]
        %v797 = vld [vmem:[%s222 + $0x9c] sm:$0xf]
        %v798 = vld [vmem:[%s222 + $0xa0] sm:$0x3]
        %s799 = scalar_lea.vmem %s1, 24
        %v800 = vld [vmem:[%s799] sm:$0xf]
        %v801 = vld [vmem:[%s799 + $0x4] sm:$0xf]
        %v802 = vld [vmem:[%s799 + $0x8] sm:$0xf]
        %v840 = vunpack.c.l.b16 %v762
        %v841 = vunpack.c.l.b16 %v763
        %v842 = vunpack.c.l.b16 %v764
        %v843 = vunpack.c.l.b16 %v765
        %v844 = vunpack.c.l.b16 %v766
        %v845 = vunpack.c.l.b16 %v767
        %v846 = vunpack.c.l.b16 %v768
        %v847 = vunpack.c.l.b16 %v769
        %v848 = vunpack.c.l.b16 %v770
        %v849 = vunpack.c.l.b16 %v771
        %v850 = vunpack.c.l.b16 %v772
        %v851 = vunpack.c.l.b16 %v773
        %v852 = vunpack.c.l.b16 %v774
        %v853 = vunpack.c.l.b16 %v775
        %v854 = vunpack.c.l.b16 %v776
        %v855 = vunpack.c.l.b16 %v777
        %v856 = vunpack.c.l.b16 %v778
        %v857 = vunpack.c.l.b16 %v779
        %v858 = vunpack.c.l.b16 %v780
        %v859 = vunpack.c.l.b16 %v781
        %v860 = vunpack.c.l.b16 %v782
        %v861 = vunpack.c.l.b16 %v783
        %v862 = vunpack.c.l.b16 %v784
        %v863 = vunpack.c.l.b16 %v785
        %v864 = vunpack.c.l.b16 %v786
        %v865 = vunpack.c.l.b16 %v787
        %v866 = vunpack.c.l.b16 %v788
        %v867 = vunpack.c.l.b16 %v789
        %v868 = vunpack.c.l.b16 %v790
        %v869 = vunpack.c.l.b16 %v791
        %v870 = vunpack.c.l.b16 %v792
        %v871 = vunpack.c.l.b16 %v793
        %v872 = vunpack.c.l.b16 %v794
        %v873 = vunpack.c.l.b16 %v795
        %v874 = vunpack.c.l.b16 %v796
        %v875 = vunpack.c.l.b16 %v797
        %v876 = vunpack.c.l.b16 %v798
        %v877 = vpack.c.b16 %v841, %v840
        %v878 = vpack.c.b16 %v843, %v842
        %v879 = vpack.c.b16 %v845, %v844
        %v880 = vpack.c.b16 %v847, %v846
        %v881 = vpack.c.b16 %v849, %v848
        %v882 = vpack.c.b16 %v851, %v850
        %v883 = vpack.c.b16 %v853, %v852
        %v884 = vpack.c.b16 %v855, %v854
        %v885 = vpack.c.b16 %v857, %v856
        %v886 = vpack.c.b16 %v859, %v858
        %v887 = vpack.c.b16 %v861, %v860
        %v888 = vpack.c.b16 %v863, %v862
        %v889 = vpack.c.b16 %v865, %v864
        %v890 = vpack.c.b16 %v867, %v866
        %v891 = vpack.c.b16 %v869, %v868
        %v892 = vpack.c.b16 %v871, %v870
        %v893 = vpack.c.b16 %v873, %v872
        %v894 = vpack.c.b16 %v875, %v874
        %v895 = vpack.c.b16 %v876, %v876
        %vm896 = vcmask 1045504
        %v897 = vrot.slane %v877, 2
        %v898 = vrot.slane %v878, 2
        %v899 = vsel %vm896, %v897, %v898
        %v900 = vrot.slane %v879, 2
        %v901 = vsel %vm896, %v898, %v900
        %v902 = vrot.slane %v880, 2
        %v903 = vsel %vm896, %v900, %v902
        %v904 = vrot.slane %v881, 2
        %v905 = vsel %vm896, %v902, %v904
        %v906 = vrot.slane %v882, 2
        %v907 = vsel %vm896, %v904, %v906
        %v908 = vrot.slane %v883, 2
        %v909 = vsel %vm896, %v906, %v908
        %v910 = vrot.slane %v884, 2
        %v911 = vsel %vm896, %v908, %v910
        %v912 = vrot.slane %v885, 2
        %v913 = vsel %vm896, %v910, %v912
        %v914 = vrot.slane %v886, 2
        %v915 = vsel %vm896, %v912, %v914
        %v916 = vrot.slane %v887, 2
        %v917 = vsel %vm896, %v914, %v916
        %v918 = vrot.slane %v888, 2
        %v919 = vsel %vm896, %v916, %v918
        %v920 = vrot.slane %v889, 2
        %v921 = vsel %vm896, %v918, %v920
        %v922 = vrot.slane %v890, 2
        %v923 = vsel %vm896, %v920, %v922
        %v924 = vrot.slane %v891, 2
        %v925 = vsel %vm896, %v922, %v924
        %v926 = vrot.slane %v892, 2
        %v927 = vsel %vm896, %v924, %v926
        %v928 = vrot.slane %v893, 2
        %v929 = vsel %vm896, %v926, %v928
        %v930 = vrot.slane %v894, 2
        %v931 = vsel %vm896, %v928, %v930
        %v932 = vrot.slane %v895, 2
        %v933 = vsel %vm896, %v930, %v932
        %v937 = vunpack.c.l.b16 %v800
        %v938 = vunpack.c.l.b16 %v801
        %v939 = vunpack.c.l.b16 %v802
        %v940 = vpack.c.b16 %v938, %v937
        %v941 = vpack.c.b16 %v939, %v939
        %v944 = vsel %vm431, %v899, 0
        %v947 = vsel %vm431, %v901, 0
        %v950 = vsel %vm431, %v903, 0
        %v953 = vsel %vm431, %v905, 0
        %v956 = vsel %vm431, %v907, 0
        %v959 = vsel %vm431, %v909, 0
        %v962 = vsel %vm431, %v911, 0
        %v965 = vsel %vm431, %v913, 0
        %v968 = vsel %vm431, %v915, 0
        %v971 = vsel %vm431, %v917, 0
        %v974 = vsel %vm431, %v919, 0
        %v977 = vsel %vm431, %v921, 0
        %v980 = vsel %vm431, %v923, 0
        %v983 = vsel %vm431, %v925, 0
        %v986 = vsel %vm431, %v927, 0
        %v989 = vsel %vm431, %v929, 0
        %v992 = vsel %vm431, %v931, 0
        %v995 = vsel %vm431, %v933, 0
        %v998 = vsel %vm486, %v941, 0
        %1000 = vmatpush.bf16.msra.mxu0 0
        %1001 = vmatpush.bf16.msra.mxu0 0
        %1002 = vmatpush.bf16.msra.mxu0 0
        %1003 = vmatpush.bf16.msra.mxu0 0
        %1004 = vmatpush.bf16.msra.mxu0 0
        %1005 = vmatpush.bf16.msra.mxu0 0
        %1006 = vmatpush.bf16.msra.mxu0 %v998
        %1007 = vmatpush.bf16.msra.mxu0 %v940
        %1008 = vmatmul.bf16.gmra.mxu0 %v944
        %v1009 = vpop.f32.mrf.mxu0
        %v1010 = vadd.f32 0.0, %v1009
        %v1011 = vpop.f32.mrf.mxu0
        %v1012 = vadd.f32 0.0, %v1011
        %1013 = vmatmul.bf16.gmra.mxu0 %v947
        %v1014 = vpop.f32.mrf.mxu0
        %v1015 = vadd.f32 0.0, %v1014
        %v1016 = vpop.f32.mrf.mxu0
        %v1017 = vadd.f32 0.0, %v1016
        %1018 = vmatmul.bf16.gmra.mxu0 %v950
        %v1019 = vpop.f32.mrf.mxu0
        %v1020 = vadd.f32 0.0, %v1019
        %v1021 = vpop.f32.mrf.mxu0
        %v1022 = vadd.f32 0.0, %v1021
        %1023 = vmatmul.bf16.gmra.mxu0 %v953
        %v1024 = vpop.f32.mrf.mxu0
        %v1025 = vadd.f32 0.0, %v1024
        %v1026 = vpop.f32.mrf.mxu0
        %v1027 = vadd.f32 0.0, %v1026
        %1028 = vmatmul.bf16.gmra.mxu0 %v956
        %v1029 = vpop.f32.mrf.mxu0
        %v1030 = vadd.f32 0.0, %v1029
        %v1031 = vpop.f32.mrf.mxu0
        %v1032 = vadd.f32 0.0, %v1031
        %1033 = vmatmul.bf16.gmra.mxu0 %v959
        %v1034 = vpop.f32.mrf.mxu0
        %v1035 = vadd.f32 0.0, %v1034
        %v1036 = vpop.f32.mrf.mxu0
        %v1037 = vadd.f32 0.0, %v1036
        %1038 = vmatmul.bf16.gmra.mxu0 %v962
        %v1039 = vpop.f32.mrf.mxu0
        %v1040 = vadd.f32 0.0, %v1039
        %v1041 = vpop.f32.mrf.mxu0
        %v1042 = vadd.f32 0.0, %v1041
        %1043 = vmatmul.bf16.gmra.mxu0 %v965
        %v1044 = vpop.f32.mrf.mxu0
        %v1045 = vadd.f32 0.0, %v1044
        %v1046 = vpop.f32.mrf.mxu0
        %v1047 = vadd.f32 0.0, %v1046
        %1048 = vmatmul.bf16.gmra.mxu0 %v968
        %v1049 = vpop.f32.mrf.mxu0
        %v1050 = vadd.f32 0.0, %v1049
        %v1051 = vpop.f32.mrf.mxu0
        %v1052 = vadd.f32 0.0, %v1051
        %1053 = vmatmul.bf16.gmra.mxu0 %v971
        %v1054 = vpop.f32.mrf.mxu0
        %v1055 = vadd.f32 0.0, %v1054
        %v1056 = vpop.f32.mrf.mxu0
        %v1057 = vadd.f32 0.0, %v1056
        %1058 = vmatmul.bf16.gmra.mxu0 %v974
        %v1059 = vpop.f32.mrf.mxu0
        %v1060 = vadd.f32 0.0, %v1059
        %v1061 = vpop.f32.mrf.mxu0
        %v1062 = vadd.f32 0.0, %v1061
        %1063 = vmatmul.bf16.gmra.mxu0 %v977
        %v1064 = vpop.f32.mrf.mxu0
        %v1065 = vadd.f32 0.0, %v1064
        %v1066 = vpop.f32.mrf.mxu0
        %v1067 = vadd.f32 0.0, %v1066
        %1068 = vmatmul.bf16.gmra.mxu0 %v980
        %v1069 = vpop.f32.mrf.mxu0
        %v1070 = vadd.f32 0.0, %v1069
        %v1071 = vpop.f32.mrf.mxu0
        %v1072 = vadd.f32 0.0, %v1071
        %1073 = vmatmul.bf16.gmra.mxu0 %v983
        %v1074 = vpop.f32.mrf.mxu0
        %v1075 = vadd.f32 0.0, %v1074
        %v1076 = vpop.f32.mrf.mxu0
        %v1077 = vadd.f32 0.0, %v1076
        %1078 = vmatmul.bf16.gmra.mxu0 %v986
        %v1079 = vpop.f32.mrf.mxu0
        %v1080 = vadd.f32 0.0, %v1079
        %v1081 = vpop.f32.mrf.mxu0
        %v1082 = vadd.f32 0.0, %v1081
        %1083 = vmatmul.bf16.gmra.mxu0 %v989
        %v1084 = vpop.f32.mrf.mxu0
        %v1085 = vadd.f32 0.0, %v1084
        %v1086 = vpop.f32.mrf.mxu0
        %v1087 = vadd.f32 0.0, %v1086
        %1088 = vmatmul.bf16.gmra.mxu0 %v992
        %v1089 = vpop.f32.mrf.mxu0
        %v1090 = vadd.f32 0.0, %v1089
        %v1091 = vpop.f32.mrf.mxu0
        %v1092 = vadd.f32 0.0, %v1091
        %1093 = vmatmul.bf16.gmra.mxu0 %v995
        %v1094 = vpop.f32.mrf.mxu0
        %v1095 = vadd.f32 0.0, %v1094
        %v1096 = vpop.f32.mrf.mxu0
        %v1097 = vadd.f32 0.0, %v1096
        %1098 = vdwg.mxu0
        %v1099 = vadd.f32 %v673, %v1010
        %v1100 = vadd.f32 %v675, %v1012
        %v1101 = vadd.f32 %v678, %v1015
        %v1102 = vadd.f32 %v680, %v1017
        %v1103 = vadd.f32 %v683, %v1020
        %v1104 = vadd.f32 %v685, %v1022
        %v1105 = vadd.f32 %v688, %v1025
        %v1106 = vadd.f32 %v690, %v1027
        %v1107 = vadd.f32 %v693, %v1030
        %v1108 = vadd.f32 %v695, %v1032
        %v1109 = vadd.f32 %v698, %v1035
        %v1110 = vadd.f32 %v700, %v1037
        %v1111 = vadd.f32 %v703, %v1040
        %v1112 = vadd.f32 %v705, %v1042
        %v1113 = vadd.f32 %v708, %v1045
        %v1114 = vadd.f32 %v710, %v1047
        %v1115 = vadd.f32 %v713, %v1050
        %v1116 = vadd.f32 %v715, %v1052
        %v1117 = vadd.f32 %v718, %v1055
        %v1118 = vadd.f32 %v720, %v1057
        %v1119 = vadd.f32 %v723, %v1060
        %v1120 = vadd.f32 %v725, %v1062
        %v1121 = vadd.f32 %v728, %v1065
        %v1122 = vadd.f32 %v730, %v1067
        %v1123 = vadd.f32 %v733, %v1070
        %v1124 = vadd.f32 %v735, %v1072
        %v1125 = vadd.f32 %v738, %v1075
        %v1126 = vadd.f32 %v740, %v1077
        %v1127 = vadd.f32 %v743, %v1080
        %v1128 = vadd.f32 %v745, %v1082
        %v1129 = vadd.f32 %v748, %v1085
        %v1130 = vadd.f32 %v750, %v1087
        %v1131 = vadd.f32 %v753, %v1090
        %v1132 = vadd.f32 %v755, %v1092
        %v1133 = vadd.f32 %v758, %v1095
        %v1134 = vadd.f32 %v760, %v1097
        %v1135 = vpack.c.bf16 %v1099, %v1099
        %v1136 = vpack.c.bf16 %v1100, %v1100
        %v1137 = vpack.c.bf16 %v1101, %v1101
        %v1138 = vpack.c.bf16 %v1102, %v1102
        %v1139 = vpack.c.bf16 %v1103, %v1103
        %v1140 = vpack.c.bf16 %v1104, %v1104
        %v1141 = vpack.c.bf16 %v1105, %v1105
        %v1142 = vpack.c.bf16 %v1106, %v1106
        %v1143 = vpack.c.bf16 %v1107, %v1107
        %v1144 = vpack.c.bf16 %v1108, %v1108
        %v1145 = vpack.c.bf16 %v1109, %v1109
        %v1146 = vpack.c.bf16 %v1110, %v1110
        %v1147 = vpack.c.bf16 %v1111, %v1111
        %v1148 = vpack.c.bf16 %v1112, %v1112
        %v1149 = vpack.c.bf16 %v1113, %v1113
        %v1150 = vpack.c.bf16 %v1114, %v1114
        %v1151 = vpack.c.bf16 %v1115, %v1115
        %v1152 = vpack.c.bf16 %v1116, %v1116
        %v1153 = vpack.c.bf16 %v1117, %v1117
        %v1154 = vpack.c.bf16 %v1118, %v1118
        %v1155 = vpack.c.bf16 %v1119, %v1119
        %v1156 = vpack.c.bf16 %v1120, %v1120
        %v1157 = vpack.c.bf16 %v1121, %v1121
        %v1158 = vpack.c.bf16 %v1122, %v1122
        %v1159 = vpack.c.bf16 %v1123, %v1123
        %v1160 = vpack.c.bf16 %v1124, %v1124
        %v1161 = vpack.c.bf16 %v1125, %v1125
        %v1162 = vpack.c.bf16 %v1126, %v1126
        %v1163 = vpack.c.bf16 %v1127, %v1127
        %v1164 = vpack.c.bf16 %v1128, %v1128
        %v1165 = vpack.c.bf16 %v1129, %v1129
        %v1166 = vpack.c.bf16 %v1130, %v1130
        %v1167 = vpack.c.bf16 %v1131, %v1131
        %v1168 = vpack.c.bf16 %v1132, %v1132
        %v1169 = vpack.c.bf16 %v1133, %v1133
        %v1170 = vpack.c.bf16 %v1134, %v1134
        %s1171 = smul.u32 %s20, 36
        %s1172 = smul.addr %s1171, 4
        %s1173 = scalar_lea.vmem [#allocation2], %s1172
        %1174 = vst [vmem:[%s1173] sm:$0xf] %v1135
        %1175 = vst [vmem:[%s1173 + $0x4] sm:$0xf] %v1136
        %1176 = vst [vmem:[%s1173 + $0x8] sm:$0xf] %v1137
        %1177 = vst [vmem:[%s1173 + $0xc] sm:$0xf] %v1138
        %1178 = vst [vmem:[%s1173 + $0x10] sm:$0xf] %v1139
        %1179 = vst [vmem:[%s1173 + $0x14] sm:$0xf] %v1140
        %1180 = vst [vmem:[%s1173 + $0x18] sm:$0xf] %v1141
        %1181 = vst [vmem:[%s1173 + $0x1c] sm:$0xf] %v1142
        %1182 = vst [vmem:[%s1173 + $0x20] sm:$0xf] %v1143
        %1183 = vst [vmem:[%s1173 + $0x24] sm:$0xf] %v1144
        %1184 = vst [vmem:[%s1173 + $0x28] sm:$0xf] %v1145
        %1185 = vst [vmem:[%s1173 + $0x2c] sm:$0xf] %v1146
        %1186 = vst [vmem:[%s1173 + $0x30] sm:$0xf] %v1147
        %1187 = vst [vmem:[%s1173 + $0x34] sm:$0xf] %v1148
        %1188 = vst [vmem:[%s1173 + $0x38] sm:$0xf] %v1149
        %1189 = vst [vmem:[%s1173 + $0x3c] sm:$0xf] %v1150
        %1190 = vst [vmem:[%s1173 + $0x40] sm:$0xf] %v1151
        %1191 = vst [vmem:[%s1173 + $0x44] sm:$0xf] %v1152
        %1192 = vst [vmem:[%s1173 + $0x48] sm:$0xf] %v1153
        %1193 = vst [vmem:[%s1173 + $0x4c] sm:$0xf] %v1154
        %1194 = vst [vmem:[%s1173 + $0x50] sm:$0xf] %v1155
        %1195 = vst [vmem:[%s1173 + $0x54] sm:$0xf] %v1156
        %1196 = vst [vmem:[%s1173 + $0x58] sm:$0xf] %v1157
        %1197 = vst [vmem:[%s1173 + $0x5c] sm:$0xf] %v1158
        %1198 = vst [vmem:[%s1173 + $0x60] sm:$0xf] %v1159
        %1199 = vst [vmem:[%s1173 + $0x64] sm:$0xf] %v1160
        %1200 = vst [vmem:[%s1173 + $0x68] sm:$0xf] %v1161
        %1201 = vst [vmem:[%s1173 + $0x6c] sm:$0xf] %v1162
        %1202 = vst [vmem:[%s1173 + $0x70] sm:$0xf] %v1163
        %1203 = vst [vmem:[%s1173 + $0x74] sm:$0xf] %v1164
        %1204 = vst [vmem:[%s1173 + $0x78] sm:$0xf] %v1165
        %1205 = vst [vmem:[%s1173 + $0x7c] sm:$0xf] %v1166
        %1206 = vst [vmem:[%s1173 + $0x80] sm:$0xf] %v1167
        %1207 = vst [vmem:[%s1173 + $0x84] sm:$0xf] %v1168
        %1208 = vst [vmem:[%s1173 + $0x88] sm:$0xf] %v1169
        %1209 = vst [vmem:[%s1173 + $0x8c] sm:$0xf] %v1170
        %v1210 = vlaneseq
        %v1211 = vshrl.u32 %v1210, 7
        %v1212 = vadd.s32 %v1211, 8
        %v1213 = vadd.s32 %v1211, 16
        %v1214 = vadd.s32 %v1211, 24
        %v1215 = vadd.s32 %v1211, 32
        %v1216 = vadd.s32 %v1211, 40
        %v1217 = vadd.s32 %v1211, 48
        %v1218 = vadd.s32 %v1211, 56
        %v1219 = vadd.s32 %v1211, 64
        %v1220 = vadd.s32 %v1211, 72
        %v1221 = vadd.s32 %v1211, 80
        %v1222 = vadd.s32 %v1211, 88
        %v1223 = vadd.s32 %v1211, 96
        %v1224 = vadd.s32 %v1211, 104
        %v1225 = vadd.s32 %v1211, 112
        %v1226 = vadd.s32 %v1211, 120
        %v1227 = vadd.s32 %v1211, 128
        %v1228 = vadd.s32 %v1211, 136
        %v1229 = vadd.s32 %v1211, 144
        %v1230 = vadd.s32 %v1211, 152
        %v1231 = vadd.s32 %v1211, 160
        %v1232 = vadd.s32 %v1211, 168
        %v1233 = vadd.s32 %v1211, 176
        %v1234 = vadd.s32 %v1211, 184
        %v1235 = vadd.s32 %v1211, 192
        %v1236 = vadd.s32 %v1211, 200
        %v1237 = vadd.s32 %v1211, 208
        %v1238 = vadd.s32 %v1211, 216
        %v1239 = vadd.s32 %v1211, 224
        %v1240 = vadd.s32 %v1211, 232
        %v1241 = vadd.s32 %v1211, 240
        %v1242 = vadd.s32 %v1211, 248
        %v1243 = vadd.s32 %v1211, 256
        %v1244 = vadd.s32 %v1211, 264
        %v1245 = vadd.s32 %v1211, 272
        %v1246 = vadd.s32 %v1211, 280
        %vm1247 = vcmp.lt.s32.totalorder %v1211, 0
        %v1248 = vsub.s32 0, %v1211
        %v1249 = vsel %vm1247, %v1248, %v1211
        %v1250 = vand.u32 %v1249, 65535
        %v1251 = vshrl.u32 %v1249, 16
        %v1253 = vmul.u32 %v1250, 14564
        %v1254 = vmul.u32 %v1250, 58254
        %v1255 = vmul.u32 %v1251, 14564
        %v1256 = vmul.u32 %v1251, 58254
        %v1257 = vshll.u32 %v1254, 16
        %v1258 = vshrl.u32 %v1254, 16
        %v1259 = vshll.u32 %v1255, 16
        %v1260 = vshrl.u32 %v1255, 16
        %vm1261 = vc.u32 %v1253, %v1257
        %v1262 = vsel %vm1261, 1, 0
        %v1263 = vadd.s32 %v1253, %v1257
        %v1264 = vadd.s32 %v1256, %v1262
        %vm1265 = vc.u32 %v1263, %v1259
        %v1266 = vsel %vm1265, 1, 0
        %v1267 = vadd.s32 %v1263, %v1259
        %v1268 = vadd.s32 %v1264, %v1266
        %v1269 = vadd.s32 %v1268, %v1258
        %v1270 = vadd.s32 %v1269, %v1260
        %v1271 = vshrl.u32 %v1270, 4
        %v1272 = vmul.u32 %v1271, 18
        %v1273 = vsub.s32 %v1249, %v1272
        %v1274 = vsub.s32 0, %v1273
        %v1275 = vsel %vm1247, %v1274, %v1273
        %vm1276 = vcmp.lt.s32.totalorder %v1212, 0
        %v1277 = vsub.s32 0, %v1212
        %v1278 = vsel %vm1276, %v1277, %v1212
        %v1279 = vand.u32 %v1278, 65535
        %v1280 = vshrl.u32 %v1278, 16
        %v1282 = vmul.u32 %v1279, 14564
        %v1283 = vmul.u32 %v1279, 58254
        %v1284 = vmul.u32 %v1280, 14564
        %v1285 = vmul.u32 %v1280, 58254
        %v1286 = vshll.u32 %v1283, 16
        %v1287 = vshrl.u32 %v1283, 16
        %v1288 = vshll.u32 %v1284, 16
        %v1289 = vshrl.u32 %v1284, 16
        %vm1290 = vc.u32 %v1282, %v1286
        %v1291 = vsel %vm1290, 1, 0
        %v1292 = vadd.s32 %v1282, %v1286
        %v1293 = vadd.s32 %v1285, %v1291
        %vm1294 = vc.u32 %v1292, %v1288
        %v1295 = vsel %vm1294, 1, 0
        %v1296 = vadd.s32 %v1292, %v1288
        %v1297 = vadd.s32 %v1293, %v1295
        %v1298 = vadd.s32 %v1297, %v1287
        %v1299 = vadd.s32 %v1298, %v1289
        %v1300 = vshrl.u32 %v1299, 4
        %v1301 = vmul.u32 %v1300, 18
        %v1302 = vsub.s32 %v1278, %v1301
        %v1303 = vsub.s32 0, %v1302
        %v1304 = vsel %vm1276, %v1303, %v1302
        %vm1305 = vcmp.lt.s32.totalorder %v1213, 0
        %v1306 = vsub.s32 0, %v1213
        %v1307 = vsel %vm1305, %v1306, %v1213
        %v1308 = vand.u32 %v1307, 65535
        %v1309 = vshrl.u32 %v1307, 16
        %v1311 = vmul.u32 %v1308, 14564
        %v1312 = vmul.u32 %v1308, 58254
        %v1313 = vmul.u32 %v1309, 14564
        %v1314 = vmul.u32 %v1309, 58254
        %v1315 = vshll.u32 %v1312, 16
        %v1316 = vshrl.u32 %v1312, 16
        %v1317 = vshll.u32 %v1313, 16
        %v1318 = vshrl.u32 %v1313, 16
        %vm1319 = vc.u32 %v1311, %v1315
        %v1320 = vsel %vm1319, 1, 0
        %v1321 = vadd.s32 %v1311, %v1315
        %v1322 = vadd.s32 %v1314, %v1320
        %vm1323 = vc.u32 %v1321, %v1317
        %v1324 = vsel %vm1323, 1, 0
        %v1325 = vadd.s32 %v1321, %v1317
        %v1326 = vadd.s32 %v1322, %v1324
        %v1327 = vadd.s32 %v1326, %v1316
        %v1328 = vadd.s32 %v1327, %v1318
        %v1329 = vshrl.u32 %v1328, 4
        %v1330 = vmul.u32 %v1329, 18
        %v1331 = vsub.s32 %v1307, %v1330
        %v1332 = vsub.s32 0, %v1331
        %v1333 = vsel %vm1305, %v1332, %v1331
        %vm1334 = vcmp.lt.s32.totalorder %v1214, 0
        %v1335 = vsub.s32 0, %v1214
        %v1336 = vsel %vm1334, %v1335, %v1214
        %v1337 = vand.u32 %v1336, 65535
        %v1338 = vshrl.u32 %v1336, 16
        %v1340 = vmul.u32 %v1337, 14564
        %v1341 = vmul.u32 %v1337, 58254
        %v1342 = vmul.u32 %v1338, 14564
        %v1343 = vmul.u32 %v1338, 58254
        %v1344 = vshll.u32 %v1341, 16
        %v1345 = vshrl.u32 %v1341, 16
        %v1346 = vshll.u32 %v1342, 16
        %v1347 = vshrl.u32 %v1342, 16
        %vm1348 = vc.u32 %v1340, %v1344
        %v1349 = vsel %vm1348, 1, 0
        %v1350 = vadd.s32 %v1340, %v1344
        %v1351 = vadd.s32 %v1343, %v1349
        %vm1352 = vc.u32 %v1350, %v1346
        %v1353 = vsel %vm1352, 1, 0
        %v1354 = vadd.s32 %v1350, %v1346
        %v1355 = vadd.s32 %v1351, %v1353
        %v1356 = vadd.s32 %v1355, %v1345
        %v1357 = vadd.s32 %v1356, %v1347
        %v1358 = vshrl.u32 %v1357, 4
        %v1359 = vmul.u32 %v1358, 18
        %v1360 = vsub.s32 %v1336, %v1359
        %v1361 = vsub.s32 0, %v1360
        %v1362 = vsel %vm1334, %v1361, %v1360
        %vm1363 = vcmp.lt.s32.totalorder %v1215, 0
        %v1364 = vsub.s32 0, %v1215
        %v1365 = vsel %vm1363, %v1364, %v1215
        %v1366 = vand.u32 %v1365, 65535
        %v1367 = vshrl.u32 %v1365, 16
        %v1369 = vmul.u32 %v1366, 14564
        %v1370 = vmul.u32 %v1366, 58254
        %v1371 = vmul.u32 %v1367, 14564
        %v1372 = vmul.u32 %v1367, 58254
        %v1373 = vshll.u32 %v1370, 16
        %v1374 = vshrl.u32 %v1370, 16
        %v1375 = vshll.u32 %v1371, 16
        %v1376 = vshrl.u32 %v1371, 16
        %vm1377 = vc.u32 %v1369, %v1373
        %v1378 = vsel %vm1377, 1, 0
        %v1379 = vadd.s32 %v1369, %v1373
        %v1380 = vadd.s32 %v1372, %v1378
        %vm1381 = vc.u32 %v1379, %v1375
        %v1382 = vsel %vm1381, 1, 0
        %v1383 = vadd.s32 %v1379, %v1375
        %v1384 = vadd.s32 %v1380, %v1382
        %v1385 = vadd.s32 %v1384, %v1374
        %v1386 = vadd.s32 %v1385, %v1376
        %v1387 = vshrl.u32 %v1386, 4
        %v1388 = vmul.u32 %v1387, 18
        %v1389 = vsub.s32 %v1365, %v1388
        %v1390 = vsub.s32 0, %v1389
        %v1391 = vsel %vm1363, %v1390, %v1389
        %vm1392 = vcmp.lt.s32.totalorder %v1216, 0
        %v1393 = vsub.s32 0, %v1216
        %v1394 = vsel %vm1392, %v1393, %v1216
        %v1395 = vand.u32 %v1394, 65535
        %v1396 = vshrl.u32 %v1394, 16
        %v1398 = vmul.u32 %v1395, 14564
        %v1399 = vmul.u32 %v1395, 58254
        %v1400 = vmul.u32 %v1396, 14564
        %v1401 = vmul.u32 %v1396, 58254
        %v1402 = vshll.u32 %v1399, 16
        %v1403 = vshrl.u32 %v1399, 16
        %v1404 = vshll.u32 %v1400, 16
        %v1405 = vshrl.u32 %v1400, 16
        %vm1406 = vc.u32 %v1398, %v1402
        %v1407 = vsel %vm1406, 1, 0
        %v1408 = vadd.s32 %v1398, %v1402
        %v1409 = vadd.s32 %v1401, %v1407
        %vm1410 = vc.u32 %v1408, %v1404
        %v1411 = vsel %vm1410, 1, 0
        %v1412 = vadd.s32 %v1408, %v1404
        %v1413 = vadd.s32 %v1409, %v1411
        %v1414 = vadd.s32 %v1413, %v1403
        %v1415 = vadd.s32 %v1414, %v1405
        %v1416 = vshrl.u32 %v1415, 4
        %v1417 = vmul.u32 %v1416, 18
        %v1418 = vsub.s32 %v1394, %v1417
        %v1419 = vsub.s32 0, %v1418
        %v1420 = vsel %vm1392, %v1419, %v1418
        %vm1421 = vcmp.lt.s32.totalorder %v1217, 0
        %v1422 = vsub.s32 0, %v1217
        %v1423 = vsel %vm1421, %v1422, %v1217
        %v1424 = vand.u32 %v1423, 65535
        %v1425 = vshrl.u32 %v1423, 16
        %v1427 = vmul.u32 %v1424, 14564
        %v1428 = vmul.u32 %v1424, 58254
        %v1429 = vmul.u32 %v1425, 14564
        %v1430 = vmul.u32 %v1425, 58254
        %v1431 = vshll.u32 %v1428, 16
        %v1432 = vshrl.u32 %v1428, 16
        %v1433 = vshll.u32 %v1429, 16
        %v1434 = vshrl.u32 %v1429, 16
        %vm1435 = vc.u32 %v1427, %v1431
        %v1436 = vsel %vm1435, 1, 0
        %v1437 = vadd.s32 %v1427, %v1431
        %v1438 = vadd.s32 %v1430, %v1436
        %vm1439 = vc.u32 %v1437, %v1433
        %v1440 = vsel %vm1439, 1, 0
        %v1441 = vadd.s32 %v1437, %v1433
        %v1442 = vadd.s32 %v1438, %v1440
        %v1443 = vadd.s32 %v1442, %v1432
        %v1444 = vadd.s32 %v1443, %v1434
        %v1445 = vshrl.u32 %v1444, 4
        %v1446 = vmul.u32 %v1445, 18
        %v1447 = vsub.s32 %v1423, %v1446
        %v1448 = vsub.s32 0, %v1447
        %v1449 = vsel %vm1421, %v1448, %v1447
        %vm1450 = vcmp.lt.s32.totalorder %v1218, 0
        %v1451 = vsub.s32 0, %v1218
        %v1452 = vsel %vm1450, %v1451, %v1218
        %v1453 = vand.u32 %v1452, 65535
        %v1454 = vshrl.u32 %v1452, 16
        %v1456 = vmul.u32 %v1453, 14564
        %v1457 = vmul.u32 %v1453, 58254
        %v1458 = vmul.u32 %v1454, 14564
        %v1459 = vmul.u32 %v1454, 58254
        %v1460 = vshll.u32 %v1457, 16
        %v1461 = vshrl.u32 %v1457, 16
        %v1462 = vshll.u32 %v1458, 16
        %v1463 = vshrl.u32 %v1458, 16
        %vm1464 = vc.u32 %v1456, %v1460
        %v1465 = vsel %vm1464, 1, 0
        %v1466 = vadd.s32 %v1456, %v1460
        %v1467 = vadd.s32 %v1459, %v1465
        %vm1468 = vc.u32 %v1466, %v1462
        %v1469 = vsel %vm1468, 1, 0
        %v1470 = vadd.s32 %v1466, %v1462
        %v1471 = vadd.s32 %v1467, %v1469
        %v1472 = vadd.s32 %v1471, %v1461
        %v1473 = vadd.s32 %v1472, %v1463
        %v1474 = vshrl.u32 %v1473, 4
        %v1475 = vmul.u32 %v1474, 18
        %v1476 = vsub.s32 %v1452, %v1475
        %v1477 = vsub.s32 0, %v1476
        %v1478 = vsel %vm1450, %v1477, %v1476
        %vm1479 = vcmp.lt.s32.totalorder %v1219, 0
        %v1480 = vsub.s32 0, %v1219
        %v1481 = vsel %vm1479, %v1480, %v1219
        %v1482 = vand.u32 %v1481, 65535
        %v1483 = vshrl.u32 %v1481, 16
        %v1485 = vmul.u32 %v1482, 14564
        %v1486 = vmul.u32 %v1482, 58254
        %v1487 = vmul.u32 %v1483, 14564
        %v1488 = vmul.u32 %v1483, 58254
        %v1489 = vshll.u32 %v1486, 16
        %v1490 = vshrl.u32 %v1486, 16
        %v1491 = vshll.u32 %v1487, 16
        %v1492 = vshrl.u32 %v1487, 16
        %vm1493 = vc.u32 %v1485, %v1489
        %v1494 = vsel %vm1493, 1, 0
        %v1495 = vadd.s32 %v1485, %v1489
        %v1496 = vadd.s32 %v1488, %v1494
        %vm1497 = vc.u32 %v1495, %v1491
        %v1498 = vsel %vm1497, 1, 0
        %v1499 = vadd.s32 %v1495, %v1491
        %v1500 = vadd.s32 %v1496, %v1498
        %v1501 = vadd.s32 %v1500, %v1490
        %v1502 = vadd.s32 %v1501, %v1492
        %v1503 = vshrl.u32 %v1502, 4
        %v1504 = vmul.u32 %v1503, 18
        %v1505 = vsub.s32 %v1481, %v1504
        %v1506 = vsub.s32 0, %v1505
        %v1507 = vsel %vm1479, %v1506, %v1505
        %vm1508 = vcmp.lt.s32.totalorder %v1220, 0
        %v1509 = vsub.s32 0, %v1220
        %v1510 = vsel %vm1508, %v1509, %v1220
        %v1511 = vand.u32 %v1510, 65535
        %v1512 = vshrl.u32 %v1510, 16
        %v1514 = vmul.u32 %v1511, 14564
        %v1515 = vmul.u32 %v1511, 58254
        %v1516 = vmul.u32 %v1512, 14564
        %v1517 = vmul.u32 %v1512, 58254
        %v1518 = vshll.u32 %v1515, 16
        %v1519 = vshrl.u32 %v1515, 16
        %v1520 = vshll.u32 %v1516, 16
        %v1521 = vshrl.u32 %v1516, 16
        %vm1522 = vc.u32 %v1514, %v1518
        %v1523 = vsel %vm1522, 1, 0
        %v1524 = vadd.s32 %v1514, %v1518
        %v1525 = vadd.s32 %v1517, %v1523
        %vm1526 = vc.u32 %v1524, %v1520
        %v1527 = vsel %vm1526, 1, 0
        %v1528 = vadd.s32 %v1524, %v1520
        %v1529 = vadd.s32 %v1525, %v1527
        %v1530 = vadd.s32 %v1529, %v1519
        %v1531 = vadd.s32 %v1530, %v1521
        %v1532 = vshrl.u32 %v1531, 4
        %v1533 = vmul.u32 %v1532, 18
        %v1534 = vsub.s32 %v1510, %v1533
        %v1535 = vsub.s32 0, %v1534
        %v1536 = vsel %vm1508, %v1535, %v1534
        %vm1537 = vcmp.lt.s32.totalorder %v1221, 0
        %v1538 = vsub.s32 0, %v1221
        %v1539 = vsel %vm1537, %v1538, %v1221
        %v1540 = vand.u32 %v1539, 65535
        %v1541 = vshrl.u32 %v1539, 16
        %v1543 = vmul.u32 %v1540, 14564
        %v1544 = vmul.u32 %v1540, 58254
        %v1545 = vmul.u32 %v1541, 14564
        %v1546 = vmul.u32 %v1541, 58254
        %v1547 = vshll.u32 %v1544, 16
        %v1548 = vshrl.u32 %v1544, 16
        %v1549 = vshll.u32 %v1545, 16
        %v1550 = vshrl.u32 %v1545, 16
        %vm1551 = vc.u32 %v1543, %v1547
        %v1552 = vsel %vm1551, 1, 0
        %v1553 = vadd.s32 %v1543, %v1547
        %v1554 = vadd.s32 %v1546, %v1552
        %vm1555 = vc.u32 %v1553, %v1549
        %v1556 = vsel %vm1555, 1, 0
        %v1557 = vadd.s32 %v1553, %v1549
        %v1558 = vadd.s32 %v1554, %v1556
        %v1559 = vadd.s32 %v1558, %v1548
        %v1560 = vadd.s32 %v1559, %v1550
        %v1561 = vshrl.u32 %v1560, 4
        %v1562 = vmul.u32 %v1561, 18
        %v1563 = vsub.s32 %v1539, %v1562
        %v1564 = vsub.s32 0, %v1563
        %v1565 = vsel %vm1537, %v1564, %v1563
        %vm1566 = vcmp.lt.s32.totalorder %v1222, 0
        %v1567 = vsub.s32 0, %v1222
        %v1568 = vsel %vm1566, %v1567, %v1222
        %v1569 = vand.u32 %v1568, 65535
        %v1570 = vshrl.u32 %v1568, 16
        %v1572 = vmul.u32 %v1569, 14564
        %v1573 = vmul.u32 %v1569, 58254
        %v1574 = vmul.u32 %v1570, 14564
        %v1575 = vmul.u32 %v1570, 58254
        %v1576 = vshll.u32 %v1573, 16
        %v1577 = vshrl.u32 %v1573, 16
        %v1578 = vshll.u32 %v1574, 16
        %v1579 = vshrl.u32 %v1574, 16
        %vm1580 = vc.u32 %v1572, %v1576
        %v1581 = vsel %vm1580, 1, 0
        %v1582 = vadd.s32 %v1572, %v1576
        %v1583 = vadd.s32 %v1575, %v1581
        %vm1584 = vc.u32 %v1582, %v1578
        %v1585 = vsel %vm1584, 1, 0
        %v1586 = vadd.s32 %v1582, %v1578
        %v1587 = vadd.s32 %v1583, %v1585
        %v1588 = vadd.s32 %v1587, %v1577
        %v1589 = vadd.s32 %v1588, %v1579
        %v1590 = vshrl.u32 %v1589, 4
        %v1591 = vmul.u32 %v1590, 18
        %v1592 = vsub.s32 %v1568, %v1591
        %v1593 = vsub.s32 0, %v1592
        %v1594 = vsel %vm1566, %v1593, %v1592
        %vm1595 = vcmp.lt.s32.totalorder %v1223, 0
        %v1596 = vsub.s32 0, %v1223
        %v1597 = vsel %vm1595, %v1596, %v1223
        %v1598 = vand.u32 %v1597, 65535
        %v1599 = vshrl.u32 %v1597, 16
        %v1601 = vmul.u32 %v1598, 14564
        %v1602 = vmul.u32 %v1598, 58254
        %v1603 = vmul.u32 %v1599, 14564
        %v1604 = vmul.u32 %v1599, 58254
        %v1605 = vshll.u32 %v1602, 16
        %v1606 = vshrl.u32 %v1602, 16
        %v1607 = vshll.u32 %v1603, 16
        %v1608 = vshrl.u32 %v1603, 16
        %vm1609 = vc.u32 %v1601, %v1605
        %v1610 = vsel %vm1609, 1, 0
        %v1611 = vadd.s32 %v1601, %v1605
        %v1612 = vadd.s32 %v1604, %v1610
        %vm1613 = vc.u32 %v1611, %v1607
        %v1614 = vsel %vm1613, 1, 0
        %v1615 = vadd.s32 %v1611, %v1607
        %v1616 = vadd.s32 %v1612, %v1614
        %v1617 = vadd.s32 %v1616, %v1606
        %v1618 = vadd.s32 %v1617, %v1608
        %v1619 = vshrl.u32 %v1618, 4
        %v1620 = vmul.u32 %v1619, 18
        %v1621 = vsub.s32 %v1597, %v1620
        %v1622 = vsub.s32 0, %v1621
        %v1623 = vsel %vm1595, %v1622, %v1621
        %vm1624 = vcmp.lt.s32.totalorder %v1224, 0
        %v1625 = vsub.s32 0, %v1224
        %v1626 = vsel %vm1624, %v1625, %v1224
        %v1627 = vand.u32 %v1626, 65535
        %v1628 = vshrl.u32 %v1626, 16
        %v1630 = vmul.u32 %v1627, 14564
        %v1631 = vmul.u32 %v1627, 58254
        %v1632 = vmul.u32 %v1628, 14564
        %v1633 = vmul.u32 %v1628, 58254
        %v1634 = vshll.u32 %v1631, 16
        %v1635 = vshrl.u32 %v1631, 16
        %v1636 = vshll.u32 %v1632, 16
        %v1637 = vshrl.u32 %v1632, 16
        %vm1638 = vc.u32 %v1630, %v1634
        %v1639 = vsel %vm1638, 1, 0
        %v1640 = vadd.s32 %v1630, %v1634
        %v1641 = vadd.s32 %v1633, %v1639
        %vm1642 = vc.u32 %v1640, %v1636
        %v1643 = vsel %vm1642, 1, 0
        %v1644 = vadd.s32 %v1640, %v1636
        %v1645 = vadd.s32 %v1641, %v1643
        %v1646 = vadd.s32 %v1645, %v1635
        %v1647 = vadd.s32 %v1646, %v1637
        %v1648 = vshrl.u32 %v1647, 4
        %v1649 = vmul.u32 %v1648, 18
        %v1650 = vsub.s32 %v1626, %v1649
        %v1651 = vsub.s32 0, %v1650
        %v1652 = vsel %vm1624, %v1651, %v1650
        %vm1653 = vcmp.lt.s32.totalorder %v1225, 0
        %v1654 = vsub.s32 0, %v1225
        %v1655 = vsel %vm1653, %v1654, %v1225
        %v1656 = vand.u32 %v1655, 65535
        %v1657 = vshrl.u32 %v1655, 16
        %v1659 = vmul.u32 %v1656, 14564
        %v1660 = vmul.u32 %v1656, 58254
        %v1661 = vmul.u32 %v1657, 14564
        %v1662 = vmul.u32 %v1657, 58254
        %v1663 = vshll.u32 %v1660, 16
        %v1664 = vshrl.u32 %v1660, 16
        %v1665 = vshll.u32 %v1661, 16
        %v1666 = vshrl.u32 %v1661, 16
        %vm1667 = vc.u32 %v1659, %v1663
        %v1668 = vsel %vm1667, 1, 0
        %v1669 = vadd.s32 %v1659, %v1663
        %v1670 = vadd.s32 %v1662, %v1668
        %vm1671 = vc.u32 %v1669, %v1665
        %v1672 = vsel %vm1671, 1, 0
        %v1673 = vadd.s32 %v1669, %v1665
        %v1674 = vadd.s32 %v1670, %v1672
        %v1675 = vadd.s32 %v1674, %v1664
        %v1676 = vadd.s32 %v1675, %v1666
        %v1677 = vshrl.u32 %v1676, 4
        %v1678 = vmul.u32 %v1677, 18
        %v1679 = vsub.s32 %v1655, %v1678
        %v1680 = vsub.s32 0, %v1679
        %v1681 = vsel %vm1653, %v1680, %v1679
        %vm1682 = vcmp.lt.s32.totalorder %v1226, 0
        %v1683 = vsub.s32 0, %v1226
        %v1684 = vsel %vm1682, %v1683, %v1226
        %v1685 = vand.u32 %v1684, 65535
        %v1686 = vshrl.u32 %v1684, 16
        %v1688 = vmul.u32 %v1685, 14564
        %v1689 = vmul.u32 %v1685, 58254
        %v1690 = vmul.u32 %v1686, 14564
        %v1691 = vmul.u32 %v1686, 58254
        %v1692 = vshll.u32 %v1689, 16
        %v1693 = vshrl.u32 %v1689, 16
        %v1694 = vshll.u32 %v1690, 16
        %v1695 = vshrl.u32 %v1690, 16
        %vm1696 = vc.u32 %v1688, %v1692
        %v1697 = vsel %vm1696, 1, 0
        %v1698 = vadd.s32 %v1688, %v1692
        %v1699 = vadd.s32 %v1691, %v1697
        %vm1700 = vc.u32 %v1698, %v1694
        %v1701 = vsel %vm1700, 1, 0
        %v1702 = vadd.s32 %v1698, %v1694
        %v1703 = vadd.s32 %v1699, %v1701
        %v1704 = vadd.s32 %v1703, %v1693
        %v1705 = vadd.s32 %v1704, %v1695
        %v1706 = vshrl.u32 %v1705, 4
        %v1707 = vmul.u32 %v1706, 18
        %v1708 = vsub.s32 %v1684, %v1707
        %v1709 = vsub.s32 0, %v1708
        %v1710 = vsel %vm1682, %v1709, %v1708
        %vm1711 = vcmp.lt.s32.totalorder %v1227, 0
        %v1712 = vsub.s32 0, %v1227
        %v1713 = vsel %vm1711, %v1712, %v1227
        %v1714 = vand.u32 %v1713, 65535
        %v1715 = vshrl.u32 %v1713, 16
        %v1717 = vmul.u32 %v1714, 14564
        %v1718 = vmul.u32 %v1714, 58254
        %v1719 = vmul.u32 %v1715, 14564
        %v1720 = vmul.u32 %v1715, 58254
        %v1721 = vshll.u32 %v1718, 16
        %v1722 = vshrl.u32 %v1718, 16
        %v1723 = vshll.u32 %v1719, 16
        %v1724 = vshrl.u32 %v1719, 16
        %vm1725 = vc.u32 %v1717, %v1721
        %v1726 = vsel %vm1725, 1, 0
        %v1727 = vadd.s32 %v1717, %v1721
        %v1728 = vadd.s32 %v1720, %v1726
        %vm1729 = vc.u32 %v1727, %v1723
        %v1730 = vsel %vm1729, 1, 0
        %v1731 = vadd.s32 %v1727, %v1723
        %v1732 = vadd.s32 %v1728, %v1730
        %v1733 = vadd.s32 %v1732, %v1722
        %v1734 = vadd.s32 %v1733, %v1724
        %v1735 = vshrl.u32 %v1734, 4
        %v1736 = vmul.u32 %v1735, 18
        %v1737 = vsub.s32 %v1713, %v1736
        %v1738 = vsub.s32 0, %v1737
        %v1739 = vsel %vm1711, %v1738, %v1737
        %vm1740 = vcmp.lt.s32.totalorder %v1228, 0
        %v1741 = vsub.s32 0, %v1228
        %v1742 = vsel %vm1740, %v1741, %v1228
        %v1743 = vand.u32 %v1742, 65535
        %v1744 = vshrl.u32 %v1742, 16
        %v1746 = vmul.u32 %v1743, 14564
        %v1747 = vmul.u32 %v1743, 58254
        %v1748 = vmul.u32 %v1744, 14564
        %v1749 = vmul.u32 %v1744, 58254
        %v1750 = vshll.u32 %v1747, 16
        %v1751 = vshrl.u32 %v1747, 16
        %v1752 = vshll.u32 %v1748, 16
        %v1753 = vshrl.u32 %v1748, 16
        %vm1754 = vc.u32 %v1746, %v1750
        %v1755 = vsel %vm1754, 1, 0
        %v1756 = vadd.s32 %v1746, %v1750
        %v1757 = vadd.s32 %v1749, %v1755
        %vm1758 = vc.u32 %v1756, %v1752
        %v1759 = vsel %vm1758, 1, 0
        %v1760 = vadd.s32 %v1756, %v1752
        %v1761 = vadd.s32 %v1757, %v1759
        %v1762 = vadd.s32 %v1761, %v1751
        %v1763 = vadd.s32 %v1762, %v1753
        %v1764 = vshrl.u32 %v1763, 4
        %v1765 = vmul.u32 %v1764, 18
        %v1766 = vsub.s32 %v1742, %v1765
        %v1767 = vsub.s32 0, %v1766
        %v1768 = vsel %vm1740, %v1767, %v1766
        %vm1769 = vcmp.lt.s32.totalorder %v1229, 0
        %v1770 = vsub.s32 0, %v1229
        %v1771 = vsel %vm1769, %v1770, %v1229
        %v1772 = vand.u32 %v1771, 65535
        %v1773 = vshrl.u32 %v1771, 16
        %v1775 = vmul.u32 %v1772, 14564
        %v1776 = vmul.u32 %v1772, 58254
        %v1777 = vmul.u32 %v1773, 14564
        %v1778 = vmul.u32 %v1773, 58254
        %v1779 = vshll.u32 %v1776, 16
        %v1780 = vshrl.u32 %v1776, 16
        %v1781 = vshll.u32 %v1777, 16
        %v1782 = vshrl.u32 %v1777, 16
        %vm1783 = vc.u32 %v1775, %v1779
        %v1784 = vsel %vm1783, 1, 0
        %v1785 = vadd.s32 %v1775, %v1779
        %v1786 = vadd.s32 %v1778, %v1784
        %vm1787 = vc.u32 %v1785, %v1781
        %v1788 = vsel %vm1787, 1, 0
        %v1789 = vadd.s32 %v1785, %v1781
        %v1790 = vadd.s32 %v1786, %v1788
        %v1791 = vadd.s32 %v1790, %v1780
        %v1792 = vadd.s32 %v1791, %v1782
        %v1793 = vshrl.u32 %v1792, 4
        %v1794 = vmul.u32 %v1793, 18
        %v1795 = vsub.s32 %v1771, %v1794
        %v1796 = vsub.s32 0, %v1795
        %v1797 = vsel %vm1769, %v1796, %v1795
        %vm1798 = vcmp.lt.s32.totalorder %v1230, 0
        %v1799 = vsub.s32 0, %v1230
        %v1800 = vsel %vm1798, %v1799, %v1230
        %v1801 = vand.u32 %v1800, 65535
        %v1802 = vshrl.u32 %v1800, 16
        %v1804 = vmul.u32 %v1801, 14564
        %v1805 = vmul.u32 %v1801, 58254
        %v1806 = vmul.u32 %v1802, 14564
        %v1807 = vmul.u32 %v1802, 58254
        %v1808 = vshll.u32 %v1805, 16
        %v1809 = vshrl.u32 %v1805, 16
        %v1810 = vshll.u32 %v1806, 16
        %v1811 = vshrl.u32 %v1806, 16
        %vm1812 = vc.u32 %v1804, %v1808
        %v1813 = vsel %vm1812, 1, 0
        %v1814 = vadd.s32 %v1804, %v1808
        %v1815 = vadd.s32 %v1807, %v1813
        %vm1816 = vc.u32 %v1814, %v1810
        %v1817 = vsel %vm1816, 1, 0
        %v1818 = vadd.s32 %v1814, %v1810
        %v1819 = vadd.s32 %v1815, %v1817
        %v1820 = vadd.s32 %v1819, %v1809
        %v1821 = vadd.s32 %v1820, %v1811
        %v1822 = vshrl.u32 %v1821, 4
        %v1823 = vmul.u32 %v1822, 18
        %v1824 = vsub.s32 %v1800, %v1823
        %v1825 = vsub.s32 0, %v1824
        %v1826 = vsel %vm1798, %v1825, %v1824
        %vm1827 = vcmp.lt.s32.totalorder %v1231, 0
        %v1828 = vsub.s32 0, %v1231
        %v1829 = vsel %vm1827, %v1828, %v1231
        %v1830 = vand.u32 %v1829, 65535
        %v1831 = vshrl.u32 %v1829, 16
        %v1833 = vmul.u32 %v1830, 14564
        %v1834 = vmul.u32 %v1830, 58254
        %v1835 = vmul.u32 %v1831, 14564
        %v1836 = vmul.u32 %v1831, 58254
        %v1837 = vshll.u32 %v1834, 16
        %v1838 = vshrl.u32 %v1834, 16
        %v1839 = vshll.u32 %v1835, 16
        %v1840 = vshrl.u32 %v1835, 16
        %vm1841 = vc.u32 %v1833, %v1837
        %v1842 = vsel %vm1841, 1, 0
        %v1843 = vadd.s32 %v1833, %v1837
        %v1844 = vadd.s32 %v1836, %v1842
        %vm1845 = vc.u32 %v1843, %v1839
        %v1846 = vsel %vm1845, 1, 0
        %v1847 = vadd.s32 %v1843, %v1839
        %v1848 = vadd.s32 %v1844, %v1846
        %v1849 = vadd.s32 %v1848, %v1838
        %v1850 = vadd.s32 %v1849, %v1840
        %v1851 = vshrl.u32 %v1850, 4
        %v1852 = vmul.u32 %v1851, 18
        %v1853 = vsub.s32 %v1829, %v1852
        %v1854 = vsub.s32 0, %v1853
        %v1855 = vsel %vm1827, %v1854, %v1853
        %vm1856 = vcmp.lt.s32.totalorder %v1232, 0
        %v1857 = vsub.s32 0, %v1232
        %v1858 = vsel %vm1856, %v1857, %v1232
        %v1859 = vand.u32 %v1858, 65535
        %v1860 = vshrl.u32 %v1858, 16
        %v1862 = vmul.u32 %v1859, 14564
        %v1863 = vmul.u32 %v1859, 58254
        %v1864 = vmul.u32 %v1860, 14564
        %v1865 = vmul.u32 %v1860, 58254
        %v1866 = vshll.u32 %v1863, 16
        %v1867 = vshrl.u32 %v1863, 16
        %v1868 = vshll.u32 %v1864, 16
        %v1869 = vshrl.u32 %v1864, 16
        %vm1870 = vc.u32 %v1862, %v1866
        %v1871 = vsel %vm1870, 1, 0
        %v1872 = vadd.s32 %v1862, %v1866
        %v1873 = vadd.s32 %v1865, %v1871
        %vm1874 = vc.u32 %v1872, %v1868
        %v1875 = vsel %vm1874, 1, 0
        %v1876 = vadd.s32 %v1872, %v1868
        %v1877 = vadd.s32 %v1873, %v1875
        %v1878 = vadd.s32 %v1877, %v1867
        %v1879 = vadd.s32 %v1878, %v1869
        %v1880 = vshrl.u32 %v1879, 4
        %v1881 = vmul.u32 %v1880, 18
        %v1882 = vsub.s32 %v1858, %v1881
        %v1883 = vsub.s32 0, %v1882
        %v1884 = vsel %vm1856, %v1883, %v1882
        %vm1885 = vcmp.lt.s32.totalorder %v1233, 0
        %v1886 = vsub.s32 0, %v1233
        %v1887 = vsel %vm1885, %v1886, %v1233
        %v1888 = vand.u32 %v1887, 65535
        %v1889 = vshrl.u32 %v1887, 16
        %v1891 = vmul.u32 %v1888, 14564
        %v1892 = vmul.u32 %v1888, 58254
        %v1893 = vmul.u32 %v1889, 14564
        %v1894 = vmul.u32 %v1889, 58254
        %v1895 = vshll.u32 %v1892, 16
        %v1896 = vshrl.u32 %v1892, 16
        %v1897 = vshll.u32 %v1893, 16
        %v1898 = vshrl.u32 %v1893, 16
        %vm1899 = vc.u32 %v1891, %v1895
        %v1900 = vsel %vm1899, 1, 0
        %v1901 = vadd.s32 %v1891, %v1895
        %v1902 = vadd.s32 %v1894, %v1900
        %vm1903 = vc.u32 %v1901, %v1897
        %v1904 = vsel %vm1903, 1, 0
        %v1905 = vadd.s32 %v1901, %v1897
        %v1906 = vadd.s32 %v1902, %v1904
        %v1907 = vadd.s32 %v1906, %v1896
        %v1908 = vadd.s32 %v1907, %v1898
        %v1909 = vshrl.u32 %v1908, 4
        %v1910 = vmul.u32 %v1909, 18
        %v1911 = vsub.s32 %v1887, %v1910
        %v1912 = vsub.s32 0, %v1911
        %v1913 = vsel %vm1885, %v1912, %v1911
        %vm1914 = vcmp.lt.s32.totalorder %v1234, 0
        %v1915 = vsub.s32 0, %v1234
        %v1916 = vsel %vm1914, %v1915, %v1234
        %v1917 = vand.u32 %v1916, 65535
        %v1918 = vshrl.u32 %v1916, 16
        %v1920 = vmul.u32 %v1917, 14564
        %v1921 = vmul.u32 %v1917, 58254
        %v1922 = vmul.u32 %v1918, 14564
        %v1923 = vmul.u32 %v1918, 58254
        %v1924 = vshll.u32 %v1921, 16
        %v1925 = vshrl.u32 %v1921, 16
        %v1926 = vshll.u32 %v1922, 16
        %v1927 = vshrl.u32 %v1922, 16
        %vm1928 = vc.u32 %v1920, %v1924
        %v1929 = vsel %vm1928, 1, 0
        %v1930 = vadd.s32 %v1920, %v1924
        %v1931 = vadd.s32 %v1923, %v1929
        %vm1932 = vc.u32 %v1930, %v1926
        %v1933 = vsel %vm1932, 1, 0
        %v1934 = vadd.s32 %v1930, %v1926
        %v1935 = vadd.s32 %v1931, %v1933
        %v1936 = vadd.s32 %v1935, %v1925
        %v1937 = vadd.s32 %v1936, %v1927
        %v1938 = vshrl.u32 %v1937, 4
        %v1939 = vmul.u32 %v1938, 18
        %v1940 = vsub.s32 %v1916, %v1939
        %v1941 = vsub.s32 0, %v1940
        %v1942 = vsel %vm1914, %v1941, %v1940
        %vm1943 = vcmp.lt.s32.totalorder %v1235, 0
        %v1944 = vsub.s32 0, %v1235
        %v1945 = vsel %vm1943, %v1944, %v1235
        %v1946 = vand.u32 %v1945, 65535
        %v1947 = vshrl.u32 %v1945, 16
        %v1949 = vmul.u32 %v1946, 14564
        %v1950 = vmul.u32 %v1946, 58254
        %v1951 = vmul.u32 %v1947, 14564
        %v1952 = vmul.u32 %v1947, 58254
        %v1953 = vshll.u32 %v1950, 16
        %v1954 = vshrl.u32 %v1950, 16
        %v1955 = vshll.u32 %v1951, 16
        %v1956 = vshrl.u32 %v1951, 16
        %vm1957 = vc.u32 %v1949, %v1953
        %v1958 = vsel %vm1957, 1, 0
        %v1959 = vadd.s32 %v1949, %v1953
        %v1960 = vadd.s32 %v1952, %v1958
        %vm1961 = vc.u32 %v1959, %v1955
        %v1962 = vsel %vm1961, 1, 0
        %v1963 = vadd.s32 %v1959, %v1955
        %v1964 = vadd.s32 %v1960, %v1962
        %v1965 = vadd.s32 %v1964, %v1954
        %v1966 = vadd.s32 %v1965, %v1956
        %v1967 = vshrl.u32 %v1966, 4
        %v1968 = vmul.u32 %v1967, 18
        %v1969 = vsub.s32 %v1945, %v1968
        %v1970 = vsub.s32 0, %v1969
        %v1971 = vsel %vm1943, %v1970, %v1969
        %vm1972 = vcmp.lt.s32.totalorder %v1236, 0
        %v1973 = vsub.s32 0, %v1236
        %v1974 = vsel %vm1972, %v1973, %v1236
        %v1975 = vand.u32 %v1974, 65535
        %v1976 = vshrl.u32 %v1974, 16
        %v1978 = vmul.u32 %v1975, 14564
        %v1979 = vmul.u32 %v1975, 58254
        %v1980 = vmul.u32 %v1976, 14564
        %v1981 = vmul.u32 %v1976, 58254
        %v1982 = vshll.u32 %v1979, 16
        %v1983 = vshrl.u32 %v1979, 16
        %v1984 = vshll.u32 %v1980, 16
        %v1985 = vshrl.u32 %v1980, 16
        %vm1986 = vc.u32 %v1978, %v1982
        %v1987 = vsel %vm1986, 1, 0
        %v1988 = vadd.s32 %v1978, %v1982
        %v1989 = vadd.s32 %v1981, %v1987
        %vm1990 = vc.u32 %v1988, %v1984
        %v1991 = vsel %vm1990, 1, 0
        %v1992 = vadd.s32 %v1988, %v1984
        %v1993 = vadd.s32 %v1989, %v1991
        %v1994 = vadd.s32 %v1993, %v1983
        %v1995 = vadd.s32 %v1994, %v1985
        %v1996 = vshrl.u32 %v1995, 4
        %v1997 = vmul.u32 %v1996, 18
        %v1998 = vsub.s32 %v1974, %v1997
        %v1999 = vsub.s32 0, %v1998
        %v2000 = vsel %vm1972, %v1999, %v1998
        %vm2001 = vcmp.lt.s32.totalorder %v1237, 0
        %v2002 = vsub.s32 0, %v1237
        %v2003 = vsel %vm2001, %v2002, %v1237
        %v2004 = vand.u32 %v2003, 65535
        %v2005 = vshrl.u32 %v2003, 16
        %v2007 = vmul.u32 %v2004, 14564
        %v2008 = vmul.u32 %v2004, 58254
        %v2009 = vmul.u32 %v2005, 14564
        %v2010 = vmul.u32 %v2005, 58254
        %v2011 = vshll.u32 %v2008, 16
        %v2012 = vshrl.u32 %v2008, 16
        %v2013 = vshll.u32 %v2009, 16
        %v2014 = vshrl.u32 %v2009, 16
        %vm2015 = vc.u32 %v2007, %v2011
        %v2016 = vsel %vm2015, 1, 0
        %v2017 = vadd.s32 %v2007, %v2011
        %v2018 = vadd.s32 %v2010, %v2016
        %vm2019 = vc.u32 %v2017, %v2013
        %v2020 = vsel %vm2019, 1, 0
        %v2021 = vadd.s32 %v2017, %v2013
        %v2022 = vadd.s32 %v2018, %v2020
        %v2023 = vadd.s32 %v2022, %v2012
        %v2024 = vadd.s32 %v2023, %v2014
        %v2025 = vshrl.u32 %v2024, 4
        %v2026 = vmul.u32 %v2025, 18
        %v2027 = vsub.s32 %v2003, %v2026
        %v2028 = vsub.s32 0, %v2027
        %v2029 = vsel %vm2001, %v2028, %v2027
        %vm2030 = vcmp.lt.s32.totalorder %v1238, 0
        %v2031 = vsub.s32 0, %v1238
        %v2032 = vsel %vm2030, %v2031, %v1238
        %v2033 = vand.u32 %v2032, 65535
        %v2034 = vshrl.u32 %v2032, 16
        %v2036 = vmul.u32 %v2033, 14564
        %v2037 = vmul.u32 %v2033, 58254
        %v2038 = vmul.u32 %v2034, 14564
        %v2039 = vmul.u32 %v2034, 58254
        %v2040 = vshll.u32 %v2037, 16
        %v2041 = vshrl.u32 %v2037, 16
        %v2042 = vshll.u32 %v2038, 16
        %v2043 = vshrl.u32 %v2038, 16
        %vm2044 = vc.u32 %v2036, %v2040
        %v2045 = vsel %vm2044, 1, 0
        %v2046 = vadd.s32 %v2036, %v2040
        %v2047 = vadd.s32 %v2039, %v2045
        %vm2048 = vc.u32 %v2046, %v2042
        %v2049 = vsel %vm2048, 1, 0
        %v2050 = vadd.s32 %v2046, %v2042
        %v2051 = vadd.s32 %v2047, %v2049
        %v2052 = vadd.s32 %v2051, %v2041
        %v2053 = vadd.s32 %v2052, %v2043
        %v2054 = vshrl.u32 %v2053, 4
        %v2055 = vmul.u32 %v2054, 18
        %v2056 = vsub.s32 %v2032, %v2055
        %v2057 = vsub.s32 0, %v2056
        %v2058 = vsel %vm2030, %v2057, %v2056
        %vm2059 = vcmp.lt.s32.totalorder %v1239, 0
        %v2060 = vsub.s32 0, %v1239
        %v2061 = vsel %vm2059, %v2060, %v1239
        %v2062 = vand.u32 %v2061, 65535
        %v2063 = vshrl.u32 %v2061, 16
        %v2065 = vmul.u32 %v2062, 14564
        %v2066 = vmul.u32 %v2062, 58254
        %v2067 = vmul.u32 %v2063, 14564
        %v2068 = vmul.u32 %v2063, 58254
        %v2069 = vshll.u32 %v2066, 16
        %v2070 = vshrl.u32 %v2066, 16
        %v2071 = vshll.u32 %v2067, 16
        %v2072 = vshrl.u32 %v2067, 16
        %vm2073 = vc.u32 %v2065, %v2069
        %v2074 = vsel %vm2073, 1, 0
        %v2075 = vadd.s32 %v2065, %v2069
        %v2076 = vadd.s32 %v2068, %v2074
        %vm2077 = vc.u32 %v2075, %v2071
        %v2078 = vsel %vm2077, 1, 0
        %v2079 = vadd.s32 %v2075, %v2071
        %v2080 = vadd.s32 %v2076, %v2078
        %v2081 = vadd.s32 %v2080, %v2070
        %v2082 = vadd.s32 %v2081, %v2072
        %v2083 = vshrl.u32 %v2082, 4
        %v2084 = vmul.u32 %v2083, 18
        %v2085 = vsub.s32 %v2061, %v2084
        %v2086 = vsub.s32 0, %v2085
        %v2087 = vsel %vm2059, %v2086, %v2085
        %vm2088 = vcmp.lt.s32.totalorder %v1240, 0
        %v2089 = vsub.s32 0, %v1240
        %v2090 = vsel %vm2088, %v2089, %v1240
        %v2091 = vand.u32 %v2090, 65535
        %v2092 = vshrl.u32 %v2090, 16
        %v2094 = vmul.u32 %v2091, 14564
        %v2095 = vmul.u32 %v2091, 58254
        %v2096 = vmul.u32 %v2092, 14564
        %v2097 = vmul.u32 %v2092, 58254
        %v2098 = vshll.u32 %v2095, 16
        %v2099 = vshrl.u32 %v2095, 16
        %v2100 = vshll.u32 %v2096, 16
        %v2101 = vshrl.u32 %v2096, 16
        %vm2102 = vc.u32 %v2094, %v2098
        %v2103 = vsel %vm2102, 1, 0
        %v2104 = vadd.s32 %v2094, %v2098
        %v2105 = vadd.s32 %v2097, %v2103
        %vm2106 = vc.u32 %v2104, %v2100
        %v2107 = vsel %vm2106, 1, 0
        %v2108 = vadd.s32 %v2104, %v2100
        %v2109 = vadd.s32 %v2105, %v2107
        %v2110 = vadd.s32 %v2109, %v2099
        %v2111 = vadd.s32 %v2110, %v2101
        %v2112 = vshrl.u32 %v2111, 4
        %v2113 = vmul.u32 %v2112, 18
        %v2114 = vsub.s32 %v2090, %v2113
        %v2115 = vsub.s32 0, %v2114
        %v2116 = vsel %vm2088, %v2115, %v2114
        %vm2117 = vcmp.lt.s32.totalorder %v1241, 0
        %v2118 = vsub.s32 0, %v1241
        %v2119 = vsel %vm2117, %v2118, %v1241
        %v2120 = vand.u32 %v2119, 65535
        %v2121 = vshrl.u32 %v2119, 16
        %v2123 = vmul.u32 %v2120, 14564
        %v2124 = vmul.u32 %v2120, 58254
        %v2125 = vmul.u32 %v2121, 14564
        %v2126 = vmul.u32 %v2121, 58254
        %v2127 = vshll.u32 %v2124, 16
        %v2128 = vshrl.u32 %v2124, 16
        %v2129 = vshll.u32 %v2125, 16
        %v2130 = vshrl.u32 %v2125, 16
        %vm2131 = vc.u32 %v2123, %v2127
        %v2132 = vsel %vm2131, 1, 0
        %v2133 = vadd.s32 %v2123, %v2127
        %v2134 = vadd.s32 %v2126, %v2132
        %vm2135 = vc.u32 %v2133, %v2129
        %v2136 = vsel %vm2135, 1, 0
        %v2137 = vadd.s32 %v2133, %v2129
        %v2138 = vadd.s32 %v2134, %v2136
        %v2139 = vadd.s32 %v2138, %v2128
        %v2140 = vadd.s32 %v2139, %v2130
        %v2141 = vshrl.u32 %v2140, 4
        %v2142 = vmul.u32 %v2141, 18
        %v2143 = vsub.s32 %v2119, %v2142
        %v2144 = vsub.s32 0, %v2143
        %v2145 = vsel %vm2117, %v2144, %v2143
        %vm2146 = vcmp.lt.s32.totalorder %v1242, 0
        %v2147 = vsub.s32 0, %v1242
        %v2148 = vsel %vm2146, %v2147, %v1242
        %v2149 = vand.u32 %v2148, 65535
        %v2150 = vshrl.u32 %v2148, 16
        %v2152 = vmul.u32 %v2149, 14564
        %v2153 = vmul.u32 %v2149, 58254
        %v2154 = vmul.u32 %v2150, 14564
        %v2155 = vmul.u32 %v2150, 58254
        %v2156 = vshll.u32 %v2153, 16
        %v2157 = vshrl.u32 %v2153, 16
        %v2158 = vshll.u32 %v2154, 16
        %v2159 = vshrl.u32 %v2154, 16
        %vm2160 = vc.u32 %v2152, %v2156
        %v2161 = vsel %vm2160, 1, 0
        %v2162 = vadd.s32 %v2152, %v2156
        %v2163 = vadd.s32 %v2155, %v2161
        %vm2164 = vc.u32 %v2162, %v2158
        %v2165 = vsel %vm2164, 1, 0
        %v2166 = vadd.s32 %v2162, %v2158
        %v2167 = vadd.s32 %v2163, %v2165
        %v2168 = vadd.s32 %v2167, %v2157
        %v2169 = vadd.s32 %v2168, %v2159
        %v2170 = vshrl.u32 %v2169, 4
        %v2171 = vmul.u32 %v2170, 18
        %v2172 = vsub.s32 %v2148, %v2171
        %v2173 = vsub.s32 0, %v2172
        %v2174 = vsel %vm2146, %v2173, %v2172
        %vm2175 = vcmp.lt.s32.totalorder %v1243, 0
        %v2176 = vsub.s32 0, %v1243
        %v2177 = vsel %vm2175, %v2176, %v1243
        %v2178 = vand.u32 %v2177, 65535
        %v2179 = vshrl.u32 %v2177, 16
        %v2181 = vmul.u32 %v2178, 14564
        %v2182 = vmul.u32 %v2178, 58254
        %v2183 = vmul.u32 %v2179, 14564
        %v2184 = vmul.u32 %v2179, 58254
        %v2185 = vshll.u32 %v2182, 16
        %v2186 = vshrl.u32 %v2182, 16
        %v2187 = vshll.u32 %v2183, 16
        %v2188 = vshrl.u32 %v2183, 16
        %vm2189 = vc.u32 %v2181, %v2185
        %v2190 = vsel %vm2189, 1, 0
        %v2191 = vadd.s32 %v2181, %v2185
        %v2192 = vadd.s32 %v2184, %v2190
        %vm2193 = vc.u32 %v2191, %v2187
        %v2194 = vsel %vm2193, 1, 0
        %v2195 = vadd.s32 %v2191, %v2187
        %v2196 = vadd.s32 %v2192, %v2194
        %v2197 = vadd.s32 %v2196, %v2186
        %v2198 = vadd.s32 %v2197, %v2188
        %v2199 = vshrl.u32 %v2198, 4
        %v2200 = vmul.u32 %v2199, 18
        %v2201 = vsub.s32 %v2177, %v2200
        %v2202 = vsub.s32 0, %v2201
        %v2203 = vsel %vm2175, %v2202, %v2201
        %vm2204 = vcmp.lt.s32.totalorder %v1244, 0
        %v2205 = vsub.s32 0, %v1244
        %v2206 = vsel %vm2204, %v2205, %v1244
        %v2207 = vand.u32 %v2206, 65535
        %v2208 = vshrl.u32 %v2206, 16
        %v2210 = vmul.u32 %v2207, 14564
        %v2211 = vmul.u32 %v2207, 58254
        %v2212 = vmul.u32 %v2208, 14564
        %v2213 = vmul.u32 %v2208, 58254
        %v2214 = vshll.u32 %v2211, 16
        %v2215 = vshrl.u32 %v2211, 16
        %v2216 = vshll.u32 %v2212, 16
        %v2217 = vshrl.u32 %v2212, 16
        %vm2218 = vc.u32 %v2210, %v2214
        %v2219 = vsel %vm2218, 1, 0
        %v2220 = vadd.s32 %v2210, %v2214
        %v2221 = vadd.s32 %v2213, %v2219
        %vm2222 = vc.u32 %v2220, %v2216
        %v2223 = vsel %vm2222, 1, 0
        %v2224 = vadd.s32 %v2220, %v2216
        %v2225 = vadd.s32 %v2221, %v2223
        %v2226 = vadd.s32 %v2225, %v2215
        %v2227 = vadd.s32 %v2226, %v2217
        %v2228 = vshrl.u32 %v2227, 4
        %v2229 = vmul.u32 %v2228, 18
        %v2230 = vsub.s32 %v2206, %v2229
        %v2231 = vsub.s32 0, %v2230
        %v2232 = vsel %vm2204, %v2231, %v2230
        %vm2233 = vcmp.lt.s32.totalorder %v1245, 0
        %v2234 = vsub.s32 0, %v1245
        %v2235 = vsel %vm2233, %v2234, %v1245
        %v2236 = vand.u32 %v2235, 65535
        %v2237 = vshrl.u32 %v2235, 16
        %v2239 = vmul.u32 %v2236, 14564
        %v2240 = vmul.u32 %v2236, 58254
        %v2241 = vmul.u32 %v2237, 14564
        %v2242 = vmul.u32 %v2237, 58254
        %v2243 = vshll.u32 %v2240, 16
        %v2244 = vshrl.u32 %v2240, 16
        %v2245 = vshll.u32 %v2241, 16
        %v2246 = vshrl.u32 %v2241, 16
        %vm2247 = vc.u32 %v2239, %v2243
        %v2248 = vsel %vm2247, 1, 0
        %v2249 = vadd.s32 %v2239, %v2243
        %v2250 = vadd.s32 %v2242, %v2248
        %vm2251 = vc.u32 %v2249, %v2245
        %v2252 = vsel %vm2251, 1, 0
        %v2253 = vadd.s32 %v2249, %v2245
        %v2254 = vadd.s32 %v2250, %v2252
        %v2255 = vadd.s32 %v2254, %v2244
        %v2256 = vadd.s32 %v2255, %v2246
        %v2257 = vshrl.u32 %v2256, 4
        %v2258 = vmul.u32 %v2257, 18
        %v2259 = vsub.s32 %v2235, %v2258
        %v2260 = vsub.s32 0, %v2259
        %v2261 = vsel %vm2233, %v2260, %v2259
        %vm2262 = vcmp.lt.s32.totalorder %v1246, 0
        %v2263 = vsub.s32 0, %v1246
        %v2264 = vsel %vm2262, %v2263, %v1246
        %v2265 = vand.u32 %v2264, 65535
        %v2266 = vshrl.u32 %v2264, 16
        %v2268 = vmul.u32 %v2265, 14564
        %v2269 = vmul.u32 %v2265, 58254
        %v2270 = vmul.u32 %v2266, 14564
        %v2271 = vmul.u32 %v2266, 58254
        %v2272 = vshll.u32 %v2269, 16
        %v2273 = vshrl.u32 %v2269, 16
        %v2274 = vshll.u32 %v2270, 16
        %v2275 = vshrl.u32 %v2270, 16
        %vm2276 = vc.u32 %v2268, %v2272
        %v2277 = vsel %vm2276, 1, 0
        %v2278 = vadd.s32 %v2268, %v2272
        %v2279 = vadd.s32 %v2271, %v2277
        %vm2280 = vc.u32 %v2278, %v2274
        %v2281 = vsel %vm2280, 1, 0
        %v2282 = vadd.s32 %v2278, %v2274
        %v2283 = vadd.s32 %v2279, %v2281
        %v2284 = vadd.s32 %v2283, %v2273
        %v2285 = vadd.s32 %v2284, %v2275
        %v2286 = vshrl.u32 %v2285, 4
        %v2287 = vmul.u32 %v2286, 18
        %v2288 = vsub.s32 %v2264, %v2287
        %v2289 = vsub.s32 0, %v2288
        %v2290 = vsel %vm2262, %v2289, %v2288
        %vm2291 = vcmp.ne.s32.totalorder %v1275, 0
        %vm2292 = vcmp.ne.s32.totalorder %v1304, 0
        %vm2293 = vcmp.ne.s32.totalorder %v1333, 0
        %vm2294 = vcmp.ne.s32.totalorder %v1362, 0
        %vm2295 = vcmp.ne.s32.totalorder %v1391, 0
        %vm2296 = vcmp.ne.s32.totalorder %v1420, 0
        %vm2297 = vcmp.ne.s32.totalorder %v1449, 0
        %vm2298 = vcmp.ne.s32.totalorder %v1478, 0
        %vm2299 = vcmp.ne.s32.totalorder %v1507, 0
        %vm2300 = vcmp.ne.s32.totalorder %v1536, 0
        %vm2301 = vcmp.ne.s32.totalorder %v1565, 0
        %vm2302 = vcmp.ne.s32.totalorder %v1594, 0
        %vm2303 = vcmp.ne.s32.totalorder %v1623, 0
        %vm2304 = vcmp.ne.s32.totalorder %v1652, 0
        %vm2305 = vcmp.ne.s32.totalorder %v1681, 0
        %vm2306 = vcmp.ne.s32.totalorder %v1710, 0
        %vm2307 = vcmp.ne.s32.totalorder %v1739, 0
        %vm2308 = vcmp.ne.s32.totalorder %v1768, 0
        %vm2309 = vcmp.ne.s32.totalorder %v1797, 0
        %vm2310 = vcmp.ne.s32.totalorder %v1826, 0
        %vm2311 = vcmp.ne.s32.totalorder %v1855, 0
        %vm2312 = vcmp.ne.s32.totalorder %v1884, 0
        %vm2313 = vcmp.ne.s32.totalorder %v1913, 0
        %vm2314 = vcmp.ne.s32.totalorder %v1942, 0
        %vm2315 = vcmp.ne.s32.totalorder %v1971, 0
        %vm2316 = vcmp.ne.s32.totalorder %v2000, 0
        %vm2317 = vcmp.ne.s32.totalorder %v2029, 0
        %vm2318 = vcmp.ne.s32.totalorder %v2058, 0
        %vm2319 = vcmp.ne.s32.totalorder %v2087, 0
        %vm2320 = vcmp.ne.s32.totalorder %v2116, 0
        %vm2321 = vcmp.ne.s32.totalorder %v2145, 0
        %vm2322 = vcmp.ne.s32.totalorder %v2174, 0
        %vm2323 = vcmp.ne.s32.totalorder %v2203, 0
        %vm2324 = vcmp.ne.s32.totalorder %v2232, 0
        %vm2325 = vcmp.ne.s32.totalorder %v2261, 0
        %vm2326 = vcmp.ne.s32.totalorder %v2290, 0
        %vm2327 = vcmp.lt.s32.totalorder %v1275, 0
        %vm2328 = vcmp.lt.s32.totalorder %v1304, 0
        %vm2329 = vcmp.lt.s32.totalorder %v1333, 0
        %vm2330 = vcmp.lt.s32.totalorder %v1362, 0
        %vm2331 = vcmp.lt.s32.totalorder %v1391, 0
        %vm2332 = vcmp.lt.s32.totalorder %v1420, 0
        %vm2333 = vcmp.lt.s32.totalorder %v1449, 0
        %vm2334 = vcmp.lt.s32.totalorder %v1478, 0
        %vm2335 = vcmp.lt.s32.totalorder %v1507, 0
        %vm2336 = vcmp.lt.s32.totalorder %v1536, 0
        %vm2337 = vcmp.lt.s32.totalorder %v1565, 0
        %vm2338 = vcmp.lt.s32.totalorder %v1594, 0
        %vm2339 = vcmp.lt.s32.totalorder %v1623, 0
        %vm2340 = vcmp.lt.s32.totalorder %v1652, 0
        %vm2341 = vcmp.lt.s32.totalorder %v1681, 0
        %vm2342 = vcmp.lt.s32.totalorder %v1710, 0
        %vm2343 = vcmp.lt.s32.totalorder %v1739, 0
        %vm2344 = vcmp.lt.s32.totalorder %v1768, 0
        %vm2345 = vcmp.lt.s32.totalorder %v1797, 0
        %vm2346 = vcmp.lt.s32.totalorder %v1826, 0
        %vm2347 = vcmp.lt.s32.totalorder %v1855, 0
        %vm2348 = vcmp.lt.s32.totalorder %v1884, 0
        %vm2349 = vcmp.lt.s32.totalorder %v1913, 0
        %vm2350 = vcmp.lt.s32.totalorder %v1942, 0
        %vm2351 = vcmp.lt.s32.totalorder %v1971, 0
        %vm2352 = vcmp.lt.s32.totalorder %v2000, 0
        %vm2353 = vcmp.lt.s32.totalorder %v2029, 0
        %vm2354 = vcmp.lt.s32.totalorder %v2058, 0
        %vm2355 = vcmp.lt.s32.totalorder %v2087, 0
        %vm2356 = vcmp.lt.s32.totalorder %v2116, 0
        %vm2357 = vcmp.lt.s32.totalorder %v2145, 0
        %vm2358 = vcmp.lt.s32.totalorder %v2174, 0
        %vm2359 = vcmp.lt.s32.totalorder %v2203, 0
        %vm2360 = vcmp.lt.s32.totalorder %v2232, 0
        %vm2361 = vcmp.lt.s32.totalorder %v2261, 0
        %vm2362 = vcmp.lt.s32.totalorder %v2290, 0
        %vm2363 = vmand %vm2327, %vm2291
        %vm2364 = vmand %vm2328, %vm2292
        %vm2365 = vmand %vm2329, %vm2293
        %vm2366 = vmand %vm2330, %vm2294
        %vm2367 = vmand %vm2331, %vm2295
        %vm2368 = vmand %vm2332, %vm2296
        %vm2369 = vmand %vm2333, %vm2297
        %vm2370 = vmand %vm2334, %vm2298
        %vm2371 = vmand %vm2335, %vm2299
        %vm2372 = vmand %vm2336, %vm2300
        %vm2373 = vmand %vm2337, %vm2301
        %vm2374 = vmand %vm2338, %vm2302
        %vm2375 = vmand %vm2339, %vm2303
        %vm2376 = vmand %vm2340, %vm2304
        %vm2377 = vmand %vm2341, %vm2305
        %vm2378 = vmand %vm2342, %vm2306
        %vm2379 = vmand %vm2343, %vm2307
        %vm2380 = vmand %vm2344, %vm2308
        %vm2381 = vmand %vm2345, %vm2309
        %vm2382 = vmand %vm2346, %vm2310
        %vm2383 = vmand %vm2347, %vm2311
        %vm2384 = vmand %vm2348, %vm2312
        %vm2385 = vmand %vm2349, %vm2313
        %vm2386 = vmand %vm2350, %vm2314
        %vm2387 = vmand %vm2351, %vm2315
        %vm2388 = vmand %vm2352, %vm2316
        %vm2389 = vmand %vm2353, %vm2317
        %vm2390 = vmand %vm2354, %vm2318
        %vm2391 = vmand %vm2355, %vm2319
        %vm2392 = vmand %vm2356, %vm2320
        %vm2393 = vmand %vm2357, %vm2321
        %vm2394 = vmand %vm2358, %vm2322
        %vm2395 = vmand %vm2359, %vm2323
        %vm2396 = vmand %vm2360, %vm2324
        %vm2397 = vmand %vm2361, %vm2325
        %vm2398 = vmand %vm2362, %vm2326
        %v2399 = vadd.s32 %v1275, 18
        %v2400 = vadd.s32 %v1304, 18
        %v2401 = vadd.s32 %v1333, 18
        %v2402 = vadd.s32 %v1362, 18
        %v2403 = vadd.s32 %v1391, 18
        %v2404 = vadd.s32 %v1420, 18
        %v2405 = vadd.s32 %v1449, 18
        %v2406 = vadd.s32 %v1478, 18
        %v2407 = vadd.s32 %v1507, 18
        %v2408 = vadd.s32 %v1536, 18
        %v2409 = vadd.s32 %v1565, 18
        %v2410 = vadd.s32 %v1594, 18
        %v2411 = vadd.s32 %v1623, 18
        %v2412 = vadd.s32 %v1652, 18
        %v2413 = vadd.s32 %v1681, 18
        %v2414 = vadd.s32 %v1710, 18
        %v2415 = vadd.s32 %v1739, 18
        %v2416 = vadd.s32 %v1768, 18
        %v2417 = vadd.s32 %v1797, 18
        %v2418 = vadd.s32 %v1826, 18
        %v2419 = vadd.s32 %v1855, 18
        %v2420 = vadd.s32 %v1884, 18
        %v2421 = vadd.s32 %v1913, 18
        %v2422 = vadd.s32 %v1942, 18
        %v2423 = vadd.s32 %v1971, 18
        %v2424 = vadd.s32 %v2000, 18
        %v2425 = vadd.s32 %v2029, 18
        %v2426 = vadd.s32 %v2058, 18
        %v2427 = vadd.s32 %v2087, 18
        %v2428 = vadd.s32 %v2116, 18
        %v2429 = vadd.s32 %v2145, 18
        %v2430 = vadd.s32 %v2174, 18
        %v2431 = vadd.s32 %v2203, 18
        %v2432 = vadd.s32 %v2232, 18
        %v2433 = vadd.s32 %v2261, 18
        %v2434 = vadd.s32 %v2290, 18
        %v2435 = vsel %vm2363, %v2399, %v1275
        %v2436 = vsel %vm2364, %v2400, %v1304
        %v2437 = vsel %vm2365, %v2401, %v1333
        %v2438 = vsel %vm2366, %v2402, %v1362
        %v2439 = vsel %vm2367, %v2403, %v1391
        %v2440 = vsel %vm2368, %v2404, %v1420
        %v2441 = vsel %vm2369, %v2405, %v1449
        %v2442 = vsel %vm2370, %v2406, %v1478
        %v2443 = vsel %vm2371, %v2407, %v1507
        %v2444 = vsel %vm2372, %v2408, %v1536
        %v2445 = vsel %vm2373, %v2409, %v1565
        %v2446 = vsel %vm2374, %v2410, %v1594
        %v2447 = vsel %vm2375, %v2411, %v1623
        %v2448 = vsel %vm2376, %v2412, %v1652
        %v2449 = vsel %vm2377, %v2413, %v1681
        %v2450 = vsel %vm2378, %v2414, %v1710
        %v2451 = vsel %vm2379, %v2415, %v1739
        %v2452 = vsel %vm2380, %v2416, %v1768
        %v2453 = vsel %vm2381, %v2417, %v1797
        %v2454 = vsel %vm2382, %v2418, %v1826
        %v2455 = vsel %vm2383, %v2419, %v1855
        %v2456 = vsel %vm2384, %v2420, %v1884
        %v2457 = vsel %vm2385, %v2421, %v1913
        %v2458 = vsel %vm2386, %v2422, %v1942
        %v2459 = vsel %vm2387, %v2423, %v1971
        %v2460 = vsel %vm2388, %v2424, %v2000
        %v2461 = vsel %vm2389, %v2425, %v2029
        %v2462 = vsel %vm2390, %v2426, %v2058
        %v2463 = vsel %vm2391, %v2427, %v2087
        %v2464 = vsel %vm2392, %v2428, %v2116
        %v2465 = vsel %vm2393, %v2429, %v2145
        %v2466 = vsel %vm2394, %v2430, %v2174
        %v2467 = vsel %vm2395, %v2431, %v2203
        %v2468 = vsel %vm2396, %v2432, %v2232
        %v2469 = vsel %vm2397, %v2433, %v2261
        %v2470 = vsel %vm2398, %v2434, %v2290
        %vm2471 = vcmp.lt.s32.totalorder %v2435, 16
        %vm2472 = vcmp.lt.s32.totalorder %v2436, 16
        %vm2473 = vcmp.lt.s32.totalorder %v2437, 16
        %vm2474 = vcmp.lt.s32.totalorder %v2438, 16
        %vm2475 = vcmp.lt.s32.totalorder %v2439, 16
        %vm2476 = vcmp.lt.s32.totalorder %v2440, 16
        %vm2477 = vcmp.lt.s32.totalorder %v2441, 16
        %vm2478 = vcmp.lt.s32.totalorder %v2442, 16
        %vm2479 = vcmp.lt.s32.totalorder %v2443, 16
        %vm2480 = vcmp.lt.s32.totalorder %v2444, 16
        %vm2481 = vcmp.lt.s32.totalorder %v2445, 16
        %vm2482 = vcmp.lt.s32.totalorder %v2446, 16
        %vm2483 = vcmp.lt.s32.totalorder %v2447, 16
        %vm2484 = vcmp.lt.s32.totalorder %v2448, 16
        %vm2485 = vcmp.lt.s32.totalorder %v2449, 16
        %vm2486 = vcmp.lt.s32.totalorder %v2450, 16
        %vm2487 = vcmp.lt.s32.totalorder %v2451, 16
        %vm2488 = vcmp.lt.s32.totalorder %v2452, 16
        %vm2489 = vcmp.lt.s32.totalorder %v2453, 16
        %vm2490 = vcmp.lt.s32.totalorder %v2454, 16
        %vm2491 = vcmp.lt.s32.totalorder %v2455, 16
        %vm2492 = vcmp.lt.s32.totalorder %v2456, 16
        %vm2493 = vcmp.lt.s32.totalorder %v2457, 16
        %vm2494 = vcmp.lt.s32.totalorder %v2458, 16
        %vm2495 = vcmp.lt.s32.totalorder %v2459, 16
        %vm2496 = vcmp.lt.s32.totalorder %v2460, 16
        %vm2497 = vcmp.lt.s32.totalorder %v2461, 16
        %vm2498 = vcmp.lt.s32.totalorder %v2462, 16
        %vm2499 = vcmp.lt.s32.totalorder %v2463, 16
        %vm2500 = vcmp.lt.s32.totalorder %v2464, 16
        %vm2501 = vcmp.lt.s32.totalorder %v2465, 16
        %vm2502 = vcmp.lt.s32.totalorder %v2466, 16
        %vm2503 = vcmp.lt.s32.totalorder %v2467, 16
        %vm2504 = vcmp.lt.s32.totalorder %v2468, 16
        %vm2505 = vcmp.lt.s32.totalorder %v2469, 16
        %vm2506 = vcmp.lt.s32.totalorder %v2470, 16
        %v2507 = vsel %vm2471, %v1099, 0.0
        %v2508 = vsel %vm2472, %v1100, 0.0
        %v2509 = vsel %vm2473, %v1101, 0.0
        %v2510 = vsel %vm2474, %v1102, 0.0
        %v2511 = vsel %vm2475, %v1103, 0.0
        %v2512 = vsel %vm2476, %v1104, 0.0
        %v2513 = vsel %vm2477, %v1105, 0.0
        %v2514 = vsel %vm2478, %v1106, 0.0
        %v2515 = vsel %vm2479, %v1107, 0.0
        %v2516 = vsel %vm2480, %v1108, 0.0
        %v2517 = vsel %vm2481, %v1109, 0.0
        %v2518 = vsel %vm2482, %v1110, 0.0
        %v2519 = vsel %vm2483, %v1111, 0.0
        %v2520 = vsel %vm2484, %v1112, 0.0
        %v2521 = vsel %vm2485, %v1113, 0.0
        %v2522 = vsel %vm2486, %v1114, 0.0
        %v2523 = vsel %vm2487, %v1115, 0.0
        %v2524 = vsel %vm2488, %v1116, 0.0
        %v2525 = vsel %vm2489, %v1117, 0.0
        %v2526 = vsel %vm2490, %v1118, 0.0
        %v2527 = vsel %vm2491, %v1119, 0.0
        %v2528 = vsel %vm2492, %v1120, 0.0
        %v2529 = vsel %vm2493, %v1121, 0.0
        %v2530 = vsel %vm2494, %v1122, 0.0
        %v2531 = vsel %vm2495, %v1123, 0.0
        %v2532 = vsel %vm2496, %v1124, 0.0
        %v2533 = vsel %vm2497, %v1125, 0.0
        %v2534 = vsel %vm2498, %v1126, 0.0
        %v2535 = vsel %vm2499, %v1127, 0.0
        %v2536 = vsel %vm2500, %v1128, 0.0
        %v2537 = vsel %vm2501, %v1129, 0.0
        %v2538 = vsel %vm2502, %v1130, 0.0
        %v2539 = vsel %vm2503, %v1131, 0.0
        %v2540 = vsel %vm2504, %v1132, 0.0
        %v2541 = vsel %vm2505, %v1133, 0.0
        %v2542 = vsel %vm2506, %v1134, 0.0
        %v2543 = vadd.f32 %v2507, %v2508
        %v2544 = vadd.f32 %v2543, %v2509
        %v2545 = vadd.f32 %v2544, %v2510
        %v2546 = vadd.f32 %v2545, %v2511
        %v2547 = vadd.f32 %v2546, %v2512
        %v2548 = vadd.f32 %v2547, %v2513
        %v2549 = vadd.f32 %v2548, %v2514
        %v2550 = vadd.f32 %v2549, %v2515
        %v2551 = vadd.f32 %v2550, %v2516
        %v2552 = vadd.f32 %v2551, %v2517
        %v2553 = vadd.f32 %v2552, %v2518
        %v2554 = vadd.f32 %v2553, %v2519
        %v2555 = vadd.f32 %v2554, %v2520
        %v2556 = vadd.f32 %v2555, %v2521
        %v2557 = vadd.f32 %v2556, %v2522
        %v2558 = vadd.f32 %v2557, %v2523
        %v2559 = vadd.f32 %v2558, %v2524
        %v2560 = vadd.f32 %v2559, %v2525
        %v2561 = vadd.f32 %v2560, %v2526
        %v2562 = vadd.f32 %v2561, %v2527
        %v2563 = vadd.f32 %v2562, %v2528
        %v2564 = vadd.f32 %v2563, %v2529
        %v2565 = vadd.f32 %v2564, %v2530
        %v2566 = vadd.f32 %v2565, %v2531
        %v2567 = vadd.f32 %v2566, %v2532
        %v2568 = vadd.f32 %v2567, %v2533
        %v2569 = vadd.f32 %v2568, %v2534
        %v2570 = vadd.f32 %v2569, %v2535
        %v2571 = vadd.f32 %v2570, %v2536
        %v2572 = vadd.f32 %v2571, %v2537
        %v2573 = vadd.f32 %v2572, %v2538
        %v2574 = vadd.f32 %v2573, %v2539
        %v2575 = vadd.f32 %v2574, %v2540
        %v2576 = vadd.f32 %v2575, %v2541
        %v2577 = vadd.f32 %v2576, %v2542
        %v2578 = vrot.slane %v2577, 4
        %v2579 = vadd.f32 %v2577, %v2578
        %v2580 = vrot.slane %v2579, 2
        %v2581 = vadd.f32 %v2579, %v2580
        %v2582 = vrot.slane %v2581, 1
        %v2583 = vadd.f32 %v2581, %v2582
        %v2584 = vmul.f32 %v2583, 0.00390625
        %v2585 = vsub.f32 %v1099, %v2584
        %v2586 = vsub.f32 %v1100, %v2584
        %v2587 = vsub.f32 %v1101, %v2584
        %v2588 = vsub.f32 %v1102, %v2584
        %v2589 = vsub.f32 %v1103, %v2584
        %v2590 = vsub.f32 %v1104, %v2584
        %v2591 = vsub.f32 %v1105, %v2584
        %v2592 = vsub.f32 %v1106, %v2584
        %v2593 = vsub.f32 %v1107, %v2584
        %v2594 = vsub.f32 %v1108, %v2584
        %v2595 = vsub.f32 %v1109, %v2584
        %v2596 = vsub.f32 %v1110, %v2584
        %v2597 = vsub.f32 %v1111, %v2584
        %v2598 = vsub.f32 %v1112, %v2584
        %v2599 = vsub.f32 %v1113, %v2584
        %v2600 = vsub.f32 %v1114, %v2584
        %v2601 = vsub.f32 %v1115, %v2584
        %v2602 = vsub.f32 %v1116, %v2584
        %v2603 = vsub.f32 %v1117, %v2584
        %v2604 = vsub.f32 %v1118, %v2584
        %v2605 = vsub.f32 %v1119, %v2584
        %v2606 = vsub.f32 %v1120, %v2584
        %v2607 = vsub.f32 %v1121, %v2584
        %v2608 = vsub.f32 %v1122, %v2584
        %v2609 = vsub.f32 %v1123, %v2584
        %v2610 = vsub.f32 %v1124, %v2584
        %v2611 = vsub.f32 %v1125, %v2584
        %v2612 = vsub.f32 %v1126, %v2584
        %v2613 = vsub.f32 %v1127, %v2584
        %v2614 = vsub.f32 %v1128, %v2584
        %v2615 = vsub.f32 %v1129, %v2584
        %v2616 = vsub.f32 %v1130, %v2584
        %v2617 = vsub.f32 %v1131, %v2584
        %v2618 = vsub.f32 %v1132, %v2584
        %v2619 = vsub.f32 %v1133, %v2584
        %v2620 = vsub.f32 %v1134, %v2584
        %v2621 = vsel %vm2471, %v2585, 0.0
        %v2622 = vsel %vm2472, %v2586, 0.0
        %v2623 = vsel %vm2473, %v2587, 0.0
        %v2624 = vsel %vm2474, %v2588, 0.0
        %v2625 = vsel %vm2475, %v2589, 0.0
        %v2626 = vsel %vm2476, %v2590, 0.0
        %v2627 = vsel %vm2477, %v2591, 0.0
        %v2628 = vsel %vm2478, %v2592, 0.0
        %v2629 = vsel %vm2479, %v2593, 0.0
        %v2630 = vsel %vm2480, %v2594, 0.0
        %v2631 = vsel %vm2481, %v2595, 0.0
        %v2632 = vsel %vm2482, %v2596, 0.0
        %v2633 = vsel %vm2483, %v2597, 0.0
        %v2634 = vsel %vm2484, %v2598, 0.0
        %v2635 = vsel %vm2485, %v2599, 0.0
        %v2636 = vsel %vm2486, %v2600, 0.0
        %v2637 = vsel %vm2487, %v2601, 0.0
        %v2638 = vsel %vm2488, %v2602, 0.0
        %v2639 = vsel %vm2489, %v2603, 0.0
        %v2640 = vsel %vm2490, %v2604, 0.0
        %v2641 = vsel %vm2491, %v2605, 0.0
        %v2642 = vsel %vm2492, %v2606, 0.0
        %v2643 = vsel %vm2493, %v2607, 0.0
        %v2644 = vsel %vm2494, %v2608, 0.0
        %v2645 = vsel %vm2495, %v2609, 0.0
        %v2646 = vsel %vm2496, %v2610, 0.0
        %v2647 = vsel %vm2497, %v2611, 0.0
        %v2648 = vsel %vm2498, %v2612, 0.0
        %v2649 = vsel %vm2499, %v2613, 0.0
        %v2650 = vsel %vm2500, %v2614, 0.0
        %v2651 = vsel %vm2501, %v2615, 0.0
        %v2652 = vsel %vm2502, %v2616, 0.0
        %v2653 = vsel %vm2503, %v2617, 0.0
        %v2654 = vsel %vm2504, %v2618, 0.0
        %v2655 = vsel %vm2505, %v2619, 0.0
        %v2656 = vsel %vm2506, %v2620, 0.0
        %v2657 = vmul.f32 %v2621, %v2621
        %v2658 = vmul.f32 %v2622, %v2622
        %v2659 = vmul.f32 %v2623, %v2623
        %v2660 = vmul.f32 %v2624, %v2624
        %v2661 = vmul.f32 %v2625, %v2625
        %v2662 = vmul.f32 %v2626, %v2626
        %v2663 = vmul.f32 %v2627, %v2627
        %v2664 = vmul.f32 %v2628, %v2628
        %v2665 = vmul.f32 %v2629, %v2629
        %v2666 = vmul.f32 %v2630, %v2630
        %v2667 = vmul.f32 %v2631, %v2631
        %v2668 = vmul.f32 %v2632, %v2632
        %v2669 = vmul.f32 %v2633, %v2633
        %v2670 = vmul.f32 %v2634, %v2634
        %v2671 = vmul.f32 %v2635, %v2635
        %v2672 = vmul.f32 %v2636, %v2636
        %v2673 = vmul.f32 %v2637, %v2637
        %v2674 = vmul.f32 %v2638, %v2638
        %v2675 = vmul.f32 %v2639, %v2639
        %v2676 = vmul.f32 %v2640, %v2640
        %v2677 = vmul.f32 %v2641, %v2641
        %v2678 = vmul.f32 %v2642, %v2642
        %v2679 = vmul.f32 %v2643, %v2643
        %v2680 = vmul.f32 %v2644, %v2644
        %v2681 = vmul.f32 %v2645, %v2645
        %v2682 = vmul.f32 %v2646, %v2646
        %v2683 = vmul.f32 %v2647, %v2647
        %v2684 = vmul.f32 %v2648, %v2648
        %v2685 = vmul.f32 %v2649, %v2649
        %v2686 = vmul.f32 %v2650, %v2650
        %v2687 = vmul.f32 %v2651, %v2651
        %v2688 = vmul.f32 %v2652, %v2652
        %v2689 = vmul.f32 %v2653, %v2653
        %v2690 = vmul.f32 %v2654, %v2654
        %v2691 = vmul.f32 %v2655, %v2655
        %v2692 = vmul.f32 %v2656, %v2656
        %v2693 = vadd.f32 %v2657, %v2658
        %v2694 = vadd.f32 %v2693, %v2659
        %v2695 = vadd.f32 %v2694, %v2660
        %v2696 = vadd.f32 %v2695, %v2661
        %v2697 = vadd.f32 %v2696, %v2662
        %v2698 = vadd.f32 %v2697, %v2663
        %v2699 = vadd.f32 %v2698, %v2664
        %v2700 = vadd.f32 %v2699, %v2665
        %v2701 = vadd.f32 %v2700, %v2666
        %v2702 = vadd.f32 %v2701, %v2667
        %v2703 = vadd.f32 %v2702, %v2668
        %v2704 = vadd.f32 %v2703, %v2669
        %v2705 = vadd.f32 %v2704, %v2670
        %v2706 = vadd.f32 %v2705, %v2671
        %v2707 = vadd.f32 %v2706, %v2672
        %v2708 = vadd.f32 %v2707, %v2673
        %v2709 = vadd.f32 %v2708, %v2674
        %v2710 = vadd.f32 %v2709, %v2675
        %v2711 = vadd.f32 %v2710, %v2676
        %v2712 = vadd.f32 %v2711, %v2677
        %v2713 = vadd.f32 %v2712, %v2678
        %v2714 = vadd.f32 %v2713, %v2679
        %v2715 = vadd.f32 %v2714, %v2680
        %v2716 = vadd.f32 %v2715, %v2681
        %v2717 = vadd.f32 %v2716, %v2682
        %v2718 = vadd.f32 %v2717, %v2683
        %v2719 = vadd.f32 %v2718, %v2684
        %v2720 = vadd.f32 %v2719, %v2685
        %v2721 = vadd.f32 %v2720, %v2686
        %v2722 = vadd.f32 %v2721, %v2687
        %v2723 = vadd.f32 %v2722, %v2688
        %v2724 = vadd.f32 %v2723, %v2689
        %v2725 = vadd.f32 %v2724, %v2690
        %v2726 = vadd.f32 %v2725, %v2691
        %v2727 = vadd.f32 %v2726, %v2692
        %v2728 = vrot.slane %v2727, 4
        %v2729 = vadd.f32 %v2727, %v2728
        %v2730 = vrot.slane %v2729, 2
        %v2731 = vadd.f32 %v2729, %v2730
        %v2732 = vrot.slane %v2731, 1
        %v2733 = vadd.f32 %v2731, %v2732
        %s2734 = scvt.s32.f32 %s20
        %s2735 = sadd.f32 %s2734, 1.0
        %v2736 = vstv %s2735
        %v2737 = vrcp.pop %v2736
        %v2738 = vmul.f32 %v2736, %v2737
        %v2739 = vsub.f32 1.0, %v2738
        %v2740 = vmul.f32 %v2737, %v2739
        %v2741 = vadd.f32 %v2737, %v2740
        %vm2742 = vweird.f32 %v2736
        %vm2743 = vweird.f32 %v2737
        %vm2744 = vmor %vm2742, %vm2743
        %v2745 = vsel %vm2744, %v2737, %v2741
        %v2746 = vand.u32 2147483647, %v2736
        %vm2747 = vcmp.eq.f32.partialorder %v2746, 8.507059e+37
        %v2748 = vand.u32 %v2736, 2147483648
        %v2749 = vor.u32 1.1754944e-38, %v2748
        %v2750 = vsel %vm2747, %v2749, %v2745
        %s2751 = vtos %v2750
        %s2752 = smul.f32 %s2734, 256.0
        %s2753 = smul.f32 %s2752, %s2751
        %v2754 = vld [vmem:[#allocation4] sm:$0x1]
        %v2755 = vld [vmem:[#allocation4 + $0x1] sm:$0x1]
        %v2756 = vsub.f32 %v2584, %v2754
        %v2757 = vstv %s2751
        %v2758 = vmul.f32 %v2756, %v2757
        %v2759 = vadd.f32 %v2754, %v2758
        %2760 = vst [vmem:[#allocation4] sm:$0x1] %v2759
        %v2761 = vadd.f32 %v2755, %v2733
        %v2762 = vmul.f32 %v2756, %v2756
        %v2763 = vstv %s2753
        %v2764 = vmul.f32 %v2762, %v2763
        %v2765 = vadd.f32 %v2761, %v2764
        %2766 = vst [vmem:[#allocation4 + $0x1] sm:$0x1] %v2765
        %p2767 = scmp.eq.s32.totalorder %s20, 1
        // Predicated region
        $region45: #{inconv_forward.1} parent=39 // pred_check
          %p2768 = pneg %p2767
        $region46: #{inconv_forward.1} parent=39 // pred_check_branch
          %2770 = sbr.rel (%p2768) target = $region48
        $region47: #{inconv_forward.1} parent=39 // pred_region
          %v2771 = vld [vmem:[#allocation4] sm:$0x1]
          %v2772 = vld [vmem:[#allocation4 + $0x1] sm:$0x1]
          %v2773 = vmul.f32 %v2772, 0.001953125
          %v2774 = vld [vmem:[%s3] sm:$0x1]
          %v2775 = vld [vmem:[%s3 + $0x1] sm:$0x1]
          %v2776 = vadd.f32 %v2773, 1e-05
          %v2777 = vrsqrt.pop %v2776
          %v2778 = vmul.f32 %v2777, %v2776
          %v2779 = vmul.f32 %v2778, %v2777
          %v2780 = vmul.f32 0.5, %v2779
          %v2781 = vsub.f32 1.5, %v2780
          %v2782 = vmul.f32 %v2777, %v2781
          %vm2783 = vweird.f32 %v2776
          %vm2784 = vweird.f32 %v2777
          %vm2785 = vmor %vm2783, %vm2784
          %v2786 = vsel %vm2785, %v2777, %v2782
          %v2787 = vmul.f32 %v2774, %v2786
          %2788 = vst [vmem:[#allocation5] sm:$0x1] %v2787
          %v2789 = vmul.f32 %v2771, %v2787
          %v2790 = vsub.f32 %v2775, %v2789
          %2791 = vst [vmem:[#allocation5 + $0x1] sm:$0x1] %v2790
          %2792 = vst [vmem:[#allocation4] sm:$0x3] 0.0
        $region48: #{inconv_forward.1} parent=39 // pred_fallthru
          _
      $region40: #{inconv_forward.1} parent=35 // pred_fallthru
        _
      %p2793 = scmp.eq.s32.totalorder %s19, 1
      // Predicated region
      $region49: #{inconv_forward.1} parent=35 // pred_check
        %p2794 = pneg %p2793
      $region50: #{inconv_forward.1} parent=35 // pred_check_branch
        %2796 = sbr.rel (%p2794) target = $region52
      $region51: #{inconv_forward.1} parent=35 // pred_region
        %p2797 = scmp.eq.s32.totalorder %s20, 0
        // Predicated region
        $region53: #{inconv_forward.1} parent=51 // pred_check
          %p2798 = pneg %p2797
        $region54: #{inconv_forward.1} parent=51 // pred_check_branch
          %2800 = sbr.rel (%p2798) target = $region56
        $region55: #{inconv_forward.1} parent=51 // pred_region
          %2801 = vst [vmem:[#allocation3] sm:$0xf] 0
          %2802 = vst [vmem:[#allocation3 + $0x4] sm:$0xf] 0
          %vm2803 = vcmask 1041408
          %vm2804 = vsmask.f32 1280
          %vm2805 = vmand %vm2803, %vm2804
          %v2806 = vld [vmem:[#allocation3 + $0x8] sm:$0x3]
          %v2807 = vsel %vm2805, 0, %v2806
          %2808 = vst [vmem:[#allocation3 + $0x8] sm:$0x3] %v2807
          %vm2809 = vcmask 1043457
          %vm2810 = vsmask.f32 7942
          %vm2811 = vmand %vm2809, %vm2810
          %v2812 = vld [vmem:[#allocation3 + $0x98] sm:$0xe]
          %v2813 = vsel %vm2811, 0, %v2812
          %2814 = vst [vmem:[#allocation3 + $0x98] sm:$0xe] %v2813
          %2815 = vst [vmem:[#allocation3 + $0x9c] sm:$0xf] 0
          %2816 = vst [vmem:[#allocation3 + $0xa0] sm:$0xf] 0
          %2817 = vst [vmem:[#allocation3 + $0xa4] sm:$0x3] 0
        $region56: #{inconv_forward.1} parent=51 // pred_fallthru
          _
        %v2818 = vlaneseq
        %v2819 = vshrl.u32 %v2818, 7
        %v2820 = vadd.s32 %v2819, 8
        %v2821 = vadd.s32 %v2819, 16
        %v2822 = vadd.s32 %v2819, 24
        %v2823 = vadd.s32 %v2819, 32
        %v2824 = vadd.s32 %v2819, 40
        %v2825 = vadd.s32 %v2819, 48
        %v2826 = vadd.s32 %v2819, 56
        %v2827 = vadd.s32 %v2819, 64
        %v2828 = vadd.s32 %v2819, 72
        %v2829 = vadd.s32 %v2819, 80
        %v2830 = vadd.s32 %v2819, 88
        %v2831 = vadd.s32 %v2819, 96
        %v2832 = vadd.s32 %v2819, 104
        %v2833 = vadd.s32 %v2819, 112
        %v2834 = vadd.s32 %v2819, 120
        %v2835 = vadd.s32 %v2819, 128
        %v2836 = vadd.s32 %v2819, 136
        %v2837 = vadd.s32 %v2819, 144
        %v2838 = vadd.s32 %v2819, 152
        %v2839 = vadd.s32 %v2819, 160
        %v2840 = vadd.s32 %v2819, 168
        %v2841 = vadd.s32 %v2819, 176
        %v2842 = vadd.s32 %v2819, 184
        %v2843 = vadd.s32 %v2819, 192
        %v2844 = vadd.s32 %v2819, 200
        %v2845 = vadd.s32 %v2819, 208
        %v2846 = vadd.s32 %v2819, 216
        %v2847 = vadd.s32 %v2819, 224
        %v2848 = vadd.s32 %v2819, 232
        %v2849 = vadd.s32 %v2819, 240
        %v2850 = vadd.s32 %v2819, 248
        %v2851 = vadd.s32 %v2819, 256
        %v2852 = vadd.s32 %v2819, 264
        %v2853 = vadd.s32 %v2819, 272
        %v2854 = vadd.s32 %v2819, 280
        %vm2855 = vcmp.lt.s32.totalorder %v2819, 0
        %v2856 = vsub.s32 0, %v2819
        %v2857 = vsel %vm2855, %v2856, %v2819
        %v2858 = vand.u32 %v2857, 65535
        %v2859 = vshrl.u32 %v2857, 16
        %v2861 = vmul.u32 %v2858, 14564
        %v2862 = vmul.u32 %v2858, 58254
        %v2863 = vmul.u32 %v2859, 14564
        %v2864 = vmul.u32 %v2859, 58254
        %v2865 = vshll.u32 %v2862, 16
        %v2866 = vshrl.u32 %v2862, 16
        %v2867 = vshll.u32 %v2863, 16
        %v2868 = vshrl.u32 %v2863, 16
        %vm2869 = vc.u32 %v2861, %v2865
        %v2870 = vsel %vm2869, 1, 0
        %v2871 = vadd.s32 %v2861, %v2865
        %v2872 = vadd.s32 %v2864, %v2870
        %vm2873 = vc.u32 %v2871, %v2867
        %v2874 = vsel %vm2873, 1, 0
        %v2875 = vadd.s32 %v2871, %v2867
        %v2876 = vadd.s32 %v2872, %v2874
        %v2877 = vadd.s32 %v2876, %v2866
        %v2878 = vadd.s32 %v2877, %v2868
        %v2879 = vshrl.u32 %v2878, 4
        %v2880 = vmul.u32 %v2879, 18
        %v2881 = vsub.s32 %v2857, %v2880
        %v2882 = vsub.s32 0, %v2881
        %v2883 = vsel %vm2855, %v2882, %v2881
        %vm2884 = vcmp.lt.s32.totalorder %v2820, 0
        %v2885 = vsub.s32 0, %v2820
        %v2886 = vsel %vm2884, %v2885, %v2820
        %v2887 = vand.u32 %v2886, 65535
        %v2888 = vshrl.u32 %v2886, 16
        %v2890 = vmul.u32 %v2887, 14564
        %v2891 = vmul.u32 %v2887, 58254
        %v2892 = vmul.u32 %v2888, 14564
        %v2893 = vmul.u32 %v2888, 58254
        %v2894 = vshll.u32 %v2891, 16
        %v2895 = vshrl.u32 %v2891, 16
        %v2896 = vshll.u32 %v2892, 16
        %v2897 = vshrl.u32 %v2892, 16
        %vm2898 = vc.u32 %v2890, %v2894
        %v2899 = vsel %vm2898, 1, 0
        %v2900 = vadd.s32 %v2890, %v2894
        %v2901 = vadd.s32 %v2893, %v2899
        %vm2902 = vc.u32 %v2900, %v2896
        %v2903 = vsel %vm2902, 1, 0
        %v2904 = vadd.s32 %v2900, %v2896
        %v2905 = vadd.s32 %v2901, %v2903
        %v2906 = vadd.s32 %v2905, %v2895
        %v2907 = vadd.s32 %v2906, %v2897
        %v2908 = vshrl.u32 %v2907, 4
        %v2909 = vmul.u32 %v2908, 18
        %v2910 = vsub.s32 %v2886, %v2909
        %v2911 = vsub.s32 0, %v2910
        %v2912 = vsel %vm2884, %v2911, %v2910
        %vm2913 = vcmp.lt.s32.totalorder %v2821, 0
        %v2914 = vsub.s32 0, %v2821
        %v2915 = vsel %vm2913, %v2914, %v2821
        %v2916 = vand.u32 %v2915, 65535
        %v2917 = vshrl.u32 %v2915, 16
        %v2919 = vmul.u32 %v2916, 14564
        %v2920 = vmul.u32 %v2916, 58254
        %v2921 = vmul.u32 %v2917, 14564
        %v2922 = vmul.u32 %v2917, 58254
        %v2923 = vshll.u32 %v2920, 16
        %v2924 = vshrl.u32 %v2920, 16
        %v2925 = vshll.u32 %v2921, 16
        %v2926 = vshrl.u32 %v2921, 16
        %vm2927 = vc.u32 %v2919, %v2923
        %v2928 = vsel %vm2927, 1, 0
        %v2929 = vadd.s32 %v2919, %v2923
        %v2930 = vadd.s32 %v2922, %v2928
        %vm2931 = vc.u32 %v2929, %v2925
        %v2932 = vsel %vm2931, 1, 0
        %v2933 = vadd.s32 %v2929, %v2925
        %v2934 = vadd.s32 %v2930, %v2932
        %v2935 = vadd.s32 %v2934, %v2924
        %v2936 = vadd.s32 %v2935, %v2926
        %v2937 = vshrl.u32 %v2936, 4
        %v2938 = vmul.u32 %v2937, 18
        %v2939 = vsub.s32 %v2915, %v2938
        %v2940 = vsub.s32 0, %v2939
        %v2941 = vsel %vm2913, %v2940, %v2939
        %vm2942 = vcmp.lt.s32.totalorder %v2822, 0
        %v2943 = vsub.s32 0, %v2822
        %v2944 = vsel %vm2942, %v2943, %v2822
        %v2945 = vand.u32 %v2944, 65535
        %v2946 = vshrl.u32 %v2944, 16
        %v2948 = vmul.u32 %v2945, 14564
        %v2949 = vmul.u32 %v2945, 58254
        %v2950 = vmul.u32 %v2946, 14564
        %v2951 = vmul.u32 %v2946, 58254
        %v2952 = vshll.u32 %v2949, 16
        %v2953 = vshrl.u32 %v2949, 16
        %v2954 = vshll.u32 %v2950, 16
        %v2955 = vshrl.u32 %v2950, 16
        %vm2956 = vc.u32 %v2948, %v2952
        %v2957 = vsel %vm2956, 1, 0
        %v2958 = vadd.s32 %v2948, %v2952
        %v2959 = vadd.s32 %v2951, %v2957
        %vm2960 = vc.u32 %v2958, %v2954
        %v2961 = vsel %vm2960, 1, 0
        %v2962 = vadd.s32 %v2958, %v2954
        %v2963 = vadd.s32 %v2959, %v2961
        %v2964 = vadd.s32 %v2963, %v2953
        %v2965 = vadd.s32 %v2964, %v2955
        %v2966 = vshrl.u32 %v2965, 4
        %v2967 = vmul.u32 %v2966, 18
        %v2968 = vsub.s32 %v2944, %v2967
        %v2969 = vsub.s32 0, %v2968
        %v2970 = vsel %vm2942, %v2969, %v2968
        %vm2971 = vcmp.lt.s32.totalorder %v2823, 0
        %v2972 = vsub.s32 0, %v2823
        %v2973 = vsel %vm2971, %v2972, %v2823
        %v2974 = vand.u32 %v2973, 65535
        %v2975 = vshrl.u32 %v2973, 16
        %v2977 = vmul.u32 %v2974, 14564
        %v2978 = vmul.u32 %v2974, 58254
        %v2979 = vmul.u32 %v2975, 14564
        %v2980 = vmul.u32 %v2975, 58254
        %v2981 = vshll.u32 %v2978, 16
        %v2982 = vshrl.u32 %v2978, 16
        %v2983 = vshll.u32 %v2979, 16
        %v2984 = vshrl.u32 %v2979, 16
        %vm2985 = vc.u32 %v2977, %v2981
        %v2986 = vsel %vm2985, 1, 0
        %v2987 = vadd.s32 %v2977, %v2981
        %v2988 = vadd.s32 %v2980, %v2986
        %vm2989 = vc.u32 %v2987, %v2983
        %v2990 = vsel %vm2989, 1, 0
        %v2991 = vadd.s32 %v2987, %v2983
        %v2992 = vadd.s32 %v2988, %v2990
        %v2993 = vadd.s32 %v2992, %v2982
        %v2994 = vadd.s32 %v2993, %v2984
        %v2995 = vshrl.u32 %v2994, 4
        %v2996 = vmul.u32 %v2995, 18
        %v2997 = vsub.s32 %v2973, %v2996
        %v2998 = vsub.s32 0, %v2997
        %v2999 = vsel %vm2971, %v2998, %v2997
        %vm3000 = vcmp.lt.s32.totalorder %v2824, 0
        %v3001 = vsub.s32 0, %v2824
        %v3002 = vsel %vm3000, %v3001, %v2824
        %v3003 = vand.u32 %v3002, 65535
        %v3004 = vshrl.u32 %v3002, 16
        %v3006 = vmul.u32 %v3003, 14564
        %v3007 = vmul.u32 %v3003, 58254
        %v3008 = vmul.u32 %v3004, 14564
        %v3009 = vmul.u32 %v3004, 58254
        %v3010 = vshll.u32 %v3007, 16
        %v3011 = vshrl.u32 %v3007, 16
        %v3012 = vshll.u32 %v3008, 16
        %v3013 = vshrl.u32 %v3008, 16
        %vm3014 = vc.u32 %v3006, %v3010
        %v3015 = vsel %vm3014, 1, 0
        %v3016 = vadd.s32 %v3006, %v3010
        %v3017 = vadd.s32 %v3009, %v3015
        %vm3018 = vc.u32 %v3016, %v3012
        %v3019 = vsel %vm3018, 1, 0
        %v3020 = vadd.s32 %v3016, %v3012
        %v3021 = vadd.s32 %v3017, %v3019
        %v3022 = vadd.s32 %v3021, %v3011
        %v3023 = vadd.s32 %v3022, %v3013
        %v3024 = vshrl.u32 %v3023, 4
        %v3025 = vmul.u32 %v3024, 18
        %v3026 = vsub.s32 %v3002, %v3025
        %v3027 = vsub.s32 0, %v3026
        %v3028 = vsel %vm3000, %v3027, %v3026
        %vm3029 = vcmp.lt.s32.totalorder %v2825, 0
        %v3030 = vsub.s32 0, %v2825
        %v3031 = vsel %vm3029, %v3030, %v2825
        %v3032 = vand.u32 %v3031, 65535
        %v3033 = vshrl.u32 %v3031, 16
        %v3035 = vmul.u32 %v3032, 14564
        %v3036 = vmul.u32 %v3032, 58254
        %v3037 = vmul.u32 %v3033, 14564
        %v3038 = vmul.u32 %v3033, 58254
        %v3039 = vshll.u32 %v3036, 16
        %v3040 = vshrl.u32 %v3036, 16
        %v3041 = vshll.u32 %v3037, 16
        %v3042 = vshrl.u32 %v3037, 16
        %vm3043 = vc.u32 %v3035, %v3039
        %v3044 = vsel %vm3043, 1, 0
        %v3045 = vadd.s32 %v3035, %v3039
        %v3046 = vadd.s32 %v3038, %v3044
        %vm3047 = vc.u32 %v3045, %v3041
        %v3048 = vsel %vm3047, 1, 0
        %v3049 = vadd.s32 %v3045, %v3041
        %v3050 = vadd.s32 %v3046, %v3048
        %v3051 = vadd.s32 %v3050, %v3040
        %v3052 = vadd.s32 %v3051, %v3042
        %v3053 = vshrl.u32 %v3052, 4
        %v3054 = vmul.u32 %v3053, 18
        %v3055 = vsub.s32 %v3031, %v3054
        %v3056 = vsub.s32 0, %v3055
        %v3057 = vsel %vm3029, %v3056, %v3055
        %vm3058 = vcmp.lt.s32.totalorder %v2826, 0
        %v3059 = vsub.s32 0, %v2826
        %v3060 = vsel %vm3058, %v3059, %v2826
        %v3061 = vand.u32 %v3060, 65535
        %v3062 = vshrl.u32 %v3060, 16
        %v3064 = vmul.u32 %v3061, 14564
        %v3065 = vmul.u32 %v3061, 58254
        %v3066 = vmul.u32 %v3062, 14564
        %v3067 = vmul.u32 %v3062, 58254
        %v3068 = vshll.u32 %v3065, 16
        %v3069 = vshrl.u32 %v3065, 16
        %v3070 = vshll.u32 %v3066, 16
        %v3071 = vshrl.u32 %v3066, 16
        %vm3072 = vc.u32 %v3064, %v3068
        %v3073 = vsel %vm3072, 1, 0
        %v3074 = vadd.s32 %v3064, %v3068
        %v3075 = vadd.s32 %v3067, %v3073
        %vm3076 = vc.u32 %v3074, %v3070
        %v3077 = vsel %vm3076, 1, 0
        %v3078 = vadd.s32 %v3074, %v3070
        %v3079 = vadd.s32 %v3075, %v3077
        %v3080 = vadd.s32 %v3079, %v3069
        %v3081 = vadd.s32 %v3080, %v3071
        %v3082 = vshrl.u32 %v3081, 4
        %v3083 = vmul.u32 %v3082, 18
        %v3084 = vsub.s32 %v3060, %v3083
        %v3085 = vsub.s32 0, %v3084
        %v3086 = vsel %vm3058, %v3085, %v3084
        %vm3087 = vcmp.lt.s32.totalorder %v2827, 0
        %v3088 = vsub.s32 0, %v2827
        %v3089 = vsel %vm3087, %v3088, %v2827
        %v3090 = vand.u32 %v3089, 65535
        %v3091 = vshrl.u32 %v3089, 16
        %v3093 = vmul.u32 %v3090, 14564
        %v3094 = vmul.u32 %v3090, 58254
        %v3095 = vmul.u32 %v3091, 14564
        %v3096 = vmul.u32 %v3091, 58254
        %v3097 = vshll.u32 %v3094, 16
        %v3098 = vshrl.u32 %v3094, 16
        %v3099 = vshll.u32 %v3095, 16
        %v3100 = vshrl.u32 %v3095, 16
        %vm3101 = vc.u32 %v3093, %v3097
        %v3102 = vsel %vm3101, 1, 0
        %v3103 = vadd.s32 %v3093, %v3097
        %v3104 = vadd.s32 %v3096, %v3102
        %vm3105 = vc.u32 %v3103, %v3099
        %v3106 = vsel %vm3105, 1, 0
        %v3107 = vadd.s32 %v3103, %v3099
        %v3108 = vadd.s32 %v3104, %v3106
        %v3109 = vadd.s32 %v3108, %v3098
        %v3110 = vadd.s32 %v3109, %v3100
        %v3111 = vshrl.u32 %v3110, 4
        %v3112 = vmul.u32 %v3111, 18
        %v3113 = vsub.s32 %v3089, %v3112
        %v3114 = vsub.s32 0, %v3113
        %v3115 = vsel %vm3087, %v3114, %v3113
        %vm3116 = vcmp.lt.s32.totalorder %v2828, 0
        %v3117 = vsub.s32 0, %v2828
        %v3118 = vsel %vm3116, %v3117, %v2828
        %v3119 = vand.u32 %v3118, 65535
        %v3120 = vshrl.u32 %v3118, 16
        %v3122 = vmul.u32 %v3119, 14564
        %v3123 = vmul.u32 %v3119, 58254
        %v3124 = vmul.u32 %v3120, 14564
        %v3125 = vmul.u32 %v3120, 58254
        %v3126 = vshll.u32 %v3123, 16
        %v3127 = vshrl.u32 %v3123, 16
        %v3128 = vshll.u32 %v3124, 16
        %v3129 = vshrl.u32 %v3124, 16
        %vm3130 = vc.u32 %v3122, %v3126
        %v3131 = vsel %vm3130, 1, 0
        %v3132 = vadd.s32 %v3122, %v3126
        %v3133 = vadd.s32 %v3125, %v3131
        %vm3134 = vc.u32 %v3132, %v3128
        %v3135 = vsel %vm3134, 1, 0
        %v3136 = vadd.s32 %v3132, %v3128
        %v3137 = vadd.s32 %v3133, %v3135
        %v3138 = vadd.s32 %v3137, %v3127
        %v3139 = vadd.s32 %v3138, %v3129
        %v3140 = vshrl.u32 %v3139, 4
        %v3141 = vmul.u32 %v3140, 18
        %v3142 = vsub.s32 %v3118, %v3141
        %v3143 = vsub.s32 0, %v3142
        %v3144 = vsel %vm3116, %v3143, %v3142
        %vm3145 = vcmp.lt.s32.totalorder %v2829, 0
        %v3146 = vsub.s32 0, %v2829
        %v3147 = vsel %vm3145, %v3146, %v2829
        %v3148 = vand.u32 %v3147, 65535
        %v3149 = vshrl.u32 %v3147, 16
        %v3151 = vmul.u32 %v3148, 14564
        %v3152 = vmul.u32 %v3148, 58254
        %v3153 = vmul.u32 %v3149, 14564
        %v3154 = vmul.u32 %v3149, 58254
        %v3155 = vshll.u32 %v3152, 16
        %v3156 = vshrl.u32 %v3152, 16
        %v3157 = vshll.u32 %v3153, 16
        %v3158 = vshrl.u32 %v3153, 16
        %vm3159 = vc.u32 %v3151, %v3155
        %v3160 = vsel %vm3159, 1, 0
        %v3161 = vadd.s32 %v3151, %v3155
        %v3162 = vadd.s32 %v3154, %v3160
        %vm3163 = vc.u32 %v3161, %v3157
        %v3164 = vsel %vm3163, 1, 0
        %v3165 = vadd.s32 %v3161, %v3157
        %v3166 = vadd.s32 %v3162, %v3164
        %v3167 = vadd.s32 %v3166, %v3156
        %v3168 = vadd.s32 %v3167, %v3158
        %v3169 = vshrl.u32 %v3168, 4
        %v3170 = vmul.u32 %v3169, 18
        %v3171 = vsub.s32 %v3147, %v3170
        %v3172 = vsub.s32 0, %v3171
        %v3173 = vsel %vm3145, %v3172, %v3171
        %vm3174 = vcmp.lt.s32.totalorder %v2830, 0
        %v3175 = vsub.s32 0, %v2830
        %v3176 = vsel %vm3174, %v3175, %v2830
        %v3177 = vand.u32 %v3176, 65535
        %v3178 = vshrl.u32 %v3176, 16
        %v3180 = vmul.u32 %v3177, 14564
        %v3181 = vmul.u32 %v3177, 58254
        %v3182 = vmul.u32 %v3178, 14564
        %v3183 = vmul.u32 %v3178, 58254
        %v3184 = vshll.u32 %v3181, 16
        %v3185 = vshrl.u32 %v3181, 16
        %v3186 = vshll.u32 %v3182, 16
        %v3187 = vshrl.u32 %v3182, 16
        %vm3188 = vc.u32 %v3180, %v3184
        %v3189 = vsel %vm3188, 1, 0
        %v3190 = vadd.s32 %v3180, %v3184
        %v3191 = vadd.s32 %v3183, %v3189
        %vm3192 = vc.u32 %v3190, %v3186
        %v3193 = vsel %vm3192, 1, 0
        %v3194 = vadd.s32 %v3190, %v3186
        %v3195 = vadd.s32 %v3191, %v3193
        %v3196 = vadd.s32 %v3195, %v3185
        %v3197 = vadd.s32 %v3196, %v3187
        %v3198 = vshrl.u32 %v3197, 4
        %v3199 = vmul.u32 %v3198, 18
        %v3200 = vsub.s32 %v3176, %v3199
        %v3201 = vsub.s32 0, %v3200
        %v3202 = vsel %vm3174, %v3201, %v3200
        %vm3203 = vcmp.lt.s32.totalorder %v2831, 0
        %v3204 = vsub.s32 0, %v2831
        %v3205 = vsel %vm3203, %v3204, %v2831
        %v3206 = vand.u32 %v3205, 65535
        %v3207 = vshrl.u32 %v3205, 16
        %v3209 = vmul.u32 %v3206, 14564
        %v3210 = vmul.u32 %v3206, 58254
        %v3211 = vmul.u32 %v3207, 14564
        %v3212 = vmul.u32 %v3207, 58254
        %v3213 = vshll.u32 %v3210, 16
        %v3214 = vshrl.u32 %v3210, 16
        %v3215 = vshll.u32 %v3211, 16
        %v3216 = vshrl.u32 %v3211, 16
        %vm3217 = vc.u32 %v3209, %v3213
        %v3218 = vsel %vm3217, 1, 0
        %v3219 = vadd.s32 %v3209, %v3213
        %v3220 = vadd.s32 %v3212, %v3218
        %vm3221 = vc.u32 %v3219, %v3215
        %v3222 = vsel %vm3221, 1, 0
        %v3223 = vadd.s32 %v3219, %v3215
        %v3224 = vadd.s32 %v3220, %v3222
        %v3225 = vadd.s32 %v3224, %v3214
        %v3226 = vadd.s32 %v3225, %v3216
        %v3227 = vshrl.u32 %v3226, 4
        %v3228 = vmul.u32 %v3227, 18
        %v3229 = vsub.s32 %v3205, %v3228
        %v3230 = vsub.s32 0, %v3229
        %v3231 = vsel %vm3203, %v3230, %v3229
        %vm3232 = vcmp.lt.s32.totalorder %v2832, 0
        %v3233 = vsub.s32 0, %v2832
        %v3234 = vsel %vm3232, %v3233, %v2832
        %v3235 = vand.u32 %v3234, 65535
        %v3236 = vshrl.u32 %v3234, 16
        %v3238 = vmul.u32 %v3235, 14564
        %v3239 = vmul.u32 %v3235, 58254
        %v3240 = vmul.u32 %v3236, 14564
        %v3241 = vmul.u32 %v3236, 58254
        %v3242 = vshll.u32 %v3239, 16
        %v3243 = vshrl.u32 %v3239, 16
        %v3244 = vshll.u32 %v3240, 16
        %v3245 = vshrl.u32 %v3240, 16
        %vm3246 = vc.u32 %v3238, %v3242
        %v3247 = vsel %vm3246, 1, 0
        %v3248 = vadd.s32 %v3238, %v3242
        %v3249 = vadd.s32 %v3241, %v3247
        %vm3250 = vc.u32 %v3248, %v3244
        %v3251 = vsel %vm3250, 1, 0
        %v3252 = vadd.s32 %v3248, %v3244
        %v3253 = vadd.s32 %v3249, %v3251
        %v3254 = vadd.s32 %v3253, %v3243
        %v3255 = vadd.s32 %v3254, %v3245
        %v3256 = vshrl.u32 %v3255, 4
        %v3257 = vmul.u32 %v3256, 18
        %v3258 = vsub.s32 %v3234, %v3257
        %v3259 = vsub.s32 0, %v3258
        %v3260 = vsel %vm3232, %v3259, %v3258
        %vm3261 = vcmp.lt.s32.totalorder %v2833, 0
        %v3262 = vsub.s32 0, %v2833
        %v3263 = vsel %vm3261, %v3262, %v2833
        %v3264 = vand.u32 %v3263, 65535
        %v3265 = vshrl.u32 %v3263, 16
        %v3267 = vmul.u32 %v3264, 14564
        %v3268 = vmul.u32 %v3264, 58254
        %v3269 = vmul.u32 %v3265, 14564
        %v3270 = vmul.u32 %v3265, 58254
        %v3271 = vshll.u32 %v3268, 16
        %v3272 = vshrl.u32 %v3268, 16
        %v3273 = vshll.u32 %v3269, 16
        %v3274 = vshrl.u32 %v3269, 16
        %vm3275 = vc.u32 %v3267, %v3271
        %v3276 = vsel %vm3275, 1, 0
        %v3277 = vadd.s32 %v3267, %v3271
        %v3278 = vadd.s32 %v3270, %v3276
        %vm3279 = vc.u32 %v3277, %v3273
        %v3280 = vsel %vm3279, 1, 0
        %v3281 = vadd.s32 %v3277, %v3273
        %v3282 = vadd.s32 %v3278, %v3280
        %v3283 = vadd.s32 %v3282, %v3272
        %v3284 = vadd.s32 %v3283, %v3274
        %v3285 = vshrl.u32 %v3284, 4
        %v3286 = vmul.u32 %v3285, 18
        %v3287 = vsub.s32 %v3263, %v3286
        %v3288 = vsub.s32 0, %v3287
        %v3289 = vsel %vm3261, %v3288, %v3287
        %vm3290 = vcmp.lt.s32.totalorder %v2834, 0
        %v3291 = vsub.s32 0, %v2834
        %v3292 = vsel %vm3290, %v3291, %v2834
        %v3293 = vand.u32 %v3292, 65535
        %v3294 = vshrl.u32 %v3292, 16
        %v3296 = vmul.u32 %v3293, 14564
        %v3297 = vmul.u32 %v3293, 58254
        %v3298 = vmul.u32 %v3294, 14564
        %v3299 = vmul.u32 %v3294, 58254
        %v3300 = vshll.u32 %v3297, 16
        %v3301 = vshrl.u32 %v3297, 16
        %v3302 = vshll.u32 %v3298, 16
        %v3303 = vshrl.u32 %v3298, 16
        %vm3304 = vc.u32 %v3296, %v3300
        %v3305 = vsel %vm3304, 1, 0
        %v3306 = vadd.s32 %v3296, %v3300
        %v3307 = vadd.s32 %v3299, %v3305
        %vm3308 = vc.u32 %v3306, %v3302
        %v3309 = vsel %vm3308, 1, 0
        %v3310 = vadd.s32 %v3306, %v3302
        %v3311 = vadd.s32 %v3307, %v3309
        %v3312 = vadd.s32 %v3311, %v3301
        %v3313 = vadd.s32 %v3312, %v3303
        %v3314 = vshrl.u32 %v3313, 4
        %v3315 = vmul.u32 %v3314, 18
        %v3316 = vsub.s32 %v3292, %v3315
        %v3317 = vsub.s32 0, %v3316
        %v3318 = vsel %vm3290, %v3317, %v3316
        %vm3319 = vcmp.lt.s32.totalorder %v2835, 0
        %v3320 = vsub.s32 0, %v2835
        %v3321 = vsel %vm3319, %v3320, %v2835
        %v3322 = vand.u32 %v3321, 65535
        %v3323 = vshrl.u32 %v3321, 16
        %v3325 = vmul.u32 %v3322, 14564
        %v3326 = vmul.u32 %v3322, 58254
        %v3327 = vmul.u32 %v3323, 14564
        %v3328 = vmul.u32 %v3323, 58254
        %v3329 = vshll.u32 %v3326, 16
        %v3330 = vshrl.u32 %v3326, 16
        %v3331 = vshll.u32 %v3327, 16
        %v3332 = vshrl.u32 %v3327, 16
        %vm3333 = vc.u32 %v3325, %v3329
        %v3334 = vsel %vm3333, 1, 0
        %v3335 = vadd.s32 %v3325, %v3329
        %v3336 = vadd.s32 %v3328, %v3334
        %vm3337 = vc.u32 %v3335, %v3331
        %v3338 = vsel %vm3337, 1, 0
        %v3339 = vadd.s32 %v3335, %v3331
        %v3340 = vadd.s32 %v3336, %v3338
        %v3341 = vadd.s32 %v3340, %v3330
        %v3342 = vadd.s32 %v3341, %v3332
        %v3343 = vshrl.u32 %v3342, 4
        %v3344 = vmul.u32 %v3343, 18
        %v3345 = vsub.s32 %v3321, %v3344
        %v3346 = vsub.s32 0, %v3345
        %v3347 = vsel %vm3319, %v3346, %v3345
        %vm3348 = vcmp.lt.s32.totalorder %v2836, 0
        %v3349 = vsub.s32 0, %v2836
        %v3350 = vsel %vm3348, %v3349, %v2836
        %v3351 = vand.u32 %v3350, 65535
        %v3352 = vshrl.u32 %v3350, 16
        %v3354 = vmul.u32 %v3351, 14564
        %v3355 = vmul.u32 %v3351, 58254
        %v3356 = vmul.u32 %v3352, 14564
        %v3357 = vmul.u32 %v3352, 58254
        %v3358 = vshll.u32 %v3355, 16
        %v3359 = vshrl.u32 %v3355, 16
        %v3360 = vshll.u32 %v3356, 16
        %v3361 = vshrl.u32 %v3356, 16
        %vm3362 = vc.u32 %v3354, %v3358
        %v3363 = vsel %vm3362, 1, 0
        %v3364 = vadd.s32 %v3354, %v3358
        %v3365 = vadd.s32 %v3357, %v3363
        %vm3366 = vc.u32 %v3364, %v3360
        %v3367 = vsel %vm3366, 1, 0
        %v3368 = vadd.s32 %v3364, %v3360
        %v3369 = vadd.s32 %v3365, %v3367
        %v3370 = vadd.s32 %v3369, %v3359
        %v3371 = vadd.s32 %v3370, %v3361
        %v3372 = vshrl.u32 %v3371, 4
        %v3373 = vmul.u32 %v3372, 18
        %v3374 = vsub.s32 %v3350, %v3373
        %v3375 = vsub.s32 0, %v3374
        %v3376 = vsel %vm3348, %v3375, %v3374
        %vm3377 = vcmp.lt.s32.totalorder %v2837, 0
        %v3378 = vsub.s32 0, %v2837
        %v3379 = vsel %vm3377, %v3378, %v2837
        %v3380 = vand.u32 %v3379, 65535
        %v3381 = vshrl.u32 %v3379, 16
        %v3383 = vmul.u32 %v3380, 14564
        %v3384 = vmul.u32 %v3380, 58254
        %v3385 = vmul.u32 %v3381, 14564
        %v3386 = vmul.u32 %v3381, 58254
        %v3387 = vshll.u32 %v3384, 16
        %v3388 = vshrl.u32 %v3384, 16
        %v3389 = vshll.u32 %v3385, 16
        %v3390 = vshrl.u32 %v3385, 16
        %vm3391 = vc.u32 %v3383, %v3387
        %v3392 = vsel %vm3391, 1, 0
        %v3393 = vadd.s32 %v3383, %v3387
        %v3394 = vadd.s32 %v3386, %v3392
        %vm3395 = vc.u32 %v3393, %v3389
        %v3396 = vsel %vm3395, 1, 0
        %v3397 = vadd.s32 %v3393, %v3389
        %v3398 = vadd.s32 %v3394, %v3396
        %v3399 = vadd.s32 %v3398, %v3388
        %v3400 = vadd.s32 %v3399, %v3390
        %v3401 = vshrl.u32 %v3400, 4
        %v3402 = vmul.u32 %v3401, 18
        %v3403 = vsub.s32 %v3379, %v3402
        %v3404 = vsub.s32 0, %v3403
        %v3405 = vsel %vm3377, %v3404, %v3403
        %vm3406 = vcmp.lt.s32.totalorder %v2838, 0
        %v3407 = vsub.s32 0, %v2838
        %v3408 = vsel %vm3406, %v3407, %v2838
        %v3409 = vand.u32 %v3408, 65535
        %v3410 = vshrl.u32 %v3408, 16
        %v3412 = vmul.u32 %v3409, 14564
        %v3413 = vmul.u32 %v3409, 58254
        %v3414 = vmul.u32 %v3410, 14564
        %v3415 = vmul.u32 %v3410, 58254
        %v3416 = vshll.u32 %v3413, 16
        %v3417 = vshrl.u32 %v3413, 16
        %v3418 = vshll.u32 %v3414, 16
        %v3419 = vshrl.u32 %v3414, 16
        %vm3420 = vc.u32 %v3412, %v3416
        %v3421 = vsel %vm3420, 1, 0
        %v3422 = vadd.s32 %v3412, %v3416
        %v3423 = vadd.s32 %v3415, %v3421
        %vm3424 = vc.u32 %v3422, %v3418
        %v3425 = vsel %vm3424, 1, 0
        %v3426 = vadd.s32 %v3422, %v3418
        %v3427 = vadd.s32 %v3423, %v3425
        %v3428 = vadd.s32 %v3427, %v3417
        %v3429 = vadd.s32 %v3428, %v3419
        %v3430 = vshrl.u32 %v3429, 4
        %v3431 = vmul.u32 %v3430, 18
        %v3432 = vsub.s32 %v3408, %v3431
        %v3433 = vsub.s32 0, %v3432
        %v3434 = vsel %vm3406, %v3433, %v3432
        %vm3435 = vcmp.lt.s32.totalorder %v2839, 0
        %v3436 = vsub.s32 0, %v2839
        %v3437 = vsel %vm3435, %v3436, %v2839
        %v3438 = vand.u32 %v3437, 65535
        %v3439 = vshrl.u32 %v3437, 16
        %v3441 = vmul.u32 %v3438, 14564
        %v3442 = vmul.u32 %v3438, 58254
        %v3443 = vmul.u32 %v3439, 14564
        %v3444 = vmul.u32 %v3439, 58254
        %v3445 = vshll.u32 %v3442, 16
        %v3446 = vshrl.u32 %v3442, 16
        %v3447 = vshll.u32 %v3443, 16
        %v3448 = vshrl.u32 %v3443, 16
        %vm3449 = vc.u32 %v3441, %v3445
        %v3450 = vsel %vm3449, 1, 0
        %v3451 = vadd.s32 %v3441, %v3445
        %v3452 = vadd.s32 %v3444, %v3450
        %vm3453 = vc.u32 %v3451, %v3447
        %v3454 = vsel %vm3453, 1, 0
        %v3455 = vadd.s32 %v3451, %v3447
        %v3456 = vadd.s32 %v3452, %v3454
        %v3457 = vadd.s32 %v3456, %v3446
        %v3458 = vadd.s32 %v3457, %v3448
        %v3459 = vshrl.u32 %v3458, 4
        %v3460 = vmul.u32 %v3459, 18
        %v3461 = vsub.s32 %v3437, %v3460
        %v3462 = vsub.s32 0, %v3461
        %v3463 = vsel %vm3435, %v3462, %v3461
        %vm3464 = vcmp.lt.s32.totalorder %v2840, 0
        %v3465 = vsub.s32 0, %v2840
        %v3466 = vsel %vm3464, %v3465, %v2840
        %v3467 = vand.u32 %v3466, 65535
        %v3468 = vshrl.u32 %v3466, 16
        %v3470 = vmul.u32 %v3467, 14564
        %v3471 = vmul.u32 %v3467, 58254
        %v3472 = vmul.u32 %v3468, 14564
        %v3473 = vmul.u32 %v3468, 58254
        %v3474 = vshll.u32 %v3471, 16
        %v3475 = vshrl.u32 %v3471, 16
        %v3476 = vshll.u32 %v3472, 16
        %v3477 = vshrl.u32 %v3472, 16
        %vm3478 = vc.u32 %v3470, %v3474
        %v3479 = vsel %vm3478, 1, 0
        %v3480 = vadd.s32 %v3470, %v3474
        %v3481 = vadd.s32 %v3473, %v3479
        %vm3482 = vc.u32 %v3480, %v3476
        %v3483 = vsel %vm3482, 1, 0
        %v3484 = vadd.s32 %v3480, %v3476
        %v3485 = vadd.s32 %v3481, %v3483
        %v3486 = vadd.s32 %v3485, %v3475
        %v3487 = vadd.s32 %v3486, %v3477
        %v3488 = vshrl.u32 %v3487, 4
        %v3489 = vmul.u32 %v3488, 18
        %v3490 = vsub.s32 %v3466, %v3489
        %v3491 = vsub.s32 0, %v3490
        %v3492 = vsel %vm3464, %v3491, %v3490
        %vm3493 = vcmp.lt.s32.totalorder %v2841, 0
        %v3494 = vsub.s32 0, %v2841
        %v3495 = vsel %vm3493, %v3494, %v2841
        %v3496 = vand.u32 %v3495, 65535
        %v3497 = vshrl.u32 %v3495, 16
        %v3499 = vmul.u32 %v3496, 14564
        %v3500 = vmul.u32 %v3496, 58254
        %v3501 = vmul.u32 %v3497, 14564
        %v3502 = vmul.u32 %v3497, 58254
        %v3503 = vshll.u32 %v3500, 16
        %v3504 = vshrl.u32 %v3500, 16
        %v3505 = vshll.u32 %v3501, 16
        %v3506 = vshrl.u32 %v3501, 16
        %vm3507 = vc.u32 %v3499, %v3503
        %v3508 = vsel %vm3507, 1, 0
        %v3509 = vadd.s32 %v3499, %v3503
        %v3510 = vadd.s32 %v3502, %v3508
        %vm3511 = vc.u32 %v3509, %v3505
        %v3512 = vsel %vm3511, 1, 0
        %v3513 = vadd.s32 %v3509, %v3505
        %v3514 = vadd.s32 %v3510, %v3512
        %v3515 = vadd.s32 %v3514, %v3504
        %v3516 = vadd.s32 %v3515, %v3506
        %v3517 = vshrl.u32 %v3516, 4
        %v3518 = vmul.u32 %v3517, 18
        %v3519 = vsub.s32 %v3495, %v3518
        %v3520 = vsub.s32 0, %v3519
        %v3521 = vsel %vm3493, %v3520, %v3519
        %vm3522 = vcmp.lt.s32.totalorder %v2842, 0
        %v3523 = vsub.s32 0, %v2842
        %v3524 = vsel %vm3522, %v3523, %v2842
        %v3525 = vand.u32 %v3524, 65535
        %v3526 = vshrl.u32 %v3524, 16
        %v3528 = vmul.u32 %v3525, 14564
        %v3529 = vmul.u32 %v3525, 58254
        %v3530 = vmul.u32 %v3526, 14564
        %v3531 = vmul.u32 %v3526, 58254
        %v3532 = vshll.u32 %v3529, 16
        %v3533 = vshrl.u32 %v3529, 16
        %v3534 = vshll.u32 %v3530, 16
        %v3535 = vshrl.u32 %v3530, 16
        %vm3536 = vc.u32 %v3528, %v3532
        %v3537 = vsel %vm3536, 1, 0
        %v3538 = vadd.s32 %v3528, %v3532
        %v3539 = vadd.s32 %v3531, %v3537
        %vm3540 = vc.u32 %v3538, %v3534
        %v3541 = vsel %vm3540, 1, 0
        %v3542 = vadd.s32 %v3538, %v3534
        %v3543 = vadd.s32 %v3539, %v3541
        %v3544 = vadd.s32 %v3543, %v3533
        %v3545 = vadd.s32 %v3544, %v3535
        %v3546 = vshrl.u32 %v3545, 4
        %v3547 = vmul.u32 %v3546, 18
        %v3548 = vsub.s32 %v3524, %v3547
        %v3549 = vsub.s32 0, %v3548
        %v3550 = vsel %vm3522, %v3549, %v3548
        %vm3551 = vcmp.lt.s32.totalorder %v2843, 0
        %v3552 = vsub.s32 0, %v2843
        %v3553 = vsel %vm3551, %v3552, %v2843
        %v3554 = vand.u32 %v3553, 65535
        %v3555 = vshrl.u32 %v3553, 16
        %v3557 = vmul.u32 %v3554, 14564
        %v3558 = vmul.u32 %v3554, 58254
        %v3559 = vmul.u32 %v3555, 14564
        %v3560 = vmul.u32 %v3555, 58254
        %v3561 = vshll.u32 %v3558, 16
        %v3562 = vshrl.u32 %v3558, 16
        %v3563 = vshll.u32 %v3559, 16
        %v3564 = vshrl.u32 %v3559, 16
        %vm3565 = vc.u32 %v3557, %v3561
        %v3566 = vsel %vm3565, 1, 0
        %v3567 = vadd.s32 %v3557, %v3561
        %v3568 = vadd.s32 %v3560, %v3566
        %vm3569 = vc.u32 %v3567, %v3563
        %v3570 = vsel %vm3569, 1, 0
        %v3571 = vadd.s32 %v3567, %v3563
        %v3572 = vadd.s32 %v3568, %v3570
        %v3573 = vadd.s32 %v3572, %v3562
        %v3574 = vadd.s32 %v3573, %v3564
        %v3575 = vshrl.u32 %v3574, 4
        %v3576 = vmul.u32 %v3575, 18
        %v3577 = vsub.s32 %v3553, %v3576
        %v3578 = vsub.s32 0, %v3577
        %v3579 = vsel %vm3551, %v3578, %v3577
        %vm3580 = vcmp.lt.s32.totalorder %v2844, 0
        %v3581 = vsub.s32 0, %v2844
        %v3582 = vsel %vm3580, %v3581, %v2844
        %v3583 = vand.u32 %v3582, 65535
        %v3584 = vshrl.u32 %v3582, 16
        %v3586 = vmul.u32 %v3583, 14564
        %v3587 = vmul.u32 %v3583, 58254
        %v3588 = vmul.u32 %v3584, 14564
        %v3589 = vmul.u32 %v3584, 58254
        %v3590 = vshll.u32 %v3587, 16
        %v3591 = vshrl.u32 %v3587, 16
        %v3592 = vshll.u32 %v3588, 16
        %v3593 = vshrl.u32 %v3588, 16
        %vm3594 = vc.u32 %v3586, %v3590
        %v3595 = vsel %vm3594, 1, 0
        %v3596 = vadd.s32 %v3586, %v3590
        %v3597 = vadd.s32 %v3589, %v3595
        %vm3598 = vc.u32 %v3596, %v3592
        %v3599 = vsel %vm3598, 1, 0
        %v3600 = vadd.s32 %v3596, %v3592
        %v3601 = vadd.s32 %v3597, %v3599
        %v3602 = vadd.s32 %v3601, %v3591
        %v3603 = vadd.s32 %v3602, %v3593
        %v3604 = vshrl.u32 %v3603, 4
        %v3605 = vmul.u32 %v3604, 18
        %v3606 = vsub.s32 %v3582, %v3605
        %v3607 = vsub.s32 0, %v3606
        %v3608 = vsel %vm3580, %v3607, %v3606
        %vm3609 = vcmp.lt.s32.totalorder %v2845, 0
        %v3610 = vsub.s32 0, %v2845
        %v3611 = vsel %vm3609, %v3610, %v2845
        %v3612 = vand.u32 %v3611, 65535
        %v3613 = vshrl.u32 %v3611, 16
        %v3615 = vmul.u32 %v3612, 14564
        %v3616 = vmul.u32 %v3612, 58254
        %v3617 = vmul.u32 %v3613, 14564
        %v3618 = vmul.u32 %v3613, 58254
        %v3619 = vshll.u32 %v3616, 16
        %v3620 = vshrl.u32 %v3616, 16
        %v3621 = vshll.u32 %v3617, 16
        %v3622 = vshrl.u32 %v3617, 16
        %vm3623 = vc.u32 %v3615, %v3619
        %v3624 = vsel %vm3623, 1, 0
        %v3625 = vadd.s32 %v3615, %v3619
        %v3626 = vadd.s32 %v3618, %v3624
        %vm3627 = vc.u32 %v3625, %v3621
        %v3628 = vsel %vm3627, 1, 0
        %v3629 = vadd.s32 %v3625, %v3621
        %v3630 = vadd.s32 %v3626, %v3628
        %v3631 = vadd.s32 %v3630, %v3620
        %v3632 = vadd.s32 %v3631, %v3622
        %v3633 = vshrl.u32 %v3632, 4
        %v3634 = vmul.u32 %v3633, 18
        %v3635 = vsub.s32 %v3611, %v3634
        %v3636 = vsub.s32 0, %v3635
        %v3637 = vsel %vm3609, %v3636, %v3635
        %vm3638 = vcmp.lt.s32.totalorder %v2846, 0
        %v3639 = vsub.s32 0, %v2846
        %v3640 = vsel %vm3638, %v3639, %v2846
        %v3641 = vand.u32 %v3640, 65535
        %v3642 = vshrl.u32 %v3640, 16
        %v3644 = vmul.u32 %v3641, 14564
        %v3645 = vmul.u32 %v3641, 58254
        %v3646 = vmul.u32 %v3642, 14564
        %v3647 = vmul.u32 %v3642, 58254
        %v3648 = vshll.u32 %v3645, 16
        %v3649 = vshrl.u32 %v3645, 16
        %v3650 = vshll.u32 %v3646, 16
        %v3651 = vshrl.u32 %v3646, 16
        %vm3652 = vc.u32 %v3644, %v3648
        %v3653 = vsel %vm3652, 1, 0
        %v3654 = vadd.s32 %v3644, %v3648
        %v3655 = vadd.s32 %v3647, %v3653
        %vm3656 = vc.u32 %v3654, %v3650
        %v3657 = vsel %vm3656, 1, 0
        %v3658 = vadd.s32 %v3654, %v3650
        %v3659 = vadd.s32 %v3655, %v3657
        %v3660 = vadd.s32 %v3659, %v3649
        %v3661 = vadd.s32 %v3660, %v3651
        %v3662 = vshrl.u32 %v3661, 4
        %v3663 = vmul.u32 %v3662, 18
        %v3664 = vsub.s32 %v3640, %v3663
        %v3665 = vsub.s32 0, %v3664
        %v3666 = vsel %vm3638, %v3665, %v3664
        %vm3667 = vcmp.lt.s32.totalorder %v2847, 0
        %v3668 = vsub.s32 0, %v2847
        %v3669 = vsel %vm3667, %v3668, %v2847
        %v3670 = vand.u32 %v3669, 65535
        %v3671 = vshrl.u32 %v3669, 16
        %v3673 = vmul.u32 %v3670, 14564
        %v3674 = vmul.u32 %v3670, 58254
        %v3675 = vmul.u32 %v3671, 14564
        %v3676 = vmul.u32 %v3671, 58254
        %v3677 = vshll.u32 %v3674, 16
        %v3678 = vshrl.u32 %v3674, 16
        %v3679 = vshll.u32 %v3675, 16
        %v3680 = vshrl.u32 %v3675, 16
        %vm3681 = vc.u32 %v3673, %v3677
        %v3682 = vsel %vm3681, 1, 0
        %v3683 = vadd.s32 %v3673, %v3677
        %v3684 = vadd.s32 %v3676, %v3682
        %vm3685 = vc.u32 %v3683, %v3679
        %v3686 = vsel %vm3685, 1, 0
        %v3687 = vadd.s32 %v3683, %v3679
        %v3688 = vadd.s32 %v3684, %v3686
        %v3689 = vadd.s32 %v3688, %v3678
        %v3690 = vadd.s32 %v3689, %v3680
        %v3691 = vshrl.u32 %v3690, 4
        %v3692 = vmul.u32 %v3691, 18
        %v3693 = vsub.s32 %v3669, %v3692
        %v3694 = vsub.s32 0, %v3693
        %v3695 = vsel %vm3667, %v3694, %v3693
        %vm3696 = vcmp.lt.s32.totalorder %v2848, 0
        %v3697 = vsub.s32 0, %v2848
        %v3698 = vsel %vm3696, %v3697, %v2848
        %v3699 = vand.u32 %v3698, 65535
        %v3700 = vshrl.u32 %v3698, 16
        %v3702 = vmul.u32 %v3699, 14564
        %v3703 = vmul.u32 %v3699, 58254
        %v3704 = vmul.u32 %v3700, 14564
        %v3705 = vmul.u32 %v3700, 58254
        %v3706 = vshll.u32 %v3703, 16
        %v3707 = vshrl.u32 %v3703, 16
        %v3708 = vshll.u32 %v3704, 16
        %v3709 = vshrl.u32 %v3704, 16
        %vm3710 = vc.u32 %v3702, %v3706
        %v3711 = vsel %vm3710, 1, 0
        %v3712 = vadd.s32 %v3702, %v3706
        %v3713 = vadd.s32 %v3705, %v3711
        %vm3714 = vc.u32 %v3712, %v3708
        %v3715 = vsel %vm3714, 1, 0
        %v3716 = vadd.s32 %v3712, %v3708
        %v3717 = vadd.s32 %v3713, %v3715
        %v3718 = vadd.s32 %v3717, %v3707
        %v3719 = vadd.s32 %v3718, %v3709
        %v3720 = vshrl.u32 %v3719, 4
        %v3721 = vmul.u32 %v3720, 18
        %v3722 = vsub.s32 %v3698, %v3721
        %v3723 = vsub.s32 0, %v3722
        %v3724 = vsel %vm3696, %v3723, %v3722
        %vm3725 = vcmp.lt.s32.totalorder %v2849, 0
        %v3726 = vsub.s32 0, %v2849
        %v3727 = vsel %vm3725, %v3726, %v2849
        %v3728 = vand.u32 %v3727, 65535
        %v3729 = vshrl.u32 %v3727, 16
        %v3731 = vmul.u32 %v3728, 14564
        %v3732 = vmul.u32 %v3728, 58254
        %v3733 = vmul.u32 %v3729, 14564
        %v3734 = vmul.u32 %v3729, 58254
        %v3735 = vshll.u32 %v3732, 16
        %v3736 = vshrl.u32 %v3732, 16
        %v3737 = vshll.u32 %v3733, 16
        %v3738 = vshrl.u32 %v3733, 16
        %vm3739 = vc.u32 %v3731, %v3735
        %v3740 = vsel %vm3739, 1, 0
        %v3741 = vadd.s32 %v3731, %v3735
        %v3742 = vadd.s32 %v3734, %v3740
        %vm3743 = vc.u32 %v3741, %v3737
        %v3744 = vsel %vm3743, 1, 0
        %v3745 = vadd.s32 %v3741, %v3737
        %v3746 = vadd.s32 %v3742, %v3744
        %v3747 = vadd.s32 %v3746, %v3736
        %v3748 = vadd.s32 %v3747, %v3738
        %v3749 = vshrl.u32 %v3748, 4
        %v3750 = vmul.u32 %v3749, 18
        %v3751 = vsub.s32 %v3727, %v3750
        %v3752 = vsub.s32 0, %v3751
        %v3753 = vsel %vm3725, %v3752, %v3751
        %vm3754 = vcmp.lt.s32.totalorder %v2850, 0
        %v3755 = vsub.s32 0, %v2850
        %v3756 = vsel %vm3754, %v3755, %v2850
        %v3757 = vand.u32 %v3756, 65535
        %v3758 = vshrl.u32 %v3756, 16
        %v3760 = vmul.u32 %v3757, 14564
        %v3761 = vmul.u32 %v3757, 58254
        %v3762 = vmul.u32 %v3758, 14564
        %v3763 = vmul.u32 %v3758, 58254
        %v3764 = vshll.u32 %v3761, 16
        %v3765 = vshrl.u32 %v3761, 16
        %v3766 = vshll.u32 %v3762, 16
        %v3767 = vshrl.u32 %v3762, 16
        %vm3768 = vc.u32 %v3760, %v3764
        %v3769 = vsel %vm3768, 1, 0
        %v3770 = vadd.s32 %v3760, %v3764
        %v3771 = vadd.s32 %v3763, %v3769
        %vm3772 = vc.u32 %v3770, %v3766
        %v3773 = vsel %vm3772, 1, 0
        %v3774 = vadd.s32 %v3770, %v3766
        %v3775 = vadd.s32 %v3771, %v3773
        %v3776 = vadd.s32 %v3775, %v3765
        %v3777 = vadd.s32 %v3776, %v3767
        %v3778 = vshrl.u32 %v3777, 4
        %v3779 = vmul.u32 %v3778, 18
        %v3780 = vsub.s32 %v3756, %v3779
        %v3781 = vsub.s32 0, %v3780
        %v3782 = vsel %vm3754, %v3781, %v3780
        %vm3783 = vcmp.lt.s32.totalorder %v2851, 0
        %v3784 = vsub.s32 0, %v2851
        %v3785 = vsel %vm3783, %v3784, %v2851
        %v3786 = vand.u32 %v3785, 65535
        %v3787 = vshrl.u32 %v3785, 16
        %v3789 = vmul.u32 %v3786, 14564
        %v3790 = vmul.u32 %v3786, 58254
        %v3791 = vmul.u32 %v3787, 14564
        %v3792 = vmul.u32 %v3787, 58254
        %v3793 = vshll.u32 %v3790, 16
        %v3794 = vshrl.u32 %v3790, 16
        %v3795 = vshll.u32 %v3791, 16
        %v3796 = vshrl.u32 %v3791, 16
        %vm3797 = vc.u32 %v3789, %v3793
        %v3798 = vsel %vm3797, 1, 0
        %v3799 = vadd.s32 %v3789, %v3793
        %v3800 = vadd.s32 %v3792, %v3798
        %vm3801 = vc.u32 %v3799, %v3795
        %v3802 = vsel %vm3801, 1, 0
        %v3803 = vadd.s32 %v3799, %v3795
        %v3804 = vadd.s32 %v3800, %v3802
        %v3805 = vadd.s32 %v3804, %v3794
        %v3806 = vadd.s32 %v3805, %v3796
        %v3807 = vshrl.u32 %v3806, 4
        %v3808 = vmul.u32 %v3807, 18
        %v3809 = vsub.s32 %v3785, %v3808
        %v3810 = vsub.s32 0, %v3809
        %v3811 = vsel %vm3783, %v3810, %v3809
        %vm3812 = vcmp.lt.s32.totalorder %v2852, 0
        %v3813 = vsub.s32 0, %v2852
        %v3814 = vsel %vm3812, %v3813, %v2852
        %v3815 = vand.u32 %v3814, 65535
        %v3816 = vshrl.u32 %v3814, 16
        %v3818 = vmul.u32 %v3815, 14564
        %v3819 = vmul.u32 %v3815, 58254
        %v3820 = vmul.u32 %v3816, 14564
        %v3821 = vmul.u32 %v3816, 58254
        %v3822 = vshll.u32 %v3819, 16
        %v3823 = vshrl.u32 %v3819, 16
        %v3824 = vshll.u32 %v3820, 16
        %v3825 = vshrl.u32 %v3820, 16
        %vm3826 = vc.u32 %v3818, %v3822
        %v3827 = vsel %vm3826, 1, 0
        %v3828 = vadd.s32 %v3818, %v3822
        %v3829 = vadd.s32 %v3821, %v3827
        %vm3830 = vc.u32 %v3828, %v3824
        %v3831 = vsel %vm3830, 1, 0
        %v3832 = vadd.s32 %v3828, %v3824
        %v3833 = vadd.s32 %v3829, %v3831
        %v3834 = vadd.s32 %v3833, %v3823
        %v3835 = vadd.s32 %v3834, %v3825
        %v3836 = vshrl.u32 %v3835, 4
        %v3837 = vmul.u32 %v3836, 18
        %v3838 = vsub.s32 %v3814, %v3837
        %v3839 = vsub.s32 0, %v3838
        %v3840 = vsel %vm3812, %v3839, %v3838
        %vm3841 = vcmp.lt.s32.totalorder %v2853, 0
        %v3842 = vsub.s32 0, %v2853
        %v3843 = vsel %vm3841, %v3842, %v2853
        %v3844 = vand.u32 %v3843, 65535
        %v3845 = vshrl.u32 %v3843, 16
        %v3847 = vmul.u32 %v3844, 14564
        %v3848 = vmul.u32 %v3844, 58254
        %v3849 = vmul.u32 %v3845, 14564
        %v3850 = vmul.u32 %v3845, 58254
        %v3851 = vshll.u32 %v3848, 16
        %v3852 = vshrl.u32 %v3848, 16
        %v3853 = vshll.u32 %v3849, 16
        %v3854 = vshrl.u32 %v3849, 16
        %vm3855 = vc.u32 %v3847, %v3851
        %v3856 = vsel %vm3855, 1, 0
        %v3857 = vadd.s32 %v3847, %v3851
        %v3858 = vadd.s32 %v3850, %v3856
        %vm3859 = vc.u32 %v3857, %v3853
        %v3860 = vsel %vm3859, 1, 0
        %v3861 = vadd.s32 %v3857, %v3853
        %v3862 = vadd.s32 %v3858, %v3860
        %v3863 = vadd.s32 %v3862, %v3852
        %v3864 = vadd.s32 %v3863, %v3854
        %v3865 = vshrl.u32 %v3864, 4
        %v3866 = vmul.u32 %v3865, 18
        %v3867 = vsub.s32 %v3843, %v3866
        %v3868 = vsub.s32 0, %v3867
        %v3869 = vsel %vm3841, %v3868, %v3867
        %vm3870 = vcmp.lt.s32.totalorder %v2854, 0
        %v3871 = vsub.s32 0, %v2854
        %v3872 = vsel %vm3870, %v3871, %v2854
        %v3873 = vand.u32 %v3872, 65535
        %v3874 = vshrl.u32 %v3872, 16
        %v3876 = vmul.u32 %v3873, 14564
        %v3877 = vmul.u32 %v3873, 58254
        %v3878 = vmul.u32 %v3874, 14564
        %v3879 = vmul.u32 %v3874, 58254
        %v3880 = vshll.u32 %v3877, 16
        %v3881 = vshrl.u32 %v3877, 16
        %v3882 = vshll.u32 %v3878, 16
        %v3883 = vshrl.u32 %v3878, 16
        %vm3884 = vc.u32 %v3876, %v3880
        %v3885 = vsel %vm3884, 1, 0
        %v3886 = vadd.s32 %v3876, %v3880
        %v3887 = vadd.s32 %v3879, %v3885
        %vm3888 = vc.u32 %v3886, %v3882
        %v3889 = vsel %vm3888, 1, 0
        %v3890 = vadd.s32 %v3886, %v3882
        %v3891 = vadd.s32 %v3887, %v3889
        %v3892 = vadd.s32 %v3891, %v3881
        %v3893 = vadd.s32 %v3892, %v3883
        %v3894 = vshrl.u32 %v3893, 4
        %v3895 = vmul.u32 %v3894, 18
        %v3896 = vsub.s32 %v3872, %v3895
        %v3897 = vsub.s32 0, %v3896
        %v3898 = vsel %vm3870, %v3897, %v3896
        %vm3899 = vcmp.ne.s32.totalorder %v2883, 0
        %vm3900 = vcmp.ne.s32.totalorder %v2912, 0
        %vm3901 = vcmp.ne.s32.totalorder %v2941, 0
        %vm3902 = vcmp.ne.s32.totalorder %v2970, 0
        %vm3903 = vcmp.ne.s32.totalorder %v2999, 0
        %vm3904 = vcmp.ne.s32.totalorder %v3028, 0
        %vm3905 = vcmp.ne.s32.totalorder %v3057, 0
        %vm3906 = vcmp.ne.s32.totalorder %v3086, 0
        %vm3907 = vcmp.ne.s32.totalorder %v3115, 0
        %vm3908 = vcmp.ne.s32.totalorder %v3144, 0
        %vm3909 = vcmp.ne.s32.totalorder %v3173, 0
        %vm3910 = vcmp.ne.s32.totalorder %v3202, 0
        %vm3911 = vcmp.ne.s32.totalorder %v3231, 0
        %vm3912 = vcmp.ne.s32.totalorder %v3260, 0
        %vm3913 = vcmp.ne.s32.totalorder %v3289, 0
        %vm3914 = vcmp.ne.s32.totalorder %v3318, 0
        %vm3915 = vcmp.ne.s32.totalorder %v3347, 0
        %vm3916 = vcmp.ne.s32.totalorder %v3376, 0
        %vm3917 = vcmp.ne.s32.totalorder %v3405, 0
        %vm3918 = vcmp.ne.s32.totalorder %v3434, 0
        %vm3919 = vcmp.ne.s32.totalorder %v3463, 0
        %vm3920 = vcmp.ne.s32.totalorder %v3492, 0
        %vm3921 = vcmp.ne.s32.totalorder %v3521, 0
        %vm3922 = vcmp.ne.s32.totalorder %v3550, 0
        %vm3923 = vcmp.ne.s32.totalorder %v3579, 0
        %vm3924 = vcmp.ne.s32.totalorder %v3608, 0
        %vm3925 = vcmp.ne.s32.totalorder %v3637, 0
        %vm3926 = vcmp.ne.s32.totalorder %v3666, 0
        %vm3927 = vcmp.ne.s32.totalorder %v3695, 0
        %vm3928 = vcmp.ne.s32.totalorder %v3724, 0
        %vm3929 = vcmp.ne.s32.totalorder %v3753, 0
        %vm3930 = vcmp.ne.s32.totalorder %v3782, 0
        %vm3931 = vcmp.ne.s32.totalorder %v3811, 0
        %vm3932 = vcmp.ne.s32.totalorder %v3840, 0
        %vm3933 = vcmp.ne.s32.totalorder %v3869, 0
        %vm3934 = vcmp.ne.s32.totalorder %v3898, 0
        %vm3935 = vcmp.lt.s32.totalorder %v2883, 0
        %vm3936 = vcmp.lt.s32.totalorder %v2912, 0
        %vm3937 = vcmp.lt.s32.totalorder %v2941, 0
        %vm3938 = vcmp.lt.s32.totalorder %v2970, 0
        %vm3939 = vcmp.lt.s32.totalorder %v2999, 0
        %vm3940 = vcmp.lt.s32.totalorder %v3028, 0
        %vm3941 = vcmp.lt.s32.totalorder %v3057, 0
        %vm3942 = vcmp.lt.s32.totalorder %v3086, 0
        %vm3943 = vcmp.lt.s32.totalorder %v3115, 0
        %vm3944 = vcmp.lt.s32.totalorder %v3144, 0
        %vm3945 = vcmp.lt.s32.totalorder %v3173, 0
        %vm3946 = vcmp.lt.s32.totalorder %v3202, 0
        %vm3947 = vcmp.lt.s32.totalorder %v3231, 0
        %vm3948 = vcmp.lt.s32.totalorder %v3260, 0
        %vm3949 = vcmp.lt.s32.totalorder %v3289, 0
        %vm3950 = vcmp.lt.s32.totalorder %v3318, 0
        %vm3951 = vcmp.lt.s32.totalorder %v3347, 0
        %vm3952 = vcmp.lt.s32.totalorder %v3376, 0
        %vm3953 = vcmp.lt.s32.totalorder %v3405, 0
        %vm3954 = vcmp.lt.s32.totalorder %v3434, 0
        %vm3955 = vcmp.lt.s32.totalorder %v3463, 0
        %vm3956 = vcmp.lt.s32.totalorder %v3492, 0
        %vm3957 = vcmp.lt.s32.totalorder %v3521, 0
        %vm3958 = vcmp.lt.s32.totalorder %v3550, 0
        %vm3959 = vcmp.lt.s32.totalorder %v3579, 0
        %vm3960 = vcmp.lt.s32.totalorder %v3608, 0
        %vm3961 = vcmp.lt.s32.totalorder %v3637, 0
        %vm3962 = vcmp.lt.s32.totalorder %v3666, 0
        %vm3963 = vcmp.lt.s32.totalorder %v3695, 0
        %vm3964 = vcmp.lt.s32.totalorder %v3724, 0
        %vm3965 = vcmp.lt.s32.totalorder %v3753, 0
        %vm3966 = vcmp.lt.s32.totalorder %v3782, 0
        %vm3967 = vcmp.lt.s32.totalorder %v3811, 0
        %vm3968 = vcmp.lt.s32.totalorder %v3840, 0
        %vm3969 = vcmp.lt.s32.totalorder %v3869, 0
        %vm3970 = vcmp.lt.s32.totalorder %v3898, 0
        %vm3971 = vmand %vm3935, %vm3899
        %vm3972 = vmand %vm3936, %vm3900
        %vm3973 = vmand %vm3937, %vm3901
        %vm3974 = vmand %vm3938, %vm3902
        %vm3975 = vmand %vm3939, %vm3903
        %vm3976 = vmand %vm3940, %vm3904
        %vm3977 = vmand %vm3941, %vm3905
        %vm3978 = vmand %vm3942, %vm3906
        %vm3979 = vmand %vm3943, %vm3907
        %vm3980 = vmand %vm3944, %vm3908
        %vm3981 = vmand %vm3945, %vm3909
        %vm3982 = vmand %vm3946, %vm3910
        %vm3983 = vmand %vm3947, %vm3911
        %vm3984 = vmand %vm3948, %vm3912
        %vm3985 = vmand %vm3949, %vm3913
        %vm3986 = vmand %vm3950, %vm3914
        %vm3987 = vmand %vm3951, %vm3915
        %vm3988 = vmand %vm3952, %vm3916
        %vm3989 = vmand %vm3953, %vm3917
        %vm3990 = vmand %vm3954, %vm3918
        %vm3991 = vmand %vm3955, %vm3919
        %vm3992 = vmand %vm3956, %vm3920
        %vm3993 = vmand %vm3957, %vm3921
        %vm3994 = vmand %vm3958, %vm3922
        %vm3995 = vmand %vm3959, %vm3923
        %vm3996 = vmand %vm3960, %vm3924
        %vm3997 = vmand %vm3961, %vm3925
        %vm3998 = vmand %vm3962, %vm3926
        %vm3999 = vmand %vm3963, %vm3927
        %vm4000 = vmand %vm3964, %vm3928
        %vm4001 = vmand %vm3965, %vm3929
        %vm4002 = vmand %vm3966, %vm3930
        %vm4003 = vmand %vm3967, %vm3931
        %vm4004 = vmand %vm3968, %vm3932
        %vm4005 = vmand %vm3969, %vm3933
        %vm4006 = vmand %vm3970, %vm3934
        %v4007 = vadd.s32 %v2883, 18
        %v4008 = vadd.s32 %v2912, 18
        %v4009 = vadd.s32 %v2941, 18
        %v4010 = vadd.s32 %v2970, 18
        %v4011 = vadd.s32 %v2999, 18
        %v4012 = vadd.s32 %v3028, 18
        %v4013 = vadd.s32 %v3057, 18
        %v4014 = vadd.s32 %v3086, 18
        %v4015 = vadd.s32 %v3115, 18
        %v4016 = vadd.s32 %v3144, 18
        %v4017 = vadd.s32 %v3173, 18
        %v4018 = vadd.s32 %v3202, 18
        %v4019 = vadd.s32 %v3231, 18
        %v4020 = vadd.s32 %v3260, 18
        %v4021 = vadd.s32 %v3289, 18
        %v4022 = vadd.s32 %v3318, 18
        %v4023 = vadd.s32 %v3347, 18
        %v4024 = vadd.s32 %v3376, 18
        %v4025 = vadd.s32 %v3405, 18
        %v4026 = vadd.s32 %v3434, 18
        %v4027 = vadd.s32 %v3463, 18
        %v4028 = vadd.s32 %v3492, 18
        %v4029 = vadd.s32 %v3521, 18
        %v4030 = vadd.s32 %v3550, 18
        %v4031 = vadd.s32 %v3579, 18
        %v4032 = vadd.s32 %v3608, 18
        %v4033 = vadd.s32 %v3637, 18
        %v4034 = vadd.s32 %v3666, 18
        %v4035 = vadd.s32 %v3695, 18
        %v4036 = vadd.s32 %v3724, 18
        %v4037 = vadd.s32 %v3753, 18
        %v4038 = vadd.s32 %v3782, 18
        %v4039 = vadd.s32 %v3811, 18
        %v4040 = vadd.s32 %v3840, 18
        %v4041 = vadd.s32 %v3869, 18
        %v4042 = vadd.s32 %v3898, 18
        %v4043 = vsel %vm3971, %v4007, %v2883
        %v4044 = vsel %vm3972, %v4008, %v2912
        %v4045 = vsel %vm3973, %v4009, %v2941
        %v4046 = vsel %vm3974, %v4010, %v2970
        %v4047 = vsel %vm3975, %v4011, %v2999
        %v4048 = vsel %vm3976, %v4012, %v3028
        %v4049 = vsel %vm3977, %v4013, %v3057
        %v4050 = vsel %vm3978, %v4014, %v3086
        %v4051 = vsel %vm3979, %v4015, %v3115
        %v4052 = vsel %vm3980, %v4016, %v3144
        %v4053 = vsel %vm3981, %v4017, %v3173
        %v4054 = vsel %vm3982, %v4018, %v3202
        %v4055 = vsel %vm3983, %v4019, %v3231
        %v4056 = vsel %vm3984, %v4020, %v3260
        %v4057 = vsel %vm3985, %v4021, %v3289
        %v4058 = vsel %vm3986, %v4022, %v3318
        %v4059 = vsel %vm3987, %v4023, %v3347
        %v4060 = vsel %vm3988, %v4024, %v3376
        %v4061 = vsel %vm3989, %v4025, %v3405
        %v4062 = vsel %vm3990, %v4026, %v3434
        %v4063 = vsel %vm3991, %v4027, %v3463
        %v4064 = vsel %vm3992, %v4028, %v3492
        %v4065 = vsel %vm3993, %v4029, %v3521
        %v4066 = vsel %vm3994, %v4030, %v3550
        %v4067 = vsel %vm3995, %v4031, %v3579
        %v4068 = vsel %vm3996, %v4032, %v3608
        %v4069 = vsel %vm3997, %v4033, %v3637
        %v4070 = vsel %vm3998, %v4034, %v3666
        %v4071 = vsel %vm3999, %v4035, %v3695
        %v4072 = vsel %vm4000, %v4036, %v3724
        %v4073 = vsel %vm4001, %v4037, %v3753
        %v4074 = vsel %vm4002, %v4038, %v3782
        %v4075 = vsel %vm4003, %v4039, %v3811
        %v4076 = vsel %vm4004, %v4040, %v3840
        %v4077 = vsel %vm4005, %v4041, %v3869
        %v4078 = vsel %vm4006, %v4042, %v3898
        %vm4079 = vcmp.lt.s32.totalorder %v4043, 16
        %vm4080 = vcmp.lt.s32.totalorder %v4044, 16
        %vm4081 = vcmp.lt.s32.totalorder %v4045, 16
        %vm4082 = vcmp.lt.s32.totalorder %v4046, 16
        %vm4083 = vcmp.lt.s32.totalorder %v4047, 16
        %vm4084 = vcmp.lt.s32.totalorder %v4048, 16
        %vm4085 = vcmp.lt.s32.totalorder %v4049, 16
        %vm4086 = vcmp.lt.s32.totalorder %v4050, 16
        %vm4087 = vcmp.lt.s32.totalorder %v4051, 16
        %vm4088 = vcmp.lt.s32.totalorder %v4052, 16
        %vm4089 = vcmp.lt.s32.totalorder %v4053, 16
        %vm4090 = vcmp.lt.s32.totalorder %v4054, 16
        %vm4091 = vcmp.lt.s32.totalorder %v4055, 16
        %vm4092 = vcmp.lt.s32.totalorder %v4056, 16
        %vm4093 = vcmp.lt.s32.totalorder %v4057, 16
        %vm4094 = vcmp.lt.s32.totalorder %v4058, 16
        %vm4095 = vcmp.lt.s32.totalorder %v4059, 16
        %vm4096 = vcmp.lt.s32.totalorder %v4060, 16
        %vm4097 = vcmp.lt.s32.totalorder %v4061, 16
        %vm4098 = vcmp.lt.s32.totalorder %v4062, 16
        %vm4099 = vcmp.lt.s32.totalorder %v4063, 16
        %vm4100 = vcmp.lt.s32.totalorder %v4064, 16
        %vm4101 = vcmp.lt.s32.totalorder %v4065, 16
        %vm4102 = vcmp.lt.s32.totalorder %v4066, 16
        %vm4103 = vcmp.lt.s32.totalorder %v4067, 16
        %vm4104 = vcmp.lt.s32.totalorder %v4068, 16
        %vm4105 = vcmp.lt.s32.totalorder %v4069, 16
        %vm4106 = vcmp.lt.s32.totalorder %v4070, 16
        %vm4107 = vcmp.lt.s32.totalorder %v4071, 16
        %vm4108 = vcmp.lt.s32.totalorder %v4072, 16
        %vm4109 = vcmp.lt.s32.totalorder %v4073, 16
        %vm4110 = vcmp.lt.s32.totalorder %v4074, 16
        %vm4111 = vcmp.lt.s32.totalorder %v4075, 16
        %vm4112 = vcmp.lt.s32.totalorder %v4076, 16
        %vm4113 = vcmp.lt.s32.totalorder %v4077, 16
        %vm4114 = vcmp.lt.s32.totalorder %v4078, 16
        %s4115 = smul.u32 %s20, 36
        %s4116 = smul.addr %s4115, 4
        %s4117 = scalar_lea.vmem [#allocation2], %s4116
        %v4118 = vld [vmem:[%s4117] sm:$0xf]
        %v4119 = vld [vmem:[%s4117 + $0x4] sm:$0xf]
        %v4120 = vld [vmem:[%s4117 + $0x8] sm:$0xf]
        %v4121 = vld [vmem:[%s4117 + $0xc] sm:$0xf]
        %v4122 = vld [vmem:[%s4117 + $0x10] sm:$0xf]
        %v4123 = vld [vmem:[%s4117 + $0x14] sm:$0xf]
        %v4124 = vld [vmem:[%s4117 + $0x18] sm:$0xf]
        %v4125 = vld [vmem:[%s4117 + $0x1c] sm:$0xf]
        %v4126 = vld [vmem:[%s4117 + $0x20] sm:$0xf]
        %v4127 = vld [vmem:[%s4117 + $0x24] sm:$0xf]
        %v4128 = vld [vmem:[%s4117 + $0x28] sm:$0xf]
        %v4129 = vld [vmem:[%s4117 + $0x2c] sm:$0xf]
        %v4130 = vld [vmem:[%s4117 + $0x30] sm:$0xf]
        %v4131 = vld [vmem:[%s4117 + $0x34] sm:$0xf]
        %v4132 = vld [vmem:[%s4117 + $0x38] sm:$0xf]
        %v4133 = vld [vmem:[%s4117 + $0x3c] sm:$0xf]
        %v4134 = vld [vmem:[%s4117 + $0x40] sm:$0xf]
        %v4135 = vld [vmem:[%s4117 + $0x44] sm:$0xf]
        %v4136 = vld [vmem:[%s4117 + $0x48] sm:$0xf]
        %v4137 = vld [vmem:[%s4117 + $0x4c] sm:$0xf]
        %v4138 = vld [vmem:[%s4117 + $0x50] sm:$0xf]
        %v4139 = vld [vmem:[%s4117 + $0x54] sm:$0xf]
        %v4140 = vld [vmem:[%s4117 + $0x58] sm:$0xf]
        %v4141 = vld [vmem:[%s4117 + $0x5c] sm:$0xf]
        %v4142 = vld [vmem:[%s4117 + $0x60] sm:$0xf]
        %v4143 = vld [vmem:[%s4117 + $0x64] sm:$0xf]
        %v4144 = vld [vmem:[%s4117 + $0x68] sm:$0xf]
        %v4145 = vld [vmem:[%s4117 + $0x6c] sm:$0xf]
        %v4146 = vld [vmem:[%s4117 + $0x70] sm:$0xf]
        %v4147 = vld [vmem:[%s4117 + $0x74] sm:$0xf]
        %v4148 = vld [vmem:[%s4117 + $0x78] sm:$0xf]
        %v4149 = vld [vmem:[%s4117 + $0x7c] sm:$0xf]
        %v4150 = vld [vmem:[%s4117 + $0x80] sm:$0xf]
        %v4151 = vld [vmem:[%s4117 + $0x84] sm:$0xf]
        %v4152 = vld [vmem:[%s4117 + $0x88] sm:$0xf]
        %v4153 = vld [vmem:[%s4117 + $0x8c] sm:$0xf]
        %v4154 = vld [vmem:[#allocation5] sm:$0x1]
        %v4155 = vld [vmem:[#allocation5 + $0x1] sm:$0x1]
        %v4156 = vunpack.c.l.bf16 %v4118
        %v4157 = vunpack.c.l.bf16 %v4119
        %v4158 = vunpack.c.l.bf16 %v4120
        %v4159 = vunpack.c.l.bf16 %v4121
        %v4160 = vunpack.c.l.bf16 %v4122
        %v4161 = vunpack.c.l.bf16 %v4123
        %v4162 = vunpack.c.l.bf16 %v4124
        %v4163 = vunpack.c.l.bf16 %v4125
        %v4164 = vunpack.c.l.bf16 %v4126
        %v4165 = vunpack.c.l.bf16 %v4127
        %v4166 = vunpack.c.l.bf16 %v4128
        %v4167 = vunpack.c.l.bf16 %v4129
        %v4168 = vunpack.c.l.bf16 %v4130
        %v4169 = vunpack.c.l.bf16 %v4131
        %v4170 = vunpack.c.l.bf16 %v4132
        %v4171 = vunpack.c.l.bf16 %v4133
        %v4172 = vunpack.c.l.bf16 %v4134
        %v4173 = vunpack.c.l.bf16 %v4135
        %v4174 = vunpack.c.l.bf16 %v4136
        %v4175 = vunpack.c.l.bf16 %v4137
        %v4176 = vunpack.c.l.bf16 %v4138
        %v4177 = vunpack.c.l.bf16 %v4139
        %v4178 = vunpack.c.l.bf16 %v4140
        %v4179 = vunpack.c.l.bf16 %v4141
        %v4180 = vunpack.c.l.bf16 %v4142
        %v4181 = vunpack.c.l.bf16 %v4143
        %v4182 = vunpack.c.l.bf16 %v4144
        %v4183 = vunpack.c.l.bf16 %v4145
        %v4184 = vunpack.c.l.bf16 %v4146
        %v4185 = vunpack.c.l.bf16 %v4147
        %v4186 = vunpack.c.l.bf16 %v4148
        %v4187 = vunpack.c.l.bf16 %v4149
        %v4188 = vunpack.c.l.bf16 %v4150
        %v4189 = vunpack.c.l.bf16 %v4151
        %v4190 = vunpack.c.l.bf16 %v4152
        %v4191 = vunpack.c.l.bf16 %v4153
        %v4192 = vperm.slane %v4154, 0
        %v4193 = vmul.f32 %v4156, %v4192
        %v4194 = vmul.f32 %v4157, %v4192
        %v4195 = vmul.f32 %v4158, %v4192
        %v4196 = vmul.f32 %v4159, %v4192
        %v4197 = vmul.f32 %v4160, %v4192
        %v4198 = vmul.f32 %v4161, %v4192
        %v4199 = vmul.f32 %v4162, %v4192
        %v4200 = vmul.f32 %v4163, %v4192
        %v4201 = vmul.f32 %v4164, %v4192
        %v4202 = vmul.f32 %v4165, %v4192
        %v4203 = vmul.f32 %v4166, %v4192
        %v4204 = vmul.f32 %v4167, %v4192
        %v4205 = vmul.f32 %v4168, %v4192
        %v4206 = vmul.f32 %v4169, %v4192
        %v4207 = vmul.f32 %v4170, %v4192
        %v4208 = vmul.f32 %v4171, %v4192
        %v4209 = vmul.f32 %v4172, %v4192
        %v4210 = vmul.f32 %v4173, %v4192
        %v4211 = vmul.f32 %v4174, %v4192
        %v4212 = vmul.f32 %v4175, %v4192
        %v4213 = vmul.f32 %v4176, %v4192
        %v4214 = vmul.f32 %v4177, %v4192
        %v4215 = vmul.f32 %v4178, %v4192
        %v4216 = vmul.f32 %v4179, %v4192
        %v4217 = vmul.f32 %v4180, %v4192
        %v4218 = vmul.f32 %v4181, %v4192
        %v4219 = vmul.f32 %v4182, %v4192
        %v4220 = vmul.f32 %v4183, %v4192
        %v4221 = vmul.f32 %v4184, %v4192
        %v4222 = vmul.f32 %v4185, %v4192
        %v4223 = vmul.f32 %v4186, %v4192
        %v4224 = vmul.f32 %v4187, %v4192
        %v4225 = vmul.f32 %v4188, %v4192
        %v4226 = vmul.f32 %v4189, %v4192
        %v4227 = vmul.f32 %v4190, %v4192
        %v4228 = vmul.f32 %v4191, %v4192
        %v4229 = vperm.slane %v4155, 0
        %v4230 = vadd.f32 %v4193, %v4229
        %v4231 = vadd.f32 %v4194, %v4229
        %v4232 = vadd.f32 %v4195, %v4229
        %v4233 = vadd.f32 %v4196, %v4229
        %v4234 = vadd.f32 %v4197, %v4229
        %v4235 = vadd.f32 %v4198, %v4229
        %v4236 = vadd.f32 %v4199, %v4229
        %v4237 = vadd.f32 %v4200, %v4229
        %v4238 = vadd.f32 %v4201, %v4229
        %v4239 = vadd.f32 %v4202, %v4229
        %v4240 = vadd.f32 %v4203, %v4229
        %v4241 = vadd.f32 %v4204, %v4229
        %v4242 = vadd.f32 %v4205, %v4229
        %v4243 = vadd.f32 %v4206, %v4229
        %v4244 = vadd.f32 %v4207, %v4229
        %v4245 = vadd.f32 %v4208, %v4229
        %v4246 = vadd.f32 %v4209, %v4229
        %v4247 = vadd.f32 %v4210, %v4229
        %v4248 = vadd.f32 %v4211, %v4229
        %v4249 = vadd.f32 %v4212, %v4229
        %v4250 = vadd.f32 %v4213, %v4229
        %v4251 = vadd.f32 %v4214, %v4229
        %v4252 = vadd.f32 %v4215, %v4229
        %v4253 = vadd.f32 %v4216, %v4229
        %v4254 = vadd.f32 %v4217, %v4229
        %v4255 = vadd.f32 %v4218, %v4229
        %v4256 = vadd.f32 %v4219, %v4229
        %v4257 = vadd.f32 %v4220, %v4229
        %v4258 = vadd.f32 %v4221, %v4229
        %v4259 = vadd.f32 %v4222, %v4229
        %v4260 = vadd.f32 %v4223, %v4229
        %v4261 = vadd.f32 %v4224, %v4229
        %v4262 = vadd.f32 %v4225, %v4229
        %v4263 = vadd.f32 %v4226, %v4229
        %v4264 = vadd.f32 %v4227, %v4229
        %v4265 = vadd.f32 %v4228, %v4229
        %v4266 = vmax.f32 %v4230, 0.0
        %v4267 = vmax.f32 %v4231, 0.0
        %v4268 = vmax.f32 %v4232, 0.0
        %v4269 = vmax.f32 %v4233, 0.0
        %v4270 = vmax.f32 %v4234, 0.0
        %v4271 = vmax.f32 %v4235, 0.0
        %v4272 = vmax.f32 %v4236, 0.0
        %v4273 = vmax.f32 %v4237, 0.0
        %v4274 = vmax.f32 %v4238, 0.0
        %v4275 = vmax.f32 %v4239, 0.0
        %v4276 = vmax.f32 %v4240, 0.0
        %v4277 = vmax.f32 %v4241, 0.0
        %v4278 = vmax.f32 %v4242, 0.0
        %v4279 = vmax.f32 %v4243, 0.0
        %v4280 = vmax.f32 %v4244, 0.0
        %v4281 = vmax.f32 %v4245, 0.0
        %v4282 = vmax.f32 %v4246, 0.0
        %v4283 = vmax.f32 %v4247, 0.0
        %v4284 = vmax.f32 %v4248, 0.0
        %v4285 = vmax.f32 %v4249, 0.0
        %v4286 = vmax.f32 %v4250, 0.0
        %v4287 = vmax.f32 %v4251, 0.0
        %v4288 = vmax.f32 %v4252, 0.0
        %v4289 = vmax.f32 %v4253, 0.0
        %v4290 = vmax.f32 %v4254, 0.0
        %v4291 = vmax.f32 %v4255, 0.0
        %v4292 = vmax.f32 %v4256, 0.0
        %v4293 = vmax.f32 %v4257, 0.0
        %v4294 = vmax.f32 %v4258, 0.0
        %v4295 = vmax.f32 %v4259, 0.0
        %v4296 = vmax.f32 %v4260, 0.0
        %v4297 = vmax.f32 %v4261, 0.0
        %v4298 = vmax.f32 %v4262, 0.0
        %v4299 = vmax.f32 %v4263, 0.0
        %v4300 = vmax.f32 %v4264, 0.0
        %v4301 = vmax.f32 %v4265, 0.0
        %v4302 = vsel %vm4079, %v4266, 0.0
        %v4303 = vsel %vm4080, %v4267, 0.0
        %v4304 = vsel %vm4081, %v4268, 0.0
        %v4305 = vsel %vm4082, %v4269, 0.0
        %v4306 = vsel %vm4083, %v4270, 0.0
        %v4307 = vsel %vm4084, %v4271, 0.0
        %v4308 = vsel %vm4085, %v4272, 0.0
        %v4309 = vsel %vm4086, %v4273, 0.0
        %v4310 = vsel %vm4087, %v4274, 0.0
        %v4311 = vsel %vm4088, %v4275, 0.0
        %v4312 = vsel %vm4089, %v4276, 0.0
        %v4313 = vsel %vm4090, %v4277, 0.0
        %v4314 = vsel %vm4091, %v4278, 0.0
        %v4315 = vsel %vm4092, %v4279, 0.0
        %v4316 = vsel %vm4093, %v4280, 0.0
        %v4317 = vsel %vm4094, %v4281, 0.0
        %v4318 = vsel %vm4095, %v4282, 0.0
        %v4319 = vsel %vm4096, %v4283, 0.0
        %v4320 = vsel %vm4097, %v4284, 0.0
        %v4321 = vsel %vm4098, %v4285, 0.0
        %v4322 = vsel %vm4099, %v4286, 0.0
        %v4323 = vsel %vm4100, %v4287, 0.0
        %v4324 = vsel %vm4101, %v4288, 0.0
        %v4325 = vsel %vm4102, %v4289, 0.0
        %v4326 = vsel %vm4103, %v4290, 0.0
        %v4327 = vsel %vm4104, %v4291, 0.0
        %v4328 = vsel %vm4105, %v4292, 0.0
        %v4329 = vsel %vm4106, %v4293, 0.0
        %v4330 = vsel %vm4107, %v4294, 0.0
        %v4331 = vsel %vm4108, %v4295, 0.0
        %v4332 = vsel %vm4109, %v4296, 0.0
        %v4333 = vsel %vm4110, %v4297, 0.0
        %v4334 = vsel %vm4111, %v4298, 0.0
        %v4335 = vsel %vm4112, %v4299, 0.0
        %v4336 = vsel %vm4113, %v4300, 0.0
        %v4337 = vsel %vm4114, %v4301, 0.0
        %v4338 = vpack.c.bf16 %v4302, %v4302
        %v4339 = vpack.c.bf16 %v4303, %v4303
        %v4340 = vpack.c.bf16 %v4304, %v4304
        %v4341 = vpack.c.bf16 %v4305, %v4305
        %v4342 = vpack.c.bf16 %v4306, %v4306
        %v4343 = vpack.c.bf16 %v4307, %v4307
        %v4344 = vpack.c.bf16 %v4308, %v4308
        %v4345 = vpack.c.bf16 %v4309, %v4309
        %v4346 = vpack.c.bf16 %v4310, %v4310
        %v4347 = vpack.c.bf16 %v4311, %v4311
        %v4348 = vpack.c.bf16 %v4312, %v4312
        %v4349 = vpack.c.bf16 %v4313, %v4313
        %v4350 = vpack.c.bf16 %v4314, %v4314
        %v4351 = vpack.c.bf16 %v4315, %v4315
        %v4352 = vpack.c.bf16 %v4316, %v4316
        %v4353 = vpack.c.bf16 %v4317, %v4317
        %v4354 = vpack.c.bf16 %v4318, %v4318
        %v4355 = vpack.c.bf16 %v4319, %v4319
        %v4356 = vpack.c.bf16 %v4320, %v4320
        %v4357 = vpack.c.bf16 %v4321, %v4321
        %v4358 = vpack.c.bf16 %v4322, %v4322
        %v4359 = vpack.c.bf16 %v4323, %v4323
        %v4360 = vpack.c.bf16 %v4324, %v4324
        %v4361 = vpack.c.bf16 %v4325, %v4325
        %v4362 = vpack.c.bf16 %v4326, %v4326
        %v4363 = vpack.c.bf16 %v4327, %v4327
        %v4364 = vpack.c.bf16 %v4328, %v4328
        %v4365 = vpack.c.bf16 %v4329, %v4329
        %v4366 = vpack.c.bf16 %v4330, %v4330
        %v4367 = vpack.c.bf16 %v4331, %v4331
        %v4368 = vpack.c.bf16 %v4332, %v4332
        %v4369 = vpack.c.bf16 %v4333, %v4333
        %v4370 = vpack.c.bf16 %v4334, %v4334
        %v4371 = vpack.c.bf16 %v4335, %v4335
        %v4372 = vpack.c.bf16 %v4336, %v4336
        %v4373 = vpack.c.bf16 %v4337, %v4337
        %vm4374 = vsmask.f32 1280
        %vm4375 = vsmask.f32 5392
        %vm4376 = vmor %vm4374, %vm4375
        %v4378 = vshrl.u32 %v4338, 16
        %v4380 = vrot.slane %v4378, 6
        %v4381 = vshll.u32 %v4338, 16
        %v4383 = vrot.slane %v4381, 7
        %v4384 = vor.u32 %v4380, %v4383
        %v4385 = vrot.slane %v4384, 4
        %v4387 = vshrl.u32 %v4339, 16
        %v4389 = vrot.slane %v4387, 6
        %v4390 = vshll.u32 %v4339, 16
        %v4392 = vrot.slane %v4390, 7
        %v4393 = vor.u32 %v4389, %v4392
        %v4394 = vsel %vm4376, %v4385, %v4393
        %v4395 = vrot.slane %v4393, 4
        %v4397 = vshrl.u32 %v4340, 16
        %v4399 = vrot.slane %v4397, 6
        %v4400 = vshll.u32 %v4340, 16
        %v4402 = vrot.slane %v4400, 7
        %v4403 = vor.u32 %v4399, %v4402
        %v4404 = vsel %vm4376, %v4395, %v4403
        %v4405 = vrot.slane %v4403, 4
        %v4407 = vshrl.u32 %v4341, 16
        %v4409 = vrot.slane %v4407, 6
        %v4410 = vshll.u32 %v4341, 16
        %v4412 = vrot.slane %v4410, 7
        %v4413 = vor.u32 %v4409, %v4412
        %v4414 = vsel %vm4376, %v4405, %v4413
        %v4415 = vrot.slane %v4413, 4
        %v4417 = vshrl.u32 %v4342, 16
        %v4419 = vrot.slane %v4417, 6
        %v4420 = vshll.u32 %v4342, 16
        %v4422 = vrot.slane %v4420, 7
        %v4423 = vor.u32 %v4419, %v4422
        %v4424 = vsel %vm4376, %v4415, %v4423
        %v4425 = vrot.slane %v4423, 4
        %v4427 = vshrl.u32 %v4343, 16
        %v4429 = vrot.slane %v4427, 6
        %v4430 = vshll.u32 %v4343, 16
        %v4432 = vrot.slane %v4430, 7
        %v4433 = vor.u32 %v4429, %v4432
        %v4434 = vsel %vm4376, %v4425, %v4433
        %v4435 = vrot.slane %v4433, 4
        %v4437 = vshrl.u32 %v4344, 16
        %v4439 = vrot.slane %v4437, 6
        %v4440 = vshll.u32 %v4344, 16
        %v4442 = vrot.slane %v4440, 7
        %v4443 = vor.u32 %v4439, %v4442
        %v4444 = vsel %vm4376, %v4435, %v4443
        %v4445 = vrot.slane %v4443, 4
        %v4447 = vshrl.u32 %v4345, 16
        %v4449 = vrot.slane %v4447, 6
        %v4450 = vshll.u32 %v4345, 16
        %v4452 = vrot.slane %v4450, 7
        %v4453 = vor.u32 %v4449, %v4452
        %v4454 = vsel %vm4376, %v4445, %v4453
        %v4455 = vrot.slane %v4453, 4
        %v4457 = vshrl.u32 %v4346, 16
        %v4459 = vrot.slane %v4457, 6
        %v4460 = vshll.u32 %v4346, 16
        %v4462 = vrot.slane %v4460, 7
        %v4463 = vor.u32 %v4459, %v4462
        %v4464 = vsel %vm4376, %v4455, %v4463
        %v4465 = vrot.slane %v4463, 4
        %v4467 = vshrl.u32 %v4347, 16
        %v4469 = vrot.slane %v4467, 6
        %v4470 = vshll.u32 %v4347, 16
        %v4472 = vrot.slane %v4470, 7
        %v4473 = vor.u32 %v4469, %v4472
        %v4474 = vsel %vm4376, %v4465, %v4473
        %v4475 = vrot.slane %v4473, 4
        %v4477 = vshrl.u32 %v4348, 16
        %v4479 = vrot.slane %v4477, 6
        %v4480 = vshll.u32 %v4348, 16
        %v4482 = vrot.slane %v4480, 7
        %v4483 = vor.u32 %v4479, %v4482
        %v4484 = vsel %vm4376, %v4475, %v4483
        %v4485 = vrot.slane %v4483, 4
        %v4487 = vshrl.u32 %v4349, 16
        %v4489 = vrot.slane %v4487, 6
        %v4490 = vshll.u32 %v4349, 16
        %v4492 = vrot.slane %v4490, 7
        %v4493 = vor.u32 %v4489, %v4492
        %v4494 = vsel %vm4376, %v4485, %v4493
        %v4495 = vrot.slane %v4493, 4
        %v4497 = vshrl.u32 %v4350, 16
        %v4499 = vrot.slane %v4497, 6
        %v4500 = vshll.u32 %v4350, 16
        %v4502 = vrot.slane %v4500, 7
        %v4503 = vor.u32 %v4499, %v4502
        %v4504 = vsel %vm4376, %v4495, %v4503
        %v4505 = vrot.slane %v4503, 4
        %v4507 = vshrl.u32 %v4351, 16
        %v4509 = vrot.slane %v4507, 6
        %v4510 = vshll.u32 %v4351, 16
        %v4512 = vrot.slane %v4510, 7
        %v4513 = vor.u32 %v4509, %v4512
        %v4514 = vsel %vm4376, %v4505, %v4513
        %v4515 = vrot.slane %v4513, 4
        %v4517 = vshrl.u32 %v4352, 16
        %v4519 = vrot.slane %v4517, 6
        %v4520 = vshll.u32 %v4352, 16
        %v4522 = vrot.slane %v4520, 7
        %v4523 = vor.u32 %v4519, %v4522
        %v4524 = vsel %vm4376, %v4515, %v4523
        %v4525 = vrot.slane %v4523, 4
        %v4527 = vshrl.u32 %v4353, 16
        %v4529 = vrot.slane %v4527, 6
        %v4530 = vshll.u32 %v4353, 16
        %v4532 = vrot.slane %v4530, 7
        %v4533 = vor.u32 %v4529, %v4532
        %v4534 = vsel %vm4376, %v4525, %v4533
        %v4535 = vrot.slane %v4533, 4
        %v4537 = vshrl.u32 %v4354, 16
        %v4539 = vrot.slane %v4537, 6
        %v4540 = vshll.u32 %v4354, 16
        %v4542 = vrot.slane %v4540, 7
        %v4543 = vor.u32 %v4539, %v4542
        %v4544 = vsel %vm4376, %v4535, %v4543
        %v4545 = vrot.slane %v4543, 4
        %v4547 = vshrl.u32 %v4355, 16
        %v4549 = vrot.slane %v4547, 6
        %v4550 = vshll.u32 %v4355, 16
        %v4552 = vrot.slane %v4550, 7
        %v4553 = vor.u32 %v4549, %v4552
        %v4554 = vsel %vm4376, %v4545, %v4553
        %v4555 = vrot.slane %v4553, 4
        %v4557 = vshrl.u32 %v4356, 16
        %v4559 = vrot.slane %v4557, 6
        %v4560 = vshll.u32 %v4356, 16
        %v4562 = vrot.slane %v4560, 7
        %v4563 = vor.u32 %v4559, %v4562
        %v4564 = vsel %vm4376, %v4555, %v4563
        %v4565 = vrot.slane %v4563, 4
        %v4567 = vshrl.u32 %v4357, 16
        %v4569 = vrot.slane %v4567, 6
        %v4570 = vshll.u32 %v4357, 16
        %v4572 = vrot.slane %v4570, 7
        %v4573 = vor.u32 %v4569, %v4572
        %v4574 = vsel %vm4376, %v4565, %v4573
        %v4575 = vrot.slane %v4573, 4
        %v4577 = vshrl.u32 %v4358, 16
        %v4579 = vrot.slane %v4577, 6
        %v4580 = vshll.u32 %v4358, 16
        %v4582 = vrot.slane %v4580, 7
        %v4583 = vor.u32 %v4579, %v4582
        %v4584 = vsel %vm4376, %v4575, %v4583
        %v4585 = vrot.slane %v4583, 4
        %v4587 = vshrl.u32 %v4359, 16
        %v4589 = vrot.slane %v4587, 6
        %v4590 = vshll.u32 %v4359, 16
        %v4592 = vrot.slane %v4590, 7
        %v4593 = vor.u32 %v4589, %v4592
        %v4594 = vsel %vm4376, %v4585, %v4593
        %v4595 = vrot.slane %v4593, 4
        %v4597 = vshrl.u32 %v4360, 16
        %v4599 = vrot.slane %v4597, 6
        %v4600 = vshll.u32 %v4360, 16
        %v4602 = vrot.slane %v4600, 7
        %v4603 = vor.u32 %v4599, %v4602
        %v4604 = vsel %vm4376, %v4595, %v4603
        %v4605 = vrot.slane %v4603, 4
        %v4607 = vshrl.u32 %v4361, 16
        %v4609 = vrot.slane %v4607, 6
        %v4610 = vshll.u32 %v4361, 16
        %v4612 = vrot.slane %v4610, 7
        %v4613 = vor.u32 %v4609, %v4612
        %v4614 = vsel %vm4376, %v4605, %v4613
        %v4615 = vrot.slane %v4613, 4
        %v4617 = vshrl.u32 %v4362, 16
        %v4619 = vrot.slane %v4617, 6
        %v4620 = vshll.u32 %v4362, 16
        %v4622 = vrot.slane %v4620, 7
        %v4623 = vor.u32 %v4619, %v4622
        %v4624 = vsel %vm4376, %v4615, %v4623
        %v4625 = vrot.slane %v4623, 4
        %v4627 = vshrl.u32 %v4363, 16
        %v4629 = vrot.slane %v4627, 6
        %v4630 = vshll.u32 %v4363, 16
        %v4632 = vrot.slane %v4630, 7
        %v4633 = vor.u32 %v4629, %v4632
        %v4634 = vsel %vm4376, %v4625, %v4633
        %v4635 = vrot.slane %v4633, 4
        %v4637 = vshrl.u32 %v4364, 16
        %v4639 = vrot.slane %v4637, 6
        %v4640 = vshll.u32 %v4364, 16
        %v4642 = vrot.slane %v4640, 7
        %v4643 = vor.u32 %v4639, %v4642
        %v4644 = vsel %vm4376, %v4635, %v4643
        %v4645 = vrot.slane %v4643, 4
        %v4647 = vshrl.u32 %v4365, 16
        %v4649 = vrot.slane %v4647, 6
        %v4650 = vshll.u32 %v4365, 16
        %v4652 = vrot.slane %v4650, 7
        %v4653 = vor.u32 %v4649, %v4652
        %v4654 = vsel %vm4376, %v4645, %v4653
        %v4655 = vrot.slane %v4653, 4
        %v4657 = vshrl.u32 %v4366, 16
        %v4659 = vrot.slane %v4657, 6
        %v4660 = vshll.u32 %v4366, 16
        %v4662 = vrot.slane %v4660, 7
        %v4663 = vor.u32 %v4659, %v4662
        %v4664 = vsel %vm4376, %v4655, %v4663
        %v4665 = vrot.slane %v4663, 4
        %v4667 = vshrl.u32 %v4367, 16
        %v4669 = vrot.slane %v4667, 6
        %v4670 = vshll.u32 %v4367, 16
        %v4672 = vrot.slane %v4670, 7
        %v4673 = vor.u32 %v4669, %v4672
        %v4674 = vsel %vm4376, %v4665, %v4673
        %v4675 = vrot.slane %v4673, 4
        %v4677 = vshrl.u32 %v4368, 16
        %v4679 = vrot.slane %v4677, 6
        %v4680 = vshll.u32 %v4368, 16
        %v4682 = vrot.slane %v4680, 7
        %v4683 = vor.u32 %v4679, %v4682
        %v4684 = vsel %vm4376, %v4675, %v4683
        %v4685 = vrot.slane %v4683, 4
        %v4687 = vshrl.u32 %v4369, 16
        %v4689 = vrot.slane %v4687, 6
        %v4690 = vshll.u32 %v4369, 16
        %v4692 = vrot.slane %v4690, 7
        %v4693 = vor.u32 %v4689, %v4692
        %v4694 = vsel %vm4376, %v4685, %v4693
        %v4695 = vrot.slane %v4693, 4
        %v4697 = vshrl.u32 %v4370, 16
        %v4699 = vrot.slane %v4697, 6
        %v4700 = vshll.u32 %v4370, 16
        %v4702 = vrot.slane %v4700, 7
        %v4703 = vor.u32 %v4699, %v4702
        %v4704 = vsel %vm4376, %v4695, %v4703
        %v4705 = vrot.slane %v4703, 4
        %v4707 = vshrl.u32 %v4371, 16
        %v4709 = vrot.slane %v4707, 6
        %v4710 = vshll.u32 %v4371, 16
        %v4712 = vrot.slane %v4710, 7
        %v4713 = vor.u32 %v4709, %v4712
        %v4714 = vsel %vm4376, %v4705, %v4713
        %v4715 = vrot.slane %v4713, 4
        %v4717 = vshrl.u32 %v4372, 16
        %v4719 = vrot.slane %v4717, 6
        %v4720 = vshll.u32 %v4372, 16
        %v4722 = vrot.slane %v4720, 7
        %v4723 = vor.u32 %v4719, %v4722
        %v4724 = vsel %vm4376, %v4715, %v4723
        %v4725 = vrot.slane %v4723, 4
        %v4727 = vshrl.u32 %v4373, 16
        %v4729 = vrot.slane %v4727, 6
        %v4730 = vshll.u32 %v4373, 16
        %v4732 = vrot.slane %v4730, 7
        %v4733 = vor.u32 %v4729, %v4732
        %v4734 = vsel %vm4376, %v4725, %v4733
        %v4735 = vrot.slane %v4733, 4
        %vm4773 = vcmask 1043457
        %vm4774 = vsmask.f32 7942
        %vm4775 = vmand %vm4773, %vm4774
        %v4776 = vld [vmem:[#allocation3 + $0x8] sm:$0xe]
        %v4777 = vsel %vm4775, %v4384, %v4776
        %4778 = vst [vmem:[#allocation3 + $0x8] sm:$0xe] %v4777
        %4779 = vst [vmem:[#allocation3 + $0xc] sm:$0xf] %v4394
        %4780 = vst [vmem:[#allocation3 + $0x10] sm:$0xf] %v4404
        %4781 = vst [vmem:[#allocation3 + $0x14] sm:$0xf] %v4414
        %4782 = vst [vmem:[#allocation3 + $0x18] sm:$0xf] %v4424
        %4783 = vst [vmem:[#allocation3 + $0x1c] sm:$0xf] %v4434
        %4784 = vst [vmem:[#allocation3 + $0x20] sm:$0xf] %v4444
        %4785 = vst [vmem:[#allocation3 + $0x24] sm:$0xf] %v4454
        %4786 = vst [vmem:[#allocation3 + $0x28] sm:$0xf] %v4464
        %4787 = vst [vmem:[#allocation3 + $0x2c] sm:$0xf] %v4474
        %4788 = vst [vmem:[#allocation3 + $0x30] sm:$0xf] %v4484
        %4789 = vst [vmem:[#allocation3 + $0x34] sm:$0xf] %v4494
        %4790 = vst [vmem:[#allocation3 + $0x38] sm:$0xf] %v4504
        %4791 = vst [vmem:[#allocation3 + $0x3c] sm:$0xf] %v4514
        %4792 = vst [vmem:[#allocation3 + $0x40] sm:$0xf] %v4524
        %4793 = vst [vmem:[#allocation3 + $0x44] sm:$0xf] %v4534
        %4794 = vst [vmem:[#allocation3 + $0x48] sm:$0xf] %v4544
        %4795 = vst [vmem:[#allocation3 + $0x4c] sm:$0xf] %v4554
        %4796 = vst [vmem:[#allocation3 + $0x50] sm:$0xf] %v4564
        %4797 = vst [vmem:[#allocation3 + $0x54] sm:$0xf] %v4574
        %4798 = vst [vmem:[#allocation3 + $0x58] sm:$0xf] %v4584
        %4799 = vst [vmem:[#allocation3 + $0x5c] sm:$0xf] %v4594
        %4800 = vst [vmem:[#allocation3 + $0x60] sm:$0xf] %v4604
        %4801 = vst [vmem:[#allocation3 + $0x64] sm:$0xf] %v4614
        %4802 = vst [vmem:[#allocation3 + $0x68] sm:$0xf] %v4624
        %4803 = vst [vmem:[#allocation3 + $0x6c] sm:$0xf] %v4634
        %4804 = vst [vmem:[#allocation3 + $0x70] sm:$0xf] %v4644
        %4805 = vst [vmem:[#allocation3 + $0x74] sm:$0xf] %v4654
        %4806 = vst [vmem:[#allocation3 + $0x78] sm:$0xf] %v4664
        %4807 = vst [vmem:[#allocation3 + $0x7c] sm:$0xf] %v4674
        %4808 = vst [vmem:[#allocation3 + $0x80] sm:$0xf] %v4684
        %4809 = vst [vmem:[#allocation3 + $0x84] sm:$0xf] %v4694
        %4810 = vst [vmem:[#allocation3 + $0x88] sm:$0xf] %v4704
        %4811 = vst [vmem:[#allocation3 + $0x8c] sm:$0xf] %v4714
        %4812 = vst [vmem:[#allocation3 + $0x90] sm:$0xf] %v4724
        %4813 = vst [vmem:[#allocation3 + $0x94] sm:$0xf] %v4734
        %vm4814 = vcmask 1041408
        %vm4815 = vmand %vm4814, %vm4374
        %v4816 = vld [vmem:[#allocation3 + $0x98] sm:$0x3]
        %v4817 = vsel %vm4815, %v4735, %v4816
        %4818 = vst [vmem:[#allocation3 + $0x98] sm:$0x3] %v4817
        %v4819 = vld [vmem:[#allocation3] sm:$0xf]
        %v4820 = vld [vmem:[#allocation3 + $0x4] sm:$0xf]
        %v4821 = vld [vmem:[#allocation3 + $0x8] sm:$0xf]
        %v4822 = vld [vmem:[#allocation3 + $0xc] sm:$0xf]
        %v4823 = vld [vmem:[#allocation3 + $0x10] sm:$0xf]
        %v4824 = vld [vmem:[#allocation3 + $0x14] sm:$0xf]
        %v4825 = vld [vmem:[#allocation3 + $0x18] sm:$0xf]
        %v4826 = vld [vmem:[#allocation3 + $0x1c] sm:$0xf]
        %v4827 = vld [vmem:[#allocation3 + $0x20] sm:$0xf]
        %v4828 = vld [vmem:[#allocation3 + $0x24] sm:$0xf]
        %v4829 = vld [vmem:[#allocation3 + $0x28] sm:$0xf]
        %v4830 = vld [vmem:[#allocation3 + $0x2c] sm:$0xf]
        %v4831 = vld [vmem:[#allocation3 + $0x30] sm:$0xf]
        %v4832 = vld [vmem:[#allocation3 + $0x34] sm:$0xf]
        %v4833 = vld [vmem:[#allocation3 + $0x38] sm:$0xf]
        %v4834 = vld [vmem:[#allocation3 + $0x3c] sm:$0xf]
        %v4835 = vld [vmem:[#allocation3 + $0x40] sm:$0xf]
        %v4836 = vld [vmem:[#allocation3 + $0x44] sm:$0xf]
        %v4837 = vld [vmem:[#allocation3 + $0x48] sm:$0xf]
        %v4838 = vld [vmem:[#allocation3 + $0x4c] sm:$0xf]
        %v4839 = vld [vmem:[#allocation3 + $0x50] sm:$0xf]
        %v4840 = vld [vmem:[#allocation3 + $0x54] sm:$0xf]
        %v4841 = vld [vmem:[#allocation3 + $0x58] sm:$0xf]
        %v4842 = vld [vmem:[#allocation3 + $0x5c] sm:$0xf]
        %v4843 = vld [vmem:[#allocation3 + $0x60] sm:$0xf]
        %v4844 = vld [vmem:[#allocation3 + $0x64] sm:$0xf]
        %v4845 = vld [vmem:[#allocation3 + $0x68] sm:$0xf]
        %v4846 = vld [vmem:[#allocation3 + $0x6c] sm:$0xf]
        %v4847 = vld [vmem:[#allocation3 + $0x70] sm:$0xf]
        %v4848 = vld [vmem:[#allocation3 + $0x74] sm:$0xf]
        %v4849 = vld [vmem:[#allocation3 + $0x78] sm:$0xf]
        %v4850 = vld [vmem:[#allocation3 + $0x7c] sm:$0xf]
        %v4851 = vld [vmem:[#allocation3 + $0x80] sm:$0xf]
        %v4852 = vld [vmem:[#allocation3 + $0x84] sm:$0xf]
        %v4853 = vld [vmem:[#allocation3 + $0x88] sm:$0xf]
        %v4854 = vld [vmem:[#allocation3 + $0x8c] sm:$0xf]
        %v4855 = vld [vmem:[#allocation3 + $0x90] sm:$0x1]
        %v4856 = vld [vmem:[#allocation3] sm:$0xe]
        %v4893 = vunpack.c.l.b16 %v4819
        %v4894 = vunpack.c.l.b16 %v4820
        %v4895 = vunpack.c.l.b16 %v4821
        %v4896 = vunpack.c.l.b16 %v4822
        %v4897 = vunpack.c.l.b16 %v4823
        %v4898 = vunpack.c.l.b16 %v4824
        %v4899 = vunpack.c.l.b16 %v4825
        %v4900 = vunpack.c.l.b16 %v4826
        %v4901 = vunpack.c.l.b16 %v4827
        %v4902 = vunpack.c.l.b16 %v4828
        %v4903 = vunpack.c.l.b16 %v4829
        %v4904 = vunpack.c.l.b16 %v4830
        %v4905 = vunpack.c.l.b16 %v4831
        %v4906 = vunpack.c.l.b16 %v4832
        %v4907 = vunpack.c.l.b16 %v4833
        %v4908 = vunpack.c.l.b16 %v4834
        %v4909 = vunpack.c.l.b16 %v4835
        %v4910 = vunpack.c.l.b16 %v4836
        %v4911 = vunpack.c.l.b16 %v4837
        %v4912 = vunpack.c.l.b16 %v4838
        %v4913 = vunpack.c.l.b16 %v4839
        %v4914 = vunpack.c.l.b16 %v4840
        %v4915 = vunpack.c.l.b16 %v4841
        %v4916 = vunpack.c.l.b16 %v4842
        %v4917 = vunpack.c.l.b16 %v4843
        %v4918 = vunpack.c.l.b16 %v4844
        %v4919 = vunpack.c.l.b16 %v4845
        %v4920 = vunpack.c.l.b16 %v4846
        %v4921 = vunpack.c.l.b16 %v4847
        %v4922 = vunpack.c.l.b16 %v4848
        %v4923 = vunpack.c.l.b16 %v4849
        %v4924 = vunpack.c.l.b16 %v4850
        %v4925 = vunpack.c.l.b16 %v4851
        %v4926 = vunpack.c.l.b16 %v4852
        %v4927 = vunpack.c.l.b16 %v4853
        %v4928 = vunpack.c.l.b16 %v4854
        %v4929 = vpack.c.b16 %v4894, %v4893
        %v4930 = vpack.c.b16 %v4896, %v4895
        %v4931 = vpack.c.b16 %v4898, %v4897
        %v4932 = vpack.c.b16 %v4900, %v4899
        %v4933 = vpack.c.b16 %v4902, %v4901
        %v4934 = vpack.c.b16 %v4904, %v4903
        %v4935 = vpack.c.b16 %v4906, %v4905
        %v4936 = vpack.c.b16 %v4908, %v4907
        %v4937 = vpack.c.b16 %v4910, %v4909
        %v4938 = vpack.c.b16 %v4912, %v4911
        %v4939 = vpack.c.b16 %v4914, %v4913
        %v4940 = vpack.c.b16 %v4916, %v4915
        %v4941 = vpack.c.b16 %v4918, %v4917
        %v4942 = vpack.c.b16 %v4920, %v4919
        %v4943 = vpack.c.b16 %v4922, %v4921
        %v4944 = vpack.c.b16 %v4924, %v4923
        %v4945 = vpack.c.b16 %v4926, %v4925
        %v4946 = vpack.c.b16 %v4928, %v4927
        %v4966 = vunpack.c.l.b16 %v4855
        %v4967 = vpack.c.b16 %v4966, %v4966
        %vm4968 = vsmask.f32 7424
        %v4970 = vshrl.u32 %v4929, 16
        %v4972 = vshll.u32 %v4929, 16
        %v4974 = vrot.slane %v4972, 1
        %v4975 = vor.u32 %v4970, %v4974
        %v4977 = vshll.u32 %v4930, 16
        %v4979 = vrot.slane %v4977, 1
        %v4980 = vsel %vm4968, %v4975, %v4979
        %v4981 = vshrl.u32 %v4930, 16
        %v4983 = vor.u32 %v4981, %v4979
        %v4985 = vshll.u32 %v4931, 16
        %v4987 = vrot.slane %v4985, 1
        %v4988 = vsel %vm4968, %v4983, %v4987
        %v4989 = vshrl.u32 %v4931, 16
        %v4991 = vor.u32 %v4989, %v4987
        %v4993 = vshll.u32 %v4932, 16
        %v4995 = vrot.slane %v4993, 1
        %v4996 = vsel %vm4968, %v4991, %v4995
        %v4997 = vshrl.u32 %v4932, 16
        %v4999 = vor.u32 %v4997, %v4995
        %v5001 = vshll.u32 %v4933, 16
        %v5003 = vrot.slane %v5001, 1
        %v5004 = vsel %vm4968, %v4999, %v5003
        %v5005 = vshrl.u32 %v4933, 16
        %v5007 = vor.u32 %v5005, %v5003
        %v5009 = vshll.u32 %v4934, 16
        %v5011 = vrot.slane %v5009, 1
        %v5012 = vsel %vm4968, %v5007, %v5011
        %v5013 = vshrl.u32 %v4934, 16
        %v5015 = vor.u32 %v5013, %v5011
        %v5017 = vshll.u32 %v4935, 16
        %v5019 = vrot.slane %v5017, 1
        %v5020 = vsel %vm4968, %v5015, %v5019
        %v5021 = vshrl.u32 %v4935, 16
        %v5023 = vor.u32 %v5021, %v5019
        %v5025 = vshll.u32 %v4936, 16
        %v5027 = vrot.slane %v5025, 1
        %v5028 = vsel %vm4968, %v5023, %v5027
        %v5029 = vshrl.u32 %v4936, 16
        %v5031 = vor.u32 %v5029, %v5027
        %v5033 = vshll.u32 %v4937, 16
        %v5035 = vrot.slane %v5033, 1
        %v5036 = vsel %vm4968, %v5031, %v5035
        %v5037 = vshrl.u32 %v4937, 16
        %v5039 = vor.u32 %v5037, %v5035
        %v5041 = vshll.u32 %v4938, 16
        %v5043 = vrot.slane %v5041, 1
        %v5044 = vsel %vm4968, %v5039, %v5043
        %v5045 = vshrl.u32 %v4938, 16
        %v5047 = vor.u32 %v5045, %v5043
        %v5049 = vshll.u32 %v4939, 16
        %v5051 = vrot.slane %v5049, 1
        %v5052 = vsel %vm4968, %v5047, %v5051
        %v5053 = vshrl.u32 %v4939, 16
        %v5055 = vor.u32 %v5053, %v5051
        %v5057 = vshll.u32 %v4940, 16
        %v5059 = vrot.slane %v5057, 1
        %v5060 = vsel %vm4968, %v5055, %v5059
        %v5061 = vshrl.u32 %v4940, 16
        %v5063 = vor.u32 %v5061, %v5059
        %v5065 = vshll.u32 %v4941, 16
        %v5067 = vrot.slane %v5065, 1
        %v5068 = vsel %vm4968, %v5063, %v5067
        %v5069 = vshrl.u32 %v4941, 16
        %v5071 = vor.u32 %v5069, %v5067
        %v5073 = vshll.u32 %v4942, 16
        %v5075 = vrot.slane %v5073, 1
        %v5076 = vsel %vm4968, %v5071, %v5075
        %v5077 = vshrl.u32 %v4942, 16
        %v5079 = vor.u32 %v5077, %v5075
        %v5081 = vshll.u32 %v4943, 16
        %v5083 = vrot.slane %v5081, 1
        %v5084 = vsel %vm4968, %v5079, %v5083
        %v5085 = vshrl.u32 %v4943, 16
        %v5087 = vor.u32 %v5085, %v5083
        %v5089 = vshll.u32 %v4944, 16
        %v5091 = vrot.slane %v5089, 1
        %v5092 = vsel %vm4968, %v5087, %v5091
        %v5093 = vshrl.u32 %v4944, 16
        %v5095 = vor.u32 %v5093, %v5091
        %v5097 = vshll.u32 %v4945, 16
        %v5099 = vrot.slane %v5097, 1
        %v5100 = vsel %vm4968, %v5095, %v5099
        %v5101 = vshrl.u32 %v4945, 16
        %v5103 = vor.u32 %v5101, %v5099
        %v5105 = vshll.u32 %v4946, 16
        %v5107 = vrot.slane %v5105, 1
        %v5108 = vsel %vm4968, %v5103, %v5107
        %v5109 = vshrl.u32 %v4946, 16
        %v5111 = vor.u32 %v5109, %v5107
        %v5113 = vshll.u32 %v4967, 16
        %v5115 = vrot.slane %v5113, 1
        %v5116 = vsel %vm4968, %v5111, %v5115
        %v5136 = vunpack.c.l.b16 %v4856
        %v5137 = vpack.c.b16 %v4894, %v5136
        %vm5138 = vcmask 1046528
        %v5139 = vrot.slane %v5137, 1
        %v5140 = vrot.slane %v4930, 1
        %v5141 = vsel %vm5138, %v5139, %v5140
        %v5142 = vrot.slane %v4931, 1
        %v5143 = vsel %vm5138, %v5140, %v5142
        %v5144 = vrot.slane %v4932, 1
        %v5145 = vsel %vm5138, %v5142, %v5144
        %v5146 = vrot.slane %v4933, 1
        %v5147 = vsel %vm5138, %v5144, %v5146
        %v5148 = vrot.slane %v4934, 1
        %v5149 = vsel %vm5138, %v5146, %v5148
        %v5150 = vrot.slane %v4935, 1
        %v5151 = vsel %vm5138, %v5148, %v5150
        %v5152 = vrot.slane %v4936, 1
        %v5153 = vsel %vm5138, %v5150, %v5152
        %v5154 = vrot.slane %v4937, 1
        %v5155 = vsel %vm5138, %v5152, %v5154
        %v5156 = vrot.slane %v4938, 1
        %v5157 = vsel %vm5138, %v5154, %v5156
        %v5158 = vrot.slane %v4939, 1
        %v5159 = vsel %vm5138, %v5156, %v5158
        %v5160 = vrot.slane %v4940, 1
        %v5161 = vsel %vm5138, %v5158, %v5160
        %v5162 = vrot.slane %v4941, 1
        %v5163 = vsel %vm5138, %v5160, %v5162
        %v5164 = vrot.slane %v4942, 1
        %v5165 = vsel %vm5138, %v5162, %v5164
        %v5166 = vrot.slane %v4943, 1
        %v5167 = vsel %vm5138, %v5164, %v5166
        %v5168 = vrot.slane %v4944, 1
        %v5169 = vsel %vm5138, %v5166, %v5168
        %v5170 = vrot.slane %v4945, 1
        %v5171 = vsel %vm5138, %v5168, %v5170
        %v5172 = vrot.slane %v4946, 1
        %v5173 = vsel %vm5138, %v5170, %v5172
        %v5174 = vrot.slane %v4967, 1
        %v5175 = vsel %vm5138, %v5172, %v5174
        %v5194 = vld [vmem:[%s2] sm:$0xf]
        %v5195 = vld [vmem:[%s2 + $0x4] sm:$0xf]
        %v5196 = vld [vmem:[%s2 + $0x8] sm:$0xf]
        %v5197 = vld [vmem:[%s2 + $0xc] sm:$0xf]
        %v5198 = vld [vmem:[%s2 + $0x10] sm:$0xf]
        %v5199 = vld [vmem:[%s2 + $0x14] sm:$0xf]
        %v5200 = vld [vmem:[%s2 + $0x18] sm:$0xf]
        %v5201 = vld [vmem:[%s2 + $0x1c] sm:$0xf]
        %v5202 = vld [vmem:[%s2 + $0x20] sm:$0xf]
        %v5203 = vld [vmem:[%s2 + $0x24] sm:$0xf]
        %v5204 = vld [vmem:[%s2 + $0x28] sm:$0xf]
        %v5205 = vld [vmem:[%s2 + $0x2c] sm:$0xf]
        %v5206 = vld [vmem:[%s2 + $0x30] sm:$0xf]
        %v5207 = vld [vmem:[%s2 + $0x34] sm:$0xf]
        %v5208 = vld [vmem:[%s2 + $0x38] sm:$0xf]
        %v5209 = vld [vmem:[%s2 + $0x3c] sm:$0xf]
        %v5210 = vld [vmem:[%s2 + $0x40] sm:$0xf]
        %v5211 = vld [vmem:[%s2 + $0x44] sm:$0xf]
        %v5212 = vld [vmem:[%s2 + $0x48] sm:$0xf]
        %v5213 = vld [vmem:[%s2 + $0x4c] sm:$0xf]
        %v5214 = vld [vmem:[%s2 + $0x50] sm:$0xf]
        %v5215 = vld [vmem:[%s2 + $0x54] sm:$0xf]
        %v5216 = vld [vmem:[%s2 + $0x58] sm:$0xf]
        %v5217 = vld [vmem:[%s2 + $0x5c] sm:$0xf]
        %v5218 = vld [vmem:[%s2 + $0x60] sm:$0xf]
        %v5219 = vld [vmem:[%s2 + $0x64] sm:$0xf]
        %v5220 = vld [vmem:[%s2 + $0x68] sm:$0xf]
        %v5221 = vld [vmem:[%s2 + $0x6c] sm:$0xf]
        %v5222 = vld [vmem:[%s2 + $0x70] sm:$0xf]
        %v5223 = vld [vmem:[%s2 + $0x74] sm:$0xf]
        %v5224 = vld [vmem:[%s2 + $0x78] sm:$0xf]
        %v5225 = vld [vmem:[%s2 + $0x7c] sm:$0xf]
        %v5226 = vld [vmem:[%s2 + $0x80] sm:$0xf]
        %v5227 = vld [vmem:[%s2 + $0x84] sm:$0xf]
        %v5228 = vld [vmem:[%s2 + $0x88] sm:$0xf]
        %v5229 = vld [vmem:[%s2 + $0x8c] sm:$0xf]
        %v5230 = vld [vmem:[%s2 + $0x90] sm:$0xf]
        %v5231 = vld [vmem:[%s2 + $0x94] sm:$0xf]
        %v5232 = vld [vmem:[%s2 + $0x98] sm:$0xf]
        %v5233 = vld [vmem:[%s2 + $0x9c] sm:$0xf]
        %v5234 = vld [vmem:[%s2 + $0xa0] sm:$0xf]
        %v5235 = vld [vmem:[%s2 + $0xa4] sm:$0xf]
        %v5236 = vld [vmem:[%s2 + $0xa8] sm:$0xf]
        %v5237 = vld [vmem:[%s2 + $0xac] sm:$0xf]
        %v5238 = vld [vmem:[%s2 + $0xb0] sm:$0xf]
        %v5239 = vld [vmem:[%s2 + $0xb4] sm:$0xf]
        %v5240 = vld [vmem:[%s2 + $0xb8] sm:$0xf]
        %v5241 = vld [vmem:[%s2 + $0xbc] sm:$0xf]
        %v5242 = vld [vmem:[#allocation3 + $0x8] sm:$0xe]
        %v5243 = vld [vmem:[#allocation3 + $0x90] sm:$0xf]
        %v5244 = vld [vmem:[#allocation3 + $0x94] sm:$0xf]
        %v5245 = vld [vmem:[#allocation3 + $0x98] sm:$0x1]
        %v5246 = vld [vmem:[#allocation3 + $0x98] sm:$0x3]
        %v5247 = vld [vmem:[#allocation3 + $0x8] sm:$0xc]
        %v5252 = vunpack.c.l.b16 %v5242
        %v5253 = vunpack.c.l.b16 %v5243
        %v5254 = vunpack.c.l.b16 %v5244
        %v5255 = vunpack.c.l.b16 %v5245
        %v5256 = vpack.c.b16 %v4896, %v5252
        %v5257 = vpack.c.b16 %v5254, %v5253
        %v5258 = vpack.c.b16 %v5255, %v5255
        %v5260 = vunpack.c.l.b16 %v5246
        %v5261 = vpack.c.b16 %v5260, %v5260
        %v5263 = vshrl.u32 %v5256, 16
        %v5265 = vshll.u32 %v5256, 16
        %v5267 = vrot.slane %v5265, 1
        %v5268 = vor.u32 %v5263, %v5267
        %v5269 = vsel %vm4968, %v5268, %v4987
        %v5271 = vshll.u32 %v5257, 16
        %v5273 = vrot.slane %v5271, 1
        %v5274 = vsel %vm4968, %v5111, %v5273
        %v5275 = vshrl.u32 %v5257, 16
        %v5277 = vor.u32 %v5275, %v5273
        %v5279 = vshll.u32 %v5261, 16
        %v5281 = vrot.slane %v5279, 1
        %v5282 = vsel %vm4968, %v5277, %v5281
        %v5283 = vshrl.u32 %v5261, 16
        %v5285 = vor.u32 %v5283, %v5281
        %v5287 = vunpack.c.l.b16 %v5247
        %v5288 = vpack.c.b16 %v4896, %v5287
        %v5289 = vrot.slane %v5288, 1
        %v5290 = vsel %vm5138, %v5289, %v5142
        %v5291 = vrot.slane %v5257, 1
        %v5292 = vsel %vm5138, %v5172, %v5291
        %v5293 = vrot.slane %v5261, 1
        %v5294 = vsel %vm5138, %v5291, %v5293
        %s5295 = scalar_lea.vmem %s2, 192
        %v5296 = vld [vmem:[%s5295] sm:$0xf]
        %v5297 = vld [vmem:[%s5295 + $0x4] sm:$0xf]
        %v5298 = vld [vmem:[%s5295 + $0x8] sm:$0xf]
        %v5299 = vld [vmem:[%s5295 + $0xc] sm:$0xf]
        %v5300 = vld [vmem:[%s5295 + $0x10] sm:$0xf]
        %v5301 = vld [vmem:[%s5295 + $0x14] sm:$0xf]
        %v5302 = vld [vmem:[%s5295 + $0x18] sm:$0xf]
        %v5303 = vld [vmem:[%s5295 + $0x1c] sm:$0xf]
        %v5304 = vld [vmem:[%s5295 + $0x20] sm:$0xf]
        %v5305 = vld [vmem:[%s5295 + $0x24] sm:$0xf]
        %v5306 = vld [vmem:[%s5295 + $0x28] sm:$0xf]
        %v5307 = vld [vmem:[%s5295 + $0x2c] sm:$0xf]
        %v5308 = vld [vmem:[%s5295 + $0x30] sm:$0xf]
        %v5309 = vld [vmem:[%s5295 + $0x34] sm:$0xf]
        %v5310 = vld [vmem:[%s5295 + $0x38] sm:$0xf]
        %v5311 = vld [vmem:[%s5295 + $0x3c] sm:$0xf]
        %v5312 = vld [vmem:[%s5295 + $0x40] sm:$0xf]
        %v5313 = vld [vmem:[%s5295 + $0x44] sm:$0xf]
        %v5314 = vld [vmem:[%s5295 + $0x48] sm:$0xf]
        %v5315 = vld [vmem:[%s5295 + $0x4c] sm:$0xf]
        %v5316 = vld [vmem:[%s5295 + $0x50] sm:$0xf]
        %v5317 = vld [vmem:[%s5295 + $0x54] sm:$0xf]
        %v5318 = vld [vmem:[%s5295 + $0x58] sm:$0xf]
        %v5319 = vld [vmem:[%s5295 + $0x5c] sm:$0xf]
        %v5320 = vld [vmem:[%s5295 + $0x60] sm:$0xf]
        %v5321 = vld [vmem:[%s5295 + $0x64] sm:$0xf]
        %v5322 = vld [vmem:[%s5295 + $0x68] sm:$0xf]
        %v5323 = vld [vmem:[%s5295 + $0x6c] sm:$0xf]
        %v5324 = vld [vmem:[%s5295 + $0x70] sm:$0xf]
        %v5325 = vld [vmem:[%s5295 + $0x74] sm:$0xf]
        %v5326 = vld [vmem:[%s5295 + $0x78] sm:$0xf]
        %v5327 = vld [vmem:[%s5295 + $0x7c] sm:$0xf]
        %v5328 = vld [vmem:[%s5295 + $0x80] sm:$0xf]
        %v5329 = vld [vmem:[%s5295 + $0x84] sm:$0xf]
        %v5330 = vld [vmem:[%s5295 + $0x88] sm:$0xf]
        %v5331 = vld [vmem:[%s5295 + $0x8c] sm:$0xf]
        %v5332 = vld [vmem:[%s5295 + $0x90] sm:$0xf]
        %v5333 = vld [vmem:[%s5295 + $0x94] sm:$0xf]
        %v5334 = vld [vmem:[%s5295 + $0x98] sm:$0xf]
        %v5335 = vld [vmem:[%s5295 + $0x9c] sm:$0xf]
        %v5336 = vld [vmem:[%s5295 + $0xa0] sm:$0xf]
        %v5337 = vld [vmem:[%s5295 + $0xa4] sm:$0xf]
        %v5338 = vld [vmem:[%s5295 + $0xa8] sm:$0xf]
        %v5339 = vld [vmem:[%s5295 + $0xac] sm:$0xf]
        %v5340 = vld [vmem:[%s5295 + $0xb0] sm:$0xf]
        %v5341 = vld [vmem:[%s5295 + $0xb4] sm:$0xf]
        %v5342 = vld [vmem:[%s5295 + $0xb8] sm:$0xf]
        %v5343 = vld [vmem:[%s5295 + $0xbc] sm:$0xf]
        %v5344 = vrot.slane %v5256, 1
        %v5345 = vsel %vm5138, %v5344, %v5142
        %v5346 = vrot.slane %v5269, 1
        %v5347 = vrot.slane %v4996, 1
        %v5348 = vsel %vm5138, %v5346, %v5347
        %v5349 = vrot.slane %v5290, 1
        %v5350 = vrot.slane %v5145, 1
        %v5351 = vsel %vm5138, %v5349, %v5350
        %v5352 = vrot.slane %v5004, 1
        %v5353 = vsel %vm5138, %v5347, %v5352
        %v5354 = vrot.slane %v5147, 1
        %v5355 = vsel %vm5138, %v5350, %v5354
        %v5356 = vrot.slane %v5012, 1
        %v5357 = vsel %vm5138, %v5352, %v5356
        %v5358 = vrot.slane %v5149, 1
        %v5359 = vsel %vm5138, %v5354, %v5358
        %v5360 = vrot.slane %v5020, 1
        %v5361 = vsel %vm5138, %v5356, %v5360
        %v5362 = vrot.slane %v5151, 1
        %v5363 = vsel %vm5138, %v5358, %v5362
        %v5364 = vrot.slane %v5028, 1
        %v5365 = vsel %vm5138, %v5360, %v5364
        %v5366 = vrot.slane %v5153, 1
        %v5367 = vsel %vm5138, %v5362, %v5366
        %v5368 = vrot.slane %v5036, 1
        %v5369 = vsel %vm5138, %v5364, %v5368
        %v5370 = vrot.slane %v5155, 1
        %v5371 = vsel %vm5138, %v5366, %v5370
        %v5372 = vrot.slane %v5044, 1
        %v5373 = vsel %vm5138, %v5368, %v5372
        %v5374 = vrot.slane %v5157, 1
        %v5375 = vsel %vm5138, %v5370, %v5374
        %v5376 = vrot.slane %v5052, 1
        %v5377 = vsel %vm5138, %v5372, %v5376
        %v5378 = vrot.slane %v5159, 1
        %v5379 = vsel %vm5138, %v5374, %v5378
        %v5380 = vrot.slane %v5060, 1
        %v5381 = vsel %vm5138, %v5376, %v5380
        %v5382 = vrot.slane %v5161, 1
        %v5383 = vsel %vm5138, %v5378, %v5382
        %v5384 = vrot.slane %v5068, 1
        %v5385 = vsel %vm5138, %v5380, %v5384
        %v5386 = vrot.slane %v5163, 1
        %v5387 = vsel %vm5138, %v5382, %v5386
        %v5388 = vrot.slane %v5076, 1
        %v5389 = vsel %vm5138, %v5384, %v5388
        %v5390 = vrot.slane %v5165, 1
        %v5391 = vsel %vm5138, %v5386, %v5390
        %v5392 = vrot.slane %v5084, 1
        %v5393 = vsel %vm5138, %v5388, %v5392
        %v5394 = vrot.slane %v5167, 1
        %v5395 = vsel %vm5138, %v5390, %v5394
        %v5396 = vrot.slane %v5092, 1
        %v5397 = vsel %vm5138, %v5392, %v5396
        %v5398 = vrot.slane %v5169, 1
        %v5399 = vsel %vm5138, %v5394, %v5398
        %v5400 = vrot.slane %v5100, 1
        %v5401 = vsel %vm5138, %v5396, %v5400
        %v5402 = vrot.slane %v5171, 1
        %v5403 = vsel %vm5138, %v5398, %v5402
        %v5404 = vrot.slane %v5108, 1
        %v5405 = vsel %vm5138, %v5400, %v5404
        %v5406 = vrot.slane %v5173, 1
        %v5407 = vsel %vm5138, %v5402, %v5406
        %v5408 = vrot.slane %v5274, 1
        %v5409 = vsel %vm5138, %v5404, %v5408
        %v5410 = vrot.slane %v5292, 1
        %v5411 = vsel %vm5138, %v5406, %v5410
        %v5412 = vrot.slane %v5282, 1
        %v5413 = vsel %vm5138, %v5408, %v5412
        %v5414 = vrot.slane %v5294, 1
        %v5415 = vsel %vm5138, %v5410, %v5414
        %v5416 = vrot.slane %v5258, 1
        %v5417 = vsel %vm5138, %v5291, %v5416
        %v5418 = vrot.slane %v5285, 1
        %v5419 = vsel %vm5138, %v5412, %v5418
        %v5420 = vrot.slane %v5293, 1
        %v5421 = vsel %vm5138, %v5414, %v5420
        %v5509 = vunpack.c.l.b16 %v5296
        %v5510 = vunpack.c.l.b16 %v5297
        %v5511 = vunpack.c.l.b16 %v5298
        %v5512 = vunpack.c.l.b16 %v5299
        %v5513 = vunpack.c.l.b16 %v5300
        %v5514 = vunpack.c.l.b16 %v5301
        %v5515 = vunpack.c.l.b16 %v5302
        %v5516 = vunpack.c.l.b16 %v5303
        %v5517 = vunpack.c.l.b16 %v5304
        %v5518 = vunpack.c.l.b16 %v5305
        %v5519 = vunpack.c.l.b16 %v5306
        %v5520 = vunpack.c.l.b16 %v5307
        %v5521 = vunpack.c.l.b16 %v5308
        %v5522 = vunpack.c.l.b16 %v5309
        %v5523 = vunpack.c.l.b16 %v5310
        %v5524 = vunpack.c.l.b16 %v5311
        %v5525 = vunpack.c.l.b16 %v5312
        %v5526 = vunpack.c.l.b16 %v5313
        %v5527 = vunpack.c.l.b16 %v5314
        %v5528 = vunpack.c.l.b16 %v5315
        %v5529 = vunpack.c.l.b16 %v5316
        %v5530 = vunpack.c.l.b16 %v5317
        %v5531 = vunpack.c.l.b16 %v5318
        %v5532 = vunpack.c.l.b16 %v5319
        %v5533 = vunpack.c.l.b16 %v5320
        %v5534 = vunpack.c.l.b16 %v5321
        %v5535 = vunpack.c.l.b16 %v5322
        %v5536 = vunpack.c.l.b16 %v5323
        %v5537 = vunpack.c.l.b16 %v5324
        %v5538 = vunpack.c.l.b16 %v5325
        %v5539 = vunpack.c.l.b16 %v5326
        %v5540 = vunpack.c.l.b16 %v5327
        %v5541 = vunpack.c.l.b16 %v5328
        %v5542 = vunpack.c.l.b16 %v5329
        %v5543 = vunpack.c.l.b16 %v5330
        %v5544 = vunpack.c.l.b16 %v5331
        %v5545 = vunpack.c.l.b16 %v5332
        %v5546 = vunpack.c.l.b16 %v5333
        %v5547 = vunpack.c.l.b16 %v5334
        %v5548 = vunpack.c.l.b16 %v5335
        %v5549 = vunpack.c.l.b16 %v5336
        %v5550 = vunpack.c.l.b16 %v5337
        %v5551 = vunpack.c.l.b16 %v5338
        %v5552 = vunpack.c.l.b16 %v5339
        %v5553 = vunpack.c.l.b16 %v5340
        %v5554 = vunpack.c.l.b16 %v5341
        %v5555 = vunpack.c.l.b16 %v5342
        %v5556 = vunpack.c.l.b16 %v5343
        %v5557 = vpack.c.b16 %v5510, %v5509
        %v5558 = vpack.c.b16 %v5512, %v5511
        %v5559 = vpack.c.b16 %v5514, %v5513
        %v5560 = vpack.c.b16 %v5516, %v5515
        %v5561 = vpack.c.b16 %v5518, %v5517
        %v5562 = vpack.c.b16 %v5520, %v5519
        %v5563 = vpack.c.b16 %v5522, %v5521
        %v5564 = vpack.c.b16 %v5524, %v5523
        %v5565 = vpack.c.b16 %v5526, %v5525
        %v5566 = vpack.c.b16 %v5528, %v5527
        %v5567 = vpack.c.b16 %v5530, %v5529
        %v5568 = vpack.c.b16 %v5532, %v5531
        %v5569 = vpack.c.b16 %v5534, %v5533
        %v5570 = vpack.c.b16 %v5536, %v5535
        %v5571 = vpack.c.b16 %v5538, %v5537
        %v5572 = vpack.c.b16 %v5540, %v5539
        %v5573 = vpack.c.b16 %v5542, %v5541
        %v5574 = vpack.c.b16 %v5544, %v5543
        %v5575 = vpack.c.b16 %v5546, %v5545
        %v5576 = vpack.c.b16 %v5548, %v5547
        %v5577 = vpack.c.b16 %v5550, %v5549
        %v5578 = vpack.c.b16 %v5552, %v5551
        %v5579 = vpack.c.b16 %v5554, %v5553
        %v5580 = vpack.c.b16 %v5556, %v5555
        %5605 = vmatpush.bf16.msra.mxu0 %v5564
        %5606 = vmatpush.bf16.msra.mxu0 %v5563
        %5607 = vmatpush.bf16.msra.mxu0 %v5562
        %5608 = vmatpush.bf16.msra.mxu0 %v5561
        %5609 = vmatpush.bf16.msra.mxu0 %v5560
        %5610 = vmatpush.bf16.msra.mxu0 %v5559
        %5611 = vmatpush.bf16.msra.mxu0 %v5558
        %5612 = vmatpush.bf16.msra.mxu0 %v5557
        %5613 = vmatmul.bf16.gmra.mxu0 %v5345
        %v5614 = vpop.f32.mrf.mxu0
        %v5615 = vadd.f32 0.0, %v5614
        %v5616 = vpop.f32.mrf.mxu0
        %v5617 = vadd.f32 0.0, %v5616
        %5618 = vmatmul.bf16.gmra.mxu0 %v5145
        %v5619 = vpop.f32.mrf.mxu0
        %v5620 = vadd.f32 0.0, %v5619
        %v5621 = vpop.f32.mrf.mxu0
        %v5622 = vadd.f32 0.0, %v5621
        %5623 = vmatmul.bf16.gmra.mxu0 %v5147
        %v5624 = vpop.f32.mrf.mxu0
        %v5625 = vadd.f32 0.0, %v5624
        %v5626 = vpop.f32.mrf.mxu0
        %v5627 = vadd.f32 0.0, %v5626
        %5628 = vmatmul.bf16.gmra.mxu0 %v5149
        %v5629 = vpop.f32.mrf.mxu0
        %v5630 = vadd.f32 0.0, %v5629
        %v5631 = vpop.f32.mrf.mxu0
        %v5632 = vadd.f32 0.0, %v5631
        %5633 = vmatmul.bf16.gmra.mxu0 %v5151
        %v5634 = vpop.f32.mrf.mxu0
        %v5635 = vadd.f32 0.0, %v5634
        %v5636 = vpop.f32.mrf.mxu0
        %v5637 = vadd.f32 0.0, %v5636
        %5638 = vmatmul.bf16.gmra.mxu0 %v5153
        %v5639 = vpop.f32.mrf.mxu0
        %v5640 = vadd.f32 0.0, %v5639
        %v5641 = vpop.f32.mrf.mxu0
        %v5642 = vadd.f32 0.0, %v5641
        %5643 = vmatmul.bf16.gmra.mxu0 %v5155
        %v5644 = vpop.f32.mrf.mxu0
        %v5645 = vadd.f32 0.0, %v5644
        %v5646 = vpop.f32.mrf.mxu0
        %v5647 = vadd.f32 0.0, %v5646
        %5648 = vmatmul.bf16.gmra.mxu0 %v5157
        %v5649 = vpop.f32.mrf.mxu0
        %v5650 = vadd.f32 0.0, %v5649
        %v5651 = vpop.f32.mrf.mxu0
        %v5652 = vadd.f32 0.0, %v5651
        %5653 = vmatmul.bf16.gmra.mxu0 %v5159
        %v5654 = vpop.f32.mrf.mxu0
        %v5655 = vadd.f32 0.0, %v5654
        %v5656 = vpop.f32.mrf.mxu0
        %v5657 = vadd.f32 0.0, %v5656
        %5658 = vmatmul.bf16.gmra.mxu0 %v5161
        %v5659 = vpop.f32.mrf.mxu0
        %v5660 = vadd.f32 0.0, %v5659
        %v5661 = vpop.f32.mrf.mxu0
        %v5662 = vadd.f32 0.0, %v5661
        %5663 = vmatmul.bf16.gmra.mxu0 %v5163
        %v5664 = vpop.f32.mrf.mxu0
        %v5665 = vadd.f32 0.0, %v5664
        %v5666 = vpop.f32.mrf.mxu0
        %v5667 = vadd.f32 0.0, %v5666
        %5668 = vmatmul.bf16.gmra.mxu0 %v5165
        %v5669 = vpop.f32.mrf.mxu0
        %v5670 = vadd.f32 0.0, %v5669
        %v5671 = vpop.f32.mrf.mxu0
        %v5672 = vadd.f32 0.0, %v5671
        %5673 = vmatmul.bf16.gmra.mxu0 %v5167
        %v5674 = vpop.f32.mrf.mxu0
        %v5675 = vadd.f32 0.0, %v5674
        %v5676 = vpop.f32.mrf.mxu0
        %v5677 = vadd.f32 0.0, %v5676
        %5678 = vmatmul.bf16.gmra.mxu0 %v5169
        %v5679 = vpop.f32.mrf.mxu0
        %v5680 = vadd.f32 0.0, %v5679
        %v5681 = vpop.f32.mrf.mxu0
        %v5682 = vadd.f32 0.0, %v5681
        %5683 = vmatmul.bf16.gmra.mxu0 %v5171
        %v5684 = vpop.f32.mrf.mxu0
        %v5685 = vadd.f32 0.0, %v5684
        %v5686 = vpop.f32.mrf.mxu0
        %v5687 = vadd.f32 0.0, %v5686
        %5688 = vmatmul.bf16.gmra.mxu0 %v5173
        %v5689 = vpop.f32.mrf.mxu0
        %v5690 = vadd.f32 0.0, %v5689
        %v5691 = vpop.f32.mrf.mxu0
        %v5692 = vadd.f32 0.0, %v5691
        %5693 = vmatmul.bf16.gmra.mxu0 %v5292
        %v5694 = vpop.f32.mrf.mxu0
        %v5695 = vadd.f32 0.0, %v5694
        %v5696 = vpop.f32.mrf.mxu0
        %v5697 = vadd.f32 0.0, %v5696
        %5698 = vmatmul.bf16.gmra.mxu0 %v5417
        %v5699 = vpop.f32.mrf.mxu0
        %v5700 = vadd.f32 0.0, %v5699
        %v5701 = vpop.f32.mrf.mxu0
        %v5702 = vadd.f32 0.0, %v5701
        %5703 = vdwg.mxu0
        %5704 = vmatpush.bf16.msra.mxu0 %v5572
        %5705 = vmatpush.bf16.msra.mxu0 %v5571
        %5706 = vmatpush.bf16.msra.mxu0 %v5570
        %5707 = vmatpush.bf16.msra.mxu0 %v5569
        %5708 = vmatpush.bf16.msra.mxu0 %v5568
        %5709 = vmatpush.bf16.msra.mxu0 %v5567
        %5710 = vmatpush.bf16.msra.mxu0 %v5566
        %5711 = vmatpush.bf16.msra.mxu0 %v5565
        %5712 = vmatmul.bf16.gmra.mxu0 %v5348
        %v5713 = vpop.f32.mrf.mxu0
        %v5714 = vadd.f32 %v5615, %v5713
        %v5715 = vpop.f32.mrf.mxu0
        %v5716 = vadd.f32 %v5617, %v5715
        %5717 = vmatmul.bf16.gmra.mxu0 %v5353
        %v5718 = vpop.f32.mrf.mxu0
        %v5719 = vadd.f32 %v5620, %v5718
        %v5720 = vpop.f32.mrf.mxu0
        %v5721 = vadd.f32 %v5622, %v5720
        %5722 = vmatmul.bf16.gmra.mxu0 %v5357
        %v5723 = vpop.f32.mrf.mxu0
        %v5724 = vadd.f32 %v5625, %v5723
        %v5725 = vpop.f32.mrf.mxu0
        %v5726 = vadd.f32 %v5627, %v5725
        %5727 = vmatmul.bf16.gmra.mxu0 %v5361
        %v5728 = vpop.f32.mrf.mxu0
        %v5729 = vadd.f32 %v5630, %v5728
        %v5730 = vpop.f32.mrf.mxu0
        %v5731 = vadd.f32 %v5632, %v5730
        %5732 = vmatmul.bf16.gmra.mxu0 %v5365
        %v5733 = vpop.f32.mrf.mxu0
        %v5734 = vadd.f32 %v5635, %v5733
        %v5735 = vpop.f32.mrf.mxu0
        %v5736 = vadd.f32 %v5637, %v5735
        %5737 = vmatmul.bf16.gmra.mxu0 %v5369
        %v5738 = vpop.f32.mrf.mxu0
        %v5739 = vadd.f32 %v5640, %v5738
        %v5740 = vpop.f32.mrf.mxu0
        %v5741 = vadd.f32 %v5642, %v5740
        %5742 = vmatmul.bf16.gmra.mxu0 %v5373
        %v5743 = vpop.f32.mrf.mxu0
        %v5744 = vadd.f32 %v5645, %v5743
        %v5745 = vpop.f32.mrf.mxu0
        %v5746 = vadd.f32 %v5647, %v5745
        %5747 = vmatmul.bf16.gmra.mxu0 %v5377
        %v5748 = vpop.f32.mrf.mxu0
        %v5749 = vadd.f32 %v5650, %v5748
        %v5750 = vpop.f32.mrf.mxu0
        %v5751 = vadd.f32 %v5652, %v5750
        %5752 = vmatmul.bf16.gmra.mxu0 %v5381
        %v5753 = vpop.f32.mrf.mxu0
        %v5754 = vadd.f32 %v5655, %v5753
        %v5755 = vpop.f32.mrf.mxu0
        %v5756 = vadd.f32 %v5657, %v5755
        %5757 = vmatmul.bf16.gmra.mxu0 %v5385
        %v5758 = vpop.f32.mrf.mxu0
        %v5759 = vadd.f32 %v5660, %v5758
        %v5760 = vpop.f32.mrf.mxu0
        %v5761 = vadd.f32 %v5662, %v5760
        %5762 = vmatmul.bf16.gmra.mxu0 %v5389
        %v5763 = vpop.f32.mrf.mxu0
        %v5764 = vadd.f32 %v5665, %v5763
        %v5765 = vpop.f32.mrf.mxu0
        %v5766 = vadd.f32 %v5667, %v5765
        %5767 = vmatmul.bf16.gmra.mxu0 %v5393
        %v5768 = vpop.f32.mrf.mxu0
        %v5769 = vadd.f32 %v5670, %v5768
        %v5770 = vpop.f32.mrf.mxu0
        %v5771 = vadd.f32 %v5672, %v5770
        %5772 = vmatmul.bf16.gmra.mxu0 %v5397
        %v5773 = vpop.f32.mrf.mxu0
        %v5774 = vadd.f32 %v5675, %v5773
        %v5775 = vpop.f32.mrf.mxu0
        %v5776 = vadd.f32 %v5677, %v5775
        %5777 = vmatmul.bf16.gmra.mxu0 %v5401
        %v5778 = vpop.f32.mrf.mxu0
        %v5779 = vadd.f32 %v5680, %v5778
        %v5780 = vpop.f32.mrf.mxu0
        %v5781 = vadd.f32 %v5682, %v5780
        %5782 = vmatmul.bf16.gmra.mxu0 %v5405
        %v5783 = vpop.f32.mrf.mxu0
        %v5784 = vadd.f32 %v5685, %v5783
        %v5785 = vpop.f32.mrf.mxu0
        %v5786 = vadd.f32 %v5687, %v5785
        %5787 = vmatmul.bf16.gmra.mxu0 %v5409
        %v5788 = vpop.f32.mrf.mxu0
        %v5789 = vadd.f32 %v5690, %v5788
        %v5790 = vpop.f32.mrf.mxu0
        %v5791 = vadd.f32 %v5692, %v5790
        %5792 = vmatmul.bf16.gmra.mxu0 %v5413
        %v5793 = vpop.f32.mrf.mxu0
        %v5794 = vadd.f32 %v5695, %v5793
        %v5795 = vpop.f32.mrf.mxu0
        %v5796 = vadd.f32 %v5697, %v5795
        %5797 = vmatmul.bf16.gmra.mxu0 %v5419
        %v5798 = vpop.f32.mrf.mxu0
        %v5799 = vadd.f32 %v5700, %v5798
        %v5800 = vpop.f32.mrf.mxu0
        %v5801 = vadd.f32 %v5702, %v5800
        %5802 = vdwg.mxu0
        %5803 = vmatpush.bf16.msra.mxu0 %v5580
        %5804 = vmatpush.bf16.msra.mxu0 %v5579
        %5805 = vmatpush.bf16.msra.mxu0 %v5578
        %5806 = vmatpush.bf16.msra.mxu0 %v5577
        %5807 = vmatpush.bf16.msra.mxu0 %v5576
        %5808 = vmatpush.bf16.msra.mxu0 %v5575
        %5809 = vmatpush.bf16.msra.mxu0 %v5574
        %5810 = vmatpush.bf16.msra.mxu0 %v5573
        %5811 = vmatmul.bf16.gmra.mxu0 %v5351
        %v5812 = vpop.f32.mrf.mxu0
        %v5813 = vadd.f32 %v5714, %v5812
        %v5814 = vpop.f32.mrf.mxu0
        %v5815 = vadd.f32 %v5716, %v5814
        %5816 = vmatmul.bf16.gmra.mxu0 %v5355
        %v5817 = vpop.f32.mrf.mxu0
        %v5818 = vadd.f32 %v5719, %v5817
        %v5819 = vpop.f32.mrf.mxu0
        %v5820 = vadd.f32 %v5721, %v5819
        %5821 = vmatmul.bf16.gmra.mxu0 %v5359
        %v5822 = vpop.f32.mrf.mxu0
        %v5823 = vadd.f32 %v5724, %v5822
        %v5824 = vpop.f32.mrf.mxu0
        %v5825 = vadd.f32 %v5726, %v5824
        %5826 = vmatmul.bf16.gmra.mxu0 %v5363
        %v5827 = vpop.f32.mrf.mxu0
        %v5828 = vadd.f32 %v5729, %v5827
        %v5829 = vpop.f32.mrf.mxu0
        %v5830 = vadd.f32 %v5731, %v5829
        %5831 = vmatmul.bf16.gmra.mxu0 %v5367
        %v5832 = vpop.f32.mrf.mxu0
        %v5833 = vadd.f32 %v5734, %v5832
        %v5834 = vpop.f32.mrf.mxu0
        %v5835 = vadd.f32 %v5736, %v5834
        %5836 = vmatmul.bf16.gmra.mxu0 %v5371
        %v5837 = vpop.f32.mrf.mxu0
        %v5838 = vadd.f32 %v5739, %v5837
        %v5839 = vpop.f32.mrf.mxu0
        %v5840 = vadd.f32 %v5741, %v5839
        %5841 = vmatmul.bf16.gmra.mxu0 %v5375
        %v5842 = vpop.f32.mrf.mxu0
        %v5843 = vadd.f32 %v5744, %v5842
        %v5844 = vpop.f32.mrf.mxu0
        %v5845 = vadd.f32 %v5746, %v5844
        %5846 = vmatmul.bf16.gmra.mxu0 %v5379
        %v5847 = vpop.f32.mrf.mxu0
        %v5848 = vadd.f32 %v5749, %v5847
        %v5849 = vpop.f32.mrf.mxu0
        %v5850 = vadd.f32 %v5751, %v5849
        %5851 = vmatmul.bf16.gmra.mxu0 %v5383
        %v5852 = vpop.f32.mrf.mxu0
        %v5853 = vadd.f32 %v5754, %v5852
        %v5854 = vpop.f32.mrf.mxu0
        %v5855 = vadd.f32 %v5756, %v5854
        %5856 = vmatmul.bf16.gmra.mxu0 %v5387
        %v5857 = vpop.f32.mrf.mxu0
        %v5858 = vadd.f32 %v5759, %v5857
        %v5859 = vpop.f32.mrf.mxu0
        %v5860 = vadd.f32 %v5761, %v5859
        %5861 = vmatmul.bf16.gmra.mxu0 %v5391
        %v5862 = vpop.f32.mrf.mxu0
        %v5863 = vadd.f32 %v5764, %v5862
        %v5864 = vpop.f32.mrf.mxu0
        %v5865 = vadd.f32 %v5766, %v5864
        %5866 = vmatmul.bf16.gmra.mxu0 %v5395
        %v5867 = vpop.f32.mrf.mxu0
        %v5868 = vadd.f32 %v5769, %v5867
        %v5869 = vpop.f32.mrf.mxu0
        %v5870 = vadd.f32 %v5771, %v5869
        %5871 = vmatmul.bf16.gmra.mxu0 %v5399
        %v5872 = vpop.f32.mrf.mxu0
        %v5873 = vadd.f32 %v5774, %v5872
        %v5874 = vpop.f32.mrf.mxu0
        %v5875 = vadd.f32 %v5776, %v5874
        %5876 = vmatmul.bf16.gmra.mxu0 %v5403
        %v5877 = vpop.f32.mrf.mxu0
        %v5878 = vadd.f32 %v5779, %v5877
        %v5879 = vpop.f32.mrf.mxu0
        %v5880 = vadd.f32 %v5781, %v5879
        %5881 = vmatmul.bf16.gmra.mxu0 %v5407
        %v5882 = vpop.f32.mrf.mxu0
        %v5883 = vadd.f32 %v5784, %v5882
        %v5884 = vpop.f32.mrf.mxu0
        %v5885 = vadd.f32 %v5786, %v5884
        %5886 = vmatmul.bf16.gmra.mxu0 %v5411
        %v5887 = vpop.f32.mrf.mxu0
        %v5888 = vadd.f32 %v5789, %v5887
        %v5889 = vpop.f32.mrf.mxu0
        %v5890 = vadd.f32 %v5791, %v5889
        %5891 = vmatmul.bf16.gmra.mxu0 %v5415
        %v5892 = vpop.f32.mrf.mxu0
        %v5893 = vadd.f32 %v5794, %v5892
        %v5894 = vpop.f32.mrf.mxu0
        %v5895 = vadd.f32 %v5796, %v5894
        %5896 = vmatmul.bf16.gmra.mxu0 %v5421
        %v5897 = vpop.f32.mrf.mxu0
        %v5898 = vadd.f32 %v5799, %v5897
        %v5899 = vpop.f32.mrf.mxu0
        %v5900 = vadd.f32 %v5801, %v5899
        %5901 = vdwg.mxu0
        %v5950 = vunpack.c.l.b16 %v5194
        %v5951 = vunpack.c.l.b16 %v5195
        %v5952 = vunpack.c.l.b16 %v5196
        %v5953 = vunpack.c.l.b16 %v5197
        %v5954 = vunpack.c.l.b16 %v5198
        %v5955 = vunpack.c.l.b16 %v5199
        %v5956 = vunpack.c.l.b16 %v5200
        %v5957 = vunpack.c.l.b16 %v5201
        %v5958 = vunpack.c.l.b16 %v5202
        %v5959 = vunpack.c.l.b16 %v5203
        %v5960 = vunpack.c.l.b16 %v5204
        %v5961 = vunpack.c.l.b16 %v5205
        %v5962 = vunpack.c.l.b16 %v5206
        %v5963 = vunpack.c.l.b16 %v5207
        %v5964 = vunpack.c.l.b16 %v5208
        %v5965 = vunpack.c.l.b16 %v5209
        %v5966 = vunpack.c.l.b16 %v5210
        %v5967 = vunpack.c.l.b16 %v5211
        %v5968 = vunpack.c.l.b16 %v5212
        %v5969 = vunpack.c.l.b16 %v5213
        %v5970 = vunpack.c.l.b16 %v5214
        %v5971 = vunpack.c.l.b16 %v5215
        %v5972 = vunpack.c.l.b16 %v5216
        %v5973 = vunpack.c.l.b16 %v5217
        %v5974 = vunpack.c.l.b16 %v5218
        %v5975 = vunpack.c.l.b16 %v5219
        %v5976 = vunpack.c.l.b16 %v5220
        %v5977 = vunpack.c.l.b16 %v5221
        %v5978 = vunpack.c.l.b16 %v5222
        %v5979 = vunpack.c.l.b16 %v5223
        %v5980 = vunpack.c.l.b16 %v5224
        %v5981 = vunpack.c.l.b16 %v5225
        %v5982 = vunpack.c.l.b16 %v5226
        %v5983 = vunpack.c.l.b16 %v5227
        %v5984 = vunpack.c.l.b16 %v5228
        %v5985 = vunpack.c.l.b16 %v5229
        %v5986 = vunpack.c.l.b16 %v5230
        %v5987 = vunpack.c.l.b16 %v5231
        %v5988 = vunpack.c.l.b16 %v5232
        %v5989 = vunpack.c.l.b16 %v5233
        %v5990 = vunpack.c.l.b16 %v5234
        %v5991 = vunpack.c.l.b16 %v5235
        %v5992 = vunpack.c.l.b16 %v5236
        %v5993 = vunpack.c.l.b16 %v5237
        %v5994 = vunpack.c.l.b16 %v5238
        %v5995 = vunpack.c.l.b16 %v5239
        %v5996 = vunpack.c.l.b16 %v5240
        %v5997 = vunpack.c.l.b16 %v5241
        %v5998 = vpack.c.b16 %v5951, %v5950
        %v5999 = vpack.c.b16 %v5953, %v5952
        %v6000 = vpack.c.b16 %v5955, %v5954
        %v6001 = vpack.c.b16 %v5957, %v5956
        %v6002 = vpack.c.b16 %v5959, %v5958
        %v6003 = vpack.c.b16 %v5961, %v5960
        %v6004 = vpack.c.b16 %v5963, %v5962
        %v6005 = vpack.c.b16 %v5965, %v5964
        %v6006 = vpack.c.b16 %v5967, %v5966
        %v6007 = vpack.c.b16 %v5969, %v5968
        %v6008 = vpack.c.b16 %v5971, %v5970
        %v6009 = vpack.c.b16 %v5973, %v5972
        %v6010 = vpack.c.b16 %v5975, %v5974
        %v6011 = vpack.c.b16 %v5977, %v5976
        %v6012 = vpack.c.b16 %v5979, %v5978
        %v6013 = vpack.c.b16 %v5981, %v5980
        %v6014 = vpack.c.b16 %v5983, %v5982
        %v6015 = vpack.c.b16 %v5985, %v5984
        %v6016 = vpack.c.b16 %v5987, %v5986
        %v6017 = vpack.c.b16 %v5989, %v5988
        %v6018 = vpack.c.b16 %v5991, %v5990
        %v6019 = vpack.c.b16 %v5993, %v5992
        %v6020 = vpack.c.b16 %v5995, %v5994
        %v6021 = vpack.c.b16 %v5997, %v5996
        %6046 = vmatpush.bf16.msra.mxu0 %v6005
        %6047 = vmatpush.bf16.msra.mxu0 %v6004
        %6048 = vmatpush.bf16.msra.mxu0 %v6003
        %6049 = vmatpush.bf16.msra.mxu0 %v6002
        %6050 = vmatpush.bf16.msra.mxu0 %v6001
        %6051 = vmatpush.bf16.msra.mxu0 %v6000
        %6052 = vmatpush.bf16.msra.mxu0 %v5999
        %6053 = vmatpush.bf16.msra.mxu0 %v5998
        %6054 = vmatmul.bf16.gmra.mxu0 %v4929
        %v6055 = vpop.f32.mrf.mxu0
        %v6056 = vadd.f32 %v5813, %v6055
        %v6057 = vpop.f32.mrf.mxu0
        %v6058 = vadd.f32 %v5815, %v6057
        %6059 = vmatmul.bf16.gmra.mxu0 %v4930
        %v6060 = vpop.f32.mrf.mxu0
        %v6061 = vadd.f32 %v5818, %v6060
        %v6062 = vpop.f32.mrf.mxu0
        %v6063 = vadd.f32 %v5820, %v6062
        %6064 = vmatmul.bf16.gmra.mxu0 %v4931
        %v6065 = vpop.f32.mrf.mxu0
        %v6066 = vadd.f32 %v5823, %v6065
        %v6067 = vpop.f32.mrf.mxu0
        %v6068 = vadd.f32 %v5825, %v6067
        %6069 = vmatmul.bf16.gmra.mxu0 %v4932
        %v6070 = vpop.f32.mrf.mxu0
        %v6071 = vadd.f32 %v5828, %v6070
        %v6072 = vpop.f32.mrf.mxu0
        %v6073 = vadd.f32 %v5830, %v6072
        %6074 = vmatmul.bf16.gmra.mxu0 %v4933
        %v6075 = vpop.f32.mrf.mxu0
        %v6076 = vadd.f32 %v5833, %v6075
        %v6077 = vpop.f32.mrf.mxu0
        %v6078 = vadd.f32 %v5835, %v6077
        %6079 = vmatmul.bf16.gmra.mxu0 %v4934
        %v6080 = vpop.f32.mrf.mxu0
        %v6081 = vadd.f32 %v5838, %v6080
        %v6082 = vpop.f32.mrf.mxu0
        %v6083 = vadd.f32 %v5840, %v6082
        %6084 = vmatmul.bf16.gmra.mxu0 %v4935
        %v6085 = vpop.f32.mrf.mxu0
        %v6086 = vadd.f32 %v5843, %v6085
        %v6087 = vpop.f32.mrf.mxu0
        %v6088 = vadd.f32 %v5845, %v6087
        %6089 = vmatmul.bf16.gmra.mxu0 %v4936
        %v6090 = vpop.f32.mrf.mxu0
        %v6091 = vadd.f32 %v5848, %v6090
        %v6092 = vpop.f32.mrf.mxu0
        %v6093 = vadd.f32 %v5850, %v6092
        %6094 = vmatmul.bf16.gmra.mxu0 %v4937
        %v6095 = vpop.f32.mrf.mxu0
        %v6096 = vadd.f32 %v5853, %v6095
        %v6097 = vpop.f32.mrf.mxu0
        %v6098 = vadd.f32 %v5855, %v6097
        %6099 = vmatmul.bf16.gmra.mxu0 %v4938
        %v6100 = vpop.f32.mrf.mxu0
        %v6101 = vadd.f32 %v5858, %v6100
        %v6102 = vpop.f32.mrf.mxu0
        %v6103 = vadd.f32 %v5860, %v6102
        %6104 = vmatmul.bf16.gmra.mxu0 %v4939
        %v6105 = vpop.f32.mrf.mxu0
        %v6106 = vadd.f32 %v5863, %v6105
        %v6107 = vpop.f32.mrf.mxu0
        %v6108 = vadd.f32 %v5865, %v6107
        %6109 = vmatmul.bf16.gmra.mxu0 %v4940
        %v6110 = vpop.f32.mrf.mxu0
        %v6111 = vadd.f32 %v5868, %v6110
        %v6112 = vpop.f32.mrf.mxu0
        %v6113 = vadd.f32 %v5870, %v6112
        %6114 = vmatmul.bf16.gmra.mxu0 %v4941
        %v6115 = vpop.f32.mrf.mxu0
        %v6116 = vadd.f32 %v5873, %v6115
        %v6117 = vpop.f32.mrf.mxu0
        %v6118 = vadd.f32 %v5875, %v6117
        %6119 = vmatmul.bf16.gmra.mxu0 %v4942
        %v6120 = vpop.f32.mrf.mxu0
        %v6121 = vadd.f32 %v5878, %v6120
        %v6122 = vpop.f32.mrf.mxu0
        %v6123 = vadd.f32 %v5880, %v6122
        %6124 = vmatmul.bf16.gmra.mxu0 %v4943
        %v6125 = vpop.f32.mrf.mxu0
        %v6126 = vadd.f32 %v5883, %v6125
        %v6127 = vpop.f32.mrf.mxu0
        %v6128 = vadd.f32 %v5885, %v6127
        %6129 = vmatmul.bf16.gmra.mxu0 %v4944
        %v6130 = vpop.f32.mrf.mxu0
        %v6131 = vadd.f32 %v5888, %v6130
        %v6132 = vpop.f32.mrf.mxu0
        %v6133 = vadd.f32 %v5890, %v6132
        %6134 = vmatmul.bf16.gmra.mxu0 %v4945
        %v6135 = vpop.f32.mrf.mxu0
        %v6136 = vadd.f32 %v5893, %v6135
        %v6137 = vpop.f32.mrf.mxu0
        %v6138 = vadd.f32 %v5895, %v6137
        %6139 = vmatmul.bf16.gmra.mxu0 %v4946
        %v6140 = vpop.f32.mrf.mxu0
        %v6141 = vadd.f32 %v5898, %v6140
        %v6142 = vpop.f32.mrf.mxu0
        %v6143 = vadd.f32 %v5900, %v6142
        %6144 = vdwg.mxu0
        %6145 = vmatpush.bf16.msra.mxu0 %v6013
        %6146 = vmatpush.bf16.msra.mxu0 %v6012
        %6147 = vmatpush.bf16.msra.mxu0 %v6011
        %6148 = vmatpush.bf16.msra.mxu0 %v6010
        %6149 = vmatpush.bf16.msra.mxu0 %v6009
        %6150 = vmatpush.bf16.msra.mxu0 %v6008
        %6151 = vmatpush.bf16.msra.mxu0 %v6007
        %6152 = vmatpush.bf16.msra.mxu0 %v6006
        %6153 = vmatmul.bf16.gmra.mxu0 %v4980
        %v6154 = vpop.f32.mrf.mxu0
        %v6155 = vadd.f32 %v6056, %v6154
        %v6156 = vpop.f32.mrf.mxu0
        %v6157 = vadd.f32 %v6058, %v6156
        %6158 = vmatmul.bf16.gmra.mxu0 %v4988
        %v6159 = vpop.f32.mrf.mxu0
        %v6160 = vadd.f32 %v6061, %v6159
        %v6161 = vpop.f32.mrf.mxu0
        %v6162 = vadd.f32 %v6063, %v6161
        %6163 = vmatmul.bf16.gmra.mxu0 %v4996
        %v6164 = vpop.f32.mrf.mxu0
        %v6165 = vadd.f32 %v6066, %v6164
        %v6166 = vpop.f32.mrf.mxu0
        %v6167 = vadd.f32 %v6068, %v6166
        %6168 = vmatmul.bf16.gmra.mxu0 %v5004
        %v6169 = vpop.f32.mrf.mxu0
        %v6170 = vadd.f32 %v6071, %v6169
        %v6171 = vpop.f32.mrf.mxu0
        %v6172 = vadd.f32 %v6073, %v6171
        %6173 = vmatmul.bf16.gmra.mxu0 %v5012
        %v6174 = vpop.f32.mrf.mxu0
        %v6175 = vadd.f32 %v6076, %v6174
        %v6176 = vpop.f32.mrf.mxu0
        %v6177 = vadd.f32 %v6078, %v6176
        %6178 = vmatmul.bf16.gmra.mxu0 %v5020
        %v6179 = vpop.f32.mrf.mxu0
        %v6180 = vadd.f32 %v6081, %v6179
        %v6181 = vpop.f32.mrf.mxu0
        %v6182 = vadd.f32 %v6083, %v6181
        %6183 = vmatmul.bf16.gmra.mxu0 %v5028
        %v6184 = vpop.f32.mrf.mxu0
        %v6185 = vadd.f32 %v6086, %v6184
        %v6186 = vpop.f32.mrf.mxu0
        %v6187 = vadd.f32 %v6088, %v6186
        %6188 = vmatmul.bf16.gmra.mxu0 %v5036
        %v6189 = vpop.f32.mrf.mxu0
        %v6190 = vadd.f32 %v6091, %v6189
        %v6191 = vpop.f32.mrf.mxu0
        %v6192 = vadd.f32 %v6093, %v6191
        %6193 = vmatmul.bf16.gmra.mxu0 %v5044
        %v6194 = vpop.f32.mrf.mxu0
        %v6195 = vadd.f32 %v6096, %v6194
        %v6196 = vpop.f32.mrf.mxu0
        %v6197 = vadd.f32 %v6098, %v6196
        %6198 = vmatmul.bf16.gmra.mxu0 %v5052
        %v6199 = vpop.f32.mrf.mxu0
        %v6200 = vadd.f32 %v6101, %v6199
        %v6201 = vpop.f32.mrf.mxu0
        %v6202 = vadd.f32 %v6103, %v6201
        %6203 = vmatmul.bf16.gmra.mxu0 %v5060
        %v6204 = vpop.f32.mrf.mxu0
        %v6205 = vadd.f32 %v6106, %v6204
        %v6206 = vpop.f32.mrf.mxu0
        %v6207 = vadd.f32 %v6108, %v6206
        %6208 = vmatmul.bf16.gmra.mxu0 %v5068
        %v6209 = vpop.f32.mrf.mxu0
        %v6210 = vadd.f32 %v6111, %v6209
        %v6211 = vpop.f32.mrf.mxu0
        %v6212 = vadd.f32 %v6113, %v6211
        %6213 = vmatmul.bf16.gmra.mxu0 %v5076
        %v6214 = vpop.f32.mrf.mxu0
        %v6215 = vadd.f32 %v6116, %v6214
        %v6216 = vpop.f32.mrf.mxu0
        %v6217 = vadd.f32 %v6118, %v6216
        %6218 = vmatmul.bf16.gmra.mxu0 %v5084
        %v6219 = vpop.f32.mrf.mxu0
        %v6220 = vadd.f32 %v6121, %v6219
        %v6221 = vpop.f32.mrf.mxu0
        %v6222 = vadd.f32 %v6123, %v6221
        %6223 = vmatmul.bf16.gmra.mxu0 %v5092
        %v6224 = vpop.f32.mrf.mxu0
        %v6225 = vadd.f32 %v6126, %v6224
        %v6226 = vpop.f32.mrf.mxu0
        %v6227 = vadd.f32 %v6128, %v6226
        %6228 = vmatmul.bf16.gmra.mxu0 %v5100
        %v6229 = vpop.f32.mrf.mxu0
        %v6230 = vadd.f32 %v6131, %v6229
        %v6231 = vpop.f32.mrf.mxu0
        %v6232 = vadd.f32 %v6133, %v6231
        %6233 = vmatmul.bf16.gmra.mxu0 %v5108
        %v6234 = vpop.f32.mrf.mxu0
        %v6235 = vadd.f32 %v6136, %v6234
        %v6236 = vpop.f32.mrf.mxu0
        %v6237 = vadd.f32 %v6138, %v6236
        %6238 = vmatmul.bf16.gmra.mxu0 %v5116
        %v6239 = vpop.f32.mrf.mxu0
        %v6240 = vadd.f32 %v6141, %v6239
        %v6241 = vpop.f32.mrf.mxu0
        %v6242 = vadd.f32 %v6143, %v6241
        %6243 = vdwg.mxu0
        %6244 = vmatpush.bf16.msra.mxu0 %v6021
        %6245 = vmatpush.bf16.msra.mxu0 %v6020
        %6246 = vmatpush.bf16.msra.mxu0 %v6019
        %6247 = vmatpush.bf16.msra.mxu0 %v6018
        %6248 = vmatpush.bf16.msra.mxu0 %v6017
        %6249 = vmatpush.bf16.msra.mxu0 %v6016
        %6250 = vmatpush.bf16.msra.mxu0 %v6015
        %6251 = vmatpush.bf16.msra.mxu0 %v6014
        %6252 = vmatmul.bf16.gmra.mxu0 %v5141
        %v6253 = vpop.f32.mrf.mxu0
        %v6254 = vadd.f32 %v6155, %v6253
        %v6255 = vpop.f32.mrf.mxu0
        %v6256 = vadd.f32 %v6157, %v6255
        %6257 = vmatmul.bf16.gmra.mxu0 %v5143
        %v6258 = vpop.f32.mrf.mxu0
        %v6259 = vadd.f32 %v6160, %v6258
        %v6260 = vpop.f32.mrf.mxu0
        %v6261 = vadd.f32 %v6162, %v6260
        %6262 = vmatmul.bf16.gmra.mxu0 %v5145
        %v6263 = vpop.f32.mrf.mxu0
        %v6264 = vadd.f32 %v6165, %v6263
        %v6265 = vpop.f32.mrf.mxu0
        %v6266 = vadd.f32 %v6167, %v6265
        %6267 = vmatmul.bf16.gmra.mxu0 %v5147
        %v6268 = vpop.f32.mrf.mxu0
        %v6269 = vadd.f32 %v6170, %v6268
        %v6270 = vpop.f32.mrf.mxu0
        %v6271 = vadd.f32 %v6172, %v6270
        %6272 = vmatmul.bf16.gmra.mxu0 %v5149
        %v6273 = vpop.f32.mrf.mxu0
        %v6274 = vadd.f32 %v6175, %v6273
        %v6275 = vpop.f32.mrf.mxu0
        %v6276 = vadd.f32 %v6177, %v6275
        %6277 = vmatmul.bf16.gmra.mxu0 %v5151
        %v6278 = vpop.f32.mrf.mxu0
        %v6279 = vadd.f32 %v6180, %v6278
        %v6280 = vpop.f32.mrf.mxu0
        %v6281 = vadd.f32 %v6182, %v6280
        %6282 = vmatmul.bf16.gmra.mxu0 %v5153
        %v6283 = vpop.f32.mrf.mxu0
        %v6284 = vadd.f32 %v6185, %v6283
        %v6285 = vpop.f32.mrf.mxu0
        %v6286 = vadd.f32 %v6187, %v6285
        %6287 = vmatmul.bf16.gmra.mxu0 %v5155
        %v6288 = vpop.f32.mrf.mxu0
        %v6289 = vadd.f32 %v6190, %v6288
        %v6290 = vpop.f32.mrf.mxu0
        %v6291 = vadd.f32 %v6192, %v6290
        %6292 = vmatmul.bf16.gmra.mxu0 %v5157
        %v6293 = vpop.f32.mrf.mxu0
        %v6294 = vadd.f32 %v6195, %v6293
        %v6295 = vpop.f32.mrf.mxu0
        %v6296 = vadd.f32 %v6197, %v6295
        %6297 = vmatmul.bf16.gmra.mxu0 %v5159
        %v6298 = vpop.f32.mrf.mxu0
        %v6299 = vadd.f32 %v6200, %v6298
        %v6300 = vpop.f32.mrf.mxu0
        %v6301 = vadd.f32 %v6202, %v6300
        %6302 = vmatmul.bf16.gmra.mxu0 %v5161
        %v6303 = vpop.f32.mrf.mxu0
        %v6304 = vadd.f32 %v6205, %v6303
        %v6305 = vpop.f32.mrf.mxu0
        %v6306 = vadd.f32 %v6207, %v6305
        %6307 = vmatmul.bf16.gmra.mxu0 %v5163
        %v6308 = vpop.f32.mrf.mxu0
        %v6309 = vadd.f32 %v6210, %v6308
        %v6310 = vpop.f32.mrf.mxu0
        %v6311 = vadd.f32 %v6212, %v6310
        %6312 = vmatmul.bf16.gmra.mxu0 %v5165
        %v6313 = vpop.f32.mrf.mxu0
        %v6314 = vadd.f32 %v6215, %v6313
        %v6315 = vpop.f32.mrf.mxu0
        %v6316 = vadd.f32 %v6217, %v6315
        %6317 = vmatmul.bf16.gmra.mxu0 %v5167
        %v6318 = vpop.f32.mrf.mxu0
        %v6319 = vadd.f32 %v6220, %v6318
        %v6320 = vpop.f32.mrf.mxu0
        %v6321 = vadd.f32 %v6222, %v6320
        %6322 = vmatmul.bf16.gmra.mxu0 %v5169
        %v6323 = vpop.f32.mrf.mxu0
        %v6324 = vadd.f32 %v6225, %v6323
        %v6325 = vpop.f32.mrf.mxu0
        %v6326 = vadd.f32 %v6227, %v6325
        %6327 = vmatmul.bf16.gmra.mxu0 %v5171
        %v6328 = vpop.f32.mrf.mxu0
        %v6329 = vadd.f32 %v6230, %v6328
        %v6330 = vpop.f32.mrf.mxu0
        %v6331 = vadd.f32 %v6232, %v6330
        %6332 = vmatmul.bf16.gmra.mxu0 %v5173
        %v6333 = vpop.f32.mrf.mxu0
        %v6334 = vadd.f32 %v6235, %v6333
        %v6335 = vpop.f32.mrf.mxu0
        %v6336 = vadd.f32 %v6237, %v6335
        %6337 = vmatmul.bf16.gmra.mxu0 %v5175
        %v6338 = vpop.f32.mrf.mxu0
        %v6339 = vadd.f32 %v6240, %v6338
        %v6340 = vpop.f32.mrf.mxu0
        %v6341 = vadd.f32 %v6242, %v6340
        %6342 = vdwg.mxu0
        %v6343 = vld [vmem:[#allocation3 + $0x10] sm:$0xc]
        %v6344 = vld [vmem:[#allocation3 + $0x14] sm:$0xf]
        %v6345 = vld [vmem:[#allocation3 + $0x18] sm:$0xf]
        %v6346 = vld [vmem:[#allocation3 + $0x1c] sm:$0xf]
        %v6347 = vld [vmem:[#allocation3 + $0x20] sm:$0xf]
        %v6348 = vld [vmem:[#allocation3 + $0x24] sm:$0xf]
        %v6349 = vld [vmem:[#allocation3 + $0x28] sm:$0xf]
        %v6350 = vld [vmem:[#allocation3 + $0x2c] sm:$0xf]
        %v6351 = vld [vmem:[#allocation3 + $0x30] sm:$0xf]
        %v6352 = vld [vmem:[#allocation3 + $0x34] sm:$0xf]
        %v6353 = vld [vmem:[#allocation3 + $0x38] sm:$0xf]
        %v6354 = vld [vmem:[#allocation3 + $0x3c] sm:$0xf]
        %v6355 = vld [vmem:[#allocation3 + $0x40] sm:$0xf]
        %v6356 = vld [vmem:[#allocation3 + $0x44] sm:$0xf]
        %v6357 = vld [vmem:[#allocation3 + $0x48] sm:$0xf]
        %v6358 = vld [vmem:[#allocation3 + $0x4c] sm:$0xf]
        %v6359 = vld [vmem:[#allocation3 + $0x50] sm:$0xf]
        %v6360 = vld [vmem:[#allocation3 + $0x54] sm:$0xf]
        %v6361 = vld [vmem:[#allocation3 + $0x58] sm:$0xf]
        %v6362 = vld [vmem:[#allocation3 + $0x5c] sm:$0xf]
        %v6363 = vld [vmem:[#allocation3 + $0x60] sm:$0xf]
        %v6364 = vld [vmem:[#allocation3 + $0x64] sm:$0xf]
        %v6365 = vld [vmem:[#allocation3 + $0x68] sm:$0xf]
        %v6366 = vld [vmem:[#allocation3 + $0x6c] sm:$0xf]
        %v6367 = vld [vmem:[#allocation3 + $0x70] sm:$0xf]
        %v6368 = vld [vmem:[#allocation3 + $0x74] sm:$0xf]
        %v6369 = vld [vmem:[#allocation3 + $0x78] sm:$0xf]
        %v6370 = vld [vmem:[#allocation3 + $0x7c] sm:$0xf]
        %v6371 = vld [vmem:[#allocation3 + $0x80] sm:$0xf]
        %v6372 = vld [vmem:[#allocation3 + $0x84] sm:$0xf]
        %v6373 = vld [vmem:[#allocation3 + $0x88] sm:$0xf]
        %v6374 = vld [vmem:[#allocation3 + $0x8c] sm:$0xf]
        %v6375 = vld [vmem:[#allocation3 + $0x90] sm:$0xf]
        %v6376 = vld [vmem:[#allocation3 + $0x94] sm:$0xf]
        %v6377 = vld [vmem:[#allocation3 + $0x98] sm:$0xf]
        %v6378 = vld [vmem:[#allocation3 + $0x9c] sm:$0xf]
        %v6379 = vld [vmem:[#allocation3 + $0xa0] sm:$0x3]
        %v6380 = vld [vmem:[#allocation3 + $0xa0] sm:$0x7]
        %v6381 = vld [vmem:[#allocation3 + $0x10] sm:$0x8]
        %v6419 = vunpack.c.l.b16 %v6343
        %v6420 = vunpack.c.l.b16 %v6344
        %v6421 = vunpack.c.l.b16 %v6345
        %v6422 = vunpack.c.l.b16 %v6346
        %v6423 = vunpack.c.l.b16 %v6347
        %v6424 = vunpack.c.l.b16 %v6348
        %v6425 = vunpack.c.l.b16 %v6349
        %v6426 = vunpack.c.l.b16 %v6350
        %v6427 = vunpack.c.l.b16 %v6351
        %v6428 = vunpack.c.l.b16 %v6352
        %v6429 = vunpack.c.l.b16 %v6353
        %v6430 = vunpack.c.l.b16 %v6354
        %v6431 = vunpack.c.l.b16 %v6355
        %v6432 = vunpack.c.l.b16 %v6356
        %v6433 = vunpack.c.l.b16 %v6357
        %v6434 = vunpack.c.l.b16 %v6358
        %v6435 = vunpack.c.l.b16 %v6359
        %v6436 = vunpack.c.l.b16 %v6360
        %v6437 = vunpack.c.l.b16 %v6361
        %v6438 = vunpack.c.l.b16 %v6362
        %v6439 = vunpack.c.l.b16 %v6363
        %v6440 = vunpack.c.l.b16 %v6364
        %v6441 = vunpack.c.l.b16 %v6365
        %v6442 = vunpack.c.l.b16 %v6366
        %v6443 = vunpack.c.l.b16 %v6367
        %v6444 = vunpack.c.l.b16 %v6368
        %v6445 = vunpack.c.l.b16 %v6369
        %v6446 = vunpack.c.l.b16 %v6370
        %v6447 = vunpack.c.l.b16 %v6371
        %v6448 = vunpack.c.l.b16 %v6372
        %v6449 = vunpack.c.l.b16 %v6373
        %v6450 = vunpack.c.l.b16 %v6374
        %v6451 = vunpack.c.l.b16 %v6375
        %v6452 = vunpack.c.l.b16 %v6376
        %v6453 = vunpack.c.l.b16 %v6377
        %v6454 = vunpack.c.l.b16 %v6378
        %v6455 = vunpack.c.l.b16 %v6379
        %v6456 = vpack.c.b16 %v6420, %v6419
        %v6457 = vpack.c.b16 %v6422, %v6421
        %v6458 = vpack.c.b16 %v6424, %v6423
        %v6459 = vpack.c.b16 %v6426, %v6425
        %v6460 = vpack.c.b16 %v6428, %v6427
        %v6461 = vpack.c.b16 %v6430, %v6429
        %v6462 = vpack.c.b16 %v6432, %v6431
        %v6463 = vpack.c.b16 %v6434, %v6433
        %v6464 = vpack.c.b16 %v6436, %v6435
        %v6465 = vpack.c.b16 %v6438, %v6437
        %v6466 = vpack.c.b16 %v6440, %v6439
        %v6467 = vpack.c.b16 %v6442, %v6441
        %v6468 = vpack.c.b16 %v6444, %v6443
        %v6469 = vpack.c.b16 %v6446, %v6445
        %v6470 = vpack.c.b16 %v6448, %v6447
        %v6471 = vpack.c.b16 %v6450, %v6449
        %v6472 = vpack.c.b16 %v6452, %v6451
        %v6473 = vpack.c.b16 %v6454, %v6453
        %v6474 = vpack.c.b16 %v6455, %v6455
        %v6476 = vunpack.c.l.b16 %v6380
        %v6477 = vpack.c.b16 %v6476, %v6476
        %v6479 = vshrl.u32 %v6456, 16
        %v6481 = vshll.u32 %v6456, 16
        %v6483 = vrot.slane %v6481, 1
        %v6484 = vor.u32 %v6479, %v6483
        %v6486 = vshll.u32 %v6457, 16
        %v6488 = vrot.slane %v6486, 1
        %v6489 = vsel %vm4968, %v6484, %v6488
        %v6490 = vshrl.u32 %v6457, 16
        %v6492 = vor.u32 %v6490, %v6488
        %v6494 = vshll.u32 %v6458, 16
        %v6496 = vrot.slane %v6494, 1
        %v6497 = vsel %vm4968, %v6492, %v6496
        %v6498 = vshrl.u32 %v6458, 16
        %v6500 = vor.u32 %v6498, %v6496
        %v6502 = vshll.u32 %v6459, 16
        %v6504 = vrot.slane %v6502, 1
        %v6505 = vsel %vm4968, %v6500, %v6504
        %v6506 = vshrl.u32 %v6459, 16
        %v6508 = vor.u32 %v6506, %v6504
        %v6510 = vshll.u32 %v6460, 16
        %v6512 = vrot.slane %v6510, 1
        %v6513 = vsel %vm4968, %v6508, %v6512
        %v6514 = vshrl.u32 %v6460, 16
        %v6516 = vor.u32 %v6514, %v6512
        %v6518 = vshll.u32 %v6461, 16
        %v6520 = vrot.slane %v6518, 1
        %v6521 = vsel %vm4968, %v6516, %v6520
        %v6522 = vshrl.u32 %v6461, 16
        %v6524 = vor.u32 %v6522, %v6520
        %v6526 = vshll.u32 %v6462, 16
        %v6528 = vrot.slane %v6526, 1
        %v6529 = vsel %vm4968, %v6524, %v6528
        %v6530 = vshrl.u32 %v6462, 16
        %v6532 = vor.u32 %v6530, %v6528
        %v6534 = vshll.u32 %v6463, 16
        %v6536 = vrot.slane %v6534, 1
        %v6537 = vsel %vm4968, %v6532, %v6536
        %v6538 = vshrl.u32 %v6463, 16
        %v6540 = vor.u32 %v6538, %v6536
        %v6542 = vshll.u32 %v6464, 16
        %v6544 = vrot.slane %v6542, 1
        %v6545 = vsel %vm4968, %v6540, %v6544
        %v6546 = vshrl.u32 %v6464, 16
        %v6548 = vor.u32 %v6546, %v6544
        %v6550 = vshll.u32 %v6465, 16
        %v6552 = vrot.slane %v6550, 1
        %v6553 = vsel %vm4968, %v6548, %v6552
        %v6554 = vshrl.u32 %v6465, 16
        %v6556 = vor.u32 %v6554, %v6552
        %v6558 = vshll.u32 %v6466, 16
        %v6560 = vrot.slane %v6558, 1
        %v6561 = vsel %vm4968, %v6556, %v6560
        %v6562 = vshrl.u32 %v6466, 16
        %v6564 = vor.u32 %v6562, %v6560
        %v6566 = vshll.u32 %v6467, 16
        %v6568 = vrot.slane %v6566, 1
        %v6569 = vsel %vm4968, %v6564, %v6568
        %v6570 = vshrl.u32 %v6467, 16
        %v6572 = vor.u32 %v6570, %v6568
        %v6574 = vshll.u32 %v6468, 16
        %v6576 = vrot.slane %v6574, 1
        %v6577 = vsel %vm4968, %v6572, %v6576
        %v6578 = vshrl.u32 %v6468, 16
        %v6580 = vor.u32 %v6578, %v6576
        %v6582 = vshll.u32 %v6469, 16
        %v6584 = vrot.slane %v6582, 1
        %v6585 = vsel %vm4968, %v6580, %v6584
        %v6586 = vshrl.u32 %v6469, 16
        %v6588 = vor.u32 %v6586, %v6584
        %v6590 = vshll.u32 %v6470, 16
        %v6592 = vrot.slane %v6590, 1
        %v6593 = vsel %vm4968, %v6588, %v6592
        %v6594 = vshrl.u32 %v6470, 16
        %v6596 = vor.u32 %v6594, %v6592
        %v6598 = vshll.u32 %v6471, 16
        %v6600 = vrot.slane %v6598, 1
        %v6601 = vsel %vm4968, %v6596, %v6600
        %v6602 = vshrl.u32 %v6471, 16
        %v6604 = vor.u32 %v6602, %v6600
        %v6606 = vshll.u32 %v6472, 16
        %v6608 = vrot.slane %v6606, 1
        %v6609 = vsel %vm4968, %v6604, %v6608
        %v6610 = vshrl.u32 %v6472, 16
        %v6612 = vor.u32 %v6610, %v6608
        %v6614 = vshll.u32 %v6473, 16
        %v6616 = vrot.slane %v6614, 1
        %v6617 = vsel %vm4968, %v6612, %v6616
        %v6618 = vshrl.u32 %v6473, 16
        %v6620 = vor.u32 %v6618, %v6616
        %v6622 = vshll.u32 %v6477, 16
        %v6624 = vrot.slane %v6622, 1
        %v6625 = vsel %vm4968, %v6620, %v6624
        %v6626 = vshrl.u32 %v6477, 16
        %v6628 = vor.u32 %v6626, %v6624
        %v6630 = vunpack.c.l.b16 %v6381
        %v6631 = vpack.c.b16 %v6420, %v6630
        %v6632 = vrot.slane %v6631, 1
        %v6633 = vrot.slane %v6457, 1
        %v6634 = vsel %vm5138, %v6632, %v6633
        %v6635 = vrot.slane %v6458, 1
        %v6636 = vsel %vm5138, %v6633, %v6635
        %v6637 = vrot.slane %v6459, 1
        %v6638 = vsel %vm5138, %v6635, %v6637
        %v6639 = vrot.slane %v6460, 1
        %v6640 = vsel %vm5138, %v6637, %v6639
        %v6641 = vrot.slane %v6461, 1
        %v6642 = vsel %vm5138, %v6639, %v6641
        %v6643 = vrot.slane %v6462, 1
        %v6644 = vsel %vm5138, %v6641, %v6643
        %v6645 = vrot.slane %v6463, 1
        %v6646 = vsel %vm5138, %v6643, %v6645
        %v6647 = vrot.slane %v6464, 1
        %v6648 = vsel %vm5138, %v6645, %v6647
        %v6649 = vrot.slane %v6465, 1
        %v6650 = vsel %vm5138, %v6647, %v6649
        %v6651 = vrot.slane %v6466, 1
        %v6652 = vsel %vm5138, %v6649, %v6651
        %v6653 = vrot.slane %v6467, 1
        %v6654 = vsel %vm5138, %v6651, %v6653
        %v6655 = vrot.slane %v6468, 1
        %v6656 = vsel %vm5138, %v6653, %v6655
        %v6657 = vrot.slane %v6469, 1
        %v6658 = vsel %vm5138, %v6655, %v6657
        %v6659 = vrot.slane %v6470, 1
        %v6660 = vsel %vm5138, %v6657, %v6659
        %v6661 = vrot.slane %v6471, 1
        %v6662 = vsel %vm5138, %v6659, %v6661
        %v6663 = vrot.slane %v6472, 1
        %v6664 = vsel %vm5138, %v6661, %v6663
        %v6665 = vrot.slane %v6473, 1
        %v6666 = vsel %vm5138, %v6663, %v6665
        %v6667 = vrot.slane %v6477, 1
        %v6668 = vsel %vm5138, %v6665, %v6667
        %s6669 = scalar_lea.vmem %s2, 384
        %v6670 = vld [vmem:[%s6669] sm:$0xf]
        %v6671 = vld [vmem:[%s6669 + $0x4] sm:$0xf]
        %v6672 = vld [vmem:[%s6669 + $0x8] sm:$0xf]
        %v6673 = vld [vmem:[%s6669 + $0xc] sm:$0xf]
        %v6674 = vld [vmem:[%s6669 + $0x10] sm:$0xf]
        %v6675 = vld [vmem:[%s6669 + $0x14] sm:$0xf]
        %v6676 = vld [vmem:[%s6669 + $0x18] sm:$0xf]
        %v6677 = vld [vmem:[%s6669 + $0x1c] sm:$0xf]
        %v6678 = vld [vmem:[%s6669 + $0x20] sm:$0xf]
        %v6679 = vld [vmem:[%s6669 + $0x24] sm:$0xf]
        %v6680 = vld [vmem:[%s6669 + $0x28] sm:$0xf]
        %v6681 = vld [vmem:[%s6669 + $0x2c] sm:$0xf]
        %v6682 = vld [vmem:[%s6669 + $0x30] sm:$0xf]
        %v6683 = vld [vmem:[%s6669 + $0x34] sm:$0xf]
        %v6684 = vld [vmem:[%s6669 + $0x38] sm:$0xf]
        %v6685 = vld [vmem:[%s6669 + $0x3c] sm:$0xf]
        %v6686 = vld [vmem:[%s6669 + $0x40] sm:$0xf]
        %v6687 = vld [vmem:[%s6669 + $0x44] sm:$0xf]
        %v6688 = vld [vmem:[%s6669 + $0x48] sm:$0xf]
        %v6689 = vld [vmem:[%s6669 + $0x4c] sm:$0xf]
        %v6690 = vld [vmem:[%s6669 + $0x50] sm:$0xf]
        %v6691 = vld [vmem:[%s6669 + $0x54] sm:$0xf]
        %v6692 = vld [vmem:[%s6669 + $0x58] sm:$0xf]
        %v6693 = vld [vmem:[%s6669 + $0x5c] sm:$0xf]
        %v6694 = vld [vmem:[%s6669 + $0x60] sm:$0xf]
        %v6695 = vld [vmem:[%s6669 + $0x64] sm:$0xf]
        %v6696 = vld [vmem:[%s6669 + $0x68] sm:$0xf]
        %v6697 = vld [vmem:[%s6669 + $0x6c] sm:$0xf]
        %v6698 = vld [vmem:[%s6669 + $0x70] sm:$0xf]
        %v6699 = vld [vmem:[%s6669 + $0x74] sm:$0xf]
        %v6700 = vld [vmem:[%s6669 + $0x78] sm:$0xf]
        %v6701 = vld [vmem:[%s6669 + $0x7c] sm:$0xf]
        %v6702 = vld [vmem:[%s6669 + $0x80] sm:$0xf]
        %v6703 = vld [vmem:[%s6669 + $0x84] sm:$0xf]
        %v6704 = vld [vmem:[%s6669 + $0x88] sm:$0xf]
        %v6705 = vld [vmem:[%s6669 + $0x8c] sm:$0xf]
        %v6706 = vld [vmem:[%s6669 + $0x90] sm:$0xf]
        %v6707 = vld [vmem:[%s6669 + $0x94] sm:$0xf]
        %v6708 = vld [vmem:[%s6669 + $0x98] sm:$0xf]
        %v6709 = vld [vmem:[%s6669 + $0x9c] sm:$0xf]
        %v6710 = vld [vmem:[%s6669 + $0xa0] sm:$0xf]
        %v6711 = vld [vmem:[%s6669 + $0xa4] sm:$0xf]
        %v6712 = vld [vmem:[%s6669 + $0xa8] sm:$0xf]
        %v6713 = vld [vmem:[%s6669 + $0xac] sm:$0xf]
        %v6714 = vld [vmem:[%s6669 + $0xb0] sm:$0xf]
        %v6715 = vld [vmem:[%s6669 + $0xb4] sm:$0xf]
        %v6716 = vld [vmem:[%s6669 + $0xb8] sm:$0xf]
        %v6717 = vld [vmem:[%s6669 + $0xbc] sm:$0xf]
        %vm6718 = vcmask 1045504
        %v6719 = vrot.slane %v6456, 2
        %v6720 = vrot.slane %v6457, 2
        %v6721 = vsel %vm6718, %v6719, %v6720
        %v6722 = vrot.slane %v6489, 2
        %v6723 = vrot.slane %v6497, 2
        %v6724 = vsel %vm6718, %v6722, %v6723
        %v6725 = vrot.slane %v6634, 2
        %v6726 = vrot.slane %v6636, 2
        %v6727 = vsel %vm6718, %v6725, %v6726
        %v6728 = vrot.slane %v6458, 2
        %v6729 = vsel %vm6718, %v6720, %v6728
        %v6730 = vrot.slane %v6505, 2
        %v6731 = vsel %vm6718, %v6723, %v6730
        %v6732 = vrot.slane %v6638, 2
        %v6733 = vsel %vm6718, %v6726, %v6732
        %v6734 = vrot.slane %v6459, 2
        %v6735 = vsel %vm6718, %v6728, %v6734
        %v6736 = vrot.slane %v6513, 2
        %v6737 = vsel %vm6718, %v6730, %v6736
        %v6738 = vrot.slane %v6640, 2
        %v6739 = vsel %vm6718, %v6732, %v6738
        %v6740 = vrot.slane %v6460, 2
        %v6741 = vsel %vm6718, %v6734, %v6740
        %v6742 = vrot.slane %v6521, 2
        %v6743 = vsel %vm6718, %v6736, %v6742
        %v6744 = vrot.slane %v6642, 2
        %v6745 = vsel %vm6718, %v6738, %v6744
        %v6746 = vrot.slane %v6461, 2
        %v6747 = vsel %vm6718, %v6740, %v6746
        %v6748 = vrot.slane %v6529, 2
        %v6749 = vsel %vm6718, %v6742, %v6748
        %v6750 = vrot.slane %v6644, 2
        %v6751 = vsel %vm6718, %v6744, %v6750
        %v6752 = vrot.slane %v6462, 2
        %v6753 = vsel %vm6718, %v6746, %v6752
        %v6754 = vrot.slane %v6537, 2
        %v6755 = vsel %vm6718, %v6748, %v6754
        %v6756 = vrot.slane %v6646, 2
        %v6757 = vsel %vm6718, %v6750, %v6756
        %v6758 = vrot.slane %v6463, 2
        %v6759 = vsel %vm6718, %v6752, %v6758
        %v6760 = vrot.slane %v6545, 2
        %v6761 = vsel %vm6718, %v6754, %v6760
        %v6762 = vrot.slane %v6648, 2
        %v6763 = vsel %vm6718, %v6756, %v6762
        %v6764 = vrot.slane %v6464, 2
        %v6765 = vsel %vm6718, %v6758, %v6764
        %v6766 = vrot.slane %v6553, 2
        %v6767 = vsel %vm6718, %v6760, %v6766
        %v6768 = vrot.slane %v6650, 2
        %v6769 = vsel %vm6718, %v6762, %v6768
        %v6770 = vrot.slane %v6465, 2
        %v6771 = vsel %vm6718, %v6764, %v6770
        %v6772 = vrot.slane %v6561, 2
        %v6773 = vsel %vm6718, %v6766, %v6772
        %v6774 = vrot.slane %v6652, 2
        %v6775 = vsel %vm6718, %v6768, %v6774
        %v6776 = vrot.slane %v6466, 2
        %v6777 = vsel %vm6718, %v6770, %v6776
        %v6778 = vrot.slane %v6569, 2
        %v6779 = vsel %vm6718, %v6772, %v6778
        %v6780 = vrot.slane %v6654, 2
        %v6781 = vsel %vm6718, %v6774, %v6780
        %v6782 = vrot.slane %v6467, 2
        %v6783 = vsel %vm6718, %v6776, %v6782
        %v6784 = vrot.slane %v6577, 2
        %v6785 = vsel %vm6718, %v6778, %v6784
        %v6786 = vrot.slane %v6656, 2
        %v6787 = vsel %vm6718, %v6780, %v6786
        %v6788 = vrot.slane %v6468, 2
        %v6789 = vsel %vm6718, %v6782, %v6788
        %v6790 = vrot.slane %v6585, 2
        %v6791 = vsel %vm6718, %v6784, %v6790
        %v6792 = vrot.slane %v6658, 2
        %v6793 = vsel %vm6718, %v6786, %v6792
        %v6794 = vrot.slane %v6469, 2
        %v6795 = vsel %vm6718, %v6788, %v6794
        %v6796 = vrot.slane %v6593, 2
        %v6797 = vsel %vm6718, %v6790, %v6796
        %v6798 = vrot.slane %v6660, 2
        %v6799 = vsel %vm6718, %v6792, %v6798
        %v6800 = vrot.slane %v6470, 2
        %v6801 = vsel %vm6718, %v6794, %v6800
        %v6802 = vrot.slane %v6601, 2
        %v6803 = vsel %vm6718, %v6796, %v6802
        %v6804 = vrot.slane %v6662, 2
        %v6805 = vsel %vm6718, %v6798, %v6804
        %v6806 = vrot.slane %v6471, 2
        %v6807 = vsel %vm6718, %v6800, %v6806
        %v6808 = vrot.slane %v6609, 2
        %v6809 = vsel %vm6718, %v6802, %v6808
        %v6810 = vrot.slane %v6664, 2
        %v6811 = vsel %vm6718, %v6804, %v6810
        %v6812 = vrot.slane %v6472, 2
        %v6813 = vsel %vm6718, %v6806, %v6812
        %v6814 = vrot.slane %v6617, 2
        %v6815 = vsel %vm6718, %v6808, %v6814
        %v6816 = vrot.slane %v6666, 2
        %v6817 = vsel %vm6718, %v6810, %v6816
        %v6818 = vrot.slane %v6473, 2
        %v6819 = vsel %vm6718, %v6812, %v6818
        %v6820 = vrot.slane %v6625, 2
        %v6821 = vsel %vm6718, %v6814, %v6820
        %v6822 = vrot.slane %v6668, 2
        %v6823 = vsel %vm6718, %v6816, %v6822
        %v6824 = vrot.slane %v6474, 2
        %v6825 = vsel %vm6718, %v6818, %v6824
        %v6826 = vrot.slane %v6628, 2
        %v6827 = vsel %vm6718, %v6820, %v6826
        %v6828 = vrot.slane %v6667, 2
        %v6829 = vsel %vm6718, %v6822, %v6828
        %v6932 = vunpack.c.l.b16 %v6670
        %v6933 = vunpack.c.l.b16 %v6671
        %v6934 = vunpack.c.l.b16 %v6672
        %v6935 = vunpack.c.l.b16 %v6673
        %v6936 = vunpack.c.l.b16 %v6674
        %v6937 = vunpack.c.l.b16 %v6675
        %v6938 = vunpack.c.l.b16 %v6676
        %v6939 = vunpack.c.l.b16 %v6677
        %v6940 = vunpack.c.l.b16 %v6678
        %v6941 = vunpack.c.l.b16 %v6679
        %v6942 = vunpack.c.l.b16 %v6680
        %v6943 = vunpack.c.l.b16 %v6681
        %v6944 = vunpack.c.l.b16 %v6682
        %v6945 = vunpack.c.l.b16 %v6683
        %v6946 = vunpack.c.l.b16 %v6684
        %v6947 = vunpack.c.l.b16 %v6685
        %v6948 = vunpack.c.l.b16 %v6686
        %v6949 = vunpack.c.l.b16 %v6687
        %v6950 = vunpack.c.l.b16 %v6688
        %v6951 = vunpack.c.l.b16 %v6689
        %v6952 = vunpack.c.l.b16 %v6690
        %v6953 = vunpack.c.l.b16 %v6691
        %v6954 = vunpack.c.l.b16 %v6692
        %v6955 = vunpack.c.l.b16 %v6693
        %v6956 = vunpack.c.l.b16 %v6694
        %v6957 = vunpack.c.l.b16 %v6695
        %v6958 = vunpack.c.l.b16 %v6696
        %v6959 = vunpack.c.l.b16 %v6697
        %v6960 = vunpack.c.l.b16 %v6698
        %v6961 = vunpack.c.l.b16 %v6699
        %v6962 = vunpack.c.l.b16 %v6700
        %v6963 = vunpack.c.l.b16 %v6701
        %v6964 = vunpack.c.l.b16 %v6702
        %v6965 = vunpack.c.l.b16 %v6703
        %v6966 = vunpack.c.l.b16 %v6704
        %v6967 = vunpack.c.l.b16 %v6705
        %v6968 = vunpack.c.l.b16 %v6706
        %v6969 = vunpack.c.l.b16 %v6707
        %v6970 = vunpack.c.l.b16 %v6708
        %v6971 = vunpack.c.l.b16 %v6709
        %v6972 = vunpack.c.l.b16 %v6710
        %v6973 = vunpack.c.l.b16 %v6711
        %v6974 = vunpack.c.l.b16 %v6712
        %v6975 = vunpack.c.l.b16 %v6713
        %v6976 = vunpack.c.l.b16 %v6714
        %v6977 = vunpack.c.l.b16 %v6715
        %v6978 = vunpack.c.l.b16 %v6716
        %v6979 = vunpack.c.l.b16 %v6717
        %v6980 = vpack.c.b16 %v6933, %v6932
        %v6981 = vpack.c.b16 %v6935, %v6934
        %v6982 = vpack.c.b16 %v6937, %v6936
        %v6983 = vpack.c.b16 %v6939, %v6938
        %v6984 = vpack.c.b16 %v6941, %v6940
        %v6985 = vpack.c.b16 %v6943, %v6942
        %v6986 = vpack.c.b16 %v6945, %v6944
        %v6987 = vpack.c.b16 %v6947, %v6946
        %v6988 = vpack.c.b16 %v6949, %v6948
        %v6989 = vpack.c.b16 %v6951, %v6950
        %v6990 = vpack.c.b16 %v6953, %v6952
        %v6991 = vpack.c.b16 %v6955, %v6954
        %v6992 = vpack.c.b16 %v6957, %v6956
        %v6993 = vpack.c.b16 %v6959, %v6958
        %v6994 = vpack.c.b16 %v6961, %v6960
        %v6995 = vpack.c.b16 %v6963, %v6962
        %v6996 = vpack.c.b16 %v6965, %v6964
        %v6997 = vpack.c.b16 %v6967, %v6966
        %v6998 = vpack.c.b16 %v6969, %v6968
        %v6999 = vpack.c.b16 %v6971, %v6970
        %v7000 = vpack.c.b16 %v6973, %v6972
        %v7001 = vpack.c.b16 %v6975, %v6974
        %v7002 = vpack.c.b16 %v6977, %v6976
        %v7003 = vpack.c.b16 %v6979, %v6978
        %7028 = vmatpush.bf16.msra.mxu0 %v6987
        %7029 = vmatpush.bf16.msra.mxu0 %v6986
        %7030 = vmatpush.bf16.msra.mxu0 %v6985
        %7031 = vmatpush.bf16.msra.mxu0 %v6984
        %7032 = vmatpush.bf16.msra.mxu0 %v6983
        %7033 = vmatpush.bf16.msra.mxu0 %v6982
        %7034 = vmatpush.bf16.msra.mxu0 %v6981
        %7035 = vmatpush.bf16.msra.mxu0 %v6980
        %7036 = vmatmul.bf16.gmra.mxu0 %v6721
        %v7037 = vpop.f32.mrf.mxu0
        %v7038 = vadd.f32 0.0, %v7037
        %v7039 = vpop.f32.mrf.mxu0
        %v7040 = vadd.f32 0.0, %v7039
        %7041 = vmatmul.bf16.gmra.mxu0 %v6729
        %v7042 = vpop.f32.mrf.mxu0
        %v7043 = vadd.f32 0.0, %v7042
        %v7044 = vpop.f32.mrf.mxu0
        %v7045 = vadd.f32 0.0, %v7044
        %7046 = vmatmul.bf16.gmra.mxu0 %v6735
        %v7047 = vpop.f32.mrf.mxu0
        %v7048 = vadd.f32 0.0, %v7047
        %v7049 = vpop.f32.mrf.mxu0
        %v7050 = vadd.f32 0.0, %v7049
        %7051 = vmatmul.bf16.gmra.mxu0 %v6741
        %v7052 = vpop.f32.mrf.mxu0
        %v7053 = vadd.f32 0.0, %v7052
        %v7054 = vpop.f32.mrf.mxu0
        %v7055 = vadd.f32 0.0, %v7054
        %7056 = vmatmul.bf16.gmra.mxu0 %v6747
        %v7057 = vpop.f32.mrf.mxu0
        %v7058 = vadd.f32 0.0, %v7057
        %v7059 = vpop.f32.mrf.mxu0
        %v7060 = vadd.f32 0.0, %v7059
        %7061 = vmatmul.bf16.gmra.mxu0 %v6753
        %v7062 = vpop.f32.mrf.mxu0
        %v7063 = vadd.f32 0.0, %v7062
        %v7064 = vpop.f32.mrf.mxu0
        %v7065 = vadd.f32 0.0, %v7064
        %7066 = vmatmul.bf16.gmra.mxu0 %v6759
        %v7067 = vpop.f32.mrf.mxu0
        %v7068 = vadd.f32 0.0, %v7067
        %v7069 = vpop.f32.mrf.mxu0
        %v7070 = vadd.f32 0.0, %v7069
        %7071 = vmatmul.bf16.gmra.mxu0 %v6765
        %v7072 = vpop.f32.mrf.mxu0
        %v7073 = vadd.f32 0.0, %v7072
        %v7074 = vpop.f32.mrf.mxu0
        %v7075 = vadd.f32 0.0, %v7074
        %7076 = vmatmul.bf16.gmra.mxu0 %v6771
        %v7077 = vpop.f32.mrf.mxu0
        %v7078 = vadd.f32 0.0, %v7077
        %v7079 = vpop.f32.mrf.mxu0
        %v7080 = vadd.f32 0.0, %v7079
        %7081 = vmatmul.bf16.gmra.mxu0 %v6777
        %v7082 = vpop.f32.mrf.mxu0
        %v7083 = vadd.f32 0.0, %v7082
        %v7084 = vpop.f32.mrf.mxu0
        %v7085 = vadd.f32 0.0, %v7084
        %7086 = vmatmul.bf16.gmra.mxu0 %v6783
        %v7087 = vpop.f32.mrf.mxu0
        %v7088 = vadd.f32 0.0, %v7087
        %v7089 = vpop.f32.mrf.mxu0
        %v7090 = vadd.f32 0.0, %v7089
        %7091 = vmatmul.bf16.gmra.mxu0 %v6789
        %v7092 = vpop.f32.mrf.mxu0
        %v7093 = vadd.f32 0.0, %v7092
        %v7094 = vpop.f32.mrf.mxu0
        %v7095 = vadd.f32 0.0, %v7094
        %7096 = vmatmul.bf16.gmra.mxu0 %v6795
        %v7097 = vpop.f32.mrf.mxu0
        %v7098 = vadd.f32 0.0, %v7097
        %v7099 = vpop.f32.mrf.mxu0
        %v7100 = vadd.f32 0.0, %v7099
        %7101 = vmatmul.bf16.gmra.mxu0 %v6801
        %v7102 = vpop.f32.mrf.mxu0
        %v7103 = vadd.f32 0.0, %v7102
        %v7104 = vpop.f32.mrf.mxu0
        %v7105 = vadd.f32 0.0, %v7104
        %7106 = vmatmul.bf16.gmra.mxu0 %v6807
        %v7107 = vpop.f32.mrf.mxu0
        %v7108 = vadd.f32 0.0, %v7107
        %v7109 = vpop.f32.mrf.mxu0
        %v7110 = vadd.f32 0.0, %v7109
        %7111 = vmatmul.bf16.gmra.mxu0 %v6813
        %v7112 = vpop.f32.mrf.mxu0
        %v7113 = vadd.f32 0.0, %v7112
        %v7114 = vpop.f32.mrf.mxu0
        %v7115 = vadd.f32 0.0, %v7114
        %7116 = vmatmul.bf16.gmra.mxu0 %v6819
        %v7117 = vpop.f32.mrf.mxu0
        %v7118 = vadd.f32 0.0, %v7117
        %v7119 = vpop.f32.mrf.mxu0
        %v7120 = vadd.f32 0.0, %v7119
        %7121 = vmatmul.bf16.gmra.mxu0 %v6825
        %v7122 = vpop.f32.mrf.mxu0
        %v7123 = vadd.f32 0.0, %v7122
        %v7124 = vpop.f32.mrf.mxu0
        %v7125 = vadd.f32 0.0, %v7124
        %7126 = vdwg.mxu0
        %7127 = vmatpush.bf16.msra.mxu0 %v6995
        %7128 = vmatpush.bf16.msra.mxu0 %v6994
        %7129 = vmatpush.bf16.msra.mxu0 %v6993
        %7130 = vmatpush.bf16.msra.mxu0 %v6992
        %7131 = vmatpush.bf16.msra.mxu0 %v6991
        %7132 = vmatpush.bf16.msra.mxu0 %v6990
        %7133 = vmatpush.bf16.msra.mxu0 %v6989
        %7134 = vmatpush.bf16.msra.mxu0 %v6988
        %7135 = vmatmul.bf16.gmra.mxu0 %v6724
        %v7136 = vpop.f32.mrf.mxu0
        %v7137 = vadd.f32 %v7038, %v7136
        %v7138 = vpop.f32.mrf.mxu0
        %v7139 = vadd.f32 %v7040, %v7138
        %7140 = vmatmul.bf16.gmra.mxu0 %v6731
        %v7141 = vpop.f32.mrf.mxu0
        %v7142 = vadd.f32 %v7043, %v7141
        %v7143 = vpop.f32.mrf.mxu0
        %v7144 = vadd.f32 %v7045, %v7143
        %7145 = vmatmul.bf16.gmra.mxu0 %v6737
        %v7146 = vpop.f32.mrf.mxu0
        %v7147 = vadd.f32 %v7048, %v7146
        %v7148 = vpop.f32.mrf.mxu0
        %v7149 = vadd.f32 %v7050, %v7148
        %7150 = vmatmul.bf16.gmra.mxu0 %v6743
        %v7151 = vpop.f32.mrf.mxu0
        %v7152 = vadd.f32 %v7053, %v7151
        %v7153 = vpop.f32.mrf.mxu0
        %v7154 = vadd.f32 %v7055, %v7153
        %7155 = vmatmul.bf16.gmra.mxu0 %v6749
        %v7156 = vpop.f32.mrf.mxu0
        %v7157 = vadd.f32 %v7058, %v7156
        %v7158 = vpop.f32.mrf.mxu0
        %v7159 = vadd.f32 %v7060, %v7158
        %7160 = vmatmul.bf16.gmra.mxu0 %v6755
        %v7161 = vpop.f32.mrf.mxu0
        %v7162 = vadd.f32 %v7063, %v7161
        %v7163 = vpop.f32.mrf.mxu0
        %v7164 = vadd.f32 %v7065, %v7163
        %7165 = vmatmul.bf16.gmra.mxu0 %v6761
        %v7166 = vpop.f32.mrf.mxu0
        %v7167 = vadd.f32 %v7068, %v7166
        %v7168 = vpop.f32.mrf.mxu0
        %v7169 = vadd.f32 %v7070, %v7168
        %7170 = vmatmul.bf16.gmra.mxu0 %v6767
        %v7171 = vpop.f32.mrf.mxu0
        %v7172 = vadd.f32 %v7073, %v7171
        %v7173 = vpop.f32.mrf.mxu0
        %v7174 = vadd.f32 %v7075, %v7173
        %7175 = vmatmul.bf16.gmra.mxu0 %v6773
        %v7176 = vpop.f32.mrf.mxu0
        %v7177 = vadd.f32 %v7078, %v7176
        %v7178 = vpop.f32.mrf.mxu0
        %v7179 = vadd.f32 %v7080, %v7178
        %7180 = vmatmul.bf16.gmra.mxu0 %v6779
        %v7181 = vpop.f32.mrf.mxu0
        %v7182 = vadd.f32 %v7083, %v7181
        %v7183 = vpop.f32.mrf.mxu0
        %v7184 = vadd.f32 %v7085, %v7183
        %7185 = vmatmul.bf16.gmra.mxu0 %v6785
        %v7186 = vpop.f32.mrf.mxu0
        %v7187 = vadd.f32 %v7088, %v7186
        %v7188 = vpop.f32.mrf.mxu0
        %v7189 = vadd.f32 %v7090, %v7188
        %7190 = vmatmul.bf16.gmra.mxu0 %v6791
        %v7191 = vpop.f32.mrf.mxu0
        %v7192 = vadd.f32 %v7093, %v7191
        %v7193 = vpop.f32.mrf.mxu0
        %v7194 = vadd.f32 %v7095, %v7193
        %7195 = vmatmul.bf16.gmra.mxu0 %v6797
        %v7196 = vpop.f32.mrf.mxu0
        %v7197 = vadd.f32 %v7098, %v7196
        %v7198 = vpop.f32.mrf.mxu0
        %v7199 = vadd.f32 %v7100, %v7198
        %7200 = vmatmul.bf16.gmra.mxu0 %v6803
        %v7201 = vpop.f32.mrf.mxu0
        %v7202 = vadd.f32 %v7103, %v7201
        %v7203 = vpop.f32.mrf.mxu0
        %v7204 = vadd.f32 %v7105, %v7203
        %7205 = vmatmul.bf16.gmra.mxu0 %v6809
        %v7206 = vpop.f32.mrf.mxu0
        %v7207 = vadd.f32 %v7108, %v7206
        %v7208 = vpop.f32.mrf.mxu0
        %v7209 = vadd.f32 %v7110, %v7208
        %7210 = vmatmul.bf16.gmra.mxu0 %v6815
        %v7211 = vpop.f32.mrf.mxu0
        %v7212 = vadd.f32 %v7113, %v7211
        %v7213 = vpop.f32.mrf.mxu0
        %v7214 = vadd.f32 %v7115, %v7213
        %7215 = vmatmul.bf16.gmra.mxu0 %v6821
        %v7216 = vpop.f32.mrf.mxu0
        %v7217 = vadd.f32 %v7118, %v7216
        %v7218 = vpop.f32.mrf.mxu0
        %v7219 = vadd.f32 %v7120, %v7218
        %7220 = vmatmul.bf16.gmra.mxu0 %v6827
        %v7221 = vpop.f32.mrf.mxu0
        %v7222 = vadd.f32 %v7123, %v7221
        %v7223 = vpop.f32.mrf.mxu0
        %v7224 = vadd.f32 %v7125, %v7223
        %7225 = vdwg.mxu0
        %7226 = vmatpush.bf16.msra.mxu0 %v7003
        %7227 = vmatpush.bf16.msra.mxu0 %v7002
        %7228 = vmatpush.bf16.msra.mxu0 %v7001
        %7229 = vmatpush.bf16.msra.mxu0 %v7000
        %7230 = vmatpush.bf16.msra.mxu0 %v6999
        %7231 = vmatpush.bf16.msra.mxu0 %v6998
        %7232 = vmatpush.bf16.msra.mxu0 %v6997
        %7233 = vmatpush.bf16.msra.mxu0 %v6996
        %7234 = vmatmul.bf16.gmra.mxu0 %v6727
        %v7235 = vpop.f32.mrf.mxu0
        %v7236 = vadd.f32 %v7137, %v7235
        %v7237 = vpop.f32.mrf.mxu0
        %v7238 = vadd.f32 %v7139, %v7237
        %7239 = vmatmul.bf16.gmra.mxu0 %v6733
        %v7240 = vpop.f32.mrf.mxu0
        %v7241 = vadd.f32 %v7142, %v7240
        %v7242 = vpop.f32.mrf.mxu0
        %v7243 = vadd.f32 %v7144, %v7242
        %7244 = vmatmul.bf16.gmra.mxu0 %v6739
        %v7245 = vpop.f32.mrf.mxu0
        %v7246 = vadd.f32 %v7147, %v7245
        %v7247 = vpop.f32.mrf.mxu0
        %v7248 = vadd.f32 %v7149, %v7247
        %7249 = vmatmul.bf16.gmra.mxu0 %v6745
        %v7250 = vpop.f32.mrf.mxu0
        %v7251 = vadd.f32 %v7152, %v7250
        %v7252 = vpop.f32.mrf.mxu0
        %v7253 = vadd.f32 %v7154, %v7252
        %7254 = vmatmul.bf16.gmra.mxu0 %v6751
        %v7255 = vpop.f32.mrf.mxu0
        %v7256 = vadd.f32 %v7157, %v7255
        %v7257 = vpop.f32.mrf.mxu0
        %v7258 = vadd.f32 %v7159, %v7257
        %7259 = vmatmul.bf16.gmra.mxu0 %v6757
        %v7260 = vpop.f32.mrf.mxu0
        %v7261 = vadd.f32 %v7162, %v7260
        %v7262 = vpop.f32.mrf.mxu0
        %v7263 = vadd.f32 %v7164, %v7262
        %7264 = vmatmul.bf16.gmra.mxu0 %v6763
        %v7265 = vpop.f32.mrf.mxu0
        %v7266 = vadd.f32 %v7167, %v7265
        %v7267 = vpop.f32.mrf.mxu0
        %v7268 = vadd.f32 %v7169, %v7267
        %7269 = vmatmul.bf16.gmra.mxu0 %v6769
        %v7270 = vpop.f32.mrf.mxu0
        %v7271 = vadd.f32 %v7172, %v7270
        %v7272 = vpop.f32.mrf.mxu0
        %v7273 = vadd.f32 %v7174, %v7272
        %7274 = vmatmul.bf16.gmra.mxu0 %v6775
        %v7275 = vpop.f32.mrf.mxu0
        %v7276 = vadd.f32 %v7177, %v7275
        %v7277 = vpop.f32.mrf.mxu0
        %v7278 = vadd.f32 %v7179, %v7277
        %7279 = vmatmul.bf16.gmra.mxu0 %v6781
        %v7280 = vpop.f32.mrf.mxu0
        %v7281 = vadd.f32 %v7182, %v7280
        %v7282 = vpop.f32.mrf.mxu0
        %v7283 = vadd.f32 %v7184, %v7282
        %7284 = vmatmul.bf16.gmra.mxu0 %v6787
        %v7285 = vpop.f32.mrf.mxu0
        %v7286 = vadd.f32 %v7187, %v7285
        %v7287 = vpop.f32.mrf.mxu0
        %v7288 = vadd.f32 %v7189, %v7287
        %7289 = vmatmul.bf16.gmra.mxu0 %v6793
        %v7290 = vpop.f32.mrf.mxu0
        %v7291 = vadd.f32 %v7192, %v7290
        %v7292 = vpop.f32.mrf.mxu0
        %v7293 = vadd.f32 %v7194, %v7292
        %7294 = vmatmul.bf16.gmra.mxu0 %v6799
        %v7295 = vpop.f32.mrf.mxu0
        %v7296 = vadd.f32 %v7197, %v7295
        %v7297 = vpop.f32.mrf.mxu0
        %v7298 = vadd.f32 %v7199, %v7297
        %7299 = vmatmul.bf16.gmra.mxu0 %v6805
        %v7300 = vpop.f32.mrf.mxu0
        %v7301 = vadd.f32 %v7202, %v7300
        %v7302 = vpop.f32.mrf.mxu0
        %v7303 = vadd.f32 %v7204, %v7302
        %7304 = vmatmul.bf16.gmra.mxu0 %v6811
        %v7305 = vpop.f32.mrf.mxu0
        %v7306 = vadd.f32 %v7207, %v7305
        %v7307 = vpop.f32.mrf.mxu0
        %v7308 = vadd.f32 %v7209, %v7307
        %7309 = vmatmul.bf16.gmra.mxu0 %v6817
        %v7310 = vpop.f32.mrf.mxu0
        %v7311 = vadd.f32 %v7212, %v7310
        %v7312 = vpop.f32.mrf.mxu0
        %v7313 = vadd.f32 %v7214, %v7312
        %7314 = vmatmul.bf16.gmra.mxu0 %v6823
        %v7315 = vpop.f32.mrf.mxu0
        %v7316 = vadd.f32 %v7217, %v7315
        %v7317 = vpop.f32.mrf.mxu0
        %v7318 = vadd.f32 %v7219, %v7317
        %7319 = vmatmul.bf16.gmra.mxu0 %v6829
        %v7320 = vpop.f32.mrf.mxu0
        %v7321 = vadd.f32 %v7222, %v7320
        %v7322 = vpop.f32.mrf.mxu0
        %v7323 = vadd.f32 %v7224, %v7322
        %7324 = vdwg.mxu0
        %v7325 = vadd.f32 %v6254, %v7236
        %v7326 = vadd.f32 %v6256, %v7238
        %v7327 = vadd.f32 %v6259, %v7241
        %v7328 = vadd.f32 %v6261, %v7243
        %v7329 = vadd.f32 %v6264, %v7246
        %v7330 = vadd.f32 %v6266, %v7248
        %v7331 = vadd.f32 %v6269, %v7251
        %v7332 = vadd.f32 %v6271, %v7253
        %v7333 = vadd.f32 %v6274, %v7256
        %v7334 = vadd.f32 %v6276, %v7258
        %v7335 = vadd.f32 %v6279, %v7261
        %v7336 = vadd.f32 %v6281, %v7263
        %v7337 = vadd.f32 %v6284, %v7266
        %v7338 = vadd.f32 %v6286, %v7268
        %v7339 = vadd.f32 %v6289, %v7271
        %v7340 = vadd.f32 %v6291, %v7273
        %v7341 = vadd.f32 %v6294, %v7276
        %v7342 = vadd.f32 %v6296, %v7278
        %v7343 = vadd.f32 %v6299, %v7281
        %v7344 = vadd.f32 %v6301, %v7283
        %v7345 = vadd.f32 %v6304, %v7286
        %v7346 = vadd.f32 %v6306, %v7288
        %v7347 = vadd.f32 %v6309, %v7291
        %v7348 = vadd.f32 %v6311, %v7293
        %v7349 = vadd.f32 %v6314, %v7296
        %v7350 = vadd.f32 %v6316, %v7298
        %v7351 = vadd.f32 %v6319, %v7301
        %v7352 = vadd.f32 %v6321, %v7303
        %v7353 = vadd.f32 %v6324, %v7306
        %v7354 = vadd.f32 %v6326, %v7308
        %v7355 = vadd.f32 %v6329, %v7311
        %v7356 = vadd.f32 %v6331, %v7313
        %v7357 = vadd.f32 %v6334, %v7316
        %v7358 = vadd.f32 %v6336, %v7318
        %v7359 = vadd.f32 %v6339, %v7321
        %v7360 = vadd.f32 %v6341, %v7323
        %v7361 = vpack.c.bf16 %v7325, %v7325
        %v7362 = vpack.c.bf16 %v7326, %v7326
        %v7363 = vpack.c.bf16 %v7327, %v7327
        %v7364 = vpack.c.bf16 %v7328, %v7328
        %v7365 = vpack.c.bf16 %v7329, %v7329
        %v7366 = vpack.c.bf16 %v7330, %v7330
        %v7367 = vpack.c.bf16 %v7331, %v7331
        %v7368 = vpack.c.bf16 %v7332, %v7332
        %v7369 = vpack.c.bf16 %v7333, %v7333
        %v7370 = vpack.c.bf16 %v7334, %v7334
        %v7371 = vpack.c.bf16 %v7335, %v7335
        %v7372 = vpack.c.bf16 %v7336, %v7336
        %v7373 = vpack.c.bf16 %v7337, %v7337
        %v7374 = vpack.c.bf16 %v7338, %v7338
        %v7375 = vpack.c.bf16 %v7339, %v7339
        %v7376 = vpack.c.bf16 %v7340, %v7340
        %v7377 = vpack.c.bf16 %v7341, %v7341
        %v7378 = vpack.c.bf16 %v7342, %v7342
        %v7379 = vpack.c.bf16 %v7343, %v7343
        %v7380 = vpack.c.bf16 %v7344, %v7344
        %v7381 = vpack.c.bf16 %v7345, %v7345
        %v7382 = vpack.c.bf16 %v7346, %v7346
        %v7383 = vpack.c.bf16 %v7347, %v7347
        %v7384 = vpack.c.bf16 %v7348, %v7348
        %v7385 = vpack.c.bf16 %v7349, %v7349
        %v7386 = vpack.c.bf16 %v7350, %v7350
        %v7387 = vpack.c.bf16 %v7351, %v7351
        %v7388 = vpack.c.bf16 %v7352, %v7352
        %v7389 = vpack.c.bf16 %v7353, %v7353
        %v7390 = vpack.c.bf16 %v7354, %v7354
        %v7391 = vpack.c.bf16 %v7355, %v7355
        %v7392 = vpack.c.bf16 %v7356, %v7356
        %v7393 = vpack.c.bf16 %v7357, %v7357
        %v7394 = vpack.c.bf16 %v7358, %v7358
        %v7395 = vpack.c.bf16 %v7359, %v7359
        %v7396 = vpack.c.bf16 %v7360, %v7360
        %7397 = vst [vmem:[%s4117] sm:$0xf] %v7361
        %7398 = vst [vmem:[%s4117 + $0x4] sm:$0xf] %v7362
        %7399 = vst [vmem:[%s4117 + $0x8] sm:$0xf] %v7363
        %7400 = vst [vmem:[%s4117 + $0xc] sm:$0xf] %v7364
        %7401 = vst [vmem:[%s4117 + $0x10] sm:$0xf] %v7365
        %7402 = vst [vmem:[%s4117 + $0x14] sm:$0xf] %v7366
        %7403 = vst [vmem:[%s4117 + $0x18] sm:$0xf] %v7367
        %7404 = vst [vmem:[%s4117 + $0x1c] sm:$0xf] %v7368
        %7405 = vst [vmem:[%s4117 + $0x20] sm:$0xf] %v7369
        %7406 = vst [vmem:[%s4117 + $0x24] sm:$0xf] %v7370
        %7407 = vst [vmem:[%s4117 + $0x28] sm:$0xf] %v7371
        %7408 = vst [vmem:[%s4117 + $0x2c] sm:$0xf] %v7372
        %7409 = vst [vmem:[%s4117 + $0x30] sm:$0xf] %v7373
        %7410 = vst [vmem:[%s4117 + $0x34] sm:$0xf] %v7374
        %7411 = vst [vmem:[%s4117 + $0x38] sm:$0xf] %v7375
        %7412 = vst [vmem:[%s4117 + $0x3c] sm:$0xf] %v7376
        %7413 = vst [vmem:[%s4117 + $0x40] sm:$0xf] %v7377
        %7414 = vst [vmem:[%s4117 + $0x44] sm:$0xf] %v7378
        %7415 = vst [vmem:[%s4117 + $0x48] sm:$0xf] %v7379
        %7416 = vst [vmem:[%s4117 + $0x4c] sm:$0xf] %v7380
        %7417 = vst [vmem:[%s4117 + $0x50] sm:$0xf] %v7381
        %7418 = vst [vmem:[%s4117 + $0x54] sm:$0xf] %v7382
        %7419 = vst [vmem:[%s4117 + $0x58] sm:$0xf] %v7383
        %7420 = vst [vmem:[%s4117 + $0x5c] sm:$0xf] %v7384
        %7421 = vst [vmem:[%s4117 + $0x60] sm:$0xf] %v7385
        %7422 = vst [vmem:[%s4117 + $0x64] sm:$0xf] %v7386
        %7423 = vst [vmem:[%s4117 + $0x68] sm:$0xf] %v7387
        %7424 = vst [vmem:[%s4117 + $0x6c] sm:$0xf] %v7388
        %7425 = vst [vmem:[%s4117 + $0x70] sm:$0xf] %v7389
        %7426 = vst [vmem:[%s4117 + $0x74] sm:$0xf] %v7390
        %7427 = vst [vmem:[%s4117 + $0x78] sm:$0xf] %v7391
        %7428 = vst [vmem:[%s4117 + $0x7c] sm:$0xf] %v7392
        %7429 = vst [vmem:[%s4117 + $0x80] sm:$0xf] %v7393
        %7430 = vst [vmem:[%s4117 + $0x84] sm:$0xf] %v7394
        %7431 = vst [vmem:[%s4117 + $0x88] sm:$0xf] %v7395
        %7432 = vst [vmem:[%s4117 + $0x8c] sm:$0xf] %v7396
        %v7433 = vsel %vm4079, %v7325, 0.0
        %v7434 = vsel %vm4080, %v7326, 0.0
        %v7435 = vsel %vm4081, %v7327, 0.0
        %v7436 = vsel %vm4082, %v7328, 0.0
        %v7437 = vsel %vm4083, %v7329, 0.0
        %v7438 = vsel %vm4084, %v7330, 0.0
        %v7439 = vsel %vm4085, %v7331, 0.0
        %v7440 = vsel %vm4086, %v7332, 0.0
        %v7441 = vsel %vm4087, %v7333, 0.0
        %v7442 = vsel %vm4088, %v7334, 0.0
        %v7443 = vsel %vm4089, %v7335, 0.0
        %v7444 = vsel %vm4090, %v7336, 0.0
        %v7445 = vsel %vm4091, %v7337, 0.0
        %v7446 = vsel %vm4092, %v7338, 0.0
        %v7447 = vsel %vm4093, %v7339, 0.0
        %v7448 = vsel %vm4094, %v7340, 0.0
        %v7449 = vsel %vm4095, %v7341, 0.0
        %v7450 = vsel %vm4096, %v7342, 0.0
        %v7451 = vsel %vm4097, %v7343, 0.0
        %v7452 = vsel %vm4098, %v7344, 0.0
        %v7453 = vsel %vm4099, %v7345, 0.0
        %v7454 = vsel %vm4100, %v7346, 0.0
        %v7455 = vsel %vm4101, %v7347, 0.0
        %v7456 = vsel %vm4102, %v7348, 0.0
        %v7457 = vsel %vm4103, %v7349, 0.0
        %v7458 = vsel %vm4104, %v7350, 0.0
        %v7459 = vsel %vm4105, %v7351, 0.0
        %v7460 = vsel %vm4106, %v7352, 0.0
        %v7461 = vsel %vm4107, %v7353, 0.0
        %v7462 = vsel %vm4108, %v7354, 0.0
        %v7463 = vsel %vm4109, %v7355, 0.0
        %v7464 = vsel %vm4110, %v7356, 0.0
        %v7465 = vsel %vm4111, %v7357, 0.0
        %v7466 = vsel %vm4112, %v7358, 0.0
        %v7467 = vsel %vm4113, %v7359, 0.0
        %v7468 = vsel %vm4114, %v7360, 0.0
        %v7469 = vadd.f32 %v7433, %v7434
        %v7470 = vadd.f32 %v7469, %v7435
        %v7471 = vadd.f32 %v7470, %v7436
        %v7472 = vadd.f32 %v7471, %v7437
        %v7473 = vadd.f32 %v7472, %v7438
        %v7474 = vadd.f32 %v7473, %v7439
        %v7475 = vadd.f32 %v7474, %v7440
        %v7476 = vadd.f32 %v7475, %v7441
        %v7477 = vadd.f32 %v7476, %v7442
        %v7478 = vadd.f32 %v7477, %v7443
        %v7479 = vadd.f32 %v7478, %v7444
        %v7480 = vadd.f32 %v7479, %v7445
        %v7481 = vadd.f32 %v7480, %v7446
        %v7482 = vadd.f32 %v7481, %v7447
        %v7483 = vadd.f32 %v7482, %v7448
        %v7484 = vadd.f32 %v7483, %v7449
        %v7485 = vadd.f32 %v7484, %v7450
        %v7486 = vadd.f32 %v7485, %v7451
        %v7487 = vadd.f32 %v7486, %v7452
        %v7488 = vadd.f32 %v7487, %v7453
        %v7489 = vadd.f32 %v7488, %v7454
        %v7490 = vadd.f32 %v7489, %v7455
        %v7491 = vadd.f32 %v7490, %v7456
        %v7492 = vadd.f32 %v7491, %v7457
        %v7493 = vadd.f32 %v7492, %v7458
        %v7494 = vadd.f32 %v7493, %v7459
        %v7495 = vadd.f32 %v7494, %v7460
        %v7496 = vadd.f32 %v7495, %v7461
        %v7497 = vadd.f32 %v7496, %v7462
        %v7498 = vadd.f32 %v7497, %v7463
        %v7499 = vadd.f32 %v7498, %v7464
        %v7500 = vadd.f32 %v7499, %v7465
        %v7501 = vadd.f32 %v7500, %v7466
        %v7502 = vadd.f32 %v7501, %v7467
        %v7503 = vadd.f32 %v7502, %v7468
        %v7504 = vrot.slane %v7503, 4
        %v7505 = vadd.f32 %v7503, %v7504
        %v7506 = vrot.slane %v7505, 2
        %v7507 = vadd.f32 %v7505, %v7506
        %v7508 = vrot.slane %v7507, 1
        %v7509 = vadd.f32 %v7507, %v7508
        %v7510 = vmul.f32 %v7509, 0.00390625
        %v7511 = vsub.f32 %v7325, %v7510
        %v7512 = vsub.f32 %v7326, %v7510
        %v7513 = vsub.f32 %v7327, %v7510
        %v7514 = vsub.f32 %v7328, %v7510
        %v7515 = vsub.f32 %v7329, %v7510
        %v7516 = vsub.f32 %v7330, %v7510
        %v7517 = vsub.f32 %v7331, %v7510
        %v7518 = vsub.f32 %v7332, %v7510
        %v7519 = vsub.f32 %v7333, %v7510
        %v7520 = vsub.f32 %v7334, %v7510
        %v7521 = vsub.f32 %v7335, %v7510
        %v7522 = vsub.f32 %v7336, %v7510
        %v7523 = vsub.f32 %v7337, %v7510
        %v7524 = vsub.f32 %v7338, %v7510
        %v7525 = vsub.f32 %v7339, %v7510
        %v7526 = vsub.f32 %v7340, %v7510
        %v7527 = vsub.f32 %v7341, %v7510
        %v7528 = vsub.f32 %v7342, %v7510
        %v7529 = vsub.f32 %v7343, %v7510
        %v7530 = vsub.f32 %v7344, %v7510
        %v7531 = vsub.f32 %v7345, %v7510
        %v7532 = vsub.f32 %v7346, %v7510
        %v7533 = vsub.f32 %v7347, %v7510
        %v7534 = vsub.f32 %v7348, %v7510
        %v7535 = vsub.f32 %v7349, %v7510
        %v7536 = vsub.f32 %v7350, %v7510
        %v7537 = vsub.f32 %v7351, %v7510
        %v7538 = vsub.f32 %v7352, %v7510
        %v7539 = vsub.f32 %v7353, %v7510
        %v7540 = vsub.f32 %v7354, %v7510
        %v7541 = vsub.f32 %v7355, %v7510
        %v7542 = vsub.f32 %v7356, %v7510
        %v7543 = vsub.f32 %v7357, %v7510
        %v7544 = vsub.f32 %v7358, %v7510
        %v7545 = vsub.f32 %v7359, %v7510
        %v7546 = vsub.f32 %v7360, %v7510
        %v7547 = vsel %vm4079, %v7511, 0.0
        %v7548 = vsel %vm4080, %v7512, 0.0
        %v7549 = vsel %vm4081, %v7513, 0.0
        %v7550 = vsel %vm4082, %v7514, 0.0
        %v7551 = vsel %vm4083, %v7515, 0.0
        %v7552 = vsel %vm4084, %v7516, 0.0
        %v7553 = vsel %vm4085, %v7517, 0.0
        %v7554 = vsel %vm4086, %v7518, 0.0
        %v7555 = vsel %vm4087, %v7519, 0.0
        %v7556 = vsel %vm4088, %v7520, 0.0
        %v7557 = vsel %vm4089, %v7521, 0.0
        %v7558 = vsel %vm4090, %v7522, 0.0
        %v7559 = vsel %vm4091, %v7523, 0.0
        %v7560 = vsel %vm4092, %v7524, 0.0
        %v7561 = vsel %vm4093, %v7525, 0.0
        %v7562 = vsel %vm4094, %v7526, 0.0
        %v7563 = vsel %vm4095, %v7527, 0.0
        %v7564 = vsel %vm4096, %v7528, 0.0
        %v7565 = vsel %vm4097, %v7529, 0.0
        %v7566 = vsel %vm4098, %v7530, 0.0
        %v7567 = vsel %vm4099, %v7531, 0.0
        %v7568 = vsel %vm4100, %v7532, 0.0
        %v7569 = vsel %vm4101, %v7533, 0.0
        %v7570 = vsel %vm4102, %v7534, 0.0
        %v7571 = vsel %vm4103, %v7535, 0.0
        %v7572 = vsel %vm4104, %v7536, 0.0
        %v7573 = vsel %vm4105, %v7537, 0.0
        %v7574 = vsel %vm4106, %v7538, 0.0
        %v7575 = vsel %vm4107, %v7539, 0.0
        %v7576 = vsel %vm4108, %v7540, 0.0
        %v7577 = vsel %vm4109, %v7541, 0.0
        %v7578 = vsel %vm4110, %v7542, 0.0
        %v7579 = vsel %vm4111, %v7543, 0.0
        %v7580 = vsel %vm4112, %v7544, 0.0
        %v7581 = vsel %vm4113, %v7545, 0.0
        %v7582 = vsel %vm4114, %v7546, 0.0
        %v7583 = vmul.f32 %v7547, %v7547
        %v7584 = vmul.f32 %v7548, %v7548
        %v7585 = vmul.f32 %v7549, %v7549
        %v7586 = vmul.f32 %v7550, %v7550
        %v7587 = vmul.f32 %v7551, %v7551
        %v7588 = vmul.f32 %v7552, %v7552
        %v7589 = vmul.f32 %v7553, %v7553
        %v7590 = vmul.f32 %v7554, %v7554
        %v7591 = vmul.f32 %v7555, %v7555
        %v7592 = vmul.f32 %v7556, %v7556
        %v7593 = vmul.f32 %v7557, %v7557
        %v7594 = vmul.f32 %v7558, %v7558
        %v7595 = vmul.f32 %v7559, %v7559
        %v7596 = vmul.f32 %v7560, %v7560
        %v7597 = vmul.f32 %v7561, %v7561
        %v7598 = vmul.f32 %v7562, %v7562
        %v7599 = vmul.f32 %v7563, %v7563
        %v7600 = vmul.f32 %v7564, %v7564
        %v7601 = vmul.f32 %v7565, %v7565
        %v7602 = vmul.f32 %v7566, %v7566
        %v7603 = vmul.f32 %v7567, %v7567
        %v7604 = vmul.f32 %v7568, %v7568
        %v7605 = vmul.f32 %v7569, %v7569
        %v7606 = vmul.f32 %v7570, %v7570
        %v7607 = vmul.f32 %v7571, %v7571
        %v7608 = vmul.f32 %v7572, %v7572
        %v7609 = vmul.f32 %v7573, %v7573
        %v7610 = vmul.f32 %v7574, %v7574
        %v7611 = vmul.f32 %v7575, %v7575
        %v7612 = vmul.f32 %v7576, %v7576
        %v7613 = vmul.f32 %v7577, %v7577
        %v7614 = vmul.f32 %v7578, %v7578
        %v7615 = vmul.f32 %v7579, %v7579
        %v7616 = vmul.f32 %v7580, %v7580
        %v7617 = vmul.f32 %v7581, %v7581
        %v7618 = vmul.f32 %v7582, %v7582
        %v7619 = vadd.f32 %v7583, %v7584
        %v7620 = vadd.f32 %v7619, %v7585
        %v7621 = vadd.f32 %v7620, %v7586
        %v7622 = vadd.f32 %v7621, %v7587
        %v7623 = vadd.f32 %v7622, %v7588
        %v7624 = vadd.f32 %v7623, %v7589
        %v7625 = vadd.f32 %v7624, %v7590
        %v7626 = vadd.f32 %v7625, %v7591
        %v7627 = vadd.f32 %v7626, %v7592
        %v7628 = vadd.f32 %v7627, %v7593
        %v7629 = vadd.f32 %v7628, %v7594
        %v7630 = vadd.f32 %v7629, %v7595
        %v7631 = vadd.f32 %v7630, %v7596
        %v7632 = vadd.f32 %v7631, %v7597
        %v7633 = vadd.f32 %v7632, %v7598
        %v7634 = vadd.f32 %v7633, %v7599
        %v7635 = vadd.f32 %v7634, %v7600
        %v7636 = vadd.f32 %v7635, %v7601
        %v7637 = vadd.f32 %v7636, %v7602
        %v7638 = vadd.f32 %v7637, %v7603
        %v7639 = vadd.f32 %v7638, %v7604
        %v7640 = vadd.f32 %v7639, %v7605
        %v7641 = vadd.f32 %v7640, %v7606
        %v7642 = vadd.f32 %v7641, %v7607
        %v7643 = vadd.f32 %v7642, %v7608
        %v7644 = vadd.f32 %v7643, %v7609
        %v7645 = vadd.f32 %v7644, %v7610
        %v7646 = vadd.f32 %v7645, %v7611
        %v7647 = vadd.f32 %v7646, %v7612
        %v7648 = vadd.f32 %v7647, %v7613
        %v7649 = vadd.f32 %v7648, %v7614
        %v7650 = vadd.f32 %v7649, %v7615
        %v7651 = vadd.f32 %v7650, %v7616
        %v7652 = vadd.f32 %v7651, %v7617
        %v7653 = vadd.f32 %v7652, %v7618
        %v7654 = vrot.slane %v7653, 4
        %v7655 = vadd.f32 %v7653, %v7654
        %v7656 = vrot.slane %v7655, 2
        %v7657 = vadd.f32 %v7655, %v7656
        %v7658 = vrot.slane %v7657, 1
        %v7659 = vadd.f32 %v7657, %v7658
        %s7660 = scvt.s32.f32 %s20
        %s7661 = sadd.f32 %s7660, 1.0
        %v7662 = vstv %s7661
        %v7663 = vrcp.pop %v7662
        %v7664 = vmul.f32 %v7662, %v7663
        %v7665 = vsub.f32 1.0, %v7664
        %v7666 = vmul.f32 %v7663, %v7665
        %v7667 = vadd.f32 %v7663, %v7666
        %vm7668 = vweird.f32 %v7662
        %vm7669 = vweird.f32 %v7663
        %vm7670 = vmor %vm7668, %vm7669
        %v7671 = vsel %vm7670, %v7663, %v7667
        %v7672 = vand.u32 2147483647, %v7662
        %vm7673 = vcmp.eq.f32.partialorder %v7672, 8.507059e+37
        %v7674 = vand.u32 %v7662, 2147483648
        %v7675 = vor.u32 1.1754944e-38, %v7674
        %v7676 = vsel %vm7673, %v7675, %v7671
        %s7677 = vtos %v7676
        %s7678 = smul.f32 %s7660, 256.0
        %s7679 = smul.f32 %s7678, %s7677
        %v7680 = vld [vmem:[#allocation4] sm:$0x1]
        %v7681 = vld [vmem:[#allocation4 + $0x1] sm:$0x1]
        %v7682 = vsub.f32 %v7510, %v7680
        %v7683 = vstv %s7677
        %v7684 = vmul.f32 %v7682, %v7683
        %v7685 = vadd.f32 %v7680, %v7684
        %7686 = vst [vmem:[#allocation4] sm:$0x1] %v7685
        %v7687 = vadd.f32 %v7681, %v7659
        %v7688 = vmul.f32 %v7682, %v7682
        %v7689 = vstv %s7679
        %v7690 = vmul.f32 %v7688, %v7689
        %v7691 = vadd.f32 %v7687, %v7690
        %7692 = vst [vmem:[#allocation4 + $0x1] sm:$0x1] %v7691
        %p7693 = scmp.eq.s32.totalorder %s20, 1
        // Predicated region
        $region57: #{inconv_forward.1} parent=51 // pred_check
          %p7694 = pneg %p7693
        $region58: #{inconv_forward.1} parent=51 // pred_check_branch
          %7696 = sbr.rel (%p7694) target = $region60
        $region59: #{inconv_forward.1} parent=51 // pred_region
          %v7697 = vld [vmem:[#allocation4] sm:$0x1]
          %v7698 = vld [vmem:[#allocation4 + $0x1] sm:$0x1]
          %v7699 = vmul.f32 %v7698, 0.001953125
          %v7700 = vld [vmem:[%s3 + $0x2] sm:$0x1]
          %v7701 = vld [vmem:[%s3 + $0x3] sm:$0x1]
          %v7702 = vadd.f32 %v7699, 1e-05
          %v7703 = vrsqrt.pop %v7702
          %v7704 = vmul.f32 %v7703, %v7702
          %v7705 = vmul.f32 %v7704, %v7703
          %v7706 = vmul.f32 0.5, %v7705
          %v7707 = vsub.f32 1.5, %v7706
          %v7708 = vmul.f32 %v7703, %v7707
          %vm7709 = vweird.f32 %v7702
          %vm7710 = vweird.f32 %v7703
          %vm7711 = vmor %vm7709, %vm7710
          %v7712 = vsel %vm7711, %v7703, %v7708
          %v7713 = vmul.f32 %v7700, %v7712
          %7714 = vst [vmem:[#allocation5 + $0x2] sm:$0x1] %v7713
          %v7715 = vmul.f32 %v7697, %v7713
          %v7716 = vsub.f32 %v7701, %v7715
          %7717 = vst [vmem:[#allocation5 + $0x3] sm:$0x1] %v7716
        $region60: #{inconv_forward.1} parent=51 // pred_fallthru
          _
      $region52: #{inconv_forward.1} parent=35 // pred_fallthru
        _
      %p7718 = scmp.eq.s32.totalorder %s19, 2
      // Predicated region
      $region61: #{inconv_forward.1} parent=35 // pred_check
        %p7719 = pneg %p7718
      $region62: #{inconv_forward.1} parent=35 // pred_check_branch
        %7721 = sbr.rel (%p7719) target = $region64
      $region63: #{inconv_forward.1} parent=35 // pred_region
        %s7722 = smul.u32 %s20, 36
        %s7723 = smul.addr %s7722, 4
        %s7724 = scalar_lea.vmem [#allocation2], %s7723
        %v7725 = vld [vmem:[%s7724] sm:$0xf]
        %v7726 = vld [vmem:[%s7724 + $0x4] sm:$0xf]
        %v7727 = vld [vmem:[%s7724 + $0x8] sm:$0xf]
        %v7728 = vld [vmem:[%s7724 + $0xc] sm:$0xf]
        %v7729 = vld [vmem:[%s7724 + $0x10] sm:$0xf]
        %v7730 = vld [vmem:[%s7724 + $0x14] sm:$0xf]
        %v7731 = vld [vmem:[%s7724 + $0x18] sm:$0xf]
        %v7732 = vld [vmem:[%s7724 + $0x1c] sm:$0xf]
        %v7733 = vld [vmem:[%s7724 + $0x20] sm:$0xf]
        %v7734 = vld [vmem:[%s7724 + $0x24] sm:$0xf]
        %v7735 = vld [vmem:[%s7724 + $0x28] sm:$0xf]
        %v7736 = vld [vmem:[%s7724 + $0x2c] sm:$0xf]
        %v7737 = vld [vmem:[%s7724 + $0x30] sm:$0xf]
        %v7738 = vld [vmem:[%s7724 + $0x34] sm:$0xf]
        %v7739 = vld [vmem:[%s7724 + $0x38] sm:$0xf]
        %v7740 = vld [vmem:[%s7724 + $0x3c] sm:$0xf]
        %v7741 = vld [vmem:[%s7724 + $0x40] sm:$0xf]
        %v7742 = vld [vmem:[%s7724 + $0x44] sm:$0xf]
        %v7743 = vld [vmem:[%s7724 + $0x48] sm:$0xf]
        %v7744 = vld [vmem:[%s7724 + $0x4c] sm:$0xf]
        %v7745 = vld [vmem:[%s7724 + $0x50] sm:$0xf]
        %v7746 = vld [vmem:[%s7724 + $0x54] sm:$0xf]
        %v7747 = vld [vmem:[%s7724 + $0x58] sm:$0xf]
        %v7748 = vld [vmem:[%s7724 + $0x5c] sm:$0xf]
        %v7749 = vld [vmem:[%s7724 + $0x60] sm:$0xf]
        %v7750 = vld [vmem:[%s7724 + $0x64] sm:$0xf]
        %v7751 = vld [vmem:[%s7724 + $0x68] sm:$0xf]
        %v7752 = vld [vmem:[%s7724 + $0x6c] sm:$0xf]
        %v7753 = vld [vmem:[%s7724 + $0x70] sm:$0xf]
        %v7754 = vld [vmem:[%s7724 + $0x74] sm:$0xf]
        %v7755 = vld [vmem:[%s7724 + $0x78] sm:$0xf]
        %v7756 = vld [vmem:[%s7724 + $0x7c] sm:$0xf]
        %v7757 = vld [vmem:[%s7724 + $0x80] sm:$0xf]
        %v7758 = vld [vmem:[%s7724 + $0x84] sm:$0xf]
        %v7759 = vld [vmem:[%s7724 + $0x88] sm:$0xf]
        %v7760 = vld [vmem:[%s7724 + $0x8c] sm:$0xf]
        %v7761 = vld [vmem:[#allocation5 + $0x2] sm:$0x1]
        %v7762 = vld [vmem:[#allocation5 + $0x3] sm:$0x1]
        %v7763 = vunpack.c.l.bf16 %v7725
        %v7764 = vunpack.c.l.bf16 %v7726
        %v7765 = vunpack.c.l.bf16 %v7727
        %v7766 = vunpack.c.l.bf16 %v7728
        %v7767 = vunpack.c.l.bf16 %v7729
        %v7768 = vunpack.c.l.bf16 %v7730
        %v7769 = vunpack.c.l.bf16 %v7731
        %v7770 = vunpack.c.l.bf16 %v7732
        %v7771 = vunpack.c.l.bf16 %v7733
        %v7772 = vunpack.c.l.bf16 %v7734
        %v7773 = vunpack.c.l.bf16 %v7735
        %v7774 = vunpack.c.l.bf16 %v7736
        %v7775 = vunpack.c.l.bf16 %v7737
        %v7776 = vunpack.c.l.bf16 %v7738
        %v7777 = vunpack.c.l.bf16 %v7739
        %v7778 = vunpack.c.l.bf16 %v7740
        %v7779 = vunpack.c.l.bf16 %v7741
        %v7780 = vunpack.c.l.bf16 %v7742
        %v7781 = vunpack.c.l.bf16 %v7743
        %v7782 = vunpack.c.l.bf16 %v7744
        %v7783 = vunpack.c.l.bf16 %v7745
        %v7784 = vunpack.c.l.bf16 %v7746
        %v7785 = vunpack.c.l.bf16 %v7747
        %v7786 = vunpack.c.l.bf16 %v7748
        %v7787 = vunpack.c.l.bf16 %v7749
        %v7788 = vunpack.c.l.bf16 %v7750
        %v7789 = vunpack.c.l.bf16 %v7751
        %v7790 = vunpack.c.l.bf16 %v7752
        %v7791 = vunpack.c.l.bf16 %v7753
        %v7792 = vunpack.c.l.bf16 %v7754
        %v7793 = vunpack.c.l.bf16 %v7755
        %v7794 = vunpack.c.l.bf16 %v7756
        %v7795 = vunpack.c.l.bf16 %v7757
        %v7796 = vunpack.c.l.bf16 %v7758
        %v7797 = vunpack.c.l.bf16 %v7759
        %v7798 = vunpack.c.l.bf16 %v7760
        %v7799 = vperm.slane %v7761, 0
        %v7800 = vmul.f32 %v7763, %v7799
        %v7801 = vmul.f32 %v7764, %v7799
        %v7802 = vmul.f32 %v7765, %v7799
        %v7803 = vmul.f32 %v7766, %v7799
        %v7804 = vmul.f32 %v7767, %v7799
        %v7805 = vmul.f32 %v7768, %v7799
        %v7806 = vmul.f32 %v7769, %v7799
        %v7807 = vmul.f32 %v7770, %v7799
        %v7808 = vmul.f32 %v7771, %v7799
        %v7809 = vmul.f32 %v7772, %v7799
        %v7810 = vmul.f32 %v7773, %v7799
        %v7811 = vmul.f32 %v7774, %v7799
        %v7812 = vmul.f32 %v7775, %v7799
        %v7813 = vmul.f32 %v7776, %v7799
        %v7814 = vmul.f32 %v7777, %v7799
        %v7815 = vmul.f32 %v7778, %v7799
        %v7816 = vmul.f32 %v7779, %v7799
        %v7817 = vmul.f32 %v7780, %v7799
        %v7818 = vmul.f32 %v7781, %v7799
        %v7819 = vmul.f32 %v7782, %v7799
        %v7820 = vmul.f32 %v7783, %v7799
        %v7821 = vmul.f32 %v7784, %v7799
        %v7822 = vmul.f32 %v7785, %v7799
        %v7823 = vmul.f32 %v7786, %v7799
        %v7824 = vmul.f32 %v7787, %v7799
        %v7825 = vmul.f32 %v7788, %v7799
        %v7826 = vmul.f32 %v7789, %v7799
        %v7827 = vmul.f32 %v7790, %v7799
        %v7828 = vmul.f32 %v7791, %v7799
        %v7829 = vmul.f32 %v7792, %v7799
        %v7830 = vmul.f32 %v7793, %v7799
        %v7831 = vmul.f32 %v7794, %v7799
        %v7832 = vmul.f32 %v7795, %v7799
        %v7833 = vmul.f32 %v7796, %v7799
        %v7834 = vmul.f32 %v7797, %v7799
        %v7835 = vmul.f32 %v7798, %v7799
        %v7836 = vperm.slane %v7762, 0
        %v7837 = vadd.f32 %v7800, %v7836
        %v7838 = vadd.f32 %v7801, %v7836
        %v7839 = vadd.f32 %v7802, %v7836
        %v7840 = vadd.f32 %v7803, %v7836
        %v7841 = vadd.f32 %v7804, %v7836
        %v7842 = vadd.f32 %v7805, %v7836
        %v7843 = vadd.f32 %v7806, %v7836
        %v7844 = vadd.f32 %v7807, %v7836
        %v7845 = vadd.f32 %v7808, %v7836
        %v7846 = vadd.f32 %v7809, %v7836
        %v7847 = vadd.f32 %v7810, %v7836
        %v7848 = vadd.f32 %v7811, %v7836
        %v7849 = vadd.f32 %v7812, %v7836
        %v7850 = vadd.f32 %v7813, %v7836
        %v7851 = vadd.f32 %v7814, %v7836
        %v7852 = vadd.f32 %v7815, %v7836
        %v7853 = vadd.f32 %v7816, %v7836
        %v7854 = vadd.f32 %v7817, %v7836
        %v7855 = vadd.f32 %v7818, %v7836
        %v7856 = vadd.f32 %v7819, %v7836
        %v7857 = vadd.f32 %v7820, %v7836
        %v7858 = vadd.f32 %v7821, %v7836
        %v7859 = vadd.f32 %v7822, %v7836
        %v7860 = vadd.f32 %v7823, %v7836
        %v7861 = vadd.f32 %v7824, %v7836
        %v7862 = vadd.f32 %v7825, %v7836
        %v7863 = vadd.f32 %v7826, %v7836
        %v7864 = vadd.f32 %v7827, %v7836
        %v7865 = vadd.f32 %v7828, %v7836
        %v7866 = vadd.f32 %v7829, %v7836
        %v7867 = vadd.f32 %v7830, %v7836
        %v7868 = vadd.f32 %v7831, %v7836
        %v7869 = vadd.f32 %v7832, %v7836
        %v7870 = vadd.f32 %v7833, %v7836
        %v7871 = vadd.f32 %v7834, %v7836
        %v7872 = vadd.f32 %v7835, %v7836
        %v7873 = vmax.f32 %v7837, 0.0
        %v7874 = vmax.f32 %v7838, 0.0
        %v7875 = vmax.f32 %v7839, 0.0
        %v7876 = vmax.f32 %v7840, 0.0
        %v7877 = vmax.f32 %v7841, 0.0
        %v7878 = vmax.f32 %v7842, 0.0
        %v7879 = vmax.f32 %v7843, 0.0
        %v7880 = vmax.f32 %v7844, 0.0
        %v7881 = vmax.f32 %v7845, 0.0
        %v7882 = vmax.f32 %v7846, 0.0
        %v7883 = vmax.f32 %v7847, 0.0
        %v7884 = vmax.f32 %v7848, 0.0
        %v7885 = vmax.f32 %v7849, 0.0
        %v7886 = vmax.f32 %v7850, 0.0
        %v7887 = vmax.f32 %v7851, 0.0
        %v7888 = vmax.f32 %v7852, 0.0
        %v7889 = vmax.f32 %v7853, 0.0
        %v7890 = vmax.f32 %v7854, 0.0
        %v7891 = vmax.f32 %v7855, 0.0
        %v7892 = vmax.f32 %v7856, 0.0
        %v7893 = vmax.f32 %v7857, 0.0
        %v7894 = vmax.f32 %v7858, 0.0
        %v7895 = vmax.f32 %v7859, 0.0
        %v7896 = vmax.f32 %v7860, 0.0
        %v7897 = vmax.f32 %v7861, 0.0
        %v7898 = vmax.f32 %v7862, 0.0
        %v7899 = vmax.f32 %v7863, 0.0
        %v7900 = vmax.f32 %v7864, 0.0
        %v7901 = vmax.f32 %v7865, 0.0
        %v7902 = vmax.f32 %v7866, 0.0
        %v7903 = vmax.f32 %v7867, 0.0
        %v7904 = vmax.f32 %v7868, 0.0
        %v7905 = vmax.f32 %v7869, 0.0
        %v7906 = vmax.f32 %v7870, 0.0
        %v7907 = vmax.f32 %v7871, 0.0
        %v7908 = vmax.f32 %v7872, 0.0
        %7909 = vst [vmem:[%s231] sm:$0xff] %v7873
        %7910 = vst [vmem:[%s231 + $0x8] sm:$0xff] %v7874
        %7911 = vst [vmem:[%s231 + $0x10] sm:$0xff] %v7875
        %7912 = vst [vmem:[%s231 + $0x18] sm:$0xff] %v7876
        %7913 = vst [vmem:[%s231 + $0x20] sm:$0xff] %v7877
        %7914 = vst [vmem:[%s231 + $0x28] sm:$0xff] %v7878
        %7915 = vst [vmem:[%s231 + $0x30] sm:$0xff] %v7879
        %7916 = vst [vmem:[%s231 + $0x38] sm:$0xff] %v7880
        %7917 = vst [vmem:[%s231 + $0x40] sm:$0xff] %v7881
        %7918 = vst [vmem:[%s231 + $0x48] sm:$0xff] %v7882
        %7919 = vst [vmem:[%s231 + $0x50] sm:$0xff] %v7883
        %7920 = vst [vmem:[%s231 + $0x58] sm:$0xff] %v7884
        %7921 = vst [vmem:[%s231 + $0x60] sm:$0xff] %v7885
        %7922 = vst [vmem:[%s231 + $0x68] sm:$0xff] %v7886
        %7923 = vst [vmem:[%s231 + $0x70] sm:$0xff] %v7887
        %7924 = vst [vmem:[%s231 + $0x78] sm:$0xff] %v7888
        %7925 = vst [vmem:[%s231 + $0x80] sm:$0xff] %v7889
        %7926 = vst [vmem:[%s231 + $0x88] sm:$0xff] %v7890
        %7927 = vst [vmem:[%s231 + $0x90] sm:$0xff] %v7891
        %7928 = vst [vmem:[%s231 + $0x98] sm:$0xff] %v7892
        %7929 = vst [vmem:[%s231 + $0xa0] sm:$0xff] %v7893
        %7930 = vst [vmem:[%s231 + $0xa8] sm:$0xff] %v7894
        %7931 = vst [vmem:[%s231 + $0xb0] sm:$0xff] %v7895
        %7932 = vst [vmem:[%s231 + $0xb8] sm:$0xff] %v7896
        %7933 = vst [vmem:[%s231 + $0xc0] sm:$0xff] %v7897
        %7934 = vst [vmem:[%s231 + $0xc8] sm:$0xff] %v7898
        %7935 = vst [vmem:[%s231 + $0xd0] sm:$0xff] %v7899
        %7936 = vst [vmem:[%s231 + $0xd8] sm:$0xff] %v7900
        %7937 = vst [vmem:[%s231 + $0xe0] sm:$0xff] %v7901
        %7938 = vst [vmem:[%s231 + $0xe8] sm:$0xff] %v7902
        %7939 = vst [vmem:[%s231 + $0xf0] sm:$0xff] %v7903
        %7940 = vst [vmem:[%s231 + $0xf8] sm:$0xff] %v7904
        %7941 = vst [vmem:[%s231 + $0x100] sm:$0xff] %v7905
        %7942 = vst [vmem:[%s231 + $0x108] sm:$0xff] %v7906
        %7943 = vst [vmem:[%s231 + $0x110] sm:$0xff] %v7907
        %7944 = vst [vmem:[%s231 + $0x118] sm:$0xff] %v7908
      $region64: #{inconv_forward.1} parent=35 // pred_fallthru
        _
      %p7945 = scmp.eq.s32.totalorder %s19, 2
      %s7946 = scalar_select %p7945, %s20, 0
      %p7947 = scmp.lt.s32.totalorder %s7946, 1
      %s7948 = scalar_select %p7947, %s7946, 1
      %s7949 = smul.addr %s7948, 36
      %s7950 = smul.addr %s7949, 8
      %s7951 = scalar_lea.vmem %s4, %s7950
      // Predicated region
      $region65: #{inconv_forward.1} parent=35 // pred_check
        %p7952 = pneg %p142
      $region66: #{inconv_forward.1} parent=35 // pred_check_branch
        %7954 = sbr.rel (%p7952) target = $region68
      $region67: #{inconv_forward.1} parent=35 // pred_region
        %p7955 = scmp.eq.s32.totalorder %s19, 2
        %s7956 = scalar_select %p7955, %s20, 0
      $region68: #{inconv_forward.1} parent=35 // pred_fallthru
        _
    $region36: #{inconv_forward.1} parent=5 // pred_fallthru
      _
    %p7957 = scmp.le.s32.totalorder 2, %s10
    // Predicated region
    $region69: #{inconv_forward.1} parent=5 // pred_check
      %p7958 = pneg %p7957
    $region70: #{inconv_forward.1} parent=5 // pred_check_branch
      %7960 = sbr.rel (%p7958) target = $region72
    $region71: #{inconv_forward.1} parent=5 // pred_region
      %s7961 = ssub.s32 %s10, 2
      // Predicated region
      $region73: #{inconv_forward.1} parent=71 // pred_check
        %p7962 = pneg %p148
      $region74: #{inconv_forward.1} parent=71 // pred_check_branch
        %7964 = sbr.rel (%p7962) target = $region76
      $region75: #{inconv_forward.1} parent=71 // pred_region
        %p7965 = scmp.eq.s32.totalorder %s21, 2
        %s7966 = scalar_select %p7965, %s22, 0
        %p7967 = scmp.lt.s32.totalorder %s7966, 1
        %s7968 = scalar_select %p7967, %s7966, 1
        %s7969 = smul.addr %s7968, 36
        %s7970 = smul.addr %s7969, 8
        %s7971 = scalar_lea.vmem %s4, %s7970
      $region76: #{inconv_forward.1} parent=71 // pred_fallthru
        _
    $region72: #{inconv_forward.1} parent=5 // pred_fallthru
      _
  $region6: #{inconv_forward.1} parent=0 // loop_footer
    %s14 = sadd.s32 1, %s10
  $region7: #{inconv_forward.1} parent=0 // loop_footer_branch
    %9 = sbr.rel target = $region3
  $region8: #{inconv_forward.1} parent=0 // loop_exit
    _

</llo_original>
